<compile_context>
chip_gen: v7x
topology: tpu7x:2x2x1
jax: 0.10.0
libtpu: 0.0.40
codegen_flags: <defaults>
</compile_context>

<pallas_src>
import functools

import jax
import jax.numpy as jnp
from jax import lax
from jax.experimental import pallas as pl
from jax.experimental.pallas import tpu as pltpu

BN_EPS = 1e-5
CPAD = 8  # channel rows padded to one full sublane tile


# ---------------------------------------------------------------------------
# Kernel
# ---------------------------------------------------------------------------
def _encoder_kernel(x_ref, w_ref, v_ref, m_ref, out_ref, *, class_num, N, H, W):
    """Single-program kernel.

    x_ref   : (CPAD, NS)        f32  input activation, channels zero-padded to CPAD
    w_ref   : (33, CPAD, CPAD)  f32  11 matrices per block: [conv1, conv2 tap0..tap8, conv3]
    v_ref   : (18, CPAD, 1)     f32  6 vectors per block:   [g1, be1, g2, be2, g3, be3]
                                     (conv biases omitted: cancelled by BN mean subtraction)
    m_ref   : (8, NS)           f32  3x3 zero-padding validity masks, one row per
                                     non-centre tap (taps in (i,j) order, centre skipped)
    out_ref : (CPAD, NS)        f32  rows [0, class_num) = spatial softmax (detect map)
                                     rows [class_num, ..) = other features
    """
    S = H * W
    NS = N * S
    x = x_ref[...]

    # tap lane offsets for the 3x3 conv, k = i*3 + j -> d = (i-1)*W + (j-1)
    offsets = [(i - 1) * W + (j - 1) for i in range(3) for j in range(3)]

    # Precision pinned explicitly (single lowest-pass MXU lowering with f32 accumulate);
    # validated against the f32 reference at rtol/atol = 1e-3.
    dot = functools.partial(jnp.dot, preferred_element_type=jnp.float32,
                            precision=lax.Precision.DEFAULT)

    def bn_relu(y, gamma, beta):
        # BatchNorm2d training-mode statistics over (N, H, W) == lane axis (two-pass var),
        # fused with ReLU.  Upstream conv biases are dropped: they cancel exactly here.
        mean = jnp.mean(y, axis=-1, keepdims=True)
        d = y - mean
        var = jnp.mean(d * d, axis=-1, keepdims=True)
        return jnp.maximum(d * (lax.rsqrt(var + BN_EPS) * gamma) + beta, 0.0)

    for b in range(3):
        g1, be1 = v_ref[6 * b + 0], v_ref[6 * b + 1]
        g2, be2 = v_ref[6 * b + 2], v_ref[6 * b + 3]
        g3, be3 = v_ref[6 * b + 4], v_ref[6 * b + 5]

        # conv1 (1x1) + BN + ReLU
        out = bn_relu(dot(w_ref[11 * b + 0], x), g1, be1)

        # conv2 (3x3, padding=1): 9 per-tap (8,8)@(8,NS) MXU matmuls accumulated in f32.
        # Masks are (1, NS) rows broadcast along the sublane axis; no stacked tensor and
        # no tap stores are materialised.
        acc = dot(w_ref[11 * b + 1 + 4], out)              # centre tap: no roll, no mask
        r = 0
        for k, d in enumerate(offsets):
            if k == 4:
                continue
            tap = pltpu.roll(out, shift=(-d) % NS, axis=1) * m_ref[pl.ds(r, 1), :]
            acc = acc + dot(w_ref[11 * b + 1 + k], tap)
            r += 1
        out = bn_relu(acc, g2, be2)

        # residual: out + conv3(out), then BN + ReLU
        out = bn_relu(out + dot(w_ref[11 * b + 10], out), g3, be3)
        x = out

    # Spatial softmax per (channel, image): processed per image segment (aligned lane slices,
    # S is a lane multiple for the sizes used here) and stored lane-dense straight into
    # out_ref; channel select via a tiny (CPAD, 1) row mask (no full-tile iota/where).
    is_detect = lax.broadcasted_iota(jnp.int32, (CPAD, 1), 0) < class_num
    for n in range(N):
        seg = x[:, n * S:(n + 1) * S]                        # (CPAD, S)
        mx = jnp.max(seg, axis=-1, keepdims=True)
        e = jnp.exp(seg - mx)
        ssum = jnp.sum(e, axis=-1, keepdims=True)
        soft = e * pl.reciprocal(ssum, approx=False)         # exact (review accuracy note)
        out_ref[:, pl.ds(n * S, S)] = jnp.where(is_detect, soft, seg)


# ---------------------------------------------------------------------------
# Wrapper-side packing (runs in XLA, outside the kernel hot path)
# ---------------------------------------------------------------------------
def _conv3x3_masks(N, H, W):
    """(8, N*S) zero-padding validity masks, one row per non-centre tap (centre needs none)."""
    S = H * W
    idx = jnp.arange(N * S, dtype=jnp.int32)
    h = (idx // W) % H
    w = idx % W
    rows = []
    for i in range(3):
        for j in range(3):
            if i == 1 and j == 1:
                continue
            valid = ((h + (i - 1) >= 0) & (h + (i - 1) < H) &
                     (w + (j - 1) >= 0) & (w + (j - 1) < W))
            rows.append(valid)
    return jnp.stack(rows, 0).astype(jnp.float32)            # (8, N*S)


def _pack_params(params, class_num, other_dim):
    """Pack conv/BN parameters into one (33, CPAD, CPAD) weight slab and one (18, CPAD, 1)
    gamma/beta slab.  Conv biases are intentionally dropped (cancelled by training-mode BN)."""
    P = class_num + other_dim
    assert P <= CPAD
    w_mats, v_cols = [], []
    for (w1, _b1, g1, be1, w2t, _b2, g2, be2, w3, _b3, g3, be3) in params:
        cin = w1.shape[1]
        assert cin <= CPAD
        w_mats.append(jnp.zeros((CPAD, CPAD), jnp.float32).at[:P, :cin].set(w1))
        for k in range(9):                                   # w2t: (9, Cout, Cin), k = i*3+j
            w_mats.append(jnp.zeros((CPAD, CPAD), jnp.float32).at[:P, :P].set(w2t[k]))
        w_mats.append(jnp.zeros((CPAD, CPAD), jnp.float32).at[:P, :P].set(w3))
        for vec in (g1, be1, g2, be2, g3, be3):
            v_cols.append(jnp.zeros((CPAD, 1), jnp.float32).at[:P, :].set(vec.reshape(P, 1)))
    return jnp.stack(w_mats, 0), jnp.stack(v_cols, 0)        # (33, CPAD, CPAD), (18, CPAD, 1)


def encoder_forward(x_nchw, params, *, class_num, other_dim, domain=0):
    N, Cin, H, W = x_nchw.shape
    S = H * W
    NS = N * S

    # NCHW -> (CPAD, N*S) with zero-padded channel rows
    x_cm = jnp.transpose(x_nchw, (1, 0, 2, 3)).reshape(Cin, NS)
    x_cm = jnp.pad(x_cm, ((0, CPAD - Cin), (0, 0)))

    w_slab, v_slab = _pack_params(params, class_num, other_dim)
    masks = _conv3x3_masks(N, H, W)

    kernel = functools.partial(_encoder_kernel, class_num=class_num, N=N, H=H, W=W)
    vmem = pl.BlockSpec(memory_space=pltpu.MemorySpace.VMEM)

    flops = 3 * 11 * 2 * CPAD * CPAD * NS                    # 33 small matmuls over NS lanes
    bytes_accessed = 4 * (x_cm.size + w_slab.size + v_slab.size + masks.size + CPAD * NS)
    vmem_limit = int(min(48 * 2**20, max(16 * 2**20, 512 * NS + (1 << 20))))

    out_cm = pl.pallas_call(
        kernel,
        out_shape=jax.ShapeDtypeStruct((CPAD, NS), jnp.float32),
        in_specs=[vmem, vmem, vmem, vmem],
        out_specs=vmem,
        compiler_params=pltpu.CompilerParams(vmem_limit_bytes=vmem_limit),
        cost_estimate=pl.CostEstimate(flops=flops, transcendentals=CPAD * NS,
                                      bytes_accessed=bytes_accessed),
    )(x_cm, w_slab, v_slab, masks)

    detect = jnp.transpose(out_cm[:class_num].reshape(class_num, N, H, W), (1, 0, 2, 3))
    other = jnp.transpose(
        out_cm[class_num:class_num + other_dim].reshape(other_dim, N, H, W), (1, 0, 2, 3))
    domain_map = jnp.full((N, 1, H, W), float(domain), jnp.float32)
    other = jnp.concatenate([other, domain_map], axis=1)
    return detect, other


# ---------------------------------------------------------------------------
# Deterministic parameter initialization (same shapes as the PyTorch module)
# ---------------------------------------------------------------------------
def init_params(key, class_num, other_dim, input_dim):
    planes = class_num + other_dim
    params = []
    in_ch = input_dim
    for _ in range(3):
        key, *ks = jax.random.split(key, 7)
        k1 = 1.0 / jnp.sqrt(float(in_ch))
        w1 = jax.random.uniform(ks[0], (planes, in_ch), jnp.float32, -k1, k1)
        b1 = jax.random.uniform(ks[1], (planes, 1), jnp.float32, -k1, k1)
        k2 = 1.0 / jnp.sqrt(float(planes * 9))
        w2 = jax.random.uniform(ks[2], (planes, planes, 3, 3), jnp.float32, -k2, k2)
        b2 = jax.random.uniform(ks[3], (planes, 1), jnp.float32, -k2, k2)
        k3 = 1.0 / jnp.sqrt(float(planes))
        w3 = jax.random.uniform(ks[4], (planes, planes), jnp.float32, -k3, k3)
        b3 = jax.random.uniform(ks[5], (planes, 1), jnp.float32, -k3, k3)
        # BatchNorm params (PyTorch init: weight=1, bias=0)
        g1 = jnp.ones((planes, 1), jnp.float32); be1 = jnp.zeros((planes, 1), jnp.float32)
        g2 = jnp.ones((planes, 1), jnp.float32); be2 = jnp.zeros((planes, 1), jnp.float32)
        g3 = jnp.ones((planes, 1), jnp.float32); be3 = jnp.zeros((planes, 1), jnp.float32)
        # conv2 weight (Cout, Cin, 3, 3) -> (9, Cout, Cin), k = i*3 + j
        w2_t = jnp.transpose(w2, (2, 3, 0, 1)).reshape(9, planes, planes)
        params.append((w1, b1, g1, be1, w2_t, b2, g2, be2, w3, b3, g3, be3))
        in_ch = planes
    return params


# ---------------------------------------------------------------------------
# Pure-JAX reference (for correctness check only; keeps the conv biases)
# ---------------------------------------------------------------------------
def _ref_bn(x, g, b):
    mean = x.mean(axis=(0, 2, 3), keepdims=True)
    var = ((x - mean) ** 2).mean(axis=(0, 2, 3), keepdims=True)
    return (x - mean) / jnp.sqrt(var + BN_EPS) * g.reshape(1, -1, 1, 1) + b.reshape(1, -1, 1, 1)


def _ref_conv(x, w, b, padding):
    y = lax.conv_general_dilated(x, w, (1, 1), padding,
                                 dimension_numbers=('NCHW', 'OIHW', 'NCHW'))
    return y + b.reshape(1, -1, 1, 1)


def _ref_bottleneck(x, p):
    w1, b1, g1, be1, w2t, b2, g2, be2, w3, b3, g3, be3 = p
    cout = w1.shape[0]
    w1_ = w1.reshape(cout, -1, 1, 1)
    w2_ = jnp.transpose(w2t.reshape(3, 3, cout, cout), (2, 3, 0, 1))
    w3_ = w3.reshape(cout, cout, 1, 1)
    out = jax.nn.relu(_ref_bn(_ref_conv(x, w1_, b1, 'VALID'), g1, be1))
    out = jax.nn.relu(_ref_bn(_ref_conv(out, w2_, b2, [(1, 1), (1, 1)]), g2, be2))
    out = out + _ref_conv(out, w3_, b3, 'VALID')
    out = jax.nn.relu(_ref_bn(out, g3, be3))
    return out


def _ref_encoder(x, params, class_num, domain=0):
    for p in params:
        x = _ref_bottleneck(x, p)
    det = x[:, :class_num]
    other = x[:, class_num:]
    N, C, H, W = det.shape
    det = jax.nn.softmax(det.reshape(N, C, H * W), axis=2).reshape(N, C, H, W)
    dom = jnp.full((N, 1, H, W), float(domain), x.dtype)
    other = jnp.concatenate([other, dom], axis=1)
    return det, other


if __name__ == "__main__":
    key = jax.random.PRNGKey(0)
    class_num, other_dim, input_dim = 4, 3, 3
    N, H, W = 2, 16, 16

    kx, kp = jax.random.split(key)
    x = jax.random.normal(kx, (N, input_dim, H, W), jnp.float32)
    params = init_params(kp, class_num, other_dim, input_dim)

    detect, other = encoder_forward(x, params, class_num=class_num,
                                    other_dim=other_dim, domain=0)
    detect = jax.block_until_ready(detect)
    other = jax.block_until_ready(other)

    ref_d, ref_o = _ref_encoder(x, params, class_num, domain=0)

    assert detect.shape == (N, class_num, H, W)
    assert other.shape == (N, other_dim + 1, H, W)
    assert jnp.allclose(detect, ref_d, rtol=1e-3, atol=1e-3)
    assert jnp.allclose(other, ref_o, rtol=1e-3, atol=1e-3)

    print("KERNEL_OK")
</pallas_src>

<mosaic_0001>
module attributes {stable_mosaic.version = 11 : i64} {
  func.func @_encoder_kernel(%arg0: memref<8x512xf32, #tpu.memory_space<vmem>>, %arg1: memref<33x8x8xf32, #tpu.memory_space<vmem>>, %arg2: memref<18x8x1xf32, #tpu.memory_space<vmem>>, %arg3: memref<8x512xf32, #tpu.memory_space<vmem>>, %arg4: memref<8x512xf32, #tpu.memory_space<vmem>>) attributes {dimension_semantics = [], scalar_prefetch = 0 : i64, scratch_operands = 0 : i64, tpu.core_type = #tpu.core_type<tc>} {
    %c0 = arith.constant 0 : index
    %c0_0 = arith.constant 0 : index
    %0 = vector.load %arg0[%c0, %c0_0] : memref<8x512xf32, #tpu.memory_space<vmem>>, vector<8x512xf32>
    %c0_1 = arith.constant 0 : index
    %c0_2 = arith.constant 0 : index
    %c0_3 = arith.constant 0 : index
    %1 = vector.load %arg2[%c0_1, %c0_2, %c0_3] : memref<18x8x1xf32, #tpu.memory_space<vmem>>, vector<1x8x1xf32>
    %2 = vector.shape_cast %1 : vector<1x8x1xf32> to vector<8x1xf32>
    %c1 = arith.constant 1 : index
    %c0_4 = arith.constant 0 : index
    %c0_5 = arith.constant 0 : index
    %3 = vector.load %arg2[%c1, %c0_4, %c0_5] : memref<18x8x1xf32, #tpu.memory_space<vmem>>, vector<1x8x1xf32>
    %4 = vector.shape_cast %3 : vector<1x8x1xf32> to vector<8x1xf32>
    %c2 = arith.constant 2 : index
    %c0_6 = arith.constant 0 : index
    %c0_7 = arith.constant 0 : index
    %5 = vector.load %arg2[%c2, %c0_6, %c0_7] : memref<18x8x1xf32, #tpu.memory_space<vmem>>, vector<1x8x1xf32>
    %6 = vector.shape_cast %5 : vector<1x8x1xf32> to vector<8x1xf32>
    %c3 = arith.constant 3 : index
    %c0_8 = arith.constant 0 : index
    %c0_9 = arith.constant 0 : index
    %7 = vector.load %arg2[%c3, %c0_8, %c0_9] : memref<18x8x1xf32, #tpu.memory_space<vmem>>, vector<1x8x1xf32>
    %8 = vector.shape_cast %7 : vector<1x8x1xf32> to vector<8x1xf32>
    %c4 = arith.constant 4 : index
    %c0_10 = arith.constant 0 : index
    %c0_11 = arith.constant 0 : index
    %9 = vector.load %arg2[%c4, %c0_10, %c0_11] : memref<18x8x1xf32, #tpu.memory_space<vmem>>, vector<1x8x1xf32>
    %10 = vector.shape_cast %9 : vector<1x8x1xf32> to vector<8x1xf32>
    %c5 = arith.constant 5 : index
    %c0_12 = arith.constant 0 : index
    %c0_13 = arith.constant 0 : index
    %11 = vector.load %arg2[%c5, %c0_12, %c0_13] : memref<18x8x1xf32, #tpu.memory_space<vmem>>, vector<1x8x1xf32>
    %12 = vector.shape_cast %11 : vector<1x8x1xf32> to vector<8x1xf32>
    %c0_14 = arith.constant 0 : index
    %c0_15 = arith.constant 0 : index
    %c0_16 = arith.constant 0 : index
    %13 = vector.load %arg1[%c0_14, %c0_15, %c0_16] : memref<33x8x8xf32, #tpu.memory_space<vmem>>, vector<1x8x8xf32>
    %14 = vector.shape_cast %13 : vector<1x8x8xf32> to vector<8x8xf32>
    %cst = arith.constant dense<0.000000e+00> : vector<8x512xf32>
    %15 = tpu.matmul %14, %0, %cst {dimension_numbers = #tpu.dot_dimension_numbers<[1], [0], [0], [1], [0, 0, 1, 1], [], []>} : vector<8x8xf32>, vector<8x512xf32>, vector<8x512xf32> -> vector<8x512xf32>
    %cst_17 = arith.constant dense<0.000000e+00> : vector<8xf32>
    %16 = vector.multi_reduction <add>, %15, %cst_17 [1] : vector<8x512xf32> to vector<8xf32>
    %17 = vector.shape_cast %16 : vector<8xf32> to vector<8x1xf32>
    %cst_18 = arith.constant 5.120000e+02 : f32
    %18 = vector.broadcast %cst_18 : f32 to vector<8x1xf32>
    %19 = arith.divf %17, %18 : vector<8x1xf32>
    %20 = vector.broadcast %19 : vector<8x1xf32> to vector<8x512xf32>
    %21 = arith.subf %15, %20 : vector<8x512xf32>
    %22 = arith.mulf %21, %21 : vector<8x512xf32>
    %cst_19 = arith.constant dense<0.000000e+00> : vector<8xf32>
    %23 = vector.multi_reduction <add>, %22, %cst_19 [1] : vector<8x512xf32> to vector<8xf32>
    %24 = vector.shape_cast %23 : vector<8xf32> to vector<8x1xf32>
    %cst_20 = arith.constant 5.120000e+02 : f32
    %25 = vector.broadcast %cst_20 : f32 to vector<8x1xf32>
    %26 = arith.divf %24, %25 : vector<8x1xf32>
    %cst_21 = arith.constant 9.99999974E-6 : f32
    %27 = vector.broadcast %cst_21 : f32 to vector<8x1xf32>
    %28 = arith.addf %26, %27 : vector<8x1xf32>
    %29 = math.rsqrt %28 : vector<8x1xf32>
    %30 = arith.mulf %29, %2 : vector<8x1xf32>
    %31 = vector.broadcast %30 : vector<8x1xf32> to vector<8x512xf32>
    %32 = arith.mulf %21, %31 : vector<8x512xf32>
    %33 = vector.broadcast %4 : vector<8x1xf32> to vector<8x512xf32>
    %34 = arith.addf %32, %33 : vector<8x512xf32>
    %cst_22 = arith.constant 0.000000e+00 : f32
    %35 = vector.broadcast %cst_22 : f32 to vector<8x512xf32>
    %36 = arith.maximumf %34, %35 : vector<8x512xf32>
    %c5_23 = arith.constant 5 : index
    %c0_24 = arith.constant 0 : index
    %c0_25 = arith.constant 0 : index
    %37 = vector.load %arg1[%c5_23, %c0_24, %c0_25] : memref<33x8x8xf32, #tpu.memory_space<vmem>>, vector<1x8x8xf32>
    %38 = vector.shape_cast %37 : vector<1x8x8xf32> to vector<8x8xf32>
    %cst_26 = arith.constant dense<0.000000e+00> : vector<8x512xf32>
    %39 = tpu.matmul %38, %36, %cst_26 {dimension_numbers = #tpu.dot_dimension_numbers<[1], [0], [0], [1], [0, 0, 1, 1], [], []>} : vector<8x8xf32>, vector<8x512xf32>, vector<8x512xf32> -> vector<8x512xf32>
    %c17_i32 = arith.constant 17 : i32
    %40 = tpu.dynamic_rotate %36 by %c17_i32 dim 1 : vector<8x512xf32>, i32 -> vector<8x512xf32>
    %c0_27 = arith.constant 0 : index
    %c0_28 = arith.constant 0 : index
    %41 = vector.load %arg3[%c0_27, %c0_28] : memref<8x512xf32, #tpu.memory_space<vmem>>, vector<1x512xf32>
    %42 = vector.broadcast %41 : vector<1x512xf32> to vector<8x512xf32>
    %43 = arith.mulf %40, %42 : vector<8x512xf32>
    %c1_29 = arith.constant 1 : index
    %c0_30 = arith.constant 0 : index
    %c0_31 = arith.constant 0 : index
    %44 = vector.load %arg1[%c1_29, %c0_30, %c0_31] : memref<33x8x8xf32, #tpu.memory_space<vmem>>, vector<1x8x8xf32>
    %45 = vector.shape_cast %44 : vector<1x8x8xf32> to vector<8x8xf32>
    %cst_32 = arith.constant dense<0.000000e+00> : vector<8x512xf32>
    %46 = tpu.matmul %45, %43, %cst_32 {dimension_numbers = #tpu.dot_dimension_numbers<[1], [0], [0], [1], [0, 0, 1, 1], [], []>} : vector<8x8xf32>, vector<8x512xf32>, vector<8x512xf32> -> vector<8x512xf32>
    %47 = arith.addf %39, %46 : vector<8x512xf32>
    %c16_i32 = arith.constant 16 : i32
    %48 = tpu.dynamic_rotate %36 by %c16_i32 dim 1 : vector<8x512xf32>, i32 -> vector<8x512xf32>
    %c1_33 = arith.constant 1 : index
    %c0_34 = arith.constant 0 : index
    %49 = vector.load %arg3[%c1_33, %c0_34] : memref<8x512xf32, #tpu.memory_space<vmem>>, vector<1x512xf32>
    %50 = vector.broadcast %49 : vector<1x512xf32> to vector<8x512xf32>
    %51 = arith.mulf %48, %50 : vector<8x512xf32>
    %c2_35 = arith.constant 2 : index
    %c0_36 = arith.constant 0 : index
    %c0_37 = arith.constant 0 : index
    %52 = vector.load %arg1[%c2_35, %c0_36, %c0_37] : memref<33x8x8xf32, #tpu.memory_space<vmem>>, vector<1x8x8xf32>
    %53 = vector.shape_cast %52 : vector<1x8x8xf32> to vector<8x8xf32>
    %cst_38 = arith.constant dense<0.000000e+00> : vector<8x512xf32>
    %54 = tpu.matmul %53, %51, %cst_38 {dimension_numbers = #tpu.dot_dimension_numbers<[1], [0], [0], [1], [0, 0, 1, 1], [], []>} : vector<8x8xf32>, vector<8x512xf32>, vector<8x512xf32> -> vector<8x512xf32>
    %55 = arith.addf %47, %54 : vector<8x512xf32>
    %c15_i32 = arith.constant 15 : i32
    %56 = tpu.dynamic_rotate %36 by %c15_i32 dim 1 : vector<8x512xf32>, i32 -> vector<8x512xf32>
    %c2_39 = arith.constant 2 : index
    %c0_40 = arith.constant 0 : index
    %57 = vector.load %arg3[%c2_39, %c0_40] : memref<8x512xf32, #tpu.memory_space<vmem>>, vector<1x512xf32>
    %58 = vector.broadcast %57 : vector<1x512xf32> to vector<8x512xf32>
    %59 = arith.mulf %56, %58 : vector<8x512xf32>
    %c3_41 = arith.constant 3 : index
    %c0_42 = arith.constant 0 : index
    %c0_43 = arith.constant 0 : index
    %60 = vector.load %arg1[%c3_41, %c0_42, %c0_43] : memref<33x8x8xf32, #tpu.memory_space<vmem>>, vector<1x8x8xf32>
    %61 = vector.shape_cast %60 : vector<1x8x8xf32> to vector<8x8xf32>
    %cst_44 = arith.constant dense<0.000000e+00> : vector<8x512xf32>
    %62 = tpu.matmul %61, %59, %cst_44 {dimension_numbers = #tpu.dot_dimension_numbers<[1], [0], [0], [1], [0, 0, 1, 1], [], []>} : vector<8x8xf32>, vector<8x512xf32>, vector<8x512xf32> -> vector<8x512xf32>
    %63 = arith.addf %55, %62 : vector<8x512xf32>
    %c1_i32 = arith.constant 1 : i32
    %64 = tpu.dynamic_rotate %36 by %c1_i32 dim 1 : vector<8x512xf32>, i32 -> vector<8x512xf32>
    %c3_45 = arith.constant 3 : index
    %c0_46 = arith.constant 0 : index
    %65 = vector.load %arg3[%c3_45, %c0_46] : memref<8x512xf32, #tpu.memory_space<vmem>>, vector<1x512xf32>
    %66 = vector.broadcast %65 : vector<1x512xf32> to vector<8x512xf32>
    %67 = arith.mulf %64, %66 : vector<8x512xf32>
    %c4_47 = arith.constant 4 : index
    %c0_48 = arith.constant 0 : index
    %c0_49 = arith.constant 0 : index
    %68 = vector.load %arg1[%c4_47, %c0_48, %c0_49] : memref<33x8x8xf32, #tpu.memory_space<vmem>>, vector<1x8x8xf32>
    %69 = vector.shape_cast %68 : vector<1x8x8xf32> to vector<8x8xf32>
    %cst_50 = arith.constant dense<0.000000e+00> : vector<8x512xf32>
    %70 = tpu.matmul %69, %67, %cst_50 {dimension_numbers = #tpu.dot_dimension_numbers<[1], [0], [0], [1], [0, 0, 1, 1], [], []>} : vector<8x8xf32>, vector<8x512xf32>, vector<8x512xf32> -> vector<8x512xf32>
    %71 = arith.addf %63, %70 : vector<8x512xf32>
    %c511_i32 = arith.constant 511 : i32
    %72 = tpu.dynamic_rotate %36 by %c511_i32 dim 1 : vector<8x512xf32>, i32 -> vector<8x512xf32>
    %c4_51 = arith.constant 4 : index
    %c0_52 = arith.constant 0 : index
    %73 = vector.load %arg3[%c4_51, %c0_52] : memref<8x512xf32, #tpu.memory_space<vmem>>, vector<1x512xf32>
    %74 = vector.broadcast %73 : vector<1x512xf32> to vector<8x512xf32>
    %75 = arith.mulf %72, %74 : vector<8x512xf32>
    %c6 = arith.constant 6 : index
    %c0_53 = arith.constant 0 : index
    %c0_54 = arith.constant 0 : index
    %76 = vector.load %arg1[%c6, %c0_53, %c0_54] : memref<33x8x8xf32, #tpu.memory_space<vmem>>, vector<1x8x8xf32>
    %77 = vector.shape_cast %76 : vector<1x8x8xf32> to vector<8x8xf32>
    %cst_55 = arith.constant dense<0.000000e+00> : vector<8x512xf32>
    %78 = tpu.matmul %77, %75, %cst_55 {dimension_numbers = #tpu.dot_dimension_numbers<[1], [0], [0], [1], [0, 0, 1, 1], [], []>} : vector<8x8xf32>, vector<8x512xf32>, vector<8x512xf32> -> vector<8x512xf32>
    %79 = arith.addf %71, %78 : vector<8x512xf32>
    %c497_i32 = arith.constant 497 : i32
    %80 = tpu.dynamic_rotate %36 by %c497_i32 dim 1 : vector<8x512xf32>, i32 -> vector<8x512xf32>
    %c5_56 = arith.constant 5 : index
    %c0_57 = arith.constant 0 : index
    %81 = vector.load %arg3[%c5_56, %c0_57] : memref<8x512xf32, #tpu.memory_space<vmem>>, vector<1x512xf32>
    %82 = vector.broadcast %81 : vector<1x512xf32> to vector<8x512xf32>
    %83 = arith.mulf %80, %82 : vector<8x512xf32>
    %c7 = arith.constant 7 : index
    %c0_58 = arith.constant 0 : index
    %c0_59 = arith.constant 0 : index
    %84 = vector.load %arg1[%c7, %c0_58, %c0_59] : memref<33x8x8xf32, #tpu.memory_space<vmem>>, vector<1x8x8xf32>
    %85 = vector.shape_cast %84 : vector<1x8x8xf32> to vector<8x8xf32>
    %cst_60 = arith.constant dense<0.000000e+00> : vector<8x512xf32>
    %86 = tpu.matmul %85, %83, %cst_60 {dimension_numbers = #tpu.dot_dimension_numbers<[1], [0], [0], [1], [0, 0, 1, 1], [], []>} : vector<8x8xf32>, vector<8x512xf32>, vector<8x512xf32> -> vector<8x512xf32>
    %87 = arith.addf %79, %86 : vector<8x512xf32>
    %c496_i32 = arith.constant 496 : i32
    %88 = tpu.dynamic_rotate %36 by %c496_i32 dim 1 : vector<8x512xf32>, i32 -> vector<8x512xf32>
    %c6_61 = arith.constant 6 : index
    %c0_62 = arith.constant 0 : index
    %89 = vector.load %arg3[%c6_61, %c0_62] : memref<8x512xf32, #tpu.memory_space<vmem>>, vector<1x512xf32>
    %90 = vector.broadcast %89 : vector<1x512xf32> to vector<8x512xf32>
    %91 = arith.mulf %88, %90 : vector<8x512xf32>
    %c8 = arith.constant 8 : index
    %c0_63 = arith.constant 0 : index
    %c0_64 = arith.constant 0 : index
    %92 = vector.load %arg1[%c8, %c0_63, %c0_64] : memref<33x8x8xf32, #tpu.memory_space<vmem>>, vector<1x8x8xf32>
    %93 = vector.shape_cast %92 : vector<1x8x8xf32> to vector<8x8xf32>
    %cst_65 = arith.constant dense<0.000000e+00> : vector<8x512xf32>
    %94 = tpu.matmul %93, %91, %cst_65 {dimension_numbers = #tpu.dot_dimension_numbers<[1], [0], [0], [1], [0, 0, 1, 1], [], []>} : vector<8x8xf32>, vector<8x512xf32>, vector<8x512xf32> -> vector<8x512xf32>
    %95 = arith.addf %87, %94 : vector<8x512xf32>
    %c495_i32 = arith.constant 495 : i32
    %96 = tpu.dynamic_rotate %36 by %c495_i32 dim 1 : vector<8x512xf32>, i32 -> vector<8x512xf32>
    %c7_66 = arith.constant 7 : index
    %c0_67 = arith.constant 0 : index
    %97 = vector.load %arg3[%c7_66, %c0_67] : memref<8x512xf32, #tpu.memory_space<vmem>>, vector<1x512xf32>
    %98 = vector.broadcast %97 : vector<1x512xf32> to vector<8x512xf32>
    %99 = arith.mulf %96, %98 : vector<8x512xf32>
    %c9 = arith.constant 9 : index
    %c0_68 = arith.constant 0 : index
    %c0_69 = arith.constant 0 : index
    %100 = vector.load %arg1[%c9, %c0_68, %c0_69] : memref<33x8x8xf32, #tpu.memory_space<vmem>>, vector<1x8x8xf32>
    %101 = vector.shape_cast %100 : vector<1x8x8xf32> to vector<8x8xf32>
    %cst_70 = arith.constant dense<0.000000e+00> : vector<8x512xf32>
    %102 = tpu.matmul %101, %99, %cst_70 {dimension_numbers = #tpu.dot_dimension_numbers<[1], [0], [0], [1], [0, 0, 1, 1], [], []>} : vector<8x8xf32>, vector<8x512xf32>, vector<8x512xf32> -> vector<8x512xf32>
    %103 = arith.addf %95, %102 : vector<8x512xf32>
    %cst_71 = arith.constant dense<0.000000e+00> : vector<8xf32>
    %104 = vector.multi_reduction <add>, %103, %cst_71 [1] : vector<8x512xf32> to vector<8xf32>
    %105 = vector.shape_cast %104 : vector<8xf32> to vector<8x1xf32>
    %cst_72 = arith.constant 5.120000e+02 : f32
    %106 = vector.broadcast %cst_72 : f32 to vector<8x1xf32>
    %107 = arith.divf %105, %106 : vector<8x1xf32>
    %108 = vector.broadcast %107 : vector<8x1xf32> to vector<8x512xf32>
    %109 = arith.subf %103, %108 : vector<8x512xf32>
    %110 = arith.mulf %109, %109 : vector<8x512xf32>
    %cst_73 = arith.constant dense<0.000000e+00> : vector<8xf32>
    %111 = vector.multi_reduction <add>, %110, %cst_73 [1] : vector<8x512xf32> to vector<8xf32>
    %112 = vector.shape_cast %111 : vector<8xf32> to vector<8x1xf32>
    %cst_74 = arith.constant 5.120000e+02 : f32
    %113 = vector.broadcast %cst_74 : f32 to vector<8x1xf32>
    %114 = arith.divf %112, %113 : vector<8x1xf32>
    %cst_75 = arith.constant 9.99999974E-6 : f32
    %115 = vector.broadcast %cst_75 : f32 to vector<8x1xf32>
    %116 = arith.addf %114, %115 : vector<8x1xf32>
    %117 = math.rsqrt %116 : vector<8x1xf32>
    %118 = arith.mulf %117, %6 : vector<8x1xf32>
    %119 = vector.broadcast %118 : vector<8x1xf32> to vector<8x512xf32>
    %120 = arith.mulf %109, %119 : vector<8x512xf32>
    %121 = vector.broadcast %8 : vector<8x1xf32> to vector<8x512xf32>
    %122 = arith.addf %120, %121 : vector<8x512xf32>
    %cst_76 = arith.constant 0.000000e+00 : f32
    %123 = vector.broadcast %cst_76 : f32 to vector<8x512xf32>
    %124 = arith.maximumf %122, %123 : vector<8x512xf32>
    %c10 = arith.constant 10 : index
    %c0_77 = arith.constant 0 : index
    %c0_78 = arith.constant 0 : index
    %125 = vector.load %arg1[%c10, %c0_77, %c0_78] : memref<33x8x8xf32, #tpu.memory_space<vmem>>, vector<1x8x8xf32>
    %126 = vector.shape_cast %125 : vector<1x8x8xf32> to vector<8x8xf32>
    %cst_79 = arith.constant dense<0.000000e+00> : vector<8x512xf32>
    %127 = tpu.matmul %126, %124, %cst_79 {dimension_numbers = #tpu.dot_dimension_numbers<[1], [0], [0], [1], [0, 0, 1, 1], [], []>} : vector<8x8xf32>, vector<8x512xf32>, vector<8x512xf32> -> vector<8x512xf32>
    %128 = arith.addf %124, %127 : vector<8x512xf32>
    %cst_80 = arith.constant dense<0.000000e+00> : vector<8xf32>
    %129 = vector.multi_reduction <add>, %128, %cst_80 [1] : vector<8x512xf32> to vector<8xf32>
    %130 = vector.shape_cast %129 : vector<8xf32> to vector<8x1xf32>
    %cst_81 = arith.constant 5.120000e+02 : f32
    %131 = vector.broadcast %cst_81 : f32 to vector<8x1xf32>
    %132 = arith.divf %130, %131 : vector<8x1xf32>
    %133 = vector.broadcast %132 : vector<8x1xf32> to vector<8x512xf32>
    %134 = arith.subf %128, %133 : vector<8x512xf32>
    %135 = arith.mulf %134, %134 : vector<8x512xf32>
    %cst_82 = arith.constant dense<0.000000e+00> : vector<8xf32>
    %136 = vector.multi_reduction <add>, %135, %cst_82 [1] : vector<8x512xf32> to vector<8xf32>
    %137 = vector.shape_cast %136 : vector<8xf32> to vector<8x1xf32>
    %cst_83 = arith.constant 5.120000e+02 : f32
    %138 = vector.broadcast %cst_83 : f32 to vector<8x1xf32>
    %139 = arith.divf %137, %138 : vector<8x1xf32>
    %cst_84 = arith.constant 9.99999974E-6 : f32
    %140 = vector.broadcast %cst_84 : f32 to vector<8x1xf32>
    %141 = arith.addf %139, %140 : vector<8x1xf32>
    %142 = math.rsqrt %141 : vector<8x1xf32>
    %143 = arith.mulf %142, %10 : vector<8x1xf32>
    %144 = vector.broadcast %143 : vector<8x1xf32> to vector<8x512xf32>
    %145 = arith.mulf %134, %144 : vector<8x512xf32>
    %146 = vector.broadcast %12 : vector<8x1xf32> to vector<8x512xf32>
    %147 = arith.addf %145, %146 : vector<8x512xf32>
    %cst_85 = arith.constant 0.000000e+00 : f32
    %148 = vector.broadcast %cst_85 : f32 to vector<8x512xf32>
    %149 = arith.maximumf %147, %148 : vector<8x512xf32>
    %c6_86 = arith.constant 6 : index
    %c0_87 = arith.constant 0 : index
    %c0_88 = arith.constant 0 : index
    %150 = vector.load %arg2[%c6_86, %c0_87, %c0_88] : memref<18x8x1xf32, #tpu.memory_space<vmem>>, vector<1x8x1xf32>
    %151 = vector.shape_cast %150 : vector<1x8x1xf32> to vector<8x1xf32>
    %c7_89 = arith.constant 7 : index
    %c0_90 = arith.constant 0 : index
    %c0_91 = arith.constant 0 : index
    %152 = vector.load %arg2[%c7_89, %c0_90, %c0_91] : memref<18x8x1xf32, #tpu.memory_space<vmem>>, vector<1x8x1xf32>
    %153 = vector.shape_cast %152 : vector<1x8x1xf32> to vector<8x1xf32>
    %c8_92 = arith.constant 8 : index
    %c0_93 = arith.constant 0 : index
    %c0_94 = arith.constant 0 : index
    %154 = vector.load %arg2[%c8_92, %c0_93, %c0_94] : memref<18x8x1xf32, #tpu.memory_space<vmem>>, vector<1x8x1xf32>
    %155 = vector.shape_cast %154 : vector<1x8x1xf32> to vector<8x1xf32>
    %c9_95 = arith.constant 9 : index
    %c0_96 = arith.constant 0 : index
    %c0_97 = arith.constant 0 : index
    %156 = vector.load %arg2[%c9_95, %c0_96, %c0_97] : memref<18x8x1xf32, #tpu.memory_space<vmem>>, vector<1x8x1xf32>
    %157 = vector.shape_cast %156 : vector<1x8x1xf32> to vector<8x1xf32>
    %c10_98 = arith.constant 10 : index
    %c0_99 = arith.constant 0 : index
    %c0_100 = arith.constant 0 : index
    %158 = vector.load %arg2[%c10_98, %c0_99, %c0_100] : memref<18x8x1xf32, #tpu.memory_space<vmem>>, vector<1x8x1xf32>
    %159 = vector.shape_cast %158 : vector<1x8x1xf32> to vector<8x1xf32>
    %c11 = arith.constant 11 : index
    %c0_101 = arith.constant 0 : index
    %c0_102 = arith.constant 0 : index
    %160 = vector.load %arg2[%c11, %c0_101, %c0_102] : memref<18x8x1xf32, #tpu.memory_space<vmem>>, vector<1x8x1xf32>
    %161 = vector.shape_cast %160 : vector<1x8x1xf32> to vector<8x1xf32>
    %c11_103 = arith.constant 11 : index
    %c0_104 = arith.constant 0 : index
    %c0_105 = arith.constant 0 : index
    %162 = vector.load %arg1[%c11_103, %c0_104, %c0_105] : memref<33x8x8xf32, #tpu.memory_space<vmem>>, vector<1x8x8xf32>
    %163 = vector.shape_cast %162 : vector<1x8x8xf32> to vector<8x8xf32>
    %cst_106 = arith.constant dense<0.000000e+00> : vector<8x512xf32>
    %164 = tpu.matmul %163, %149, %cst_106 {dimension_numbers = #tpu.dot_dimension_numbers<[1], [0], [0], [1], [0, 0, 1, 1], [], []>} : vector<8x8xf32>, vector<8x512xf32>, vector<8x512xf32> -> vector<8x512xf32>
    %cst_107 = arith.constant dense<0.000000e+00> : vector<8xf32>
    %165 = vector.multi_reduction <add>, %164, %cst_107 [1] : vector<8x512xf32> to vector<8xf32>
    %166 = vector.shape_cast %165 : vector<8xf32> to vector<8x1xf32>
    %cst_108 = arith.constant 5.120000e+02 : f32
    %167 = vector.broadcast %cst_108 : f32 to vector<8x1xf32>
    %168 = arith.divf %166, %167 : vector<8x1xf32>
    %169 = vector.broadcast %168 : vector<8x1xf32> to vector<8x512xf32>
    %170 = arith.subf %164, %169 : vector<8x512xf32>
    %171 = arith.mulf %170, %170 : vector<8x512xf32>
    %cst_109 = arith.constant dense<0.000000e+00> : vector<8xf32>
    %172 = vector.multi_reduction <add>, %171, %cst_109 [1] : vector<8x512xf32> to vector<8xf32>
    %173 = vector.shape_cast %172 : vector<8xf32> to vector<8x1xf32>
    %cst_110 = arith.constant 5.120000e+02 : f32
    %174 = vector.broadcast %cst_110 : f32 to vector<8x1xf32>
    %175 = arith.divf %173, %174 : vector<8x1xf32>
    %cst_111 = arith.constant 9.99999974E-6 : f32
    %176 = vector.broadcast %cst_111 : f32 to vector<8x1xf32>
    %177 = arith.addf %175, %176 : vector<8x1xf32>
    %178 = math.rsqrt %177 : vector<8x1xf32>
    %179 = arith.mulf %178, %151 : vector<8x1xf32>
    %180 = vector.broadcast %179 : vector<8x1xf32> to vector<8x512xf32>
    %181 = arith.mulf %170, %180 : vector<8x512xf32>
    %182 = vector.broadcast %153 : vector<8x1xf32> to vector<8x512xf32>
    %183 = arith.addf %181, %182 : vector<8x512xf32>
    %cst_112 = arith.constant 0.000000e+00 : f32
    %184 = vector.broadcast %cst_112 : f32 to vector<8x512xf32>
    %185 = arith.maximumf %183, %184 : vector<8x512xf32>
    %c16 = arith.constant 16 : index
    %c0_113 = arith.constant 0 : index
    %c0_114 = arith.constant 0 : index
    %186 = vector.load %arg1[%c16, %c0_113, %c0_114] : memref<33x8x8xf32, #tpu.memory_space<vmem>>, vector<1x8x8xf32>
    %187 = vector.shape_cast %186 : vector<1x8x8xf32> to vector<8x8xf32>
    %cst_115 = arith.constant dense<0.000000e+00> : vector<8x512xf32>
    %188 = tpu.matmul %187, %185, %cst_115 {dimension_numbers = #tpu.dot_dimension_numbers<[1], [0], [0], [1], [0, 0, 1, 1], [], []>} : vector<8x8xf32>, vector<8x512xf32>, vector<8x512xf32> -> vector<8x512xf32>
    %c17_i32_116 = arith.constant 17 : i32
    %189 = tpu.dynamic_rotate %185 by %c17_i32_116 dim 1 : vector<8x512xf32>, i32 -> vector<8x512xf32>
    %c0_117 = arith.constant 0 : index
    %c0_118 = arith.constant 0 : index
    %190 = vector.load %arg3[%c0_117, %c0_118] : memref<8x512xf32, #tpu.memory_space<vmem>>, vector<1x512xf32>
    %191 = vector.broadcast %190 : vector<1x512xf32> to vector<8x512xf32>
    %192 = arith.mulf %189, %191 : vector<8x512xf32>
    %c12 = arith.constant 12 : index
    %c0_119 = arith.constant 0 : index
    %c0_120 = arith.constant 0 : index
    %193 = vector.load %arg1[%c12, %c0_119, %c0_120] : memref<33x8x8xf32, #tpu.memory_space<vmem>>, vector<1x8x8xf32>
    %194 = vector.shape_cast %193 : vector<1x8x8xf32> to vector<8x8xf32>
    %cst_121 = arith.constant dense<0.000000e+00> : vector<8x512xf32>
    %195 = tpu.matmul %194, %192, %cst_121 {dimension_numbers = #tpu.dot_dimension_numbers<[1], [0], [0], [1], [0, 0, 1, 1], [], []>} : vector<8x8xf32>, vector<8x512xf32>, vector<8x512xf32> -> vector<8x512xf32>
    %196 = arith.addf %188, %195 : vector<8x512xf32>
    %c16_i32_122 = arith.constant 16 : i32
    %197 = tpu.dynamic_rotate %185 by %c16_i32_122 dim 1 : vector<8x512xf32>, i32 -> vector<8x512xf32>
    %c1_123 = arith.constant 1 : index
    %c0_124 = arith.constant 0 : index
    %198 = vector.load %arg3[%c1_123, %c0_124] : memref<8x512xf32, #tpu.memory_space<vmem>>, vector<1x512xf32>
    %199 = vector.broadcast %198 : vector<1x512xf32> to vector<8x512xf32>
    %200 = arith.mulf %197, %199 : vector<8x512xf32>
    %c13 = arith.constant 13 : index
    %c0_125 = arith.constant 0 : index
    %c0_126 = arith.constant 0 : index
    %201 = vector.load %arg1[%c13, %c0_125, %c0_126] : memref<33x8x8xf32, #tpu.memory_space<vmem>>, vector<1x8x8xf32>
    %202 = vector.shape_cast %201 : vector<1x8x8xf32> to vector<8x8xf32>
    %cst_127 = arith.constant dense<0.000000e+00> : vector<8x512xf32>
    %203 = tpu.matmul %202, %200, %cst_127 {dimension_numbers = #tpu.dot_dimension_numbers<[1], [0], [0], [1], [0, 0, 1, 1], [], []>} : vector<8x8xf32>, vector<8x512xf32>, vector<8x512xf32> -> vector<8x512xf32>
    %204 = arith.addf %196, %203 : vector<8x512xf32>
    %c15_i32_128 = arith.constant 15 : i32
    %205 = tpu.dynamic_rotate %185 by %c15_i32_128 dim 1 : vector<8x512xf32>, i32 -> vector<8x512xf32>
    %c2_129 = arith.constant 2 : index
    %c0_130 = arith.constant 0 : index
    %206 = vector.load %arg3[%c2_129, %c0_130] : memref<8x512xf32, #tpu.memory_space<vmem>>, vector<1x512xf32>
    %207 = vector.broadcast %206 : vector<1x512xf32> to vector<8x512xf32>
    %208 = arith.mulf %205, %207 : vector<8x512xf32>
    %c14 = arith.constant 14 : index
    %c0_131 = arith.constant 0 : index
    %c0_132 = arith.constant 0 : index
    %209 = vector.load %arg1[%c14, %c0_131, %c0_132] : memref<33x8x8xf32, #tpu.memory_space<vmem>>, vector<1x8x8xf32>
    %210 = vector.shape_cast %209 : vector<1x8x8xf32> to vector<8x8xf32>
    %cst_133 = arith.constant dense<0.000000e+00> : vector<8x512xf32>
    %211 = tpu.matmul %210, %208, %cst_133 {dimension_numbers = #tpu.dot_dimension_numbers<[1], [0], [0], [1], [0, 0, 1, 1], [], []>} : vector<8x8xf32>, vector<8x512xf32>, vector<8x512xf32> -> vector<8x512xf32>
    %212 = arith.addf %204, %211 : vector<8x512xf32>
    %c1_i32_134 = arith.constant 1 : i32
    %213 = tpu.dynamic_rotate %185 by %c1_i32_134 dim 1 : vector<8x512xf32>, i32 -> vector<8x512xf32>
    %c3_135 = arith.constant 3 : index
    %c0_136 = arith.constant 0 : index
    %214 = vector.load %arg3[%c3_135, %c0_136] : memref<8x512xf32, #tpu.memory_space<vmem>>, vector<1x512xf32>
    %215 = vector.broadcast %214 : vector<1x512xf32> to vector<8x512xf32>
    %216 = arith.mulf %213, %215 : vector<8x512xf32>
    %c15 = arith.constant 15 : index
    %c0_137 = arith.constant 0 : index
    %c0_138 = arith.constant 0 : index
    %217 = vector.load %arg1[%c15, %c0_137, %c0_138] : memref<33x8x8xf32, #tpu.memory_space<vmem>>, vector<1x8x8xf32>
    %218 = vector.shape_cast %217 : vector<1x8x8xf32> to vector<8x8xf32>
    %cst_139 = arith.constant dense<0.000000e+00> : vector<8x512xf32>
    %219 = tpu.matmul %218, %216, %cst_139 {dimension_numbers = #tpu.dot_dimension_numbers<[1], [0], [0], [1], [0, 0, 1, 1], [], []>} : vector<8x8xf32>, vector<8x512xf32>, vector<8x512xf32> -> vector<8x512xf32>
    %220 = arith.addf %212, %219 : vector<8x512xf32>
    %c511_i32_140 = arith.constant 511 : i32
    %221 = tpu.dynamic_rotate %185 by %c511_i32_140 dim 1 : vector<8x512xf32>, i32 -> vector<8x512xf32>
    %c4_141 = arith.constant 4 : index
    %c0_142 = arith.constant 0 : index
    %222 = vector.load %arg3[%c4_141, %c0_142] : memref<8x512xf32, #tpu.memory_space<vmem>>, vector<1x512xf32>
    %223 = vector.broadcast %222 : vector<1x512xf32> to vector<8x512xf32>
    %224 = arith.mulf %221, %223 : vector<8x512xf32>
    %c17 = arith.constant 17 : index
    %c0_143 = arith.constant 0 : index
    %c0_144 = arith.constant 0 : index
    %225 = vector.load %arg1[%c17, %c0_143, %c0_144] : memref<33x8x8xf32, #tpu.memory_space<vmem>>, vector<1x8x8xf32>
    %226 = vector.shape_cast %225 : vector<1x8x8xf32> to vector<8x8xf32>
    %cst_145 = arith.constant dense<0.000000e+00> : vector<8x512xf32>
    %227 = tpu.matmul %226, %224, %cst_145 {dimension_numbers = #tpu.dot_dimension_numbers<[1], [0], [0], [1], [0, 0, 1, 1], [], []>} : vector<8x8xf32>, vector<8x512xf32>, vector<8x512xf32> -> vector<8x512xf32>
    %228 = arith.addf %220, %227 : vector<8x512xf32>
    %c497_i32_146 = arith.constant 497 : i32
    %229 = tpu.dynamic_rotate %185 by %c497_i32_146 dim 1 : vector<8x512xf32>, i32 -> vector<8x512xf32>
    %c5_147 = arith.constant 5 : index
    %c0_148 = arith.constant 0 : index
    %230 = vector.load %arg3[%c5_147, %c0_148] : memref<8x512xf32, #tpu.memory_space<vmem>>, vector<1x512xf32>
    %231 = vector.broadcast %230 : vector<1x512xf32> to vector<8x512xf32>
    %232 = arith.mulf %229, %231 : vector<8x512xf32>
    %c18 = arith.constant 18 : index
    %c0_149 = arith.constant 0 : index
    %c0_150 = arith.constant 0 : index
    %233 = vector.load %arg1[%c18, %c0_149, %c0_150] : memref<33x8x8xf32, #tpu.memory_space<vmem>>, vector<1x8x8xf32>
    %234 = vector.shape_cast %233 : vector<1x8x8xf32> to vector<8x8xf32>
    %cst_151 = arith.constant dense<0.000000e+00> : vector<8x512xf32>
    %235 = tpu.matmul %234, %232, %cst_151 {dimension_numbers = #tpu.dot_dimension_numbers<[1], [0], [0], [1], [0, 0, 1, 1], [], []>} : vector<8x8xf32>, vector<8x512xf32>, vector<8x512xf32> -> vector<8x512xf32>
    %236 = arith.addf %228, %235 : vector<8x512xf32>
    %c496_i32_152 = arith.constant 496 : i32
    %237 = tpu.dynamic_rotate %185 by %c496_i32_152 dim 1 : vector<8x512xf32>, i32 -> vector<8x512xf32>
    %c6_153 = arith.constant 6 : index
    %c0_154 = arith.constant 0 : index
    %238 = vector.load %arg3[%c6_153, %c0_154] : memref<8x512xf32, #tpu.memory_space<vmem>>, vector<1x512xf32>
    %239 = vector.broadcast %238 : vector<1x512xf32> to vector<8x512xf32>
    %240 = arith.mulf %237, %239 : vector<8x512xf32>
    %c19 = arith.constant 19 : index
    %c0_155 = arith.constant 0 : index
    %c0_156 = arith.constant 0 : index
    %241 = vector.load %arg1[%c19, %c0_155, %c0_156] : memref<33x8x8xf32, #tpu.memory_space<vmem>>, vector<1x8x8xf32>
    %242 = vector.shape_cast %241 : vector<1x8x8xf32> to vector<8x8xf32>
    %cst_157 = arith.constant dense<0.000000e+00> : vector<8x512xf32>
    %243 = tpu.matmul %242, %240, %cst_157 {dimension_numbers = #tpu.dot_dimension_numbers<[1], [0], [0], [1], [0, 0, 1, 1], [], []>} : vector<8x8xf32>, vector<8x512xf32>, vector<8x512xf32> -> vector<8x512xf32>
    %244 = arith.addf %236, %243 : vector<8x512xf32>
    %c495_i32_158 = arith.constant 495 : i32
    %245 = tpu.dynamic_rotate %185 by %c495_i32_158 dim 1 : vector<8x512xf32>, i32 -> vector<8x512xf32>
    %c7_159 = arith.constant 7 : index
    %c0_160 = arith.constant 0 : index
    %246 = vector.load %arg3[%c7_159, %c0_160] : memref<8x512xf32, #tpu.memory_space<vmem>>, vector<1x512xf32>
    %247 = vector.broadcast %246 : vector<1x512xf32> to vector<8x512xf32>
    %248 = arith.mulf %245, %247 : vector<8x512xf32>
    %c20 = arith.constant 20 : index
    %c0_161 = arith.constant 0 : index
    %c0_162 = arith.constant 0 : index
    %249 = vector.load %arg1[%c20, %c0_161, %c0_162] : memref<33x8x8xf32, #tpu.memory_space<vmem>>, vector<1x8x8xf32>
    %250 = vector.shape_cast %249 : vector<1x8x8xf32> to vector<8x8xf32>
    %cst_163 = arith.constant dense<0.000000e+00> : vector<8x512xf32>
    %251 = tpu.matmul %250, %248, %cst_163 {dimension_numbers = #tpu.dot_dimension_numbers<[1], [0], [0], [1], [0, 0, 1, 1], [], []>} : vector<8x8xf32>, vector<8x512xf32>, vector<8x512xf32> -> vector<8x512xf32>
    %252 = arith.addf %244, %251 : vector<8x512xf32>
    %cst_164 = arith.constant dense<0.000000e+00> : vector<8xf32>
    %253 = vector.multi_reduction <add>, %252, %cst_164 [1] : vector<8x512xf32> to vector<8xf32>
    %254 = vector.shape_cast %253 : vector<8xf32> to vector<8x1xf32>
    %cst_165 = arith.constant 5.120000e+02 : f32
    %255 = vector.broadcast %cst_165 : f32 to vector<8x1xf32>
    %256 = arith.divf %254, %255 : vector<8x1xf32>
    %257 = vector.broadcast %256 : vector<8x1xf32> to vector<8x512xf32>
    %258 = arith.subf %252, %257 : vector<8x512xf32>
    %259 = arith.mulf %258, %258 : vector<8x512xf32>
    %cst_166 = arith.constant dense<0.000000e+00> : vector<8xf32>
    %260 = vector.multi_reduction <add>, %259, %cst_166 [1] : vector<8x512xf32> to vector<8xf32>
    %261 = vector.shape_cast %260 : vector<8xf32> to vector<8x1xf32>
    %cst_167 = arith.constant 5.120000e+02 : f32
    %262 = vector.broadcast %cst_167 : f32 to vector<8x1xf32>
    %263 = arith.divf %261, %262 : vector<8x1xf32>
    %cst_168 = arith.constant 9.99999974E-6 : f32
    %264 = vector.broadcast %cst_168 : f32 to vector<8x1xf32>
    %265 = arith.addf %263, %264 : vector<8x1xf32>
    %266 = math.rsqrt %265 : vector<8x1xf32>
    %267 = arith.mulf %266, %155 : vector<8x1xf32>
    %268 = vector.broadcast %267 : vector<8x1xf32> to vector<8x512xf32>
    %269 = arith.mulf %258, %268 : vector<8x512xf32>
    %270 = vector.broadcast %157 : vector<8x1xf32> to vector<8x512xf32>
    %271 = arith.addf %269, %270 : vector<8x512xf32>
    %cst_169 = arith.constant 0.000000e+00 : f32
    %272 = vector.broadcast %cst_169 : f32 to vector<8x512xf32>
    %273 = arith.maximumf %271, %272 : vector<8x512xf32>
    %c21 = arith.constant 21 : index
    %c0_170 = arith.constant 0 : index
    %c0_171 = arith.constant 0 : index
    %274 = vector.load %arg1[%c21, %c0_170, %c0_171] : memref<33x8x8xf32, #tpu.memory_space<vmem>>, vector<1x8x8xf32>
    %275 = vector.shape_cast %274 : vector<1x8x8xf32> to vector<8x8xf32>
    %cst_172 = arith.constant dense<0.000000e+00> : vector<8x512xf32>
    %276 = tpu.matmul %275, %273, %cst_172 {dimension_numbers = #tpu.dot_dimension_numbers<[1], [0], [0], [1], [0, 0, 1, 1], [], []>} : vector<8x8xf32>, vector<8x512xf32>, vector<8x512xf32> -> vector<8x512xf32>
    %277 = arith.addf %273, %276 : vector<8x512xf32>
    %cst_173 = arith.constant dense<0.000000e+00> : vector<8xf32>
    %278 = vector.multi_reduction <add>, %277, %cst_173 [1] : vector<8x512xf32> to vector<8xf32>
    %279 = vector.shape_cast %278 : vector<8xf32> to vector<8x1xf32>
    %cst_174 = arith.constant 5.120000e+02 : f32
    %280 = vector.broadcast %cst_174 : f32 to vector<8x1xf32>
    %281 = arith.divf %279, %280 : vector<8x1xf32>
    %282 = vector.broadcast %281 : vector<8x1xf32> to vector<8x512xf32>
    %283 = arith.subf %277, %282 : vector<8x512xf32>
    %284 = arith.mulf %283, %283 : vector<8x512xf32>
    %cst_175 = arith.constant dense<0.000000e+00> : vector<8xf32>
    %285 = vector.multi_reduction <add>, %284, %cst_175 [1] : vector<8x512xf32> to vector<8xf32>
    %286 = vector.shape_cast %285 : vector<8xf32> to vector<8x1xf32>
    %cst_176 = arith.constant 5.120000e+02 : f32
    %287 = vector.broadcast %cst_176 : f32 to vector<8x1xf32>
    %288 = arith.divf %286, %287 : vector<8x1xf32>
    %cst_177 = arith.constant 9.99999974E-6 : f32
    %289 = vector.broadcast %cst_177 : f32 to vector<8x1xf32>
    %290 = arith.addf %288, %289 : vector<8x1xf32>
    %291 = math.rsqrt %290 : vector<8x1xf32>
    %292 = arith.mulf %291, %159 : vector<8x1xf32>
    %293 = vector.broadcast %292 : vector<8x1xf32> to vector<8x512xf32>
    %294 = arith.mulf %283, %293 : vector<8x512xf32>
    %295 = vector.broadcast %161 : vector<8x1xf32> to vector<8x512xf32>
    %296 = arith.addf %294, %295 : vector<8x512xf32>
    %cst_178 = arith.constant 0.000000e+00 : f32
    %297 = vector.broadcast %cst_178 : f32 to vector<8x512xf32>
    %298 = arith.maximumf %296, %297 : vector<8x512xf32>
    %c12_179 = arith.constant 12 : index
    %c0_180 = arith.constant 0 : index
    %c0_181 = arith.constant 0 : index
    %299 = vector.load %arg2[%c12_179, %c0_180, %c0_181] : memref<18x8x1xf32, #tpu.memory_space<vmem>>, vector<1x8x1xf32>
    %300 = vector.shape_cast %299 : vector<1x8x1xf32> to vector<8x1xf32>
    %c13_182 = arith.constant 13 : index
    %c0_183 = arith.constant 0 : index
    %c0_184 = arith.constant 0 : index
    %301 = vector.load %arg2[%c13_182, %c0_183, %c0_184] : memref<18x8x1xf32, #tpu.memory_space<vmem>>, vector<1x8x1xf32>
    %302 = vector.shape_cast %301 : vector<1x8x1xf32> to vector<8x1xf32>
    %c14_185 = arith.constant 14 : index
    %c0_186 = arith.constant 0 : index
    %c0_187 = arith.constant 0 : index
    %303 = vector.load %arg2[%c14_185, %c0_186, %c0_187] : memref<18x8x1xf32, #tpu.memory_space<vmem>>, vector<1x8x1xf32>
    %304 = vector.shape_cast %303 : vector<1x8x1xf32> to vector<8x1xf32>
    %c15_188 = arith.constant 15 : index
    %c0_189 = arith.constant 0 : index
    %c0_190 = arith.constant 0 : index
    %305 = vector.load %arg2[%c15_188, %c0_189, %c0_190] : memref<18x8x1xf32, #tpu.memory_space<vmem>>, vector<1x8x1xf32>
    %306 = vector.shape_cast %305 : vector<1x8x1xf32> to vector<8x1xf32>
    %c16_191 = arith.constant 16 : index
    %c0_192 = arith.constant 0 : index
    %c0_193 = arith.constant 0 : index
    %307 = vector.load %arg2[%c16_191, %c0_192, %c0_193] : memref<18x8x1xf32, #tpu.memory_space<vmem>>, vector<1x8x1xf32>
    %308 = vector.shape_cast %307 : vector<1x8x1xf32> to vector<8x1xf32>
    %c17_194 = arith.constant 17 : index
    %c0_195 = arith.constant 0 : index
    %c0_196 = arith.constant 0 : index
    %309 = vector.load %arg2[%c17_194, %c0_195, %c0_196] : memref<18x8x1xf32, #tpu.memory_space<vmem>>, vector<1x8x1xf32>
    %310 = vector.shape_cast %309 : vector<1x8x1xf32> to vector<8x1xf32>
    %c22 = arith.constant 22 : index
    %c0_197 = arith.constant 0 : index
    %c0_198 = arith.constant 0 : index
    %311 = vector.load %arg1[%c22, %c0_197, %c0_198] : memref<33x8x8xf32, #tpu.memory_space<vmem>>, vector<1x8x8xf32>
    %312 = vector.shape_cast %311 : vector<1x8x8xf32> to vector<8x8xf32>
    %cst_199 = arith.constant dense<0.000000e+00> : vector<8x512xf32>
    %313 = tpu.matmul %312, %298, %cst_199 {dimension_numbers = #tpu.dot_dimension_numbers<[1], [0], [0], [1], [0, 0, 1, 1], [], []>} : vector<8x8xf32>, vector<8x512xf32>, vector<8x512xf32> -> vector<8x512xf32>
    %cst_200 = arith.constant dense<0.000000e+00> : vector<8xf32>
    %314 = vector.multi_reduction <add>, %313, %cst_200 [1] : vector<8x512xf32> to vector<8xf32>
    %315 = vector.shape_cast %314 : vector<8xf32> to vector<8x1xf32>
    %cst_201 = arith.constant 5.120000e+02 : f32
    %316 = vector.broadcast %cst_201 : f32 to vector<8x1xf32>
    %317 = arith.divf %315, %316 : vector<8x1xf32>
    %318 = vector.broadcast %317 : vector<8x1xf32> to vector<8x512xf32>
    %319 = arith.subf %313, %318 : vector<8x512xf32>
    %320 = arith.mulf %319, %319 : vector<8x512xf32>
    %cst_202 = arith.constant dense<0.000000e+00> : vector<8xf32>
    %321 = vector.multi_reduction <add>, %320, %cst_202 [1] : vector<8x512xf32> to vector<8xf32>
    %322 = vector.shape_cast %321 : vector<8xf32> to vector<8x1xf32>
    %cst_203 = arith.constant 5.120000e+02 : f32
    %323 = vector.broadcast %cst_203 : f32 to vector<8x1xf32>
    %324 = arith.divf %322, %323 : vector<8x1xf32>
    %cst_204 = arith.constant 9.99999974E-6 : f32
    %325 = vector.broadcast %cst_204 : f32 to vector<8x1xf32>
    %326 = arith.addf %324, %325 : vector<8x1xf32>
    %327 = math.rsqrt %326 : vector<8x1xf32>
    %328 = arith.mulf %327, %300 : vector<8x1xf32>
    %329 = vector.broadcast %328 : vector<8x1xf32> to vector<8x512xf32>
    %330 = arith.mulf %319, %329 : vector<8x512xf32>
    %331 = vector.broadcast %302 : vector<8x1xf32> to vector<8x512xf32>
    %332 = arith.addf %330, %331 : vector<8x512xf32>
    %cst_205 = arith.constant 0.000000e+00 : f32
    %333 = vector.broadcast %cst_205 : f32 to vector<8x512xf32>
    %334 = arith.maximumf %332, %333 : vector<8x512xf32>
    %c27 = arith.constant 27 : index
    %c0_206 = arith.constant 0 : index
    %c0_207 = arith.constant 0 : index
    %335 = vector.load %arg1[%c27, %c0_206, %c0_207] : memref<33x8x8xf32, #tpu.memory_space<vmem>>, vector<1x8x8xf32>
    %336 = vector.shape_cast %335 : vector<1x8x8xf32> to vector<8x8xf32>
    %cst_208 = arith.constant dense<0.000000e+00> : vector<8x512xf32>
    %337 = tpu.matmul %336, %334, %cst_208 {dimension_numbers = #tpu.dot_dimension_numbers<[1], [0], [0], [1], [0, 0, 1, 1], [], []>} : vector<8x8xf32>, vector<8x512xf32>, vector<8x512xf32> -> vector<8x512xf32>
    %c17_i32_209 = arith.constant 17 : i32
    %338 = tpu.dynamic_rotate %334 by %c17_i32_209 dim 1 : vector<8x512xf32>, i32 -> vector<8x512xf32>
    %c0_210 = arith.constant 0 : index
    %c0_211 = arith.constant 0 : index
    %339 = vector.load %arg3[%c0_210, %c0_211] : memref<8x512xf32, #tpu.memory_space<vmem>>, vector<1x512xf32>
    %340 = vector.broadcast %339 : vector<1x512xf32> to vector<8x512xf32>
    %341 = arith.mulf %338, %340 : vector<8x512xf32>
    %c23 = arith.constant 23 : index
    %c0_212 = arith.constant 0 : index
    %c0_213 = arith.constant 0 : index
    %342 = vector.load %arg1[%c23, %c0_212, %c0_213] : memref<33x8x8xf32, #tpu.memory_space<vmem>>, vector<1x8x8xf32>
    %343 = vector.shape_cast %342 : vector<1x8x8xf32> to vector<8x8xf32>
    %cst_214 = arith.constant dense<0.000000e+00> : vector<8x512xf32>
    %344 = tpu.matmul %343, %341, %cst_214 {dimension_numbers = #tpu.dot_dimension_numbers<[1], [0], [0], [1], [0, 0, 1, 1], [], []>} : vector<8x8xf32>, vector<8x512xf32>, vector<8x512xf32> -> vector<8x512xf32>
    %345 = arith.addf %337, %344 : vector<8x512xf32>
    %c16_i32_215 = arith.constant 16 : i32
    %346 = tpu.dynamic_rotate %334 by %c16_i32_215 dim 1 : vector<8x512xf32>, i32 -> vector<8x512xf32>
    %c1_216 = arith.constant 1 : index
    %c0_217 = arith.constant 0 : index
    %347 = vector.load %arg3[%c1_216, %c0_217] : memref<8x512xf32, #tpu.memory_space<vmem>>, vector<1x512xf32>
    %348 = vector.broadcast %347 : vector<1x512xf32> to vector<8x512xf32>
    %349 = arith.mulf %346, %348 : vector<8x512xf32>
    %c24 = arith.constant 24 : index
    %c0_218 = arith.constant 0 : index
    %c0_219 = arith.constant 0 : index
    %350 = vector.load %arg1[%c24, %c0_218, %c0_219] : memref<33x8x8xf32, #tpu.memory_space<vmem>>, vector<1x8x8xf32>
    %351 = vector.shape_cast %350 : vector<1x8x8xf32> to vector<8x8xf32>
    %cst_220 = arith.constant dense<0.000000e+00> : vector<8x512xf32>
    %352 = tpu.matmul %351, %349, %cst_220 {dimension_numbers = #tpu.dot_dimension_numbers<[1], [0], [0], [1], [0, 0, 1, 1], [], []>} : vector<8x8xf32>, vector<8x512xf32>, vector<8x512xf32> -> vector<8x512xf32>
    %353 = arith.addf %345, %352 : vector<8x512xf32>
    %c15_i32_221 = arith.constant 15 : i32
    %354 = tpu.dynamic_rotate %334 by %c15_i32_221 dim 1 : vector<8x512xf32>, i32 -> vector<8x512xf32>
    %c2_222 = arith.constant 2 : index
    %c0_223 = arith.constant 0 : index
    %355 = vector.load %arg3[%c2_222, %c0_223] : memref<8x512xf32, #tpu.memory_space<vmem>>, vector<1x512xf32>
    %356 = vector.broadcast %355 : vector<1x512xf32> to vector<8x512xf32>
    %357 = arith.mulf %354, %356 : vector<8x512xf32>
    %c25 = arith.constant 25 : index
    %c0_224 = arith.constant 0 : index
    %c0_225 = arith.constant 0 : index
    %358 = vector.load %arg1[%c25, %c0_224, %c0_225] : memref<33x8x8xf32, #tpu.memory_space<vmem>>, vector<1x8x8xf32>
    %359 = vector.shape_cast %358 : vector<1x8x8xf32> to vector<8x8xf32>
    %cst_226 = arith.constant dense<0.000000e+00> : vector<8x512xf32>
    %360 = tpu.matmul %359, %357, %cst_226 {dimension_numbers = #tpu.dot_dimension_numbers<[1], [0], [0], [1], [0, 0, 1, 1], [], []>} : vector<8x8xf32>, vector<8x512xf32>, vector<8x512xf32> -> vector<8x512xf32>
    %361 = arith.addf %353, %360 : vector<8x512xf32>
    %c1_i32_227 = arith.constant 1 : i32
    %362 = tpu.dynamic_rotate %334 by %c1_i32_227 dim 1 : vector<8x512xf32>, i32 -> vector<8x512xf32>
    %c3_228 = arith.constant 3 : index
    %c0_229 = arith.constant 0 : index
    %363 = vector.load %arg3[%c3_228, %c0_229] : memref<8x512xf32, #tpu.memory_space<vmem>>, vector<1x512xf32>
    %364 = vector.broadcast %363 : vector<1x512xf32> to vector<8x512xf32>
    %365 = arith.mulf %362, %364 : vector<8x512xf32>
    %c26 = arith.constant 26 : index
    %c0_230 = arith.constant 0 : index
    %c0_231 = arith.constant 0 : index
    %366 = vector.load %arg1[%c26, %c0_230, %c0_231] : memref<33x8x8xf32, #tpu.memory_space<vmem>>, vector<1x8x8xf32>
    %367 = vector.shape_cast %366 : vector<1x8x8xf32> to vector<8x8xf32>
    %cst_232 = arith.constant dense<0.000000e+00> : vector<8x512xf32>
    %368 = tpu.matmul %367, %365, %cst_232 {dimension_numbers = #tpu.dot_dimension_numbers<[1], [0], [0], [1], [0, 0, 1, 1], [], []>} : vector<8x8xf32>, vector<8x512xf32>, vector<8x512xf32> -> vector<8x512xf32>
    %369 = arith.addf %361, %368 : vector<8x512xf32>
    %c511_i32_233 = arith.constant 511 : i32
    %370 = tpu.dynamic_rotate %334 by %c511_i32_233 dim 1 : vector<8x512xf32>, i32 -> vector<8x512xf32>
    %c4_234 = arith.constant 4 : index
    %c0_235 = arith.constant 0 : index
    %371 = vector.load %arg3[%c4_234, %c0_235] : memref<8x512xf32, #tpu.memory_space<vmem>>, vector<1x512xf32>
    %372 = vector.broadcast %371 : vector<1x512xf32> to vector<8x512xf32>
    %373 = arith.mulf %370, %372 : vector<8x512xf32>
    %c28 = arith.constant 28 : index
    %c0_236 = arith.constant 0 : index
    %c0_237 = arith.constant 0 : index
    %374 = vector.load %arg1[%c28, %c0_236, %c0_237] : memref<33x8x8xf32, #tpu.memory_space<vmem>>, vector<1x8x8xf32>
    %375 = vector.shape_cast %374 : vector<1x8x8xf32> to vector<8x8xf32>
    %cst_238 = arith.constant dense<0.000000e+00> : vector<8x512xf32>
    %376 = tpu.matmul %375, %373, %cst_238 {dimension_numbers = #tpu.dot_dimension_numbers<[1], [0], [0], [1], [0, 0, 1, 1], [], []>} : vector<8x8xf32>, vector<8x512xf32>, vector<8x512xf32> -> vector<8x512xf32>
    %377 = arith.addf %369, %376 : vector<8x512xf32>
    %c497_i32_239 = arith.constant 497 : i32
    %378 = tpu.dynamic_rotate %334 by %c497_i32_239 dim 1 : vector<8x512xf32>, i32 -> vector<8x512xf32>
    %c5_240 = arith.constant 5 : index
    %c0_241 = arith.constant 0 : index
    %379 = vector.load %arg3[%c5_240, %c0_241] : memref<8x512xf32, #tpu.memory_space<vmem>>, vector<1x512xf32>
    %380 = vector.broadcast %379 : vector<1x512xf32> to vector<8x512xf32>
    %381 = arith.mulf %378, %380 : vector<8x512xf32>
    %c29 = arith.constant 29 : index
    %c0_242 = arith.constant 0 : index
    %c0_243 = arith.constant 0 : index
    %382 = vector.load %arg1[%c29, %c0_242, %c0_243] : memref<33x8x8xf32, #tpu.memory_space<vmem>>, vector<1x8x8xf32>
    %383 = vector.shape_cast %382 : vector<1x8x8xf32> to vector<8x8xf32>
    %cst_244 = arith.constant dense<0.000000e+00> : vector<8x512xf32>
    %384 = tpu.matmul %383, %381, %cst_244 {dimension_numbers = #tpu.dot_dimension_numbers<[1], [0], [0], [1], [0, 0, 1, 1], [], []>} : vector<8x8xf32>, vector<8x512xf32>, vector<8x512xf32> -> vector<8x512xf32>
    %385 = arith.addf %377, %384 : vector<8x512xf32>
    %c496_i32_245 = arith.constant 496 : i32
    %386 = tpu.dynamic_rotate %334 by %c496_i32_245 dim 1 : vector<8x512xf32>, i32 -> vector<8x512xf32>
    %c6_246 = arith.constant 6 : index
    %c0_247 = arith.constant 0 : index
    %387 = vector.load %arg3[%c6_246, %c0_247] : memref<8x512xf32, #tpu.memory_space<vmem>>, vector<1x512xf32>
    %388 = vector.broadcast %387 : vector<1x512xf32> to vector<8x512xf32>
    %389 = arith.mulf %386, %388 : vector<8x512xf32>
    %c30 = arith.constant 30 : index
    %c0_248 = arith.constant 0 : index
    %c0_249 = arith.constant 0 : index
    %390 = vector.load %arg1[%c30, %c0_248, %c0_249] : memref<33x8x8xf32, #tpu.memory_space<vmem>>, vector<1x8x8xf32>
    %391 = vector.shape_cast %390 : vector<1x8x8xf32> to vector<8x8xf32>
    %cst_250 = arith.constant dense<0.000000e+00> : vector<8x512xf32>
    %392 = tpu.matmul %391, %389, %cst_250 {dimension_numbers = #tpu.dot_dimension_numbers<[1], [0], [0], [1], [0, 0, 1, 1], [], []>} : vector<8x8xf32>, vector<8x512xf32>, vector<8x512xf32> -> vector<8x512xf32>
    %393 = arith.addf %385, %392 : vector<8x512xf32>
    %c495_i32_251 = arith.constant 495 : i32
    %394 = tpu.dynamic_rotate %334 by %c495_i32_251 dim 1 : vector<8x512xf32>, i32 -> vector<8x512xf32>
    %c7_252 = arith.constant 7 : index
    %c0_253 = arith.constant 0 : index
    %395 = vector.load %arg3[%c7_252, %c0_253] : memref<8x512xf32, #tpu.memory_space<vmem>>, vector<1x512xf32>
    %396 = vector.broadcast %395 : vector<1x512xf32> to vector<8x512xf32>
    %397 = arith.mulf %394, %396 : vector<8x512xf32>
    %c31 = arith.constant 31 : index
    %c0_254 = arith.constant 0 : index
    %c0_255 = arith.constant 0 : index
    %398 = vector.load %arg1[%c31, %c0_254, %c0_255] : memref<33x8x8xf32, #tpu.memory_space<vmem>>, vector<1x8x8xf32>
    %399 = vector.shape_cast %398 : vector<1x8x8xf32> to vector<8x8xf32>
    %cst_256 = arith.constant dense<0.000000e+00> : vector<8x512xf32>
    %400 = tpu.matmul %399, %397, %cst_256 {dimension_numbers = #tpu.dot_dimension_numbers<[1], [0], [0], [1], [0, 0, 1, 1], [], []>} : vector<8x8xf32>, vector<8x512xf32>, vector<8x512xf32> -> vector<8x512xf32>
    %401 = arith.addf %393, %400 : vector<8x512xf32>
    %cst_257 = arith.constant dense<0.000000e+00> : vector<8xf32>
    %402 = vector.multi_reduction <add>, %401, %cst_257 [1] : vector<8x512xf32> to vector<8xf32>
    %403 = vector.shape_cast %402 : vector<8xf32> to vector<8x1xf32>
    %cst_258 = arith.constant 5.120000e+02 : f32
    %404 = vector.broadcast %cst_258 : f32 to vector<8x1xf32>
    %405 = arith.divf %403, %404 : vector<8x1xf32>
    %406 = vector.broadcast %405 : vector<8x1xf32> to vector<8x512xf32>
    %407 = arith.subf %401, %406 : vector<8x512xf32>
    %408 = arith.mulf %407, %407 : vector<8x512xf32>
    %cst_259 = arith.constant dense<0.000000e+00> : vector<8xf32>
    %409 = vector.multi_reduction <add>, %408, %cst_259 [1] : vector<8x512xf32> to vector<8xf32>
    %410 = vector.shape_cast %409 : vector<8xf32> to vector<8x1xf32>
    %cst_260 = arith.constant 5.120000e+02 : f32
    %411 = vector.broadcast %cst_260 : f32 to vector<8x1xf32>
    %412 = arith.divf %410, %411 : vector<8x1xf32>
    %cst_261 = arith.constant 9.99999974E-6 : f32
    %413 = vector.broadcast %cst_261 : f32 to vector<8x1xf32>
    %414 = arith.addf %412, %413 : vector<8x1xf32>
    %415 = math.rsqrt %414 : vector<8x1xf32>
    %416 = arith.mulf %415, %304 : vector<8x1xf32>
    %417 = vector.broadcast %416 : vector<8x1xf32> to vector<8x512xf32>
    %418 = arith.mulf %407, %417 : vector<8x512xf32>
    %419 = vector.broadcast %306 : vector<8x1xf32> to vector<8x512xf32>
    %420 = arith.addf %418, %419 : vector<8x512xf32>
    %cst_262 = arith.constant 0.000000e+00 : f32
    %421 = vector.broadcast %cst_262 : f32 to vector<8x512xf32>
    %422 = arith.maximumf %420, %421 : vector<8x512xf32>
    %c32 = arith.constant 32 : index
    %c0_263 = arith.constant 0 : index
    %c0_264 = arith.constant 0 : index
    %423 = vector.load %arg1[%c32, %c0_263, %c0_264] : memref<33x8x8xf32, #tpu.memory_space<vmem>>, vector<1x8x8xf32>
    %424 = vector.shape_cast %423 : vector<1x8x8xf32> to vector<8x8xf32>
    %cst_265 = arith.constant dense<0.000000e+00> : vector<8x512xf32>
    %425 = tpu.matmul %424, %422, %cst_265 {dimension_numbers = #tpu.dot_dimension_numbers<[1], [0], [0], [1], [0, 0, 1, 1], [], []>} : vector<8x8xf32>, vector<8x512xf32>, vector<8x512xf32> -> vector<8x512xf32>
    %426 = arith.addf %422, %425 : vector<8x512xf32>
    %cst_266 = arith.constant dense<0.000000e+00> : vector<8xf32>
    %427 = vector.multi_reduction <add>, %426, %cst_266 [1] : vector<8x512xf32> to vector<8xf32>
    %428 = vector.shape_cast %427 : vector<8xf32> to vector<8x1xf32>
    %cst_267 = arith.constant 5.120000e+02 : f32
    %429 = vector.broadcast %cst_267 : f32 to vector<8x1xf32>
    %430 = arith.divf %428, %429 : vector<8x1xf32>
    %431 = vector.broadcast %430 : vector<8x1xf32> to vector<8x512xf32>
    %432 = arith.subf %426, %431 : vector<8x512xf32>
    %433 = arith.mulf %432, %432 : vector<8x512xf32>
    %cst_268 = arith.constant dense<0.000000e+00> : vector<8xf32>
    %434 = vector.multi_reduction <add>, %433, %cst_268 [1] : vector<8x512xf32> to vector<8xf32>
    %435 = vector.shape_cast %434 : vector<8xf32> to vector<8x1xf32>
    %cst_269 = arith.constant 5.120000e+02 : f32
    %436 = vector.broadcast %cst_269 : f32 to vector<8x1xf32>
    %437 = arith.divf %435, %436 : vector<8x1xf32>
    %cst_270 = arith.constant 9.99999974E-6 : f32
    %438 = vector.broadcast %cst_270 : f32 to vector<8x1xf32>
    %439 = arith.addf %437, %438 : vector<8x1xf32>
    %440 = math.rsqrt %439 : vector<8x1xf32>
    %441 = arith.mulf %440, %308 : vector<8x1xf32>
    %442 = vector.broadcast %441 : vector<8x1xf32> to vector<8x512xf32>
    %443 = arith.mulf %432, %442 : vector<8x512xf32>
    %444 = vector.broadcast %310 : vector<8x1xf32> to vector<8x512xf32>
    %445 = arith.addf %443, %444 : vector<8x512xf32>
    %cst_271 = arith.constant 0.000000e+00 : f32
    %446 = vector.broadcast %cst_271 : f32 to vector<8x512xf32>
    %447 = arith.maximumf %445, %446 : vector<8x512xf32>
    %448 = tpu.iota {dimensions = array<i32: 0>} : vector<8x1xi32>
    %c4_i32 = arith.constant 4 : i32
    %449 = vector.broadcast %c4_i32 : i32 to vector<8x1xi32>
    %450 = arith.cmpi slt, %448, %449 : vector<8x1xi32>
    %451 = vector.extract_strided_slice %447 {offsets = [0, 0], sizes = [8, 256], strides = [1, 1]} : vector<8x512xf32> to vector<8x256xf32>
    %cst_272 = arith.constant dense<0xFF800000> : vector<8xf32>
    %452 = vector.multi_reduction <maximumf>, %451, %cst_272 [1] : vector<8x256xf32> to vector<8xf32>
    %453 = vector.shape_cast %452 : vector<8xf32> to vector<8x1xf32>
    %454 = vector.broadcast %453 : vector<8x1xf32> to vector<8x256xf32>
    %455 = arith.subf %451, %454 : vector<8x256xf32>
    %456 = math.exp %455 : vector<8x256xf32>
    %cst_273 = arith.constant dense<0.000000e+00> : vector<8xf32>
    %457 = vector.multi_reduction <add>, %456, %cst_273 [1] : vector<8x256xf32> to vector<8xf32>
    %458 = vector.shape_cast %457 : vector<8xf32> to vector<8x1xf32>
    %459 = tpu.reciprocal %458 : vector<8x1xf32> -> vector<8x1xf32>
    %460 = vector.broadcast %459 : vector<8x1xf32> to vector<8x256xf32>
    %461 = arith.mulf %456, %460 : vector<8x256xf32>
    %462 = vector.shape_cast %450 : vector<8x1xi1> to vector<8x1xi1>
    %463 = vector.broadcast %462 : vector<8x1xi1> to vector<8x256xi1>
    %464 = arith.select %463, %461, %451 : vector<8x256xi1>, vector<8x256xf32>
    %c0_274 = arith.constant 0 : index
    %c0_275 = arith.constant 0 : index
    %465 = vector.load %arg4[%c0_274, %c0_275] : memref<8x512xf32, #tpu.memory_space<vmem>>, vector<8x256xf32>
    tpu.vector_store %arg4[%c0_274, %c0_275], %464 {strides = array<i32>} : memref<8x512xf32, #tpu.memory_space<vmem>>, vector<8x256xf32>,
    %466 = vector.extract_strided_slice %447 {offsets = [0, 256], sizes = [8, 256], strides = [1, 1]} : vector<8x512xf32> to vector<8x256xf32>
    %cst_276 = arith.constant dense<0xFF800000> : vector<8xf32>
    %467 = vector.multi_reduction <maximumf>, %466, %cst_276 [1] : vector<8x256xf32> to vector<8xf32>
    %468 = vector.shape_cast %467 : vector<8xf32> to vector<8x1xf32>
    %469 = vector.broadcast %468 : vector<8x1xf32> to vector<8x256xf32>
    %470 = arith.subf %466, %469 : vector<8x256xf32>
    %471 = math.exp %470 : vector<8x256xf32>
    %cst_277 = arith.constant dense<0.000000e+00> : vector<8xf32>
    %472 = vector.multi_reduction <add>, %471, %cst_277 [1] : vector<8x256xf32> to vector<8xf32>
    %473 = vector.shape_cast %472 : vector<8xf32> to vector<8x1xf32>
    %474 = tpu.reciprocal %473 : vector<8x1xf32> -> vector<8x1xf32>
    %475 = vector.broadcast %474 : vector<8x1xf32> to vector<8x256xf32>
    %476 = arith.mulf %471, %475 : vector<8x256xf32>
    %477 = vector.shape_cast %450 : vector<8x1xi1> to vector<8x1xi1>
    %478 = vector.broadcast %477 : vector<8x1xi1> to vector<8x256xi1>
    %479 = arith.select %478, %476, %466 : vector<8x256xi1>, vector<8x256xf32>
    %c0_278 = arith.constant 0 : index
    %c256 = arith.constant 256 : index
    %480 = vector.load %arg4[%c0_278, %c256] : memref<8x512xf32, #tpu.memory_space<vmem>>, vector<8x256xf32>
    tpu.vector_store %arg4[%c0_278, %c256], %479 {strides = array<i32>} : memref<8x512xf32, #tpu.memory_space<vmem>>, vector<8x256xf32>,
    return
  }
}

</mosaic_0001>

<llo_original>
// kernel: tpu_custom_call.1
$region0: #{tpu_custom_call.1}
  #allocation0 [shape = 'u32[]', space=smem, size = 0x4, offset = 0x4, fixed_abs, tag = 'smem constant byte address 0x4 - core index']
  #allocation1 [shape = 'u32[144,128]{1,0:T(1,128)}', space=vmem, size = 0x12000, scoped, tag = 'internal scratch']
  %s0 = inlined_call_operand.vmem [shape: f32[8,512], index: 0, kind: input, shape index: {}]
  %s1 = inlined_call_operand.vmem [shape: f32[33,8,8], index: 1, kind: input, shape index: {}]
  %s2 = inlined_call_operand.vmem [shape: f32[18,8,1], index: 2, kind: input, shape index: {}]
  %s3 = inlined_call_operand.vmem [shape: f32[8,512], index: 3, kind: input, shape index: {}]
  %s4 = inlined_call_operand.hbm [shape: f32[8,512], index: 4, kind: output, shape index: {}]
  %s5 = sld [smem:[#allocation0]]
  $region26: #{tpu_custom_call.1} parent=0
    _
  %s7 = ssub.s32 1, %s5
  %s8 = scalar_select 0, %s7, %s5
  $region1: #{tpu_custom_call.1} parent=0
    #allocation2 [shape = 'u8[16384]{0}', space=vmem, size = 0x4000, scoped, tag = 'output window, operand 0, single buffered']
    #allocation3 [shape = 's32[1]{0}', space=sflag, size = 0x4, scoped, tag = 'scoped memory for tpu_custom_call.1']
    %9 = vsyncpa [#allocation3], 0
    // Predicated region
    $region2: #{tpu_custom_call.1} parent=1 // pred_check
      _
    $region3: #{tpu_custom_call.1} parent=1 // pred_check_branch
      %11 = sbr.rel (0) target = $region5
    $region4: #{tpu_custom_call.1} parent=1 // pred_region
      _
    $region5: #{tpu_custom_call.1} parent=1 // pred_fallthru
      _
    // Predicated region
    $region6: #{tpu_custom_call.1} parent=1 // pred_check
      _
    $region7: #{tpu_custom_call.1} parent=1 // pred_check_branch
      %13 = sbr.rel (0) target = $region9
    $region8: #{tpu_custom_call.1} parent=1 // pred_region
      _
    $region9: #{tpu_custom_call.1} parent=1 // pred_fallthru
      _
    // Predicated region
    $region10: #{tpu_custom_call.1} parent=1 // pred_check
      _
    $region11: #{tpu_custom_call.1} parent=1 // pred_check_branch
      %15 = sbr.rel (0) target = $region13
    $region12: #{tpu_custom_call.1} parent=1 // pred_region
      _
    $region13: #{tpu_custom_call.1} parent=1 // pred_fallthru
      _
    // Predicated region
    $region14: #{tpu_custom_call.1} parent=1 // pred_check
      _
    $region15: #{tpu_custom_call.1} parent=1 // pred_check_branch
      %17 = sbr.rel (0) target = $region17
    $region16: #{tpu_custom_call.1} parent=1 // pred_region
      _
    $region17: #{tpu_custom_call.1} parent=1 // pred_fallthru
      _
    %v18 = vld [vmem:[%s0] sm:$0xff]
    %v19 = vld [vmem:[%s0 + $0x8] sm:$0xff]
    %v20 = vld [vmem:[%s0 + $0x10] sm:$0xff]
    %v21 = vld [vmem:[%s0 + $0x18] sm:$0xff]
    %v22 = vld [vmem:[%s2] sm:$0xff]
    %s23 = scalar_lea.vmem %s2, 8
    %v24 = vld [vmem:[%s23] sm:$0xff]
    %s25 = scalar_lea.vmem %s2, 16
    %v26 = vld [vmem:[%s25] sm:$0xff]
    %s27 = scalar_lea.vmem %s2, 24
    %v28 = vld [vmem:[%s27] sm:$0xff]
    %s29 = scalar_lea.vmem %s2, 32
    %v30 = vld [vmem:[%s29] sm:$0xff]
    %s31 = scalar_lea.vmem %s2, 40
    %v32 = vld [vmem:[%s31] sm:$0xff]
    %v33 = vld [vmem:[%s1] sm:$0xff]
    %vm34 = vcmask 64512
    %v36 = vsel %vm34, %v33, 0
    %38 = vmatprep.subr.mxu0 %v19
    %39 = vmatpush1.msra.mxu0 %v18
    %40 = vmatprep.subr.mxu0 0.0
    %41 = vmatpush1.msra.mxu0 0.0
    %42 = vmatprep.subr.mxu0 0.0
    %43 = vmatpush1.msra.mxu0 0.0
    %44 = vmatprep.subr.mxu0 0.0
    %45 = vmatpush1.msra.mxu0 0.0
    %46 = vmatprep.subr.mxu0 0.0
    %47 = vmatpush1.msra.mxu0 0.0
    %48 = vmatprep.subr.mxu0 0.0
    %49 = vmatpush1.msra.mxu0 0.0
    %50 = vmatprep.subr.mxu0 0.0
    %51 = vmatpush1.msra.mxu0 0.0
    %52 = vmatprep.subr.mxu0 0.0
    %53 = vmatpush1.msra.mxu0 0.0
    %54 = vmatprep.subr.mxu0 0.0
    %55 = vmatpush1.msra.mxu0 0.0
    %56 = vmatprep.subr.mxu0 0.0
    %57 = vmatpush1.msra.mxu0 0.0
    %58 = vmatprep.subr.mxu0 0.0
    %59 = vmatpush1.msra.mxu0 0.0
    %60 = vmatprep.subr.mxu0 0.0
    %61 = vmatpush1.msra.mxu0 0.0
    %62 = vmatprep.subr.mxu0 0.0
    %63 = vmatpush1.msra.mxu0 0.0
    %64 = vmatprep.subr.mxu0 0.0
    %65 = vmatpush1.msra.mxu0 0.0
    %66 = vmatprep.subr.mxu0 0.0
    %67 = vmatpush1.msra.mxu0 0.0
    %68 = vmatprep.subr.mxu0 0.0
    %69 = vmatpush1.msra.mxu0 0.0
    %70 = vmatprep.subr.mxu0 0.0
    %71 = vmatpush1.msra.mxu0 0.0
    %72 = vmatprep.subr.mxu0 0.0
    %73 = vmatpush1.msra.mxu0 0.0
    %74 = vmatprep.subr.mxu0 0.0
    %75 = vmatpush1.msra.mxu0 0.0
    %76 = vmatprep.subr.mxu0 0.0
    %77 = vmatpush1.msra.mxu0 0.0
    %78 = vmatprep.subr.mxu0 0.0
    %79 = vmatpush1.msra.mxu0 0.0
    %80 = vmatprep.subr.mxu0 0.0
    %81 = vmatpush1.msra.mxu0 0.0
    %82 = vmatprep.subr.mxu0 0.0
    %83 = vmatpush1.msra.mxu0 0.0
    %84 = vmatprep.subr.mxu0 0.0
    %85 = vmatpush1.msra.mxu0 0.0
    %86 = vmatprep.subr.mxu0 0.0
    %87 = vmatpush1.msra.mxu0 0.0
    %88 = vmatprep.subr.mxu0 0.0
    %89 = vmatpush1.msra.mxu0 0.0
    %90 = vmatprep.subr.mxu0 0.0
    %91 = vmatpush1.msra.mxu0 0.0
    %92 = vmatprep.subr.mxu0 0.0
    %93 = vmatpush1.msra.mxu0 0.0
    %94 = vmatprep.subr.mxu0 0.0
    %95 = vmatpush1.msra.mxu0 0.0
    %96 = vmatprep.subr.mxu0 0.0
    %97 = vmatpush1.msra.mxu0 0.0
    %98 = vmatprep.subr.mxu0 0.0
    %99 = vmatpush1.msra.mxu0 0.0
    %100 = vmatprep.subr.mxu0 0.0
    %101 = vmatpush1.msra.mxu0 0.0
    %102 = vmatprep.mubr.f32.mxu0 0.0
    %103 = vmatmul.mubr.f32.gmra.mrb[0].mxu0 %v36
    %v104 = vpop.f32.mrb[0].mxu0
    %v105 = vadd.f32 0.0, %v104
    %v106 = vpop.f32.mrb[0].mxu0
    %v107 = vadd.f32 0.0, %v106
    %108 = vdwg.mxu0
    %109 = vmatprep.subr.mxu0 %v21
    %110 = vmatpush1.msra.mxu0 %v20
    %111 = vmatprep.subr.mxu0 0.0
    %112 = vmatpush1.msra.mxu0 0.0
    %113 = vmatprep.subr.mxu0 0.0
    %114 = vmatpush1.msra.mxu0 0.0
    %115 = vmatprep.subr.mxu0 0.0
    %116 = vmatpush1.msra.mxu0 0.0
    %117 = vmatprep.subr.mxu0 0.0
    %118 = vmatpush1.msra.mxu0 0.0
    %119 = vmatprep.subr.mxu0 0.0
    %120 = vmatpush1.msra.mxu0 0.0
    %121 = vmatprep.subr.mxu0 0.0
    %122 = vmatpush1.msra.mxu0 0.0
    %123 = vmatprep.subr.mxu0 0.0
    %124 = vmatpush1.msra.mxu0 0.0
    %125 = vmatprep.subr.mxu0 0.0
    %126 = vmatpush1.msra.mxu0 0.0
    %127 = vmatprep.subr.mxu0 0.0
    %128 = vmatpush1.msra.mxu0 0.0
    %129 = vmatprep.subr.mxu0 0.0
    %130 = vmatpush1.msra.mxu0 0.0
    %131 = vmatprep.subr.mxu0 0.0
    %132 = vmatpush1.msra.mxu0 0.0
    %133 = vmatprep.subr.mxu0 0.0
    %134 = vmatpush1.msra.mxu0 0.0
    %135 = vmatprep.subr.mxu0 0.0
    %136 = vmatpush1.msra.mxu0 0.0
    %137 = vmatprep.subr.mxu0 0.0
    %138 = vmatpush1.msra.mxu0 0.0
    %139 = vmatprep.subr.mxu0 0.0
    %140 = vmatpush1.msra.mxu0 0.0
    %141 = vmatprep.subr.mxu0 0.0
    %142 = vmatpush1.msra.mxu0 0.0
    %143 = vmatprep.subr.mxu0 0.0
    %144 = vmatpush1.msra.mxu0 0.0
    %145 = vmatprep.subr.mxu0 0.0
    %146 = vmatpush1.msra.mxu0 0.0
    %147 = vmatprep.subr.mxu0 0.0
    %148 = vmatpush1.msra.mxu0 0.0
    %149 = vmatprep.subr.mxu0 0.0
    %150 = vmatpush1.msra.mxu0 0.0
    %151 = vmatprep.subr.mxu0 0.0
    %152 = vmatpush1.msra.mxu0 0.0
    %153 = vmatprep.subr.mxu0 0.0
    %154 = vmatpush1.msra.mxu0 0.0
    %155 = vmatprep.subr.mxu0 0.0
    %156 = vmatpush1.msra.mxu0 0.0
    %157 = vmatprep.subr.mxu0 0.0
    %158 = vmatpush1.msra.mxu0 0.0
    %159 = vmatprep.subr.mxu0 0.0
    %160 = vmatpush1.msra.mxu0 0.0
    %161 = vmatprep.subr.mxu0 0.0
    %162 = vmatpush1.msra.mxu0 0.0
    %163 = vmatprep.subr.mxu0 0.0
    %164 = vmatpush1.msra.mxu0 0.0
    %165 = vmatprep.subr.mxu0 0.0
    %166 = vmatpush1.msra.mxu0 0.0
    %167 = vmatprep.subr.mxu0 0.0
    %168 = vmatpush1.msra.mxu0 0.0
    %169 = vmatprep.subr.mxu0 0.0
    %170 = vmatpush1.msra.mxu0 0.0
    %171 = vmatprep.subr.mxu0 0.0
    %172 = vmatpush1.msra.mxu0 0.0
    %173 = vmatprep.mubr.f32.mxu0 0.0
    %174 = vmatmul.mubr.f32.gmra.mrb[0].mxu0 %v36
    %v175 = vpop.f32.mrb[0].mxu0
    %v176 = vadd.f32 0.0, %v175
    %v177 = vpop.f32.mrb[0].mxu0
    %v178 = vadd.f32 0.0, %v177
    %179 = vdwg.mxu0
    %v180 = vadd.f32 %v105, %v107
    %v181 = vadd.f32 %v180, %v176
    %v182 = vadd.f32 %v181, %v178
    %183 = vadd.xlane.f32.xlu0 %v182
    %v184 = vpop.xlane.xlu0 %183
    %v185 = vrcp.pop 512.0
    %v186 = vmul.f32 %v184, %v185
    %v187 = vsub.f32 %v105, %v186
    %v188 = vsub.f32 %v107, %v186
    %v189 = vsub.f32 %v176, %v186
    %v190 = vsub.f32 %v178, %v186
    %v191 = vmul.f32 %v187, %v187
    %v192 = vmul.f32 %v188, %v188
    %v193 = vmul.f32 %v189, %v189
    %v194 = vmul.f32 %v190, %v190
    %v195 = vadd.f32 %v191, %v192
    %v196 = vadd.f32 %v195, %v193
    %v197 = vadd.f32 %v196, %v194
    %198 = vadd.xlane.f32.xlu0 %v197
    %v199 = vpop.xlane.xlu0 %198
    %v200 = vmul.f32 %v199, %v185
    %v201 = vadd.f32 %v200, 1e-05
    %v202 = vrsqrt.pop %v201
    %v203 = vmul.f32 %v202, %v22
    %205 = vset.pattern.permute.xlu0 0
    %206 = vperm.xlu0 %205, %v203
    %v207 = vpop.permute.xlu0 %206
    %v209 = vmul.f32 %v187, %v207
    %v210 = vmul.f32 %v188, %v207
    %v211 = vmul.f32 %v189, %v207
    %v212 = vmul.f32 %v190, %v207
    %214 = vset.pattern.permute.xlu0 0
    %215 = vperm.xlu0 %214, %v24
    %v216 = vpop.permute.xlu0 %215
    %v218 = vadd.f32 %v209, %v216
    %v219 = vadd.f32 %v210, %v216
    %v220 = vadd.f32 %v211, %v216
    %v221 = vadd.f32 %v212, %v216
    %v222 = vmax.f32 %v218, 0.0
    %v223 = vmax.f32 %v219, 0.0
    %v224 = vmax.f32 %v220, 0.0
    %v225 = vmax.f32 %v221, 0.0
    %s226 = scalar_lea.vmem %s1, 40
    %v227 = vld [vmem:[%s226] sm:$0xff]
    %228 = vrot.lane.b32.xlu0 %v222, 17
    %v229 = vpop.permute.xlu0 %228
    %230 = vrot.lane.b32.xlu0 %v223, 17
    %v231 = vpop.permute.xlu0 %230
    %232 = vrot.lane.b32.xlu0 %v224, 17
    %v233 = vpop.permute.xlu0 %232
    %234 = vrot.lane.b32.xlu0 %v225, 17
    %v235 = vpop.permute.xlu0 %234
    %v236 = vlaneseq
    %v237 = vand.u32 %v236, 127
    %vm238 = vcmp.lt.s32.totalorder %v237, 17
    %v239 = vsel %vm238, %v233, %v235
    %v240 = vsel %vm238, %v231, %v233
    %v241 = vsel %vm238, %v229, %v231
    %v242 = vsel %vm238, %v235, %v229
    %v243 = vld [vmem:[%s3] ss:$8 sm:$0xf]
    %v245 = vlaneseq
    %v246 = vshrl.u32 %v245, 7
    %v247 = vsub.s32 0, %v246
    %v248 = vrot.slane %v243, %v247
    %v249 = vlaneseq
    %v250 = vshrl.u32 %v249, 7
    %v251 = vsub.s32 1, %v250
    %v252 = vrot.slane %v243, %v251
    %v253 = vlaneseq
    %v254 = vshrl.u32 %v253, 7
    %v255 = vsub.s32 2, %v254
    %v256 = vrot.slane %v243, %v255
    %v257 = vlaneseq
    %v258 = vshrl.u32 %v257, 7
    %v259 = vsub.s32 3, %v258
    %v260 = vrot.slane %v243, %v259
    %v265 = vmul.f32 %v242, %v248
    %v266 = vmul.f32 %v241, %v252
    %v267 = vmul.f32 %v240, %v256
    %v268 = vmul.f32 %v239, %v260
    %s269 = scalar_lea.vmem %s1, 8
    %v270 = vld [vmem:[%s269] sm:$0xff]
    %v272 = vsel %vm34, %v270, 0
    %274 = vmatprep.subr.mxu0 %v266
    %275 = vmatpush1.msra.mxu0 %v265
    %276 = vmatprep.subr.mxu0 0.0
    %277 = vmatpush1.msra.mxu0 0.0
    %278 = vmatprep.subr.mxu0 0.0
    %279 = vmatpush1.msra.mxu0 0.0
    %280 = vmatprep.subr.mxu0 0.0
    %281 = vmatpush1.msra.mxu0 0.0
    %282 = vmatprep.subr.mxu0 0.0
    %283 = vmatpush1.msra.mxu0 0.0
    %284 = vmatprep.subr.mxu0 0.0
    %285 = vmatpush1.msra.mxu0 0.0
    %286 = vmatprep.subr.mxu0 0.0
    %287 = vmatpush1.msra.mxu0 0.0
    %288 = vmatprep.subr.mxu0 0.0
    %289 = vmatpush1.msra.mxu0 0.0
    %290 = vmatprep.subr.mxu0 0.0
    %291 = vmatpush1.msra.mxu0 0.0
    %292 = vmatprep.subr.mxu0 0.0
    %293 = vmatpush1.msra.mxu0 0.0
    %294 = vmatprep.subr.mxu0 0.0
    %295 = vmatpush1.msra.mxu0 0.0
    %296 = vmatprep.subr.mxu0 0.0
    %297 = vmatpush1.msra.mxu0 0.0
    %298 = vmatprep.subr.mxu0 0.0
    %299 = vmatpush1.msra.mxu0 0.0
    %300 = vmatprep.subr.mxu0 0.0
    %301 = vmatpush1.msra.mxu0 0.0
    %302 = vmatprep.subr.mxu0 0.0
    %303 = vmatpush1.msra.mxu0 0.0
    %304 = vmatprep.subr.mxu0 0.0
    %305 = vmatpush1.msra.mxu0 0.0
    %306 = vmatprep.subr.mxu0 0.0
    %307 = vmatpush1.msra.mxu0 0.0
    %308 = vmatprep.subr.mxu0 0.0
    %309 = vmatpush1.msra.mxu0 0.0
    %310 = vmatprep.subr.mxu0 0.0
    %311 = vmatpush1.msra.mxu0 0.0
    %312 = vmatprep.subr.mxu0 0.0
    %313 = vmatpush1.msra.mxu0 0.0
    %314 = vmatprep.subr.mxu0 0.0
    %315 = vmatpush1.msra.mxu0 0.0
    %316 = vmatprep.subr.mxu0 0.0
    %317 = vmatpush1.msra.mxu0 0.0
    %318 = vmatprep.subr.mxu0 0.0
    %319 = vmatpush1.msra.mxu0 0.0
    %320 = vmatprep.subr.mxu0 0.0
    %321 = vmatpush1.msra.mxu0 0.0
    %322 = vmatprep.subr.mxu0 0.0
    %323 = vmatpush1.msra.mxu0 0.0
    %324 = vmatprep.subr.mxu0 0.0
    %325 = vmatpush1.msra.mxu0 0.0
    %326 = vmatprep.subr.mxu0 0.0
    %327 = vmatpush1.msra.mxu0 0.0
    %328 = vmatprep.subr.mxu0 0.0
    %329 = vmatpush1.msra.mxu0 0.0
    %330 = vmatprep.subr.mxu0 0.0
    %331 = vmatpush1.msra.mxu0 0.0
    %332 = vmatprep.subr.mxu0 0.0
    %333 = vmatpush1.msra.mxu0 0.0
    %334 = vmatprep.subr.mxu0 0.0
    %335 = vmatpush1.msra.mxu0 0.0
    %336 = vmatprep.subr.mxu0 0.0
    %337 = vmatpush1.msra.mxu0 0.0
    %338 = vmatprep.mubr.f32.mxu0 0.0
    %339 = vmatmul.mubr.f32.gmra.mrb[0].mxu0 %v272
    %v340 = vpop.f32.mrb[0].mxu0
    %v341 = vadd.f32 0.0, %v340
    %v342 = vpop.f32.mrb[0].mxu0
    %v343 = vadd.f32 0.0, %v342
    %344 = vdwg.mxu0
    %345 = vmatprep.subr.mxu0 %v268
    %346 = vmatpush1.msra.mxu0 %v267
    %347 = vmatprep.subr.mxu0 0.0
    %348 = vmatpush1.msra.mxu0 0.0
    %349 = vmatprep.subr.mxu0 0.0
    %350 = vmatpush1.msra.mxu0 0.0
    %351 = vmatprep.subr.mxu0 0.0
    %352 = vmatpush1.msra.mxu0 0.0
    %353 = vmatprep.subr.mxu0 0.0
    %354 = vmatpush1.msra.mxu0 0.0
    %355 = vmatprep.subr.mxu0 0.0
    %356 = vmatpush1.msra.mxu0 0.0
    %357 = vmatprep.subr.mxu0 0.0
    %358 = vmatpush1.msra.mxu0 0.0
    %359 = vmatprep.subr.mxu0 0.0
    %360 = vmatpush1.msra.mxu0 0.0
    %361 = vmatprep.subr.mxu0 0.0
    %362 = vmatpush1.msra.mxu0 0.0
    %363 = vmatprep.subr.mxu0 0.0
    %364 = vmatpush1.msra.mxu0 0.0
    %365 = vmatprep.subr.mxu0 0.0
    %366 = vmatpush1.msra.mxu0 0.0
    %367 = vmatprep.subr.mxu0 0.0
    %368 = vmatpush1.msra.mxu0 0.0
    %369 = vmatprep.subr.mxu0 0.0
    %370 = vmatpush1.msra.mxu0 0.0
    %371 = vmatprep.subr.mxu0 0.0
    %372 = vmatpush1.msra.mxu0 0.0
    %373 = vmatprep.subr.mxu0 0.0
    %374 = vmatpush1.msra.mxu0 0.0
    %375 = vmatprep.subr.mxu0 0.0
    %376 = vmatpush1.msra.mxu0 0.0
    %377 = vmatprep.subr.mxu0 0.0
    %378 = vmatpush1.msra.mxu0 0.0
    %379 = vmatprep.subr.mxu0 0.0
    %380 = vmatpush1.msra.mxu0 0.0
    %381 = vmatprep.subr.mxu0 0.0
    %382 = vmatpush1.msra.mxu0 0.0
    %383 = vmatprep.subr.mxu0 0.0
    %384 = vmatpush1.msra.mxu0 0.0
    %385 = vmatprep.subr.mxu0 0.0
    %386 = vmatpush1.msra.mxu0 0.0
    %387 = vmatprep.subr.mxu0 0.0
    %388 = vmatpush1.msra.mxu0 0.0
    %389 = vmatprep.subr.mxu0 0.0
    %390 = vmatpush1.msra.mxu0 0.0
    %391 = vmatprep.subr.mxu0 0.0
    %392 = vmatpush1.msra.mxu0 0.0
    %393 = vmatprep.subr.mxu0 0.0
    %394 = vmatpush1.msra.mxu0 0.0
    %395 = vmatprep.subr.mxu0 0.0
    %396 = vmatpush1.msra.mxu0 0.0
    %397 = vmatprep.subr.mxu0 0.0
    %398 = vmatpush1.msra.mxu0 0.0
    %399 = vmatprep.subr.mxu0 0.0
    %400 = vmatpush1.msra.mxu0 0.0
    %401 = vmatprep.subr.mxu0 0.0
    %402 = vmatpush1.msra.mxu0 0.0
    %403 = vmatprep.subr.mxu0 0.0
    %404 = vmatpush1.msra.mxu0 0.0
    %405 = vmatprep.subr.mxu0 0.0
    %406 = vmatpush1.msra.mxu0 0.0
    %407 = vmatprep.subr.mxu0 0.0
    %408 = vmatpush1.msra.mxu0 0.0
    %409 = vmatprep.mubr.f32.mxu0 0.0
    %410 = vmatmul.mubr.f32.gmra.mrb[0].mxu0 %v272
    %v411 = vpop.f32.mrb[0].mxu0
    %v412 = vadd.f32 0.0, %v411
    %v413 = vpop.f32.mrb[0].mxu0
    %v414 = vadd.f32 0.0, %v413
    %415 = vdwg.mxu0
    %v417 = vsel %vm34, %v227, 0
    %419 = vmatprep.subr.mxu0 %v223
    %420 = vmatpush1.msra.mxu0 %v222
    %421 = vmatprep.subr.mxu0 0.0
    %422 = vmatpush1.msra.mxu0 0.0
    %423 = vmatprep.subr.mxu0 0.0
    %424 = vmatpush1.msra.mxu0 0.0
    %425 = vmatprep.subr.mxu0 0.0
    %426 = vmatpush1.msra.mxu0 0.0
    %427 = vmatprep.subr.mxu0 0.0
    %428 = vmatpush1.msra.mxu0 0.0
    %429 = vmatprep.subr.mxu0 0.0
    %430 = vmatpush1.msra.mxu0 0.0
    %431 = vmatprep.subr.mxu0 0.0
    %432 = vmatpush1.msra.mxu0 0.0
    %433 = vmatprep.subr.mxu0 0.0
    %434 = vmatpush1.msra.mxu0 0.0
    %435 = vmatprep.subr.mxu0 0.0
    %436 = vmatpush1.msra.mxu0 0.0
    %437 = vmatprep.subr.mxu0 0.0
    %438 = vmatpush1.msra.mxu0 0.0
    %439 = vmatprep.subr.mxu0 0.0
    %440 = vmatpush1.msra.mxu0 0.0
    %441 = vmatprep.subr.mxu0 0.0
    %442 = vmatpush1.msra.mxu0 0.0
    %443 = vmatprep.subr.mxu0 0.0
    %444 = vmatpush1.msra.mxu0 0.0
    %445 = vmatprep.subr.mxu0 0.0
    %446 = vmatpush1.msra.mxu0 0.0
    %447 = vmatprep.subr.mxu0 0.0
    %448 = vmatpush1.msra.mxu0 0.0
    %449 = vmatprep.subr.mxu0 0.0
    %450 = vmatpush1.msra.mxu0 0.0
    %451 = vmatprep.subr.mxu0 0.0
    %452 = vmatpush1.msra.mxu0 0.0
    %453 = vmatprep.subr.mxu0 0.0
    %454 = vmatpush1.msra.mxu0 0.0
    %455 = vmatprep.subr.mxu0 0.0
    %456 = vmatpush1.msra.mxu0 0.0
    %457 = vmatprep.subr.mxu0 0.0
    %458 = vmatpush1.msra.mxu0 0.0
    %459 = vmatprep.subr.mxu0 0.0
    %460 = vmatpush1.msra.mxu0 0.0
    %461 = vmatprep.subr.mxu0 0.0
    %462 = vmatpush1.msra.mxu0 0.0
    %463 = vmatprep.subr.mxu0 0.0
    %464 = vmatpush1.msra.mxu0 0.0
    %465 = vmatprep.subr.mxu0 0.0
    %466 = vmatpush1.msra.mxu0 0.0
    %467 = vmatprep.subr.mxu0 0.0
    %468 = vmatpush1.msra.mxu0 0.0
    %469 = vmatprep.subr.mxu0 0.0
    %470 = vmatpush1.msra.mxu0 0.0
    %471 = vmatprep.subr.mxu0 0.0
    %472 = vmatpush1.msra.mxu0 0.0
    %473 = vmatprep.subr.mxu0 0.0
    %474 = vmatpush1.msra.mxu0 0.0
    %475 = vmatprep.subr.mxu0 0.0
    %476 = vmatpush1.msra.mxu0 0.0
    %477 = vmatprep.subr.mxu0 0.0
    %478 = vmatpush1.msra.mxu0 0.0
    %479 = vmatprep.subr.mxu0 0.0
    %480 = vmatpush1.msra.mxu0 0.0
    %481 = vmatprep.subr.mxu0 0.0
    %482 = vmatpush1.msra.mxu0 0.0
    %483 = vmatprep.mubr.f32.mxu0 0.0
    %484 = vmatmul.mubr.f32.gmra.mrb[0].mxu0 %v417
    %v485 = vpop.f32.mrb[0].mxu0
    %v486 = vadd.f32 %v341, %v485
    %v487 = vpop.f32.mrb[0].mxu0
    %v488 = vadd.f32 %v343, %v487
    %489 = vdwg.mxu0
    %490 = vmatprep.subr.mxu0 %v225
    %491 = vmatpush1.msra.mxu0 %v224
    %492 = vmatprep.subr.mxu0 0.0
    %493 = vmatpush1.msra.mxu0 0.0
    %494 = vmatprep.subr.mxu0 0.0
    %495 = vmatpush1.msra.mxu0 0.0
    %496 = vmatprep.subr.mxu0 0.0
    %497 = vmatpush1.msra.mxu0 0.0
    %498 = vmatprep.subr.mxu0 0.0
    %499 = vmatpush1.msra.mxu0 0.0
    %500 = vmatprep.subr.mxu0 0.0
    %501 = vmatpush1.msra.mxu0 0.0
    %502 = vmatprep.subr.mxu0 0.0
    %503 = vmatpush1.msra.mxu0 0.0
    %504 = vmatprep.subr.mxu0 0.0
    %505 = vmatpush1.msra.mxu0 0.0
    %506 = vmatprep.subr.mxu0 0.0
    %507 = vmatpush1.msra.mxu0 0.0
    %508 = vmatprep.subr.mxu0 0.0
    %509 = vmatpush1.msra.mxu0 0.0
    %510 = vmatprep.subr.mxu0 0.0
    %511 = vmatpush1.msra.mxu0 0.0
    %512 = vmatprep.subr.mxu0 0.0
    %513 = vmatpush1.msra.mxu0 0.0
    %514 = vmatprep.subr.mxu0 0.0
    %515 = vmatpush1.msra.mxu0 0.0
    %516 = vmatprep.subr.mxu0 0.0
    %517 = vmatpush1.msra.mxu0 0.0
    %518 = vmatprep.subr.mxu0 0.0
    %519 = vmatpush1.msra.mxu0 0.0
    %520 = vmatprep.subr.mxu0 0.0
    %521 = vmatpush1.msra.mxu0 0.0
    %522 = vmatprep.subr.mxu0 0.0
    %523 = vmatpush1.msra.mxu0 0.0
    %524 = vmatprep.subr.mxu0 0.0
    %525 = vmatpush1.msra.mxu0 0.0
    %526 = vmatprep.subr.mxu0 0.0
    %527 = vmatpush1.msra.mxu0 0.0
    %528 = vmatprep.subr.mxu0 0.0
    %529 = vmatpush1.msra.mxu0 0.0
    %530 = vmatprep.subr.mxu0 0.0
    %531 = vmatpush1.msra.mxu0 0.0
    %532 = vmatprep.subr.mxu0 0.0
    %533 = vmatpush1.msra.mxu0 0.0
    %534 = vmatprep.subr.mxu0 0.0
    %535 = vmatpush1.msra.mxu0 0.0
    %536 = vmatprep.subr.mxu0 0.0
    %537 = vmatpush1.msra.mxu0 0.0
    %538 = vmatprep.subr.mxu0 0.0
    %539 = vmatpush1.msra.mxu0 0.0
    %540 = vmatprep.subr.mxu0 0.0
    %541 = vmatpush1.msra.mxu0 0.0
    %542 = vmatprep.subr.mxu0 0.0
    %543 = vmatpush1.msra.mxu0 0.0
    %544 = vmatprep.subr.mxu0 0.0
    %545 = vmatpush1.msra.mxu0 0.0
    %546 = vmatprep.subr.mxu0 0.0
    %547 = vmatpush1.msra.mxu0 0.0
    %548 = vmatprep.subr.mxu0 0.0
    %549 = vmatpush1.msra.mxu0 0.0
    %550 = vmatprep.subr.mxu0 0.0
    %551 = vmatpush1.msra.mxu0 0.0
    %552 = vmatprep.subr.mxu0 0.0
    %553 = vmatpush1.msra.mxu0 0.0
    %554 = vmatprep.mubr.f32.mxu0 0.0
    %555 = vmatmul.mubr.f32.gmra.mrb[0].mxu0 %v417
    %v556 = vpop.f32.mrb[0].mxu0
    %v557 = vadd.f32 %v412, %v556
    %v558 = vpop.f32.mrb[0].mxu0
    %v559 = vadd.f32 %v414, %v558
    %560 = vdwg.mxu0
    %561 = vrot.lane.b32.xlu0 %v222, 16
    %v562 = vpop.permute.xlu0 %561
    %563 = vrot.lane.b32.xlu0 %v223, 16
    %v564 = vpop.permute.xlu0 %563
    %565 = vrot.lane.b32.xlu0 %v224, 16
    %v566 = vpop.permute.xlu0 %565
    %567 = vrot.lane.b32.xlu0 %v225, 16
    %v568 = vpop.permute.xlu0 %567
    %vm569 = vcmp.lt.s32.totalorder %v237, 16
    %v570 = vsel %vm569, %v566, %v568
    %v571 = vsel %vm569, %v564, %v566
    %v572 = vsel %vm569, %v562, %v564
    %v573 = vsel %vm569, %v568, %v562
    %s574 = scalar_lea.vmem %s3, 1
    %v575 = vld [vmem:[%s574] ss:$8 sm:$0xf]
    %v577 = vlaneseq
    %v578 = vshrl.u32 %v577, 7
    %v579 = vsub.s32 0, %v578
    %v580 = vrot.slane %v575, %v579
    %v581 = vlaneseq
    %v582 = vshrl.u32 %v581, 7
    %v583 = vsub.s32 1, %v582
    %v584 = vrot.slane %v575, %v583
    %v585 = vlaneseq
    %v586 = vshrl.u32 %v585, 7
    %v587 = vsub.s32 2, %v586
    %v588 = vrot.slane %v575, %v587
    %v589 = vlaneseq
    %v590 = vshrl.u32 %v589, 7
    %v591 = vsub.s32 3, %v590
    %v592 = vrot.slane %v575, %v591
    %v597 = vmul.f32 %v573, %v580
    %v598 = vmul.f32 %v572, %v584
    %v599 = vmul.f32 %v571, %v588
    %v600 = vmul.f32 %v570, %v592
    %s601 = scalar_lea.vmem %s1, 16
    %v602 = vld [vmem:[%s601] sm:$0xff]
    %v604 = vsel %vm34, %v602, 0
    %606 = vmatprep.subr.mxu0 %v598
    %607 = vmatpush1.msra.mxu0 %v597
    %608 = vmatprep.subr.mxu0 0.0
    %609 = vmatpush1.msra.mxu0 0.0
    %610 = vmatprep.subr.mxu0 0.0
    %611 = vmatpush1.msra.mxu0 0.0
    %612 = vmatprep.subr.mxu0 0.0
    %613 = vmatpush1.msra.mxu0 0.0
    %614 = vmatprep.subr.mxu0 0.0
    %615 = vmatpush1.msra.mxu0 0.0
    %616 = vmatprep.subr.mxu0 0.0
    %617 = vmatpush1.msra.mxu0 0.0
    %618 = vmatprep.subr.mxu0 0.0
    %619 = vmatpush1.msra.mxu0 0.0
    %620 = vmatprep.subr.mxu0 0.0
    %621 = vmatpush1.msra.mxu0 0.0
    %622 = vmatprep.subr.mxu0 0.0
    %623 = vmatpush1.msra.mxu0 0.0
    %624 = vmatprep.subr.mxu0 0.0
    %625 = vmatpush1.msra.mxu0 0.0
    %626 = vmatprep.subr.mxu0 0.0
    %627 = vmatpush1.msra.mxu0 0.0
    %628 = vmatprep.subr.mxu0 0.0
    %629 = vmatpush1.msra.mxu0 0.0
    %630 = vmatprep.subr.mxu0 0.0
    %631 = vmatpush1.msra.mxu0 0.0
    %632 = vmatprep.subr.mxu0 0.0
    %633 = vmatpush1.msra.mxu0 0.0
    %634 = vmatprep.subr.mxu0 0.0
    %635 = vmatpush1.msra.mxu0 0.0
    %636 = vmatprep.subr.mxu0 0.0
    %637 = vmatpush1.msra.mxu0 0.0
    %638 = vmatprep.subr.mxu0 0.0
    %639 = vmatpush1.msra.mxu0 0.0
    %640 = vmatprep.subr.mxu0 0.0
    %641 = vmatpush1.msra.mxu0 0.0
    %642 = vmatprep.subr.mxu0 0.0
    %643 = vmatpush1.msra.mxu0 0.0
    %644 = vmatprep.subr.mxu0 0.0
    %645 = vmatpush1.msra.mxu0 0.0
    %646 = vmatprep.subr.mxu0 0.0
    %647 = vmatpush1.msra.mxu0 0.0
    %648 = vmatprep.subr.mxu0 0.0
    %649 = vmatpush1.msra.mxu0 0.0
    %650 = vmatprep.subr.mxu0 0.0
    %651 = vmatpush1.msra.mxu0 0.0
    %652 = vmatprep.subr.mxu0 0.0
    %653 = vmatpush1.msra.mxu0 0.0
    %654 = vmatprep.subr.mxu0 0.0
    %655 = vmatpush1.msra.mxu0 0.0
    %656 = vmatprep.subr.mxu0 0.0
    %657 = vmatpush1.msra.mxu0 0.0
    %658 = vmatprep.subr.mxu0 0.0
    %659 = vmatpush1.msra.mxu0 0.0
    %660 = vmatprep.subr.mxu0 0.0
    %661 = vmatpush1.msra.mxu0 0.0
    %662 = vmatprep.subr.mxu0 0.0
    %663 = vmatpush1.msra.mxu0 0.0
    %664 = vmatprep.subr.mxu0 0.0
    %665 = vmatpush1.msra.mxu0 0.0
    %666 = vmatprep.subr.mxu0 0.0
    %667 = vmatpush1.msra.mxu0 0.0
    %668 = vmatprep.subr.mxu0 0.0
    %669 = vmatpush1.msra.mxu0 0.0
    %670 = vmatprep.mubr.f32.mxu0 0.0
    %671 = vmatmul.mubr.f32.gmra.mrb[0].mxu0 %v604
    %v672 = vpop.f32.mrb[0].mxu0
    %v673 = vadd.f32 0.0, %v672
    %v674 = vpop.f32.mrb[0].mxu0
    %v675 = vadd.f32 0.0, %v674
    %676 = vdwg.mxu0
    %677 = vmatprep.subr.mxu0 %v600
    %678 = vmatpush1.msra.mxu0 %v599
    %679 = vmatprep.subr.mxu0 0.0
    %680 = vmatpush1.msra.mxu0 0.0
    %681 = vmatprep.subr.mxu0 0.0
    %682 = vmatpush1.msra.mxu0 0.0
    %683 = vmatprep.subr.mxu0 0.0
    %684 = vmatpush1.msra.mxu0 0.0
    %685 = vmatprep.subr.mxu0 0.0
    %686 = vmatpush1.msra.mxu0 0.0
    %687 = vmatprep.subr.mxu0 0.0
    %688 = vmatpush1.msra.mxu0 0.0
    %689 = vmatprep.subr.mxu0 0.0
    %690 = vmatpush1.msra.mxu0 0.0
    %691 = vmatprep.subr.mxu0 0.0
    %692 = vmatpush1.msra.mxu0 0.0
    %693 = vmatprep.subr.mxu0 0.0
    %694 = vmatpush1.msra.mxu0 0.0
    %695 = vmatprep.subr.mxu0 0.0
    %696 = vmatpush1.msra.mxu0 0.0
    %697 = vmatprep.subr.mxu0 0.0
    %698 = vmatpush1.msra.mxu0 0.0
    %699 = vmatprep.subr.mxu0 0.0
    %700 = vmatpush1.msra.mxu0 0.0
    %701 = vmatprep.subr.mxu0 0.0
    %702 = vmatpush1.msra.mxu0 0.0
    %703 = vmatprep.subr.mxu0 0.0
    %704 = vmatpush1.msra.mxu0 0.0
    %705 = vmatprep.subr.mxu0 0.0
    %706 = vmatpush1.msra.mxu0 0.0
    %707 = vmatprep.subr.mxu0 0.0
    %708 = vmatpush1.msra.mxu0 0.0
    %709 = vmatprep.subr.mxu0 0.0
    %710 = vmatpush1.msra.mxu0 0.0
    %711 = vmatprep.subr.mxu0 0.0
    %712 = vmatpush1.msra.mxu0 0.0
    %713 = vmatprep.subr.mxu0 0.0
    %714 = vmatpush1.msra.mxu0 0.0
    %715 = vmatprep.subr.mxu0 0.0
    %716 = vmatpush1.msra.mxu0 0.0
    %717 = vmatprep.subr.mxu0 0.0
    %718 = vmatpush1.msra.mxu0 0.0
    %719 = vmatprep.subr.mxu0 0.0
    %720 = vmatpush1.msra.mxu0 0.0
    %721 = vmatprep.subr.mxu0 0.0
    %722 = vmatpush1.msra.mxu0 0.0
    %723 = vmatprep.subr.mxu0 0.0
    %724 = vmatpush1.msra.mxu0 0.0
    %725 = vmatprep.subr.mxu0 0.0
    %726 = vmatpush1.msra.mxu0 0.0
    %727 = vmatprep.subr.mxu0 0.0
    %728 = vmatpush1.msra.mxu0 0.0
    %729 = vmatprep.subr.mxu0 0.0
    %730 = vmatpush1.msra.mxu0 0.0
    %731 = vmatprep.subr.mxu0 0.0
    %732 = vmatpush1.msra.mxu0 0.0
    %733 = vmatprep.subr.mxu0 0.0
    %734 = vmatpush1.msra.mxu0 0.0
    %735 = vmatprep.subr.mxu0 0.0
    %736 = vmatpush1.msra.mxu0 0.0
    %737 = vmatprep.subr.mxu0 0.0
    %738 = vmatpush1.msra.mxu0 0.0
    %739 = vmatprep.subr.mxu0 0.0
    %740 = vmatpush1.msra.mxu0 0.0
    %741 = vmatprep.mubr.f32.mxu0 0.0
    %742 = vmatmul.mubr.f32.gmra.mrb[0].mxu0 %v604
    %v743 = vpop.f32.mrb[0].mxu0
    %v744 = vadd.f32 0.0, %v743
    %v745 = vpop.f32.mrb[0].mxu0
    %v746 = vadd.f32 0.0, %v745
    %747 = vdwg.mxu0
    %v748 = vadd.f32 %v486, %v673
    %v749 = vadd.f32 %v488, %v675
    %v750 = vadd.f32 %v557, %v744
    %v751 = vadd.f32 %v559, %v746
    %752 = vrot.lane.b32.xlu0 %v222, 15
    %v753 = vpop.permute.xlu0 %752
    %754 = vrot.lane.b32.xlu0 %v223, 15
    %v755 = vpop.permute.xlu0 %754
    %756 = vrot.lane.b32.xlu0 %v224, 15
    %v757 = vpop.permute.xlu0 %756
    %758 = vrot.lane.b32.xlu0 %v225, 15
    %v759 = vpop.permute.xlu0 %758
    %vm760 = vcmp.lt.s32.totalorder %v237, 15
    %v761 = vsel %vm760, %v757, %v759
    %v762 = vsel %vm760, %v755, %v757
    %v763 = vsel %vm760, %v753, %v755
    %v764 = vsel %vm760, %v759, %v753
    %s765 = scalar_lea.vmem %s3, 2
    %v766 = vld [vmem:[%s765] ss:$8 sm:$0xf]
    %v768 = vlaneseq
    %v769 = vshrl.u32 %v768, 7
    %v770 = vsub.s32 0, %v769
    %v771 = vrot.slane %v766, %v770
    %v772 = vlaneseq
    %v773 = vshrl.u32 %v772, 7
    %v774 = vsub.s32 1, %v773
    %v775 = vrot.slane %v766, %v774
    %v776 = vlaneseq
    %v777 = vshrl.u32 %v776, 7
    %v778 = vsub.s32 2, %v777
    %v779 = vrot.slane %v766, %v778
    %v780 = vlaneseq
    %v781 = vshrl.u32 %v780, 7
    %v782 = vsub.s32 3, %v781
    %v783 = vrot.slane %v766, %v782
    %v788 = vmul.f32 %v764, %v771
    %v789 = vmul.f32 %v763, %v775
    %v790 = vmul.f32 %v762, %v779
    %v791 = vmul.f32 %v761, %v783
    %s792 = scalar_lea.vmem %s1, 24
    %v793 = vld [vmem:[%s792] sm:$0xff]
    %v795 = vsel %vm34, %v793, 0
    %797 = vmatprep.subr.mxu0 %v789
    %798 = vmatpush1.msra.mxu0 %v788
    %799 = vmatprep.subr.mxu0 0.0
    %800 = vmatpush1.msra.mxu0 0.0
    %801 = vmatprep.subr.mxu0 0.0
    %802 = vmatpush1.msra.mxu0 0.0
    %803 = vmatprep.subr.mxu0 0.0
    %804 = vmatpush1.msra.mxu0 0.0
    %805 = vmatprep.subr.mxu0 0.0
    %806 = vmatpush1.msra.mxu0 0.0
    %807 = vmatprep.subr.mxu0 0.0
    %808 = vmatpush1.msra.mxu0 0.0
    %809 = vmatprep.subr.mxu0 0.0
    %810 = vmatpush1.msra.mxu0 0.0
    %811 = vmatprep.subr.mxu0 0.0
    %812 = vmatpush1.msra.mxu0 0.0
    %813 = vmatprep.subr.mxu0 0.0
    %814 = vmatpush1.msra.mxu0 0.0
    %815 = vmatprep.subr.mxu0 0.0
    %816 = vmatpush1.msra.mxu0 0.0
    %817 = vmatprep.subr.mxu0 0.0
    %818 = vmatpush1.msra.mxu0 0.0
    %819 = vmatprep.subr.mxu0 0.0
    %820 = vmatpush1.msra.mxu0 0.0
    %821 = vmatprep.subr.mxu0 0.0
    %822 = vmatpush1.msra.mxu0 0.0
    %823 = vmatprep.subr.mxu0 0.0
    %824 = vmatpush1.msra.mxu0 0.0
    %825 = vmatprep.subr.mxu0 0.0
    %826 = vmatpush1.msra.mxu0 0.0
    %827 = vmatprep.subr.mxu0 0.0
    %828 = vmatpush1.msra.mxu0 0.0
    %829 = vmatprep.subr.mxu0 0.0
    %830 = vmatpush1.msra.mxu0 0.0
    %831 = vmatprep.subr.mxu0 0.0
    %832 = vmatpush1.msra.mxu0 0.0
    %833 = vmatprep.subr.mxu0 0.0
    %834 = vmatpush1.msra.mxu0 0.0
    %835 = vmatprep.subr.mxu0 0.0
    %836 = vmatpush1.msra.mxu0 0.0
    %837 = vmatprep.subr.mxu0 0.0
    %838 = vmatpush1.msra.mxu0 0.0
    %839 = vmatprep.subr.mxu0 0.0
    %840 = vmatpush1.msra.mxu0 0.0
    %841 = vmatprep.subr.mxu0 0.0
    %842 = vmatpush1.msra.mxu0 0.0
    %843 = vmatprep.subr.mxu0 0.0
    %844 = vmatpush1.msra.mxu0 0.0
    %845 = vmatprep.subr.mxu0 0.0
    %846 = vmatpush1.msra.mxu0 0.0
    %847 = vmatprep.subr.mxu0 0.0
    %848 = vmatpush1.msra.mxu0 0.0
    %849 = vmatprep.subr.mxu0 0.0
    %850 = vmatpush1.msra.mxu0 0.0
    %851 = vmatprep.subr.mxu0 0.0
    %852 = vmatpush1.msra.mxu0 0.0
    %853 = vmatprep.subr.mxu0 0.0
    %854 = vmatpush1.msra.mxu0 0.0
    %855 = vmatprep.subr.mxu0 0.0
    %856 = vmatpush1.msra.mxu0 0.0
    %857 = vmatprep.subr.mxu0 0.0
    %858 = vmatpush1.msra.mxu0 0.0
    %859 = vmatprep.subr.mxu0 0.0
    %860 = vmatpush1.msra.mxu0 0.0
    %861 = vmatprep.mubr.f32.mxu0 0.0
    %862 = vmatmul.mubr.f32.gmra.mrb[0].mxu0 %v795
    %v863 = vpop.f32.mrb[0].mxu0
    %v864 = vadd.f32 0.0, %v863
    %v865 = vpop.f32.mrb[0].mxu0
    %v866 = vadd.f32 0.0, %v865
    %867 = vdwg.mxu0
    %868 = vmatprep.subr.mxu0 %v791
    %869 = vmatpush1.msra.mxu0 %v790
    %870 = vmatprep.subr.mxu0 0.0
    %871 = vmatpush1.msra.mxu0 0.0
    %872 = vmatprep.subr.mxu0 0.0
    %873 = vmatpush1.msra.mxu0 0.0
    %874 = vmatprep.subr.mxu0 0.0
    %875 = vmatpush1.msra.mxu0 0.0
    %876 = vmatprep.subr.mxu0 0.0
    %877 = vmatpush1.msra.mxu0 0.0
    %878 = vmatprep.subr.mxu0 0.0
    %879 = vmatpush1.msra.mxu0 0.0
    %880 = vmatprep.subr.mxu0 0.0
    %881 = vmatpush1.msra.mxu0 0.0
    %882 = vmatprep.subr.mxu0 0.0
    %883 = vmatpush1.msra.mxu0 0.0
    %884 = vmatprep.subr.mxu0 0.0
    %885 = vmatpush1.msra.mxu0 0.0
    %886 = vmatprep.subr.mxu0 0.0
    %887 = vmatpush1.msra.mxu0 0.0
    %888 = vmatprep.subr.mxu0 0.0
    %889 = vmatpush1.msra.mxu0 0.0
    %890 = vmatprep.subr.mxu0 0.0
    %891 = vmatpush1.msra.mxu0 0.0
    %892 = vmatprep.subr.mxu0 0.0
    %893 = vmatpush1.msra.mxu0 0.0
    %894 = vmatprep.subr.mxu0 0.0
    %895 = vmatpush1.msra.mxu0 0.0
    %896 = vmatprep.subr.mxu0 0.0
    %897 = vmatpush1.msra.mxu0 0.0
    %898 = vmatprep.subr.mxu0 0.0
    %899 = vmatpush1.msra.mxu0 0.0
    %900 = vmatprep.subr.mxu0 0.0
    %901 = vmatpush1.msra.mxu0 0.0
    %902 = vmatprep.subr.mxu0 0.0
    %903 = vmatpush1.msra.mxu0 0.0
    %904 = vmatprep.subr.mxu0 0.0
    %905 = vmatpush1.msra.mxu0 0.0
    %906 = vmatprep.subr.mxu0 0.0
    %907 = vmatpush1.msra.mxu0 0.0
    %908 = vmatprep.subr.mxu0 0.0
    %909 = vmatpush1.msra.mxu0 0.0
    %910 = vmatprep.subr.mxu0 0.0
    %911 = vmatpush1.msra.mxu0 0.0
    %912 = vmatprep.subr.mxu0 0.0
    %913 = vmatpush1.msra.mxu0 0.0
    %914 = vmatprep.subr.mxu0 0.0
    %915 = vmatpush1.msra.mxu0 0.0
    %916 = vmatprep.subr.mxu0 0.0
    %917 = vmatpush1.msra.mxu0 0.0
    %918 = vmatprep.subr.mxu0 0.0
    %919 = vmatpush1.msra.mxu0 0.0
    %920 = vmatprep.subr.mxu0 0.0
    %921 = vmatpush1.msra.mxu0 0.0
    %922 = vmatprep.subr.mxu0 0.0
    %923 = vmatpush1.msra.mxu0 0.0
    %924 = vmatprep.subr.mxu0 0.0
    %925 = vmatpush1.msra.mxu0 0.0
    %926 = vmatprep.subr.mxu0 0.0
    %927 = vmatpush1.msra.mxu0 0.0
    %928 = vmatprep.subr.mxu0 0.0
    %929 = vmatpush1.msra.mxu0 0.0
    %930 = vmatprep.subr.mxu0 0.0
    %931 = vmatpush1.msra.mxu0 0.0
    %932 = vmatprep.mubr.f32.mxu0 0.0
    %933 = vmatmul.mubr.f32.gmra.mrb[0].mxu0 %v795
    %v934 = vpop.f32.mrb[0].mxu0
    %v935 = vadd.f32 0.0, %v934
    %v936 = vpop.f32.mrb[0].mxu0
    %v937 = vadd.f32 0.0, %v936
    %938 = vdwg.mxu0
    %v939 = vadd.f32 %v748, %v864
    %v940 = vadd.f32 %v749, %v866
    %v941 = vadd.f32 %v750, %v935
    %v942 = vadd.f32 %v751, %v937
    %943 = vrot.lane.b32.xlu0 %v222, 1
    %v944 = vpop.permute.xlu0 %943
    %945 = vrot.lane.b32.xlu0 %v223, 1
    %v946 = vpop.permute.xlu0 %945
    %947 = vrot.lane.b32.xlu0 %v224, 1
    %v948 = vpop.permute.xlu0 %947
    %949 = vrot.lane.b32.xlu0 %v225, 1
    %v950 = vpop.permute.xlu0 %949
    %vm951 = vcmp.lt.s32.totalorder %v237, 1
    %v952 = vsel %vm951, %v948, %v950
    %v953 = vsel %vm951, %v946, %v948
    %v954 = vsel %vm951, %v944, %v946
    %v955 = vsel %vm951, %v950, %v944
    %s956 = scalar_lea.vmem %s3, 3
    %v957 = vld [vmem:[%s956] ss:$8 sm:$0xf]
    %v959 = vlaneseq
    %v960 = vshrl.u32 %v959, 7
    %v961 = vsub.s32 0, %v960
    %v962 = vrot.slane %v957, %v961
    %v963 = vlaneseq
    %v964 = vshrl.u32 %v963, 7
    %v965 = vsub.s32 1, %v964
    %v966 = vrot.slane %v957, %v965
    %v967 = vlaneseq
    %v968 = vshrl.u32 %v967, 7
    %v969 = vsub.s32 2, %v968
    %v970 = vrot.slane %v957, %v969
    %v971 = vlaneseq
    %v972 = vshrl.u32 %v971, 7
    %v973 = vsub.s32 3, %v972
    %v974 = vrot.slane %v957, %v973
    %v979 = vmul.f32 %v955, %v962
    %v980 = vmul.f32 %v954, %v966
    %v981 = vmul.f32 %v953, %v970
    %v982 = vmul.f32 %v952, %v974
    %s983 = scalar_lea.vmem %s1, 32
    %v984 = vld [vmem:[%s983] sm:$0xff]
    %v986 = vsel %vm34, %v984, 0
    %988 = vmatprep.subr.mxu0 %v980
    %989 = vmatpush1.msra.mxu0 %v979
    %990 = vmatprep.subr.mxu0 0.0
    %991 = vmatpush1.msra.mxu0 0.0
    %992 = vmatprep.subr.mxu0 0.0
    %993 = vmatpush1.msra.mxu0 0.0
    %994 = vmatprep.subr.mxu0 0.0
    %995 = vmatpush1.msra.mxu0 0.0
    %996 = vmatprep.subr.mxu0 0.0
    %997 = vmatpush1.msra.mxu0 0.0
    %998 = vmatprep.subr.mxu0 0.0
    %999 = vmatpush1.msra.mxu0 0.0
    %1000 = vmatprep.subr.mxu0 0.0
    %1001 = vmatpush1.msra.mxu0 0.0
    %1002 = vmatprep.subr.mxu0 0.0
    %1003 = vmatpush1.msra.mxu0 0.0
    %1004 = vmatprep.subr.mxu0 0.0
    %1005 = vmatpush1.msra.mxu0 0.0
    %1006 = vmatprep.subr.mxu0 0.0
    %1007 = vmatpush1.msra.mxu0 0.0
    %1008 = vmatprep.subr.mxu0 0.0
    %1009 = vmatpush1.msra.mxu0 0.0
    %1010 = vmatprep.subr.mxu0 0.0
    %1011 = vmatpush1.msra.mxu0 0.0
    %1012 = vmatprep.subr.mxu0 0.0
    %1013 = vmatpush1.msra.mxu0 0.0
    %1014 = vmatprep.subr.mxu0 0.0
    %1015 = vmatpush1.msra.mxu0 0.0
    %1016 = vmatprep.subr.mxu0 0.0
    %1017 = vmatpush1.msra.mxu0 0.0
    %1018 = vmatprep.subr.mxu0 0.0
    %1019 = vmatpush1.msra.mxu0 0.0
    %1020 = vmatprep.subr.mxu0 0.0
    %1021 = vmatpush1.msra.mxu0 0.0
    %1022 = vmatprep.subr.mxu0 0.0
    %1023 = vmatpush1.msra.mxu0 0.0
    %1024 = vmatprep.subr.mxu0 0.0
    %1025 = vmatpush1.msra.mxu0 0.0
    %1026 = vmatprep.subr.mxu0 0.0
    %1027 = vmatpush1.msra.mxu0 0.0
    %1028 = vmatprep.subr.mxu0 0.0
    %1029 = vmatpush1.msra.mxu0 0.0
    %1030 = vmatprep.subr.mxu0 0.0
    %1031 = vmatpush1.msra.mxu0 0.0
    %1032 = vmatprep.subr.mxu0 0.0
    %1033 = vmatpush1.msra.mxu0 0.0
    %1034 = vmatprep.subr.mxu0 0.0
    %1035 = vmatpush1.msra.mxu0 0.0
    %1036 = vmatprep.subr.mxu0 0.0
    %1037 = vmatpush1.msra.mxu0 0.0
    %1038 = vmatprep.subr.mxu0 0.0
    %1039 = vmatpush1.msra.mxu0 0.0
    %1040 = vmatprep.subr.mxu0 0.0
    %1041 = vmatpush1.msra.mxu0 0.0
    %1042 = vmatprep.subr.mxu0 0.0
    %1043 = vmatpush1.msra.mxu0 0.0
    %1044 = vmatprep.subr.mxu0 0.0
    %1045 = vmatpush1.msra.mxu0 0.0
    %1046 = vmatprep.subr.mxu0 0.0
    %1047 = vmatpush1.msra.mxu0 0.0
    %1048 = vmatprep.subr.mxu0 0.0
    %1049 = vmatpush1.msra.mxu0 0.0
    %1050 = vmatprep.subr.mxu0 0.0
    %1051 = vmatpush1.msra.mxu0 0.0
    %1052 = vmatprep.mubr.f32.mxu0 0.0
    %1053 = vmatmul.mubr.f32.gmra.mrb[0].mxu0 %v986
    %v1054 = vpop.f32.mrb[0].mxu0
    %v1055 = vadd.f32 0.0, %v1054
    %v1056 = vpop.f32.mrb[0].mxu0
    %v1057 = vadd.f32 0.0, %v1056
    %1058 = vdwg.mxu0
    %1059 = vmatprep.subr.mxu0 %v982
    %1060 = vmatpush1.msra.mxu0 %v981
    %1061 = vmatprep.subr.mxu0 0.0
    %1062 = vmatpush1.msra.mxu0 0.0
    %1063 = vmatprep.subr.mxu0 0.0
    %1064 = vmatpush1.msra.mxu0 0.0
    %1065 = vmatprep.subr.mxu0 0.0
    %1066 = vmatpush1.msra.mxu0 0.0
    %1067 = vmatprep.subr.mxu0 0.0
    %1068 = vmatpush1.msra.mxu0 0.0
    %1069 = vmatprep.subr.mxu0 0.0
    %1070 = vmatpush1.msra.mxu0 0.0
    %1071 = vmatprep.subr.mxu0 0.0
    %1072 = vmatpush1.msra.mxu0 0.0
    %1073 = vmatprep.subr.mxu0 0.0
    %1074 = vmatpush1.msra.mxu0 0.0
    %1075 = vmatprep.subr.mxu0 0.0
    %1076 = vmatpush1.msra.mxu0 0.0
    %1077 = vmatprep.subr.mxu0 0.0
    %1078 = vmatpush1.msra.mxu0 0.0
    %1079 = vmatprep.subr.mxu0 0.0
    %1080 = vmatpush1.msra.mxu0 0.0
    %1081 = vmatprep.subr.mxu0 0.0
    %1082 = vmatpush1.msra.mxu0 0.0
    %1083 = vmatprep.subr.mxu0 0.0
    %1084 = vmatpush1.msra.mxu0 0.0
    %1085 = vmatprep.subr.mxu0 0.0
    %1086 = vmatpush1.msra.mxu0 0.0
    %1087 = vmatprep.subr.mxu0 0.0
    %1088 = vmatpush1.msra.mxu0 0.0
    %1089 = vmatprep.subr.mxu0 0.0
    %1090 = vmatpush1.msra.mxu0 0.0
    %1091 = vmatprep.subr.mxu0 0.0
    %1092 = vmatpush1.msra.mxu0 0.0
    %1093 = vmatprep.subr.mxu0 0.0
    %1094 = vmatpush1.msra.mxu0 0.0
    %1095 = vmatprep.subr.mxu0 0.0
    %1096 = vmatpush1.msra.mxu0 0.0
    %1097 = vmatprep.subr.mxu0 0.0
    %1098 = vmatpush1.msra.mxu0 0.0
    %1099 = vmatprep.subr.mxu0 0.0
    %1100 = vmatpush1.msra.mxu0 0.0
    %1101 = vmatprep.subr.mxu0 0.0
    %1102 = vmatpush1.msra.mxu0 0.0
    %1103 = vmatprep.subr.mxu0 0.0
    %1104 = vmatpush1.msra.mxu0 0.0
    %1105 = vmatprep.subr.mxu0 0.0
    %1106 = vmatpush1.msra.mxu0 0.0
    %1107 = vmatprep.subr.mxu0 0.0
    %1108 = vmatpush1.msra.mxu0 0.0
    %1109 = vmatprep.subr.mxu0 0.0
    %1110 = vmatpush1.msra.mxu0 0.0
    %1111 = vmatprep.subr.mxu0 0.0
    %1112 = vmatpush1.msra.mxu0 0.0
    %1113 = vmatprep.subr.mxu0 0.0
    %1114 = vmatpush1.msra.mxu0 0.0
    %1115 = vmatprep.subr.mxu0 0.0
    %1116 = vmatpush1.msra.mxu0 0.0
    %1117 = vmatprep.subr.mxu0 0.0
    %1118 = vmatpush1.msra.mxu0 0.0
    %1119 = vmatprep.subr.mxu0 0.0
    %1120 = vmatpush1.msra.mxu0 0.0
    %1121 = vmatprep.subr.mxu0 0.0
    %1122 = vmatpush1.msra.mxu0 0.0
    %1123 = vmatprep.mubr.f32.mxu0 0.0
    %1124 = vmatmul.mubr.f32.gmra.mrb[0].mxu0 %v986
    %v1125 = vpop.f32.mrb[0].mxu0
    %v1126 = vadd.f32 0.0, %v1125
    %v1127 = vpop.f32.mrb[0].mxu0
    %v1128 = vadd.f32 0.0, %v1127
    %1129 = vdwg.mxu0
    %v1130 = vadd.f32 %v939, %v1055
    %v1131 = vadd.f32 %v940, %v1057
    %v1132 = vadd.f32 %v941, %v1126
    %v1133 = vadd.f32 %v942, %v1128
    %1134 = vrot.lane.b32.xlu0 %v222, 127
    %v1135 = vpop.permute.xlu0 %1134
    %1136 = vrot.lane.b32.xlu0 %v223, 127
    %v1137 = vpop.permute.xlu0 %1136
    %1138 = vrot.lane.b32.xlu0 %v224, 127
    %v1139 = vpop.permute.xlu0 %1138
    %1140 = vrot.lane.b32.xlu0 %v225, 127
    %v1141 = vpop.permute.xlu0 %1140
    %vm1142 = vcmp.lt.s32.totalorder %v237, 127
    %v1143 = vsel %vm1142, %v1139, %v1141
    %v1144 = vsel %vm1142, %v1137, %v1139
    %v1145 = vsel %vm1142, %v1135, %v1137
    %v1146 = vsel %vm1142, %v1141, %v1135
    %s1147 = scalar_lea.vmem %s3, 4
    %v1148 = vld [vmem:[%s1147] ss:$8 sm:$0xf]
    %v1150 = vlaneseq
    %v1151 = vshrl.u32 %v1150, 7
    %v1152 = vsub.s32 0, %v1151
    %v1153 = vrot.slane %v1148, %v1152
    %v1154 = vlaneseq
    %v1155 = vshrl.u32 %v1154, 7
    %v1156 = vsub.s32 1, %v1155
    %v1157 = vrot.slane %v1148, %v1156
    %v1158 = vlaneseq
    %v1159 = vshrl.u32 %v1158, 7
    %v1160 = vsub.s32 2, %v1159
    %v1161 = vrot.slane %v1148, %v1160
    %v1162 = vlaneseq
    %v1163 = vshrl.u32 %v1162, 7
    %v1164 = vsub.s32 3, %v1163
    %v1165 = vrot.slane %v1148, %v1164
    %v1170 = vmul.f32 %v1145, %v1153
    %v1171 = vmul.f32 %v1144, %v1157
    %v1172 = vmul.f32 %v1143, %v1161
    %v1173 = vmul.f32 %v1146, %v1165
    %s1174 = scalar_lea.vmem %s1, 48
    %v1175 = vld [vmem:[%s1174] sm:$0xff]
    %v1177 = vsel %vm34, %v1175, 0
    %1179 = vmatprep.subr.mxu0 %v1171
    %1180 = vmatpush1.msra.mxu0 %v1170
    %1181 = vmatprep.subr.mxu0 0.0
    %1182 = vmatpush1.msra.mxu0 0.0
    %1183 = vmatprep.subr.mxu0 0.0
    %1184 = vmatpush1.msra.mxu0 0.0
    %1185 = vmatprep.subr.mxu0 0.0
    %1186 = vmatpush1.msra.mxu0 0.0
    %1187 = vmatprep.subr.mxu0 0.0
    %1188 = vmatpush1.msra.mxu0 0.0
    %1189 = vmatprep.subr.mxu0 0.0
    %1190 = vmatpush1.msra.mxu0 0.0
    %1191 = vmatprep.subr.mxu0 0.0
    %1192 = vmatpush1.msra.mxu0 0.0
    %1193 = vmatprep.subr.mxu0 0.0
    %1194 = vmatpush1.msra.mxu0 0.0
    %1195 = vmatprep.subr.mxu0 0.0
    %1196 = vmatpush1.msra.mxu0 0.0
    %1197 = vmatprep.subr.mxu0 0.0
    %1198 = vmatpush1.msra.mxu0 0.0
    %1199 = vmatprep.subr.mxu0 0.0
    %1200 = vmatpush1.msra.mxu0 0.0
    %1201 = vmatprep.subr.mxu0 0.0
    %1202 = vmatpush1.msra.mxu0 0.0
    %1203 = vmatprep.subr.mxu0 0.0
    %1204 = vmatpush1.msra.mxu0 0.0
    %1205 = vmatprep.subr.mxu0 0.0
    %1206 = vmatpush1.msra.mxu0 0.0
    %1207 = vmatprep.subr.mxu0 0.0
    %1208 = vmatpush1.msra.mxu0 0.0
    %1209 = vmatprep.subr.mxu0 0.0
    %1210 = vmatpush1.msra.mxu0 0.0
    %1211 = vmatprep.subr.mxu0 0.0
    %1212 = vmatpush1.msra.mxu0 0.0
    %1213 = vmatprep.subr.mxu0 0.0
    %1214 = vmatpush1.msra.mxu0 0.0
    %1215 = vmatprep.subr.mxu0 0.0
    %1216 = vmatpush1.msra.mxu0 0.0
    %1217 = vmatprep.subr.mxu0 0.0
    %1218 = vmatpush1.msra.mxu0 0.0
    %1219 = vmatprep.subr.mxu0 0.0
    %1220 = vmatpush1.msra.mxu0 0.0
    %1221 = vmatprep.subr.mxu0 0.0
    %1222 = vmatpush1.msra.mxu0 0.0
    %1223 = vmatprep.subr.mxu0 0.0
    %1224 = vmatpush1.msra.mxu0 0.0
    %1225 = vmatprep.subr.mxu0 0.0
    %1226 = vmatpush1.msra.mxu0 0.0
    %1227 = vmatprep.subr.mxu0 0.0
    %1228 = vmatpush1.msra.mxu0 0.0
    %1229 = vmatprep.subr.mxu0 0.0
    %1230 = vmatpush1.msra.mxu0 0.0
    %1231 = vmatprep.subr.mxu0 0.0
    %1232 = vmatpush1.msra.mxu0 0.0
    %1233 = vmatprep.subr.mxu0 0.0
    %1234 = vmatpush1.msra.mxu0 0.0
    %1235 = vmatprep.subr.mxu0 0.0
    %1236 = vmatpush1.msra.mxu0 0.0
    %1237 = vmatprep.subr.mxu0 0.0
    %1238 = vmatpush1.msra.mxu0 0.0
    %1239 = vmatprep.subr.mxu0 0.0
    %1240 = vmatpush1.msra.mxu0 0.0
    %1241 = vmatprep.subr.mxu0 0.0
    %1242 = vmatpush1.msra.mxu0 0.0
    %1243 = vmatprep.mubr.f32.mxu0 0.0
    %1244 = vmatmul.mubr.f32.gmra.mrb[0].mxu0 %v1177
    %v1245 = vpop.f32.mrb[0].mxu0
    %v1246 = vadd.f32 0.0, %v1245
    %v1247 = vpop.f32.mrb[0].mxu0
    %v1248 = vadd.f32 0.0, %v1247
    %1249 = vdwg.mxu0
    %1250 = vmatprep.subr.mxu0 %v1173
    %1251 = vmatpush1.msra.mxu0 %v1172
    %1252 = vmatprep.subr.mxu0 0.0
    %1253 = vmatpush1.msra.mxu0 0.0
    %1254 = vmatprep.subr.mxu0 0.0
    %1255 = vmatpush1.msra.mxu0 0.0
    %1256 = vmatprep.subr.mxu0 0.0
    %1257 = vmatpush1.msra.mxu0 0.0
    %1258 = vmatprep.subr.mxu0 0.0
    %1259 = vmatpush1.msra.mxu0 0.0
    %1260 = vmatprep.subr.mxu0 0.0
    %1261 = vmatpush1.msra.mxu0 0.0
    %1262 = vmatprep.subr.mxu0 0.0
    %1263 = vmatpush1.msra.mxu0 0.0
    %1264 = vmatprep.subr.mxu0 0.0
    %1265 = vmatpush1.msra.mxu0 0.0
    %1266 = vmatprep.subr.mxu0 0.0
    %1267 = vmatpush1.msra.mxu0 0.0
    %1268 = vmatprep.subr.mxu0 0.0
    %1269 = vmatpush1.msra.mxu0 0.0
    %1270 = vmatprep.subr.mxu0 0.0
    %1271 = vmatpush1.msra.mxu0 0.0
    %1272 = vmatprep.subr.mxu0 0.0
    %1273 = vmatpush1.msra.mxu0 0.0
    %1274 = vmatprep.subr.mxu0 0.0
    %1275 = vmatpush1.msra.mxu0 0.0
    %1276 = vmatprep.subr.mxu0 0.0
    %1277 = vmatpush1.msra.mxu0 0.0
    %1278 = vmatprep.subr.mxu0 0.0
    %1279 = vmatpush1.msra.mxu0 0.0
    %1280 = vmatprep.subr.mxu0 0.0
    %1281 = vmatpush1.msra.mxu0 0.0
    %1282 = vmatprep.subr.mxu0 0.0
    %1283 = vmatpush1.msra.mxu0 0.0
    %1284 = vmatprep.subr.mxu0 0.0
    %1285 = vmatpush1.msra.mxu0 0.0
    %1286 = vmatprep.subr.mxu0 0.0
    %1287 = vmatpush1.msra.mxu0 0.0
    %1288 = vmatprep.subr.mxu0 0.0
    %1289 = vmatpush1.msra.mxu0 0.0
    %1290 = vmatprep.subr.mxu0 0.0
    %1291 = vmatpush1.msra.mxu0 0.0
    %1292 = vmatprep.subr.mxu0 0.0
    %1293 = vmatpush1.msra.mxu0 0.0
    %1294 = vmatprep.subr.mxu0 0.0
    %1295 = vmatpush1.msra.mxu0 0.0
    %1296 = vmatprep.subr.mxu0 0.0
    %1297 = vmatpush1.msra.mxu0 0.0
    %1298 = vmatprep.subr.mxu0 0.0
    %1299 = vmatpush1.msra.mxu0 0.0
    %1300 = vmatprep.subr.mxu0 0.0
    %1301 = vmatpush1.msra.mxu0 0.0
    %1302 = vmatprep.subr.mxu0 0.0
    %1303 = vmatpush1.msra.mxu0 0.0
    %1304 = vmatprep.subr.mxu0 0.0
    %1305 = vmatpush1.msra.mxu0 0.0
    %1306 = vmatprep.subr.mxu0 0.0
    %1307 = vmatpush1.msra.mxu0 0.0
    %1308 = vmatprep.subr.mxu0 0.0
    %1309 = vmatpush1.msra.mxu0 0.0
    %1310 = vmatprep.subr.mxu0 0.0
    %1311 = vmatpush1.msra.mxu0 0.0
    %1312 = vmatprep.subr.mxu0 0.0
    %1313 = vmatpush1.msra.mxu0 0.0
    %1314 = vmatprep.mubr.f32.mxu0 0.0
    %1315 = vmatmul.mubr.f32.gmra.mrb[0].mxu0 %v1177
    %v1316 = vpop.f32.mrb[0].mxu0
    %v1317 = vadd.f32 0.0, %v1316
    %v1318 = vpop.f32.mrb[0].mxu0
    %v1319 = vadd.f32 0.0, %v1318
    %1320 = vdwg.mxu0
    %v1321 = vadd.f32 %v1130, %v1246
    %v1322 = vadd.f32 %v1131, %v1248
    %v1323 = vadd.f32 %v1132, %v1317
    %v1324 = vadd.f32 %v1133, %v1319
    %1325 = vrot.lane.b32.xlu0 %v222, 113
    %v1326 = vpop.permute.xlu0 %1325
    %1327 = vrot.lane.b32.xlu0 %v223, 113
    %v1328 = vpop.permute.xlu0 %1327
    %1329 = vrot.lane.b32.xlu0 %v224, 113
    %v1330 = vpop.permute.xlu0 %1329
    %1331 = vrot.lane.b32.xlu0 %v225, 113
    %v1332 = vpop.permute.xlu0 %1331
    %vm1333 = vcmp.lt.s32.totalorder %v237, 113
    %v1334 = vsel %vm1333, %v1330, %v1332
    %v1335 = vsel %vm1333, %v1328, %v1330
    %v1336 = vsel %vm1333, %v1326, %v1328
    %v1337 = vsel %vm1333, %v1332, %v1326
    %s1338 = scalar_lea.vmem %s3, 5
    %v1339 = vld [vmem:[%s1338] ss:$8 sm:$0xf]
    %v1341 = vlaneseq
    %v1342 = vshrl.u32 %v1341, 7
    %v1343 = vsub.s32 0, %v1342
    %v1344 = vrot.slane %v1339, %v1343
    %v1345 = vlaneseq
    %v1346 = vshrl.u32 %v1345, 7
    %v1347 = vsub.s32 1, %v1346
    %v1348 = vrot.slane %v1339, %v1347
    %v1349 = vlaneseq
    %v1350 = vshrl.u32 %v1349, 7
    %v1351 = vsub.s32 2, %v1350
    %v1352 = vrot.slane %v1339, %v1351
    %v1353 = vlaneseq
    %v1354 = vshrl.u32 %v1353, 7
    %v1355 = vsub.s32 3, %v1354
    %v1356 = vrot.slane %v1339, %v1355
    %v1361 = vmul.f32 %v1336, %v1344
    %v1362 = vmul.f32 %v1335, %v1348
    %v1363 = vmul.f32 %v1334, %v1352
    %v1364 = vmul.f32 %v1337, %v1356
    %s1365 = scalar_lea.vmem %s1, 56
    %v1366 = vld [vmem:[%s1365] sm:$0xff]
    %v1368 = vsel %vm34, %v1366, 0
    %1370 = vmatprep.subr.mxu0 %v1362
    %1371 = vmatpush1.msra.mxu0 %v1361
    %1372 = vmatprep.subr.mxu0 0.0
    %1373 = vmatpush1.msra.mxu0 0.0
    %1374 = vmatprep.subr.mxu0 0.0
    %1375 = vmatpush1.msra.mxu0 0.0
    %1376 = vmatprep.subr.mxu0 0.0
    %1377 = vmatpush1.msra.mxu0 0.0
    %1378 = vmatprep.subr.mxu0 0.0
    %1379 = vmatpush1.msra.mxu0 0.0
    %1380 = vmatprep.subr.mxu0 0.0
    %1381 = vmatpush1.msra.mxu0 0.0
    %1382 = vmatprep.subr.mxu0 0.0
    %1383 = vmatpush1.msra.mxu0 0.0
    %1384 = vmatprep.subr.mxu0 0.0
    %1385 = vmatpush1.msra.mxu0 0.0
    %1386 = vmatprep.subr.mxu0 0.0
    %1387 = vmatpush1.msra.mxu0 0.0
    %1388 = vmatprep.subr.mxu0 0.0
    %1389 = vmatpush1.msra.mxu0 0.0
    %1390 = vmatprep.subr.mxu0 0.0
    %1391 = vmatpush1.msra.mxu0 0.0
    %1392 = vmatprep.subr.mxu0 0.0
    %1393 = vmatpush1.msra.mxu0 0.0
    %1394 = vmatprep.subr.mxu0 0.0
    %1395 = vmatpush1.msra.mxu0 0.0
    %1396 = vmatprep.subr.mxu0 0.0
    %1397 = vmatpush1.msra.mxu0 0.0
    %1398 = vmatprep.subr.mxu0 0.0
    %1399 = vmatpush1.msra.mxu0 0.0
    %1400 = vmatprep.subr.mxu0 0.0
    %1401 = vmatpush1.msra.mxu0 0.0
    %1402 = vmatprep.subr.mxu0 0.0
    %1403 = vmatpush1.msra.mxu0 0.0
    %1404 = vmatprep.subr.mxu0 0.0
    %1405 = vmatpush1.msra.mxu0 0.0
    %1406 = vmatprep.subr.mxu0 0.0
    %1407 = vmatpush1.msra.mxu0 0.0
    %1408 = vmatprep.subr.mxu0 0.0
    %1409 = vmatpush1.msra.mxu0 0.0
    %1410 = vmatprep.subr.mxu0 0.0
    %1411 = vmatpush1.msra.mxu0 0.0
    %1412 = vmatprep.subr.mxu0 0.0
    %1413 = vmatpush1.msra.mxu0 0.0
    %1414 = vmatprep.subr.mxu0 0.0
    %1415 = vmatpush1.msra.mxu0 0.0
    %1416 = vmatprep.subr.mxu0 0.0
    %1417 = vmatpush1.msra.mxu0 0.0
    %1418 = vmatprep.subr.mxu0 0.0
    %1419 = vmatpush1.msra.mxu0 0.0
    %1420 = vmatprep.subr.mxu0 0.0
    %1421 = vmatpush1.msra.mxu0 0.0
    %1422 = vmatprep.subr.mxu0 0.0
    %1423 = vmatpush1.msra.mxu0 0.0
    %1424 = vmatprep.subr.mxu0 0.0
    %1425 = vmatpush1.msra.mxu0 0.0
    %1426 = vmatprep.subr.mxu0 0.0
    %1427 = vmatpush1.msra.mxu0 0.0
    %1428 = vmatprep.subr.mxu0 0.0
    %1429 = vmatpush1.msra.mxu0 0.0
    %1430 = vmatprep.subr.mxu0 0.0
    %1431 = vmatpush1.msra.mxu0 0.0
    %1432 = vmatprep.subr.mxu0 0.0
    %1433 = vmatpush1.msra.mxu0 0.0
    %1434 = vmatprep.mubr.f32.mxu0 0.0
    %1435 = vmatmul.mubr.f32.gmra.mrb[0].mxu0 %v1368
    %v1436 = vpop.f32.mrb[0].mxu0
    %v1437 = vadd.f32 0.0, %v1436
    %v1438 = vpop.f32.mrb[0].mxu0
    %v1439 = vadd.f32 0.0, %v1438
    %1440 = vdwg.mxu0
    %1441 = vmatprep.subr.mxu0 %v1364
    %1442 = vmatpush1.msra.mxu0 %v1363
    %1443 = vmatprep.subr.mxu0 0.0
    %1444 = vmatpush1.msra.mxu0 0.0
    %1445 = vmatprep.subr.mxu0 0.0
    %1446 = vmatpush1.msra.mxu0 0.0
    %1447 = vmatprep.subr.mxu0 0.0
    %1448 = vmatpush1.msra.mxu0 0.0
    %1449 = vmatprep.subr.mxu0 0.0
    %1450 = vmatpush1.msra.mxu0 0.0
    %1451 = vmatprep.subr.mxu0 0.0
    %1452 = vmatpush1.msra.mxu0 0.0
    %1453 = vmatprep.subr.mxu0 0.0
    %1454 = vmatpush1.msra.mxu0 0.0
    %1455 = vmatprep.subr.mxu0 0.0
    %1456 = vmatpush1.msra.mxu0 0.0
    %1457 = vmatprep.subr.mxu0 0.0
    %1458 = vmatpush1.msra.mxu0 0.0
    %1459 = vmatprep.subr.mxu0 0.0
    %1460 = vmatpush1.msra.mxu0 0.0
    %1461 = vmatprep.subr.mxu0 0.0
    %1462 = vmatpush1.msra.mxu0 0.0
    %1463 = vmatprep.subr.mxu0 0.0
    %1464 = vmatpush1.msra.mxu0 0.0
    %1465 = vmatprep.subr.mxu0 0.0
    %1466 = vmatpush1.msra.mxu0 0.0
    %1467 = vmatprep.subr.mxu0 0.0
    %1468 = vmatpush1.msra.mxu0 0.0
    %1469 = vmatprep.subr.mxu0 0.0
    %1470 = vmatpush1.msra.mxu0 0.0
    %1471 = vmatprep.subr.mxu0 0.0
    %1472 = vmatpush1.msra.mxu0 0.0
    %1473 = vmatprep.subr.mxu0 0.0
    %1474 = vmatpush1.msra.mxu0 0.0
    %1475 = vmatprep.subr.mxu0 0.0
    %1476 = vmatpush1.msra.mxu0 0.0
    %1477 = vmatprep.subr.mxu0 0.0
    %1478 = vmatpush1.msra.mxu0 0.0
    %1479 = vmatprep.subr.mxu0 0.0
    %1480 = vmatpush1.msra.mxu0 0.0
    %1481 = vmatprep.subr.mxu0 0.0
    %1482 = vmatpush1.msra.mxu0 0.0
    %1483 = vmatprep.subr.mxu0 0.0
    %1484 = vmatpush1.msra.mxu0 0.0
    %1485 = vmatprep.subr.mxu0 0.0
    %1486 = vmatpush1.msra.mxu0 0.0
    %1487 = vmatprep.subr.mxu0 0.0
    %1488 = vmatpush1.msra.mxu0 0.0
    %1489 = vmatprep.subr.mxu0 0.0
    %1490 = vmatpush1.msra.mxu0 0.0
    %1491 = vmatprep.subr.mxu0 0.0
    %1492 = vmatpush1.msra.mxu0 0.0
    %1493 = vmatprep.subr.mxu0 0.0
    %1494 = vmatpush1.msra.mxu0 0.0
    %1495 = vmatprep.subr.mxu0 0.0
    %1496 = vmatpush1.msra.mxu0 0.0
    %1497 = vmatprep.subr.mxu0 0.0
    %1498 = vmatpush1.msra.mxu0 0.0
    %1499 = vmatprep.subr.mxu0 0.0
    %1500 = vmatpush1.msra.mxu0 0.0
    %1501 = vmatprep.subr.mxu0 0.0
    %1502 = vmatpush1.msra.mxu0 0.0
    %1503 = vmatprep.subr.mxu0 0.0
    %1504 = vmatpush1.msra.mxu0 0.0
    %1505 = vmatprep.mubr.f32.mxu0 0.0
    %1506 = vmatmul.mubr.f32.gmra.mrb[0].mxu0 %v1368
    %v1507 = vpop.f32.mrb[0].mxu0
    %v1508 = vadd.f32 0.0, %v1507
    %v1509 = vpop.f32.mrb[0].mxu0
    %v1510 = vadd.f32 0.0, %v1509
    %1511 = vdwg.mxu0
    %v1512 = vadd.f32 %v1321, %v1437
    %v1513 = vadd.f32 %v1322, %v1439
    %v1514 = vadd.f32 %v1323, %v1508
    %v1515 = vadd.f32 %v1324, %v1510
    %1516 = vrot.lane.b32.xlu0 %v222, 112
    %v1517 = vpop.permute.xlu0 %1516
    %1518 = vrot.lane.b32.xlu0 %v223, 112
    %v1519 = vpop.permute.xlu0 %1518
    %1520 = vrot.lane.b32.xlu0 %v224, 112
    %v1521 = vpop.permute.xlu0 %1520
    %1522 = vrot.lane.b32.xlu0 %v225, 112
    %v1523 = vpop.permute.xlu0 %1522
    %vm1524 = vcmp.lt.s32.totalorder %v237, 112
    %v1525 = vsel %vm1524, %v1521, %v1523
    %v1526 = vsel %vm1524, %v1519, %v1521
    %v1527 = vsel %vm1524, %v1517, %v1519
    %v1528 = vsel %vm1524, %v1523, %v1517
    %s1529 = scalar_lea.vmem %s3, 6
    %v1530 = vld [vmem:[%s1529] ss:$8 sm:$0xf]
    %v1532 = vlaneseq
    %v1533 = vshrl.u32 %v1532, 7
    %v1534 = vsub.s32 0, %v1533
    %v1535 = vrot.slane %v1530, %v1534
    %v1536 = vlaneseq
    %v1537 = vshrl.u32 %v1536, 7
    %v1538 = vsub.s32 1, %v1537
    %v1539 = vrot.slane %v1530, %v1538
    %v1540 = vlaneseq
    %v1541 = vshrl.u32 %v1540, 7
    %v1542 = vsub.s32 2, %v1541
    %v1543 = vrot.slane %v1530, %v1542
    %v1544 = vlaneseq
    %v1545 = vshrl.u32 %v1544, 7
    %v1546 = vsub.s32 3, %v1545
    %v1547 = vrot.slane %v1530, %v1546
    %v1552 = vmul.f32 %v1527, %v1535
    %v1553 = vmul.f32 %v1526, %v1539
    %v1554 = vmul.f32 %v1525, %v1543
    %v1555 = vmul.f32 %v1528, %v1547
    %s1556 = scalar_lea.vmem %s1, 64
    %v1557 = vld [vmem:[%s1556] sm:$0xff]
    %v1559 = vsel %vm34, %v1557, 0
    %1561 = vmatprep.subr.mxu0 %v1553
    %1562 = vmatpush1.msra.mxu0 %v1552
    %1563 = vmatprep.subr.mxu0 0.0
    %1564 = vmatpush1.msra.mxu0 0.0
    %1565 = vmatprep.subr.mxu0 0.0
    %1566 = vmatpush1.msra.mxu0 0.0
    %1567 = vmatprep.subr.mxu0 0.0
    %1568 = vmatpush1.msra.mxu0 0.0
    %1569 = vmatprep.subr.mxu0 0.0
    %1570 = vmatpush1.msra.mxu0 0.0
    %1571 = vmatprep.subr.mxu0 0.0
    %1572 = vmatpush1.msra.mxu0 0.0
    %1573 = vmatprep.subr.mxu0 0.0
    %1574 = vmatpush1.msra.mxu0 0.0
    %1575 = vmatprep.subr.mxu0 0.0
    %1576 = vmatpush1.msra.mxu0 0.0
    %1577 = vmatprep.subr.mxu0 0.0
    %1578 = vmatpush1.msra.mxu0 0.0
    %1579 = vmatprep.subr.mxu0 0.0
    %1580 = vmatpush1.msra.mxu0 0.0
    %1581 = vmatprep.subr.mxu0 0.0
    %1582 = vmatpush1.msra.mxu0 0.0
    %1583 = vmatprep.subr.mxu0 0.0
    %1584 = vmatpush1.msra.mxu0 0.0
    %1585 = vmatprep.subr.mxu0 0.0
    %1586 = vmatpush1.msra.mxu0 0.0
    %1587 = vmatprep.subr.mxu0 0.0
    %1588 = vmatpush1.msra.mxu0 0.0
    %1589 = vmatprep.subr.mxu0 0.0
    %1590 = vmatpush1.msra.mxu0 0.0
    %1591 = vmatprep.subr.mxu0 0.0
    %1592 = vmatpush1.msra.mxu0 0.0
    %1593 = vmatprep.subr.mxu0 0.0
    %1594 = vmatpush1.msra.mxu0 0.0
    %1595 = vmatprep.subr.mxu0 0.0
    %1596 = vmatpush1.msra.mxu0 0.0
    %1597 = vmatprep.subr.mxu0 0.0
    %1598 = vmatpush1.msra.mxu0 0.0
    %1599 = vmatprep.subr.mxu0 0.0
    %1600 = vmatpush1.msra.mxu0 0.0
    %1601 = vmatprep.subr.mxu0 0.0
    %1602 = vmatpush1.msra.mxu0 0.0
    %1603 = vmatprep.subr.mxu0 0.0
    %1604 = vmatpush1.msra.mxu0 0.0
    %1605 = vmatprep.subr.mxu0 0.0
    %1606 = vmatpush1.msra.mxu0 0.0
    %1607 = vmatprep.subr.mxu0 0.0
    %1608 = vmatpush1.msra.mxu0 0.0
    %1609 = vmatprep.subr.mxu0 0.0
    %1610 = vmatpush1.msra.mxu0 0.0
    %1611 = vmatprep.subr.mxu0 0.0
    %1612 = vmatpush1.msra.mxu0 0.0
    %1613 = vmatprep.subr.mxu0 0.0
    %1614 = vmatpush1.msra.mxu0 0.0
    %1615 = vmatprep.subr.mxu0 0.0
    %1616 = vmatpush1.msra.mxu0 0.0
    %1617 = vmatprep.subr.mxu0 0.0
    %1618 = vmatpush1.msra.mxu0 0.0
    %1619 = vmatprep.subr.mxu0 0.0
    %1620 = vmatpush1.msra.mxu0 0.0
    %1621 = vmatprep.subr.mxu0 0.0
    %1622 = vmatpush1.msra.mxu0 0.0
    %1623 = vmatprep.subr.mxu0 0.0
    %1624 = vmatpush1.msra.mxu0 0.0
    %1625 = vmatprep.mubr.f32.mxu0 0.0
    %1626 = vmatmul.mubr.f32.gmra.mrb[0].mxu0 %v1559
    %v1627 = vpop.f32.mrb[0].mxu0
    %v1628 = vadd.f32 0.0, %v1627
    %v1629 = vpop.f32.mrb[0].mxu0
    %v1630 = vadd.f32 0.0, %v1629
    %1631 = vdwg.mxu0
    %1632 = vmatprep.subr.mxu0 %v1555
    %1633 = vmatpush1.msra.mxu0 %v1554
    %1634 = vmatprep.subr.mxu0 0.0
    %1635 = vmatpush1.msra.mxu0 0.0
    %1636 = vmatprep.subr.mxu0 0.0
    %1637 = vmatpush1.msra.mxu0 0.0
    %1638 = vmatprep.subr.mxu0 0.0
    %1639 = vmatpush1.msra.mxu0 0.0
    %1640 = vmatprep.subr.mxu0 0.0
    %1641 = vmatpush1.msra.mxu0 0.0
    %1642 = vmatprep.subr.mxu0 0.0
    %1643 = vmatpush1.msra.mxu0 0.0
    %1644 = vmatprep.subr.mxu0 0.0
    %1645 = vmatpush1.msra.mxu0 0.0
    %1646 = vmatprep.subr.mxu0 0.0
    %1647 = vmatpush1.msra.mxu0 0.0
    %1648 = vmatprep.subr.mxu0 0.0
    %1649 = vmatpush1.msra.mxu0 0.0
    %1650 = vmatprep.subr.mxu0 0.0
    %1651 = vmatpush1.msra.mxu0 0.0
    %1652 = vmatprep.subr.mxu0 0.0
    %1653 = vmatpush1.msra.mxu0 0.0
    %1654 = vmatprep.subr.mxu0 0.0
    %1655 = vmatpush1.msra.mxu0 0.0
    %1656 = vmatprep.subr.mxu0 0.0
    %1657 = vmatpush1.msra.mxu0 0.0
    %1658 = vmatprep.subr.mxu0 0.0
    %1659 = vmatpush1.msra.mxu0 0.0
    %1660 = vmatprep.subr.mxu0 0.0
    %1661 = vmatpush1.msra.mxu0 0.0
    %1662 = vmatprep.subr.mxu0 0.0
    %1663 = vmatpush1.msra.mxu0 0.0
    %1664 = vmatprep.subr.mxu0 0.0
    %1665 = vmatpush1.msra.mxu0 0.0
    %1666 = vmatprep.subr.mxu0 0.0
    %1667 = vmatpush1.msra.mxu0 0.0
    %1668 = vmatprep.subr.mxu0 0.0
    %1669 = vmatpush1.msra.mxu0 0.0
    %1670 = vmatprep.subr.mxu0 0.0
    %1671 = vmatpush1.msra.mxu0 0.0
    %1672 = vmatprep.subr.mxu0 0.0
    %1673 = vmatpush1.msra.mxu0 0.0
    %1674 = vmatprep.subr.mxu0 0.0
    %1675 = vmatpush1.msra.mxu0 0.0
    %1676 = vmatprep.subr.mxu0 0.0
    %1677 = vmatpush1.msra.mxu0 0.0
    %1678 = vmatprep.subr.mxu0 0.0
    %1679 = vmatpush1.msra.mxu0 0.0
    %1680 = vmatprep.subr.mxu0 0.0
    %1681 = vmatpush1.msra.mxu0 0.0
    %1682 = vmatprep.subr.mxu0 0.0
    %1683 = vmatpush1.msra.mxu0 0.0
    %1684 = vmatprep.subr.mxu0 0.0
    %1685 = vmatpush1.msra.mxu0 0.0
    %1686 = vmatprep.subr.mxu0 0.0
    %1687 = vmatpush1.msra.mxu0 0.0
    %1688 = vmatprep.subr.mxu0 0.0
    %1689 = vmatpush1.msra.mxu0 0.0
    %1690 = vmatprep.subr.mxu0 0.0
    %1691 = vmatpush1.msra.mxu0 0.0
    %1692 = vmatprep.subr.mxu0 0.0
    %1693 = vmatpush1.msra.mxu0 0.0
    %1694 = vmatprep.subr.mxu0 0.0
    %1695 = vmatpush1.msra.mxu0 0.0
    %1696 = vmatprep.mubr.f32.mxu0 0.0
    %1697 = vmatmul.mubr.f32.gmra.mrb[0].mxu0 %v1559
    %v1698 = vpop.f32.mrb[0].mxu0
    %v1699 = vadd.f32 0.0, %v1698
    %v1700 = vpop.f32.mrb[0].mxu0
    %v1701 = vadd.f32 0.0, %v1700
    %1702 = vdwg.mxu0
    %v1703 = vadd.f32 %v1512, %v1628
    %v1704 = vadd.f32 %v1513, %v1630
    %v1705 = vadd.f32 %v1514, %v1699
    %v1706 = vadd.f32 %v1515, %v1701
    %1707 = vrot.lane.b32.xlu0 %v222, 111
    %v1708 = vpop.permute.xlu0 %1707
    %1709 = vrot.lane.b32.xlu0 %v223, 111
    %v1710 = vpop.permute.xlu0 %1709
    %1711 = vrot.lane.b32.xlu0 %v224, 111
    %v1712 = vpop.permute.xlu0 %1711
    %1713 = vrot.lane.b32.xlu0 %v225, 111
    %v1714 = vpop.permute.xlu0 %1713
    %vm1715 = vcmp.lt.s32.totalorder %v237, 111
    %v1716 = vsel %vm1715, %v1712, %v1714
    %v1717 = vsel %vm1715, %v1710, %v1712
    %v1718 = vsel %vm1715, %v1708, %v1710
    %v1719 = vsel %vm1715, %v1714, %v1708
    %s1720 = scalar_lea.vmem %s3, 7
    %v1721 = vld [vmem:[%s1720] ss:$8 sm:$0xf]
    %v1723 = vlaneseq
    %v1724 = vshrl.u32 %v1723, 7
    %v1725 = vsub.s32 0, %v1724
    %v1726 = vrot.slane %v1721, %v1725
    %v1727 = vlaneseq
    %v1728 = vshrl.u32 %v1727, 7
    %v1729 = vsub.s32 1, %v1728
    %v1730 = vrot.slane %v1721, %v1729
    %v1731 = vlaneseq
    %v1732 = vshrl.u32 %v1731, 7
    %v1733 = vsub.s32 2, %v1732
    %v1734 = vrot.slane %v1721, %v1733
    %v1735 = vlaneseq
    %v1736 = vshrl.u32 %v1735, 7
    %v1737 = vsub.s32 3, %v1736
    %v1738 = vrot.slane %v1721, %v1737
    %v1743 = vmul.f32 %v1718, %v1726
    %v1744 = vmul.f32 %v1717, %v1730
    %v1745 = vmul.f32 %v1716, %v1734
    %v1746 = vmul.f32 %v1719, %v1738
    %s1747 = scalar_lea.vmem %s1, 72
    %v1748 = vld [vmem:[%s1747] sm:$0xff]
    %v1750 = vsel %vm34, %v1748, 0
    %1752 = vmatprep.subr.mxu0 %v1744
    %1753 = vmatpush1.msra.mxu0 %v1743
    %1754 = vmatprep.subr.mxu0 0.0
    %1755 = vmatpush1.msra.mxu0 0.0
    %1756 = vmatprep.subr.mxu0 0.0
    %1757 = vmatpush1.msra.mxu0 0.0
    %1758 = vmatprep.subr.mxu0 0.0
    %1759 = vmatpush1.msra.mxu0 0.0
    %1760 = vmatprep.subr.mxu0 0.0
    %1761 = vmatpush1.msra.mxu0 0.0
    %1762 = vmatprep.subr.mxu0 0.0
    %1763 = vmatpush1.msra.mxu0 0.0
    %1764 = vmatprep.subr.mxu0 0.0
    %1765 = vmatpush1.msra.mxu0 0.0
    %1766 = vmatprep.subr.mxu0 0.0
    %1767 = vmatpush1.msra.mxu0 0.0
    %1768 = vmatprep.subr.mxu0 0.0
    %1769 = vmatpush1.msra.mxu0 0.0
    %1770 = vmatprep.subr.mxu0 0.0
    %1771 = vmatpush1.msra.mxu0 0.0
    %1772 = vmatprep.subr.mxu0 0.0
    %1773 = vmatpush1.msra.mxu0 0.0
    %1774 = vmatprep.subr.mxu0 0.0
    %1775 = vmatpush1.msra.mxu0 0.0
    %1776 = vmatprep.subr.mxu0 0.0
    %1777 = vmatpush1.msra.mxu0 0.0
    %1778 = vmatprep.subr.mxu0 0.0
    %1779 = vmatpush1.msra.mxu0 0.0
    %1780 = vmatprep.subr.mxu0 0.0
    %1781 = vmatpush1.msra.mxu0 0.0
    %1782 = vmatprep.subr.mxu0 0.0
    %1783 = vmatpush1.msra.mxu0 0.0
    %1784 = vmatprep.subr.mxu0 0.0
    %1785 = vmatpush1.msra.mxu0 0.0
    %1786 = vmatprep.subr.mxu0 0.0
    %1787 = vmatpush1.msra.mxu0 0.0
    %1788 = vmatprep.subr.mxu0 0.0
    %1789 = vmatpush1.msra.mxu0 0.0
    %1790 = vmatprep.subr.mxu0 0.0
    %1791 = vmatpush1.msra.mxu0 0.0
    %1792 = vmatprep.subr.mxu0 0.0
    %1793 = vmatpush1.msra.mxu0 0.0
    %1794 = vmatprep.subr.mxu0 0.0
    %1795 = vmatpush1.msra.mxu0 0.0
    %1796 = vmatprep.subr.mxu0 0.0
    %1797 = vmatpush1.msra.mxu0 0.0
    %1798 = vmatprep.subr.mxu0 0.0
    %1799 = vmatpush1.msra.mxu0 0.0
    %1800 = vmatprep.subr.mxu0 0.0
    %1801 = vmatpush1.msra.mxu0 0.0
    %1802 = vmatprep.subr.mxu0 0.0
    %1803 = vmatpush1.msra.mxu0 0.0
    %1804 = vmatprep.subr.mxu0 0.0
    %1805 = vmatpush1.msra.mxu0 0.0
    %1806 = vmatprep.subr.mxu0 0.0
    %1807 = vmatpush1.msra.mxu0 0.0
    %1808 = vmatprep.subr.mxu0 0.0
    %1809 = vmatpush1.msra.mxu0 0.0
    %1810 = vmatprep.subr.mxu0 0.0
    %1811 = vmatpush1.msra.mxu0 0.0
    %1812 = vmatprep.subr.mxu0 0.0
    %1813 = vmatpush1.msra.mxu0 0.0
    %1814 = vmatprep.subr.mxu0 0.0
    %1815 = vmatpush1.msra.mxu0 0.0
    %1816 = vmatprep.mubr.f32.mxu0 0.0
    %1817 = vmatmul.mubr.f32.gmra.mrb[0].mxu0 %v1750
    %v1818 = vpop.f32.mrb[0].mxu0
    %v1819 = vadd.f32 0.0, %v1818
    %v1820 = vpop.f32.mrb[0].mxu0
    %v1821 = vadd.f32 0.0, %v1820
    %1822 = vdwg.mxu0
    %1823 = vmatprep.subr.mxu0 %v1746
    %1824 = vmatpush1.msra.mxu0 %v1745
    %1825 = vmatprep.subr.mxu0 0.0
    %1826 = vmatpush1.msra.mxu0 0.0
    %1827 = vmatprep.subr.mxu0 0.0
    %1828 = vmatpush1.msra.mxu0 0.0
    %1829 = vmatprep.subr.mxu0 0.0
    %1830 = vmatpush1.msra.mxu0 0.0
    %1831 = vmatprep.subr.mxu0 0.0
    %1832 = vmatpush1.msra.mxu0 0.0
    %1833 = vmatprep.subr.mxu0 0.0
    %1834 = vmatpush1.msra.mxu0 0.0
    %1835 = vmatprep.subr.mxu0 0.0
    %1836 = vmatpush1.msra.mxu0 0.0
    %1837 = vmatprep.subr.mxu0 0.0
    %1838 = vmatpush1.msra.mxu0 0.0
    %1839 = vmatprep.subr.mxu0 0.0
    %1840 = vmatpush1.msra.mxu0 0.0
    %1841 = vmatprep.subr.mxu0 0.0
    %1842 = vmatpush1.msra.mxu0 0.0
    %1843 = vmatprep.subr.mxu0 0.0
    %1844 = vmatpush1.msra.mxu0 0.0
    %1845 = vmatprep.subr.mxu0 0.0
    %1846 = vmatpush1.msra.mxu0 0.0
    %1847 = vmatprep.subr.mxu0 0.0
    %1848 = vmatpush1.msra.mxu0 0.0
    %1849 = vmatprep.subr.mxu0 0.0
    %1850 = vmatpush1.msra.mxu0 0.0
    %1851 = vmatprep.subr.mxu0 0.0
    %1852 = vmatpush1.msra.mxu0 0.0
    %1853 = vmatprep.subr.mxu0 0.0
    %1854 = vmatpush1.msra.mxu0 0.0
    %1855 = vmatprep.subr.mxu0 0.0
    %1856 = vmatpush1.msra.mxu0 0.0
    %1857 = vmatprep.subr.mxu0 0.0
    %1858 = vmatpush1.msra.mxu0 0.0
    %1859 = vmatprep.subr.mxu0 0.0
    %1860 = vmatpush1.msra.mxu0 0.0
    %1861 = vmatprep.subr.mxu0 0.0
    %1862 = vmatpush1.msra.mxu0 0.0
    %1863 = vmatprep.subr.mxu0 0.0
    %1864 = vmatpush1.msra.mxu0 0.0
    %1865 = vmatprep.subr.mxu0 0.0
    %1866 = vmatpush1.msra.mxu0 0.0
    %1867 = vmatprep.subr.mxu0 0.0
    %1868 = vmatpush1.msra.mxu0 0.0
    %1869 = vmatprep.subr.mxu0 0.0
    %1870 = vmatpush1.msra.mxu0 0.0
    %1871 = vmatprep.subr.mxu0 0.0
    %1872 = vmatpush1.msra.mxu0 0.0
    %1873 = vmatprep.subr.mxu0 0.0
    %1874 = vmatpush1.msra.mxu0 0.0
    %1875 = vmatprep.subr.mxu0 0.0
    %1876 = vmatpush1.msra.mxu0 0.0
    %1877 = vmatprep.subr.mxu0 0.0
    %1878 = vmatpush1.msra.mxu0 0.0
    %1879 = vmatprep.subr.mxu0 0.0
    %1880 = vmatpush1.msra.mxu0 0.0
    %1881 = vmatprep.subr.mxu0 0.0
    %1882 = vmatpush1.msra.mxu0 0.0
    %1883 = vmatprep.subr.mxu0 0.0
    %1884 = vmatpush1.msra.mxu0 0.0
    %1885 = vmatprep.subr.mxu0 0.0
    %1886 = vmatpush1.msra.mxu0 0.0
    %1887 = vmatprep.mubr.f32.mxu0 0.0
    %1888 = vmatmul.mubr.f32.gmra.mrb[0].mxu0 %v1750
    %v1889 = vpop.f32.mrb[0].mxu0
    %v1890 = vadd.f32 0.0, %v1889
    %v1891 = vpop.f32.mrb[0].mxu0
    %v1892 = vadd.f32 0.0, %v1891
    %1893 = vdwg.mxu0
    %v1894 = vadd.f32 %v1703, %v1819
    %v1895 = vadd.f32 %v1704, %v1821
    %v1896 = vadd.f32 %v1705, %v1890
    %v1897 = vadd.f32 %v1706, %v1892
    %v1898 = vadd.f32 %v1894, %v1895
    %v1899 = vadd.f32 %v1898, %v1896
    %v1900 = vadd.f32 %v1899, %v1897
    %1901 = vadd.xlane.f32.xlu0 %v1900
    %v1902 = vpop.xlane.xlu0 %1901
    %v1903 = vmul.f32 %v1902, %v185
    %v1904 = vsub.f32 %v1894, %v1903
    %v1905 = vsub.f32 %v1895, %v1903
    %v1906 = vsub.f32 %v1896, %v1903
    %v1907 = vsub.f32 %v1897, %v1903
    %v1908 = vmul.f32 %v1904, %v1904
    %v1909 = vmul.f32 %v1905, %v1905
    %v1910 = vmul.f32 %v1906, %v1906
    %v1911 = vmul.f32 %v1907, %v1907
    %v1912 = vadd.f32 %v1908, %v1909
    %v1913 = vadd.f32 %v1912, %v1910
    %v1914 = vadd.f32 %v1913, %v1911
    %1915 = vadd.xlane.f32.xlu0 %v1914
    %v1916 = vpop.xlane.xlu0 %1915
    %v1917 = vmul.f32 %v1916, %v185
    %v1918 = vadd.f32 %v1917, 1e-05
    %v1919 = vrsqrt.pop %v1918
    %v1920 = vmul.f32 %v1919, %v26
    %1922 = vset.pattern.permute.xlu0 0
    %1923 = vperm.xlu0 %1922, %v1920
    %v1924 = vpop.permute.xlu0 %1923
    %v1926 = vmul.f32 %v1904, %v1924
    %v1927 = vmul.f32 %v1905, %v1924
    %v1928 = vmul.f32 %v1906, %v1924
    %v1929 = vmul.f32 %v1907, %v1924
    %1931 = vset.pattern.permute.xlu0 0
    %1932 = vperm.xlu0 %1931, %v28
    %v1933 = vpop.permute.xlu0 %1932
    %v1935 = vadd.f32 %v1926, %v1933
    %v1936 = vadd.f32 %v1927, %v1933
    %v1937 = vadd.f32 %v1928, %v1933
    %v1938 = vadd.f32 %v1929, %v1933
    %v1939 = vmax.f32 %v1935, 0.0
    %v1940 = vmax.f32 %v1936, 0.0
    %v1941 = vmax.f32 %v1937, 0.0
    %v1942 = vmax.f32 %v1938, 0.0
    %s1943 = scalar_lea.vmem %s1, 80
    %v1944 = vld [vmem:[%s1943] sm:$0xff]
    %v1946 = vsel %vm34, %v1944, 0
    %1948 = vmatprep.subr.mxu0 %v1940
    %1949 = vmatpush1.msra.mxu0 %v1939
    %1950 = vmatprep.subr.mxu0 0.0
    %1951 = vmatpush1.msra.mxu0 0.0
    %1952 = vmatprep.subr.mxu0 0.0
    %1953 = vmatpush1.msra.mxu0 0.0
    %1954 = vmatprep.subr.mxu0 0.0
    %1955 = vmatpush1.msra.mxu0 0.0
    %1956 = vmatprep.subr.mxu0 0.0
    %1957 = vmatpush1.msra.mxu0 0.0
    %1958 = vmatprep.subr.mxu0 0.0
    %1959 = vmatpush1.msra.mxu0 0.0
    %1960 = vmatprep.subr.mxu0 0.0
    %1961 = vmatpush1.msra.mxu0 0.0
    %1962 = vmatprep.subr.mxu0 0.0
    %1963 = vmatpush1.msra.mxu0 0.0
    %1964 = vmatprep.subr.mxu0 0.0
    %1965 = vmatpush1.msra.mxu0 0.0
    %1966 = vmatprep.subr.mxu0 0.0
    %1967 = vmatpush1.msra.mxu0 0.0
    %1968 = vmatprep.subr.mxu0 0.0
    %1969 = vmatpush1.msra.mxu0 0.0
    %1970 = vmatprep.subr.mxu0 0.0
    %1971 = vmatpush1.msra.mxu0 0.0
    %1972 = vmatprep.subr.mxu0 0.0
    %1973 = vmatpush1.msra.mxu0 0.0
    %1974 = vmatprep.subr.mxu0 0.0
    %1975 = vmatpush1.msra.mxu0 0.0
    %1976 = vmatprep.subr.mxu0 0.0
    %1977 = vmatpush1.msra.mxu0 0.0
    %1978 = vmatprep.subr.mxu0 0.0
    %1979 = vmatpush1.msra.mxu0 0.0
    %1980 = vmatprep.subr.mxu0 0.0
    %1981 = vmatpush1.msra.mxu0 0.0
    %1982 = vmatprep.subr.mxu0 0.0
    %1983 = vmatpush1.msra.mxu0 0.0
    %1984 = vmatprep.subr.mxu0 0.0
    %1985 = vmatpush1.msra.mxu0 0.0
    %1986 = vmatprep.subr.mxu0 0.0
    %1987 = vmatpush1.msra.mxu0 0.0
    %1988 = vmatprep.subr.mxu0 0.0
    %1989 = vmatpush1.msra.mxu0 0.0
    %1990 = vmatprep.subr.mxu0 0.0
    %1991 = vmatpush1.msra.mxu0 0.0
    %1992 = vmatprep.subr.mxu0 0.0
    %1993 = vmatpush1.msra.mxu0 0.0
    %1994 = vmatprep.subr.mxu0 0.0
    %1995 = vmatpush1.msra.mxu0 0.0
    %1996 = vmatprep.subr.mxu0 0.0
    %1997 = vmatpush1.msra.mxu0 0.0
    %1998 = vmatprep.subr.mxu0 0.0
    %1999 = vmatpush1.msra.mxu0 0.0
    %2000 = vmatprep.subr.mxu0 0.0
    %2001 = vmatpush1.msra.mxu0 0.0
    %2002 = vmatprep.subr.mxu0 0.0
    %2003 = vmatpush1.msra.mxu0 0.0
    %2004 = vmatprep.subr.mxu0 0.0
    %2005 = vmatpush1.msra.mxu0 0.0
    %2006 = vmatprep.subr.mxu0 0.0
    %2007 = vmatpush1.msra.mxu0 0.0
    %2008 = vmatprep.subr.mxu0 0.0
    %2009 = vmatpush1.msra.mxu0 0.0
    %2010 = vmatprep.subr.mxu0 0.0
    %2011 = vmatpush1.msra.mxu0 0.0
    %2012 = vmatprep.mubr.f32.mxu0 0.0
    %2013 = vmatmul.mubr.f32.gmra.mrb[0].mxu0 %v1946
    %v2014 = vpop.f32.mrb[0].mxu0
    %v2015 = vadd.f32 0.0, %v2014
    %v2016 = vpop.f32.mrb[0].mxu0
    %v2017 = vadd.f32 0.0, %v2016
    %2018 = vdwg.mxu0
    %2019 = vmatprep.subr.mxu0 %v1942
    %2020 = vmatpush1.msra.mxu0 %v1941
    %2021 = vmatprep.subr.mxu0 0.0
    %2022 = vmatpush1.msra.mxu0 0.0
    %2023 = vmatprep.subr.mxu0 0.0
    %2024 = vmatpush1.msra.mxu0 0.0
    %2025 = vmatprep.subr.mxu0 0.0
    %2026 = vmatpush1.msra.mxu0 0.0
    %2027 = vmatprep.subr.mxu0 0.0
    %2028 = vmatpush1.msra.mxu0 0.0
    %2029 = vmatprep.subr.mxu0 0.0
    %2030 = vmatpush1.msra.mxu0 0.0
    %2031 = vmatprep.subr.mxu0 0.0
    %2032 = vmatpush1.msra.mxu0 0.0
    %2033 = vmatprep.subr.mxu0 0.0
    %2034 = vmatpush1.msra.mxu0 0.0
    %2035 = vmatprep.subr.mxu0 0.0
    %2036 = vmatpush1.msra.mxu0 0.0
    %2037 = vmatprep.subr.mxu0 0.0
    %2038 = vmatpush1.msra.mxu0 0.0
    %2039 = vmatprep.subr.mxu0 0.0
    %2040 = vmatpush1.msra.mxu0 0.0
    %2041 = vmatprep.subr.mxu0 0.0
    %2042 = vmatpush1.msra.mxu0 0.0
    %2043 = vmatprep.subr.mxu0 0.0
    %2044 = vmatpush1.msra.mxu0 0.0
    %2045 = vmatprep.subr.mxu0 0.0
    %2046 = vmatpush1.msra.mxu0 0.0
    %2047 = vmatprep.subr.mxu0 0.0
    %2048 = vmatpush1.msra.mxu0 0.0
    %2049 = vmatprep.subr.mxu0 0.0
    %2050 = vmatpush1.msra.mxu0 0.0
    %2051 = vmatprep.subr.mxu0 0.0
    %2052 = vmatpush1.msra.mxu0 0.0
    %2053 = vmatprep.subr.mxu0 0.0
    %2054 = vmatpush1.msra.mxu0 0.0
    %2055 = vmatprep.subr.mxu0 0.0
    %2056 = vmatpush1.msra.mxu0 0.0
    %2057 = vmatprep.subr.mxu0 0.0
    %2058 = vmatpush1.msra.mxu0 0.0
    %2059 = vmatprep.subr.mxu0 0.0
    %2060 = vmatpush1.msra.mxu0 0.0
    %2061 = vmatprep.subr.mxu0 0.0
    %2062 = vmatpush1.msra.mxu0 0.0
    %2063 = vmatprep.subr.mxu0 0.0
    %2064 = vmatpush1.msra.mxu0 0.0
    %2065 = vmatprep.subr.mxu0 0.0
    %2066 = vmatpush1.msra.mxu0 0.0
    %2067 = vmatprep.subr.mxu0 0.0
    %2068 = vmatpush1.msra.mxu0 0.0
    %2069 = vmatprep.subr.mxu0 0.0
    %2070 = vmatpush1.msra.mxu0 0.0
    %2071 = vmatprep.subr.mxu0 0.0
    %2072 = vmatpush1.msra.mxu0 0.0
    %2073 = vmatprep.subr.mxu0 0.0
    %2074 = vmatpush1.msra.mxu0 0.0
    %2075 = vmatprep.subr.mxu0 0.0
    %2076 = vmatpush1.msra.mxu0 0.0
    %2077 = vmatprep.subr.mxu0 0.0
    %2078 = vmatpush1.msra.mxu0 0.0
    %2079 = vmatprep.subr.mxu0 0.0
    %2080 = vmatpush1.msra.mxu0 0.0
    %2081 = vmatprep.subr.mxu0 0.0
    %2082 = vmatpush1.msra.mxu0 0.0
    %2083 = vmatprep.mubr.f32.mxu0 0.0
    %2084 = vmatmul.mubr.f32.gmra.mrb[0].mxu0 %v1946
    %v2085 = vpop.f32.mrb[0].mxu0
    %v2086 = vadd.f32 0.0, %v2085
    %v2087 = vpop.f32.mrb[0].mxu0
    %v2088 = vadd.f32 0.0, %v2087
    %2089 = vdwg.mxu0
    %v2090 = vadd.f32 %v1939, %v2015
    %v2091 = vadd.f32 %v1940, %v2017
    %v2092 = vadd.f32 %v1941, %v2086
    %v2093 = vadd.f32 %v1942, %v2088
    %v2094 = vadd.f32 %v2090, %v2091
    %v2095 = vadd.f32 %v2094, %v2092
    %v2096 = vadd.f32 %v2095, %v2093
    %2097 = vadd.xlane.f32.xlu0 %v2096
    %v2098 = vpop.xlane.xlu0 %2097
    %v2099 = vmul.f32 %v2098, %v185
    %v2100 = vsub.f32 %v2090, %v2099
    %v2101 = vsub.f32 %v2091, %v2099
    %v2102 = vsub.f32 %v2092, %v2099
    %v2103 = vsub.f32 %v2093, %v2099
    %v2104 = vmul.f32 %v2100, %v2100
    %v2105 = vmul.f32 %v2101, %v2101
    %v2106 = vmul.f32 %v2102, %v2102
    %v2107 = vmul.f32 %v2103, %v2103
    %v2108 = vadd.f32 %v2104, %v2105
    %v2109 = vadd.f32 %v2108, %v2106
    %v2110 = vadd.f32 %v2109, %v2107
    %2111 = vadd.xlane.f32.xlu0 %v2110
    %v2112 = vpop.xlane.xlu0 %2111
    %v2113 = vmul.f32 %v2112, %v185
    %v2114 = vadd.f32 %v2113, 1e-05
    %v2115 = vrsqrt.pop %v2114
    %v2116 = vmul.f32 %v2115, %v30
    %2118 = vset.pattern.permute.xlu0 0
    %2119 = vperm.xlu0 %2118, %v2116
    %v2120 = vpop.permute.xlu0 %2119
    %v2122 = vmul.f32 %v2100, %v2120
    %v2123 = vmul.f32 %v2101, %v2120
    %v2124 = vmul.f32 %v2102, %v2120
    %v2125 = vmul.f32 %v2103, %v2120
    %2127 = vset.pattern.permute.xlu0 0
    %2128 = vperm.xlu0 %2127, %v32
    %v2129 = vpop.permute.xlu0 %2128
    %v2131 = vadd.f32 %v2122, %v2129
    %v2132 = vadd.f32 %v2123, %v2129
    %v2133 = vadd.f32 %v2124, %v2129
    %v2134 = vadd.f32 %v2125, %v2129
    %v2135 = vmax.f32 %v2131, 0.0
    %v2136 = vmax.f32 %v2132, 0.0
    %v2137 = vmax.f32 %v2133, 0.0
    %v2138 = vmax.f32 %v2134, 0.0
    %s2139 = scalar_lea.vmem %s2, 48
    %v2140 = vld [vmem:[%s2139] sm:$0xff]
    %s2141 = scalar_lea.vmem %s2, 56
    %v2142 = vld [vmem:[%s2141] sm:$0xff]
    %s2143 = scalar_lea.vmem %s2, 64
    %v2144 = vld [vmem:[%s2143] sm:$0xff]
    %s2145 = scalar_lea.vmem %s2, 72
    %v2146 = vld [vmem:[%s2145] sm:$0xff]
    %s2147 = scalar_lea.vmem %s2, 80
    %v2148 = vld [vmem:[%s2147] sm:$0xff]
    %s2149 = scalar_lea.vmem %s2, 88
    %v2150 = vld [vmem:[%s2149] sm:$0xff]
    %s2151 = scalar_lea.vmem %s1, 88
    %v2152 = vld [vmem:[%s2151] sm:$0xff]
    %v2154 = vsel %vm34, %v2152, 0
    %2156 = vmatprep.subr.mxu0 %v2136
    %2157 = vmatpush1.msra.mxu0 %v2135
    %2158 = vmatprep.subr.mxu0 0.0
    %2159 = vmatpush1.msra.mxu0 0.0
    %2160 = vmatprep.subr.mxu0 0.0
    %2161 = vmatpush1.msra.mxu0 0.0
    %2162 = vmatprep.subr.mxu0 0.0
    %2163 = vmatpush1.msra.mxu0 0.0
    %2164 = vmatprep.subr.mxu0 0.0
    %2165 = vmatpush1.msra.mxu0 0.0
    %2166 = vmatprep.subr.mxu0 0.0
    %2167 = vmatpush1.msra.mxu0 0.0
    %2168 = vmatprep.subr.mxu0 0.0
    %2169 = vmatpush1.msra.mxu0 0.0
    %2170 = vmatprep.subr.mxu0 0.0
    %2171 = vmatpush1.msra.mxu0 0.0
    %2172 = vmatprep.subr.mxu0 0.0
    %2173 = vmatpush1.msra.mxu0 0.0
    %2174 = vmatprep.subr.mxu0 0.0
    %2175 = vmatpush1.msra.mxu0 0.0
    %2176 = vmatprep.subr.mxu0 0.0
    %2177 = vmatpush1.msra.mxu0 0.0
    %2178 = vmatprep.subr.mxu0 0.0
    %2179 = vmatpush1.msra.mxu0 0.0
    %2180 = vmatprep.subr.mxu0 0.0
    %2181 = vmatpush1.msra.mxu0 0.0
    %2182 = vmatprep.subr.mxu0 0.0
    %2183 = vmatpush1.msra.mxu0 0.0
    %2184 = vmatprep.subr.mxu0 0.0
    %2185 = vmatpush1.msra.mxu0 0.0
    %2186 = vmatprep.subr.mxu0 0.0
    %2187 = vmatpush1.msra.mxu0 0.0
    %2188 = vmatprep.subr.mxu0 0.0
    %2189 = vmatpush1.msra.mxu0 0.0
    %2190 = vmatprep.subr.mxu0 0.0
    %2191 = vmatpush1.msra.mxu0 0.0
    %2192 = vmatprep.subr.mxu0 0.0
    %2193 = vmatpush1.msra.mxu0 0.0
    %2194 = vmatprep.subr.mxu0 0.0
    %2195 = vmatpush1.msra.mxu0 0.0
    %2196 = vmatprep.subr.mxu0 0.0
    %2197 = vmatpush1.msra.mxu0 0.0
    %2198 = vmatprep.subr.mxu0 0.0
    %2199 = vmatpush1.msra.mxu0 0.0
    %2200 = vmatprep.subr.mxu0 0.0
    %2201 = vmatpush1.msra.mxu0 0.0
    %2202 = vmatprep.subr.mxu0 0.0
    %2203 = vmatpush1.msra.mxu0 0.0
    %2204 = vmatprep.subr.mxu0 0.0
    %2205 = vmatpush1.msra.mxu0 0.0
    %2206 = vmatprep.subr.mxu0 0.0
    %2207 = vmatpush1.msra.mxu0 0.0
    %2208 = vmatprep.subr.mxu0 0.0
    %2209 = vmatpush1.msra.mxu0 0.0
    %2210 = vmatprep.subr.mxu0 0.0
    %2211 = vmatpush1.msra.mxu0 0.0
    %2212 = vmatprep.subr.mxu0 0.0
    %2213 = vmatpush1.msra.mxu0 0.0
    %2214 = vmatprep.subr.mxu0 0.0
    %2215 = vmatpush1.msra.mxu0 0.0
    %2216 = vmatprep.subr.mxu0 0.0
    %2217 = vmatpush1.msra.mxu0 0.0
    %2218 = vmatprep.subr.mxu0 0.0
    %2219 = vmatpush1.msra.mxu0 0.0
    %2220 = vmatprep.mubr.f32.mxu0 0.0
    %2221 = vmatmul.mubr.f32.gmra.mrb[0].mxu0 %v2154
    %v2222 = vpop.f32.mrb[0].mxu0
    %v2223 = vadd.f32 0.0, %v2222
    %v2224 = vpop.f32.mrb[0].mxu0
    %v2225 = vadd.f32 0.0, %v2224
    %2226 = vdwg.mxu0
    %2227 = vmatprep.subr.mxu0 %v2138
    %2228 = vmatpush1.msra.mxu0 %v2137
    %2229 = vmatprep.subr.mxu0 0.0
    %2230 = vmatpush1.msra.mxu0 0.0
    %2231 = vmatprep.subr.mxu0 0.0
    %2232 = vmatpush1.msra.mxu0 0.0
    %2233 = vmatprep.subr.mxu0 0.0
    %2234 = vmatpush1.msra.mxu0 0.0
    %2235 = vmatprep.subr.mxu0 0.0
    %2236 = vmatpush1.msra.mxu0 0.0
    %2237 = vmatprep.subr.mxu0 0.0
    %2238 = vmatpush1.msra.mxu0 0.0
    %2239 = vmatprep.subr.mxu0 0.0
    %2240 = vmatpush1.msra.mxu0 0.0
    %2241 = vmatprep.subr.mxu0 0.0
    %2242 = vmatpush1.msra.mxu0 0.0
    %2243 = vmatprep.subr.mxu0 0.0
    %2244 = vmatpush1.msra.mxu0 0.0
    %2245 = vmatprep.subr.mxu0 0.0
    %2246 = vmatpush1.msra.mxu0 0.0
    %2247 = vmatprep.subr.mxu0 0.0
    %2248 = vmatpush1.msra.mxu0 0.0
    %2249 = vmatprep.subr.mxu0 0.0
    %2250 = vmatpush1.msra.mxu0 0.0
    %2251 = vmatprep.subr.mxu0 0.0
    %2252 = vmatpush1.msra.mxu0 0.0
    %2253 = vmatprep.subr.mxu0 0.0
    %2254 = vmatpush1.msra.mxu0 0.0
    %2255 = vmatprep.subr.mxu0 0.0
    %2256 = vmatpush1.msra.mxu0 0.0
    %2257 = vmatprep.subr.mxu0 0.0
    %2258 = vmatpush1.msra.mxu0 0.0
    %2259 = vmatprep.subr.mxu0 0.0
    %2260 = vmatpush1.msra.mxu0 0.0
    %2261 = vmatprep.subr.mxu0 0.0
    %2262 = vmatpush1.msra.mxu0 0.0
    %2263 = vmatprep.subr.mxu0 0.0
    %2264 = vmatpush1.msra.mxu0 0.0
    %2265 = vmatprep.subr.mxu0 0.0
    %2266 = vmatpush1.msra.mxu0 0.0
    %2267 = vmatprep.subr.mxu0 0.0
    %2268 = vmatpush1.msra.mxu0 0.0
    %2269 = vmatprep.subr.mxu0 0.0
    %2270 = vmatpush1.msra.mxu0 0.0
    %2271 = vmatprep.subr.mxu0 0.0
    %2272 = vmatpush1.msra.mxu0 0.0
    %2273 = vmatprep.subr.mxu0 0.0
    %2274 = vmatpush1.msra.mxu0 0.0
    %2275 = vmatprep.subr.mxu0 0.0
    %2276 = vmatpush1.msra.mxu0 0.0
    %2277 = vmatprep.subr.mxu0 0.0
    %2278 = vmatpush1.msra.mxu0 0.0
    %2279 = vmatprep.subr.mxu0 0.0
    %2280 = vmatpush1.msra.mxu0 0.0
    %2281 = vmatprep.subr.mxu0 0.0
    %2282 = vmatpush1.msra.mxu0 0.0
    %2283 = vmatprep.subr.mxu0 0.0
    %2284 = vmatpush1.msra.mxu0 0.0
    %2285 = vmatprep.subr.mxu0 0.0
    %2286 = vmatpush1.msra.mxu0 0.0
    %2287 = vmatprep.subr.mxu0 0.0
    %2288 = vmatpush1.msra.mxu0 0.0
    %2289 = vmatprep.subr.mxu0 0.0
    %2290 = vmatpush1.msra.mxu0 0.0
    %2291 = vmatprep.mubr.f32.mxu0 0.0
    %2292 = vmatmul.mubr.f32.gmra.mrb[0].mxu0 %v2154
    %v2293 = vpop.f32.mrb[0].mxu0
    %v2294 = vadd.f32 0.0, %v2293
    %v2295 = vpop.f32.mrb[0].mxu0
    %v2296 = vadd.f32 0.0, %v2295
    %2297 = vdwg.mxu0
    %v2298 = vadd.f32 %v2223, %v2225
    %v2299 = vadd.f32 %v2298, %v2294
    %v2300 = vadd.f32 %v2299, %v2296
    %2301 = vadd.xlane.f32.xlu0 %v2300
    %v2302 = vpop.xlane.xlu0 %2301
    %v2303 = vmul.f32 %v2302, %v185
    %v2304 = vsub.f32 %v2223, %v2303
    %v2305 = vsub.f32 %v2225, %v2303
    %v2306 = vsub.f32 %v2294, %v2303
    %v2307 = vsub.f32 %v2296, %v2303
    %v2308 = vmul.f32 %v2304, %v2304
    %v2309 = vmul.f32 %v2305, %v2305
    %v2310 = vmul.f32 %v2306, %v2306
    %v2311 = vmul.f32 %v2307, %v2307
    %v2312 = vadd.f32 %v2308, %v2309
    %v2313 = vadd.f32 %v2312, %v2310
    %v2314 = vadd.f32 %v2313, %v2311
    %2315 = vadd.xlane.f32.xlu0 %v2314
    %v2316 = vpop.xlane.xlu0 %2315
    %v2317 = vmul.f32 %v2316, %v185
    %v2318 = vadd.f32 %v2317, 1e-05
    %v2319 = vrsqrt.pop %v2318
    %v2320 = vmul.f32 %v2319, %v2140
    %2322 = vset.pattern.permute.xlu0 0
    %2323 = vperm.xlu0 %2322, %v2320
    %v2324 = vpop.permute.xlu0 %2323
    %v2326 = vmul.f32 %v2304, %v2324
    %v2327 = vmul.f32 %v2305, %v2324
    %v2328 = vmul.f32 %v2306, %v2324
    %v2329 = vmul.f32 %v2307, %v2324
    %2331 = vset.pattern.permute.xlu0 0
    %2332 = vperm.xlu0 %2331, %v2142
    %v2333 = vpop.permute.xlu0 %2332
    %v2335 = vadd.f32 %v2326, %v2333
    %v2336 = vadd.f32 %v2327, %v2333
    %v2337 = vadd.f32 %v2328, %v2333
    %v2338 = vadd.f32 %v2329, %v2333
    %v2339 = vmax.f32 %v2335, 0.0
    %v2340 = vmax.f32 %v2336, 0.0
    %v2341 = vmax.f32 %v2337, 0.0
    %v2342 = vmax.f32 %v2338, 0.0
    %s2343 = scalar_lea.vmem %s1, 128
    %v2344 = vld [vmem:[%s2343] sm:$0xff]
    %2345 = vrot.lane.b32.xlu0 %v2339, 17
    %v2346 = vpop.permute.xlu0 %2345
    %2347 = vrot.lane.b32.xlu0 %v2340, 17
    %v2348 = vpop.permute.xlu0 %2347
    %2349 = vrot.lane.b32.xlu0 %v2341, 17
    %v2350 = vpop.permute.xlu0 %2349
    %2351 = vrot.lane.b32.xlu0 %v2342, 17
    %v2352 = vpop.permute.xlu0 %2351
    %v2353 = vsel %vm238, %v2350, %v2352
    %v2354 = vsel %vm238, %v2348, %v2350
    %v2355 = vsel %vm238, %v2346, %v2348
    %v2356 = vsel %vm238, %v2352, %v2346
    %v2357 = vmul.f32 %v2356, %v248
    %v2358 = vmul.f32 %v2355, %v252
    %v2359 = vmul.f32 %v2354, %v256
    %v2360 = vmul.f32 %v2353, %v260
    %s2361 = scalar_lea.vmem %s1, 96
    %v2362 = vld [vmem:[%s2361] sm:$0xff]
    %v2364 = vsel %vm34, %v2362, 0
    %2366 = vmatprep.subr.mxu0 %v2358
    %2367 = vmatpush1.msra.mxu0 %v2357
    %2368 = vmatprep.subr.mxu0 0.0
    %2369 = vmatpush1.msra.mxu0 0.0
    %2370 = vmatprep.subr.mxu0 0.0
    %2371 = vmatpush1.msra.mxu0 0.0
    %2372 = vmatprep.subr.mxu0 0.0
    %2373 = vmatpush1.msra.mxu0 0.0
    %2374 = vmatprep.subr.mxu0 0.0
    %2375 = vmatpush1.msra.mxu0 0.0
    %2376 = vmatprep.subr.mxu0 0.0
    %2377 = vmatpush1.msra.mxu0 0.0
    %2378 = vmatprep.subr.mxu0 0.0
    %2379 = vmatpush1.msra.mxu0 0.0
    %2380 = vmatprep.subr.mxu0 0.0
    %2381 = vmatpush1.msra.mxu0 0.0
    %2382 = vmatprep.subr.mxu0 0.0
    %2383 = vmatpush1.msra.mxu0 0.0
    %2384 = vmatprep.subr.mxu0 0.0
    %2385 = vmatpush1.msra.mxu0 0.0
    %2386 = vmatprep.subr.mxu0 0.0
    %2387 = vmatpush1.msra.mxu0 0.0
    %2388 = vmatprep.subr.mxu0 0.0
    %2389 = vmatpush1.msra.mxu0 0.0
    %2390 = vmatprep.subr.mxu0 0.0
    %2391 = vmatpush1.msra.mxu0 0.0
    %2392 = vmatprep.subr.mxu0 0.0
    %2393 = vmatpush1.msra.mxu0 0.0
    %2394 = vmatprep.subr.mxu0 0.0
    %2395 = vmatpush1.msra.mxu0 0.0
    %2396 = vmatprep.subr.mxu0 0.0
    %2397 = vmatpush1.msra.mxu0 0.0
    %2398 = vmatprep.subr.mxu0 0.0
    %2399 = vmatpush1.msra.mxu0 0.0
    %2400 = vmatprep.subr.mxu0 0.0
    %2401 = vmatpush1.msra.mxu0 0.0
    %2402 = vmatprep.subr.mxu0 0.0
    %2403 = vmatpush1.msra.mxu0 0.0
    %2404 = vmatprep.subr.mxu0 0.0
    %2405 = vmatpush1.msra.mxu0 0.0
    %2406 = vmatprep.subr.mxu0 0.0
    %2407 = vmatpush1.msra.mxu0 0.0
    %2408 = vmatprep.subr.mxu0 0.0
    %2409 = vmatpush1.msra.mxu0 0.0
    %2410 = vmatprep.subr.mxu0 0.0
    %2411 = vmatpush1.msra.mxu0 0.0
    %2412 = vmatprep.subr.mxu0 0.0
    %2413 = vmatpush1.msra.mxu0 0.0
    %2414 = vmatprep.subr.mxu0 0.0
    %2415 = vmatpush1.msra.mxu0 0.0
    %2416 = vmatprep.subr.mxu0 0.0
    %2417 = vmatpush1.msra.mxu0 0.0
    %2418 = vmatprep.subr.mxu0 0.0
    %2419 = vmatpush1.msra.mxu0 0.0
    %2420 = vmatprep.subr.mxu0 0.0
    %2421 = vmatpush1.msra.mxu0 0.0
    %2422 = vmatprep.subr.mxu0 0.0
    %2423 = vmatpush1.msra.mxu0 0.0
    %2424 = vmatprep.subr.mxu0 0.0
    %2425 = vmatpush1.msra.mxu0 0.0
    %2426 = vmatprep.subr.mxu0 0.0
    %2427 = vmatpush1.msra.mxu0 0.0
    %2428 = vmatprep.subr.mxu0 0.0
    %2429 = vmatpush1.msra.mxu0 0.0
    %2430 = vmatprep.mubr.f32.mxu0 0.0
    %2431 = vmatmul.mubr.f32.gmra.mrb[0].mxu0 %v2364
    %v2432 = vpop.f32.mrb[0].mxu0
    %v2433 = vadd.f32 0.0, %v2432
    %v2434 = vpop.f32.mrb[0].mxu0
    %v2435 = vadd.f32 0.0, %v2434
    %2436 = vdwg.mxu0
    %2437 = vmatprep.subr.mxu0 %v2360
    %2438 = vmatpush1.msra.mxu0 %v2359
    %2439 = vmatprep.subr.mxu0 0.0
    %2440 = vmatpush1.msra.mxu0 0.0
    %2441 = vmatprep.subr.mxu0 0.0
    %2442 = vmatpush1.msra.mxu0 0.0
    %2443 = vmatprep.subr.mxu0 0.0
    %2444 = vmatpush1.msra.mxu0 0.0
    %2445 = vmatprep.subr.mxu0 0.0
    %2446 = vmatpush1.msra.mxu0 0.0
    %2447 = vmatprep.subr.mxu0 0.0
    %2448 = vmatpush1.msra.mxu0 0.0
    %2449 = vmatprep.subr.mxu0 0.0
    %2450 = vmatpush1.msra.mxu0 0.0
    %2451 = vmatprep.subr.mxu0 0.0
    %2452 = vmatpush1.msra.mxu0 0.0
    %2453 = vmatprep.subr.mxu0 0.0
    %2454 = vmatpush1.msra.mxu0 0.0
    %2455 = vmatprep.subr.mxu0 0.0
    %2456 = vmatpush1.msra.mxu0 0.0
    %2457 = vmatprep.subr.mxu0 0.0
    %2458 = vmatpush1.msra.mxu0 0.0
    %2459 = vmatprep.subr.mxu0 0.0
    %2460 = vmatpush1.msra.mxu0 0.0
    %2461 = vmatprep.subr.mxu0 0.0
    %2462 = vmatpush1.msra.mxu0 0.0
    %2463 = vmatprep.subr.mxu0 0.0
    %2464 = vmatpush1.msra.mxu0 0.0
    %2465 = vmatprep.subr.mxu0 0.0
    %2466 = vmatpush1.msra.mxu0 0.0
    %2467 = vmatprep.subr.mxu0 0.0
    %2468 = vmatpush1.msra.mxu0 0.0
    %2469 = vmatprep.subr.mxu0 0.0
    %2470 = vmatpush1.msra.mxu0 0.0
    %2471 = vmatprep.subr.mxu0 0.0
    %2472 = vmatpush1.msra.mxu0 0.0
    %2473 = vmatprep.subr.mxu0 0.0
    %2474 = vmatpush1.msra.mxu0 0.0
    %2475 = vmatprep.subr.mxu0 0.0
    %2476 = vmatpush1.msra.mxu0 0.0
    %2477 = vmatprep.subr.mxu0 0.0
    %2478 = vmatpush1.msra.mxu0 0.0
    %2479 = vmatprep.subr.mxu0 0.0
    %2480 = vmatpush1.msra.mxu0 0.0
    %2481 = vmatprep.subr.mxu0 0.0
    %2482 = vmatpush1.msra.mxu0 0.0
    %2483 = vmatprep.subr.mxu0 0.0
    %2484 = vmatpush1.msra.mxu0 0.0
    %2485 = vmatprep.subr.mxu0 0.0
    %2486 = vmatpush1.msra.mxu0 0.0
    %2487 = vmatprep.subr.mxu0 0.0
    %2488 = vmatpush1.msra.mxu0 0.0
    %2489 = vmatprep.subr.mxu0 0.0
    %2490 = vmatpush1.msra.mxu0 0.0
    %2491 = vmatprep.subr.mxu0 0.0
    %2492 = vmatpush1.msra.mxu0 0.0
    %2493 = vmatprep.subr.mxu0 0.0
    %2494 = vmatpush1.msra.mxu0 0.0
    %2495 = vmatprep.subr.mxu0 0.0
    %2496 = vmatpush1.msra.mxu0 0.0
    %2497 = vmatprep.subr.mxu0 0.0
    %2498 = vmatpush1.msra.mxu0 0.0
    %2499 = vmatprep.subr.mxu0 0.0
    %2500 = vmatpush1.msra.mxu0 0.0
    %2501 = vmatprep.mubr.f32.mxu0 0.0
    %2502 = vmatmul.mubr.f32.gmra.mrb[0].mxu0 %v2364
    %v2503 = vpop.f32.mrb[0].mxu0
    %v2504 = vadd.f32 0.0, %v2503
    %v2505 = vpop.f32.mrb[0].mxu0
    %v2506 = vadd.f32 0.0, %v2505
    %2507 = vdwg.mxu0
    %v2509 = vsel %vm34, %v2344, 0
    %2511 = vmatprep.subr.mxu0 %v2340
    %2512 = vmatpush1.msra.mxu0 %v2339
    %2513 = vmatprep.subr.mxu0 0.0
    %2514 = vmatpush1.msra.mxu0 0.0
    %2515 = vmatprep.subr.mxu0 0.0
    %2516 = vmatpush1.msra.mxu0 0.0
    %2517 = vmatprep.subr.mxu0 0.0
    %2518 = vmatpush1.msra.mxu0 0.0
    %2519 = vmatprep.subr.mxu0 0.0
    %2520 = vmatpush1.msra.mxu0 0.0
    %2521 = vmatprep.subr.mxu0 0.0
    %2522 = vmatpush1.msra.mxu0 0.0
    %2523 = vmatprep.subr.mxu0 0.0
    %2524 = vmatpush1.msra.mxu0 0.0
    %2525 = vmatprep.subr.mxu0 0.0
    %2526 = vmatpush1.msra.mxu0 0.0
    %2527 = vmatprep.subr.mxu0 0.0
    %2528 = vmatpush1.msra.mxu0 0.0
    %2529 = vmatprep.subr.mxu0 0.0
    %2530 = vmatpush1.msra.mxu0 0.0
    %2531 = vmatprep.subr.mxu0 0.0
    %2532 = vmatpush1.msra.mxu0 0.0
    %2533 = vmatprep.subr.mxu0 0.0
    %2534 = vmatpush1.msra.mxu0 0.0
    %2535 = vmatprep.subr.mxu0 0.0
    %2536 = vmatpush1.msra.mxu0 0.0
    %2537 = vmatprep.subr.mxu0 0.0
    %2538 = vmatpush1.msra.mxu0 0.0
    %2539 = vmatprep.subr.mxu0 0.0
    %2540 = vmatpush1.msra.mxu0 0.0
    %2541 = vmatprep.subr.mxu0 0.0
    %2542 = vmatpush1.msra.mxu0 0.0
    %2543 = vmatprep.subr.mxu0 0.0
    %2544 = vmatpush1.msra.mxu0 0.0
    %2545 = vmatprep.subr.mxu0 0.0
    %2546 = vmatpush1.msra.mxu0 0.0
    %2547 = vmatprep.subr.mxu0 0.0
    %2548 = vmatpush1.msra.mxu0 0.0
    %2549 = vmatprep.subr.mxu0 0.0
    %2550 = vmatpush1.msra.mxu0 0.0
    %2551 = vmatprep.subr.mxu0 0.0
    %2552 = vmatpush1.msra.mxu0 0.0
    %2553 = vmatprep.subr.mxu0 0.0
    %2554 = vmatpush1.msra.mxu0 0.0
    %2555 = vmatprep.subr.mxu0 0.0
    %2556 = vmatpush1.msra.mxu0 0.0
    %2557 = vmatprep.subr.mxu0 0.0
    %2558 = vmatpush1.msra.mxu0 0.0
    %2559 = vmatprep.subr.mxu0 0.0
    %2560 = vmatpush1.msra.mxu0 0.0
    %2561 = vmatprep.subr.mxu0 0.0
    %2562 = vmatpush1.msra.mxu0 0.0
    %2563 = vmatprep.subr.mxu0 0.0
    %2564 = vmatpush1.msra.mxu0 0.0
    %2565 = vmatprep.subr.mxu0 0.0
    %2566 = vmatpush1.msra.mxu0 0.0
    %2567 = vmatprep.subr.mxu0 0.0
    %2568 = vmatpush1.msra.mxu0 0.0
    %2569 = vmatprep.subr.mxu0 0.0
    %2570 = vmatpush1.msra.mxu0 0.0
    %2571 = vmatprep.subr.mxu0 0.0
    %2572 = vmatpush1.msra.mxu0 0.0
    %2573 = vmatprep.subr.mxu0 0.0
    %2574 = vmatpush1.msra.mxu0 0.0
    %2575 = vmatprep.mubr.f32.mxu0 0.0
    %2576 = vmatmul.mubr.f32.gmra.mrb[0].mxu0 %v2509
    %v2577 = vpop.f32.mrb[0].mxu0
    %v2578 = vadd.f32 %v2433, %v2577
    %v2579 = vpop.f32.mrb[0].mxu0
    %v2580 = vadd.f32 %v2435, %v2579
    %2581 = vdwg.mxu0
    %2582 = vmatprep.subr.mxu0 %v2342
    %2583 = vmatpush1.msra.mxu0 %v2341
    %2584 = vmatprep.subr.mxu0 0.0
    %2585 = vmatpush1.msra.mxu0 0.0
    %2586 = vmatprep.subr.mxu0 0.0
    %2587 = vmatpush1.msra.mxu0 0.0
    %2588 = vmatprep.subr.mxu0 0.0
    %2589 = vmatpush1.msra.mxu0 0.0
    %2590 = vmatprep.subr.mxu0 0.0
    %2591 = vmatpush1.msra.mxu0 0.0
    %2592 = vmatprep.subr.mxu0 0.0
    %2593 = vmatpush1.msra.mxu0 0.0
    %2594 = vmatprep.subr.mxu0 0.0
    %2595 = vmatpush1.msra.mxu0 0.0
    %2596 = vmatprep.subr.mxu0 0.0
    %2597 = vmatpush1.msra.mxu0 0.0
    %2598 = vmatprep.subr.mxu0 0.0
    %2599 = vmatpush1.msra.mxu0 0.0
    %2600 = vmatprep.subr.mxu0 0.0
    %2601 = vmatpush1.msra.mxu0 0.0
    %2602 = vmatprep.subr.mxu0 0.0
    %2603 = vmatpush1.msra.mxu0 0.0
    %2604 = vmatprep.subr.mxu0 0.0
    %2605 = vmatpush1.msra.mxu0 0.0
    %2606 = vmatprep.subr.mxu0 0.0
    %2607 = vmatpush1.msra.mxu0 0.0
    %2608 = vmatprep.subr.mxu0 0.0
    %2609 = vmatpush1.msra.mxu0 0.0
    %2610 = vmatprep.subr.mxu0 0.0
    %2611 = vmatpush1.msra.mxu0 0.0
    %2612 = vmatprep.subr.mxu0 0.0
    %2613 = vmatpush1.msra.mxu0 0.0
    %2614 = vmatprep.subr.mxu0 0.0
    %2615 = vmatpush1.msra.mxu0 0.0
    %2616 = vmatprep.subr.mxu0 0.0
    %2617 = vmatpush1.msra.mxu0 0.0
    %2618 = vmatprep.subr.mxu0 0.0
    %2619 = vmatpush1.msra.mxu0 0.0
    %2620 = vmatprep.subr.mxu0 0.0
    %2621 = vmatpush1.msra.mxu0 0.0
    %2622 = vmatprep.subr.mxu0 0.0
    %2623 = vmatpush1.msra.mxu0 0.0
    %2624 = vmatprep.subr.mxu0 0.0
    %2625 = vmatpush1.msra.mxu0 0.0
    %2626 = vmatprep.subr.mxu0 0.0
    %2627 = vmatpush1.msra.mxu0 0.0
    %2628 = vmatprep.subr.mxu0 0.0
    %2629 = vmatpush1.msra.mxu0 0.0
    %2630 = vmatprep.subr.mxu0 0.0
    %2631 = vmatpush1.msra.mxu0 0.0
    %2632 = vmatprep.subr.mxu0 0.0
    %2633 = vmatpush1.msra.mxu0 0.0
    %2634 = vmatprep.subr.mxu0 0.0
    %2635 = vmatpush1.msra.mxu0 0.0
    %2636 = vmatprep.subr.mxu0 0.0
    %2637 = vmatpush1.msra.mxu0 0.0
    %2638 = vmatprep.subr.mxu0 0.0
    %2639 = vmatpush1.msra.mxu0 0.0
    %2640 = vmatprep.subr.mxu0 0.0
    %2641 = vmatpush1.msra.mxu0 0.0
    %2642 = vmatprep.subr.mxu0 0.0
    %2643 = vmatpush1.msra.mxu0 0.0
    %2644 = vmatprep.subr.mxu0 0.0
    %2645 = vmatpush1.msra.mxu0 0.0
    %2646 = vmatprep.mubr.f32.mxu0 0.0
    %2647 = vmatmul.mubr.f32.gmra.mrb[0].mxu0 %v2509
    %v2648 = vpop.f32.mrb[0].mxu0
    %v2649 = vadd.f32 %v2504, %v2648
    %v2650 = vpop.f32.mrb[0].mxu0
    %v2651 = vadd.f32 %v2506, %v2650
    %2652 = vdwg.mxu0
    %2653 = vrot.lane.b32.xlu0 %v2339, 16
    %v2654 = vpop.permute.xlu0 %2653
    %2655 = vrot.lane.b32.xlu0 %v2340, 16
    %v2656 = vpop.permute.xlu0 %2655
    %2657 = vrot.lane.b32.xlu0 %v2341, 16
    %v2658 = vpop.permute.xlu0 %2657
    %2659 = vrot.lane.b32.xlu0 %v2342, 16
    %v2660 = vpop.permute.xlu0 %2659
    %v2661 = vsel %vm569, %v2658, %v2660
    %v2662 = vsel %vm569, %v2656, %v2658
    %v2663 = vsel %vm569, %v2654, %v2656
    %v2664 = vsel %vm569, %v2660, %v2654
    %v2665 = vmul.f32 %v2664, %v580
    %v2666 = vmul.f32 %v2663, %v584
    %v2667 = vmul.f32 %v2662, %v588
    %v2668 = vmul.f32 %v2661, %v592
    %s2669 = scalar_lea.vmem %s1, 104
    %v2670 = vld [vmem:[%s2669] sm:$0xff]
    %v2672 = vsel %vm34, %v2670, 0
    %2674 = vmatprep.subr.mxu0 %v2666
    %2675 = vmatpush1.msra.mxu0 %v2665
    %2676 = vmatprep.subr.mxu0 0.0
    %2677 = vmatpush1.msra.mxu0 0.0
    %2678 = vmatprep.subr.mxu0 0.0
    %2679 = vmatpush1.msra.mxu0 0.0
    %2680 = vmatprep.subr.mxu0 0.0
    %2681 = vmatpush1.msra.mxu0 0.0
    %2682 = vmatprep.subr.mxu0 0.0
    %2683 = vmatpush1.msra.mxu0 0.0
    %2684 = vmatprep.subr.mxu0 0.0
    %2685 = vmatpush1.msra.mxu0 0.0
    %2686 = vmatprep.subr.mxu0 0.0
    %2687 = vmatpush1.msra.mxu0 0.0
    %2688 = vmatprep.subr.mxu0 0.0
    %2689 = vmatpush1.msra.mxu0 0.0
    %2690 = vmatprep.subr.mxu0 0.0
    %2691 = vmatpush1.msra.mxu0 0.0
    %2692 = vmatprep.subr.mxu0 0.0
    %2693 = vmatpush1.msra.mxu0 0.0
    %2694 = vmatprep.subr.mxu0 0.0
    %2695 = vmatpush1.msra.mxu0 0.0
    %2696 = vmatprep.subr.mxu0 0.0
    %2697 = vmatpush1.msra.mxu0 0.0
    %2698 = vmatprep.subr.mxu0 0.0
    %2699 = vmatpush1.msra.mxu0 0.0
    %2700 = vmatprep.subr.mxu0 0.0
    %2701 = vmatpush1.msra.mxu0 0.0
    %2702 = vmatprep.subr.mxu0 0.0
    %2703 = vmatpush1.msra.mxu0 0.0
    %2704 = vmatprep.subr.mxu0 0.0
    %2705 = vmatpush1.msra.mxu0 0.0
    %2706 = vmatprep.subr.mxu0 0.0
    %2707 = vmatpush1.msra.mxu0 0.0
    %2708 = vmatprep.subr.mxu0 0.0
    %2709 = vmatpush1.msra.mxu0 0.0
    %2710 = vmatprep.subr.mxu0 0.0
    %2711 = vmatpush1.msra.mxu0 0.0
    %2712 = vmatprep.subr.mxu0 0.0
    %2713 = vmatpush1.msra.mxu0 0.0
    %2714 = vmatprep.subr.mxu0 0.0
    %2715 = vmatpush1.msra.mxu0 0.0
    %2716 = vmatprep.subr.mxu0 0.0
    %2717 = vmatpush1.msra.mxu0 0.0
    %2718 = vmatprep.subr.mxu0 0.0
    %2719 = vmatpush1.msra.mxu0 0.0
    %2720 = vmatprep.subr.mxu0 0.0
    %2721 = vmatpush1.msra.mxu0 0.0
    %2722 = vmatprep.subr.mxu0 0.0
    %2723 = vmatpush1.msra.mxu0 0.0
    %2724 = vmatprep.subr.mxu0 0.0
    %2725 = vmatpush1.msra.mxu0 0.0
    %2726 = vmatprep.subr.mxu0 0.0
    %2727 = vmatpush1.msra.mxu0 0.0
    %2728 = vmatprep.subr.mxu0 0.0
    %2729 = vmatpush1.msra.mxu0 0.0
    %2730 = vmatprep.subr.mxu0 0.0
    %2731 = vmatpush1.msra.mxu0 0.0
    %2732 = vmatprep.subr.mxu0 0.0
    %2733 = vmatpush1.msra.mxu0 0.0
    %2734 = vmatprep.subr.mxu0 0.0
    %2735 = vmatpush1.msra.mxu0 0.0
    %2736 = vmatprep.subr.mxu0 0.0
    %2737 = vmatpush1.msra.mxu0 0.0
    %2738 = vmatprep.mubr.f32.mxu0 0.0
    %2739 = vmatmul.mubr.f32.gmra.mrb[0].mxu0 %v2672
    %v2740 = vpop.f32.mrb[0].mxu0
    %v2741 = vadd.f32 0.0, %v2740
    %v2742 = vpop.f32.mrb[0].mxu0
    %v2743 = vadd.f32 0.0, %v2742
    %2744 = vdwg.mxu0
    %2745 = vmatprep.subr.mxu0 %v2668
    %2746 = vmatpush1.msra.mxu0 %v2667
    %2747 = vmatprep.subr.mxu0 0.0
    %2748 = vmatpush1.msra.mxu0 0.0
    %2749 = vmatprep.subr.mxu0 0.0
    %2750 = vmatpush1.msra.mxu0 0.0
    %2751 = vmatprep.subr.mxu0 0.0
    %2752 = vmatpush1.msra.mxu0 0.0
    %2753 = vmatprep.subr.mxu0 0.0
    %2754 = vmatpush1.msra.mxu0 0.0
    %2755 = vmatprep.subr.mxu0 0.0
    %2756 = vmatpush1.msra.mxu0 0.0
    %2757 = vmatprep.subr.mxu0 0.0
    %2758 = vmatpush1.msra.mxu0 0.0
    %2759 = vmatprep.subr.mxu0 0.0
    %2760 = vmatpush1.msra.mxu0 0.0
    %2761 = vmatprep.subr.mxu0 0.0
    %2762 = vmatpush1.msra.mxu0 0.0
    %2763 = vmatprep.subr.mxu0 0.0
    %2764 = vmatpush1.msra.mxu0 0.0
    %2765 = vmatprep.subr.mxu0 0.0
    %2766 = vmatpush1.msra.mxu0 0.0
    %2767 = vmatprep.subr.mxu0 0.0
    %2768 = vmatpush1.msra.mxu0 0.0
    %2769 = vmatprep.subr.mxu0 0.0
    %2770 = vmatpush1.msra.mxu0 0.0
    %2771 = vmatprep.subr.mxu0 0.0
    %2772 = vmatpush1.msra.mxu0 0.0
    %2773 = vmatprep.subr.mxu0 0.0
    %2774 = vmatpush1.msra.mxu0 0.0
    %2775 = vmatprep.subr.mxu0 0.0
    %2776 = vmatpush1.msra.mxu0 0.0
    %2777 = vmatprep.subr.mxu0 0.0
    %2778 = vmatpush1.msra.mxu0 0.0
    %2779 = vmatprep.subr.mxu0 0.0
    %2780 = vmatpush1.msra.mxu0 0.0
    %2781 = vmatprep.subr.mxu0 0.0
    %2782 = vmatpush1.msra.mxu0 0.0
    %2783 = vmatprep.subr.mxu0 0.0
    %2784 = vmatpush1.msra.mxu0 0.0
    %2785 = vmatprep.subr.mxu0 0.0
    %2786 = vmatpush1.msra.mxu0 0.0
    %2787 = vmatprep.subr.mxu0 0.0
    %2788 = vmatpush1.msra.mxu0 0.0
    %2789 = vmatprep.subr.mxu0 0.0
    %2790 = vmatpush1.msra.mxu0 0.0
    %2791 = vmatprep.subr.mxu0 0.0
    %2792 = vmatpush1.msra.mxu0 0.0
    %2793 = vmatprep.subr.mxu0 0.0
    %2794 = vmatpush1.msra.mxu0 0.0
    %2795 = vmatprep.subr.mxu0 0.0
    %2796 = vmatpush1.msra.mxu0 0.0
    %2797 = vmatprep.subr.mxu0 0.0
    %2798 = vmatpush1.msra.mxu0 0.0
    %2799 = vmatprep.subr.mxu0 0.0
    %2800 = vmatpush1.msra.mxu0 0.0
    %2801 = vmatprep.subr.mxu0 0.0
    %2802 = vmatpush1.msra.mxu0 0.0
    %2803 = vmatprep.subr.mxu0 0.0
    %2804 = vmatpush1.msra.mxu0 0.0
    %2805 = vmatprep.subr.mxu0 0.0
    %2806 = vmatpush1.msra.mxu0 0.0
    %2807 = vmatprep.subr.mxu0 0.0
    %2808 = vmatpush1.msra.mxu0 0.0
    %2809 = vmatprep.mubr.f32.mxu0 0.0
    %2810 = vmatmul.mubr.f32.gmra.mrb[0].mxu0 %v2672
    %v2811 = vpop.f32.mrb[0].mxu0
    %v2812 = vadd.f32 0.0, %v2811
    %v2813 = vpop.f32.mrb[0].mxu0
    %v2814 = vadd.f32 0.0, %v2813
    %2815 = vdwg.mxu0
    %v2816 = vadd.f32 %v2578, %v2741
    %v2817 = vadd.f32 %v2580, %v2743
    %v2818 = vadd.f32 %v2649, %v2812
    %v2819 = vadd.f32 %v2651, %v2814
    %2820 = vrot.lane.b32.xlu0 %v2339, 15
    %v2821 = vpop.permute.xlu0 %2820
    %2822 = vrot.lane.b32.xlu0 %v2340, 15
    %v2823 = vpop.permute.xlu0 %2822
    %2824 = vrot.lane.b32.xlu0 %v2341, 15
    %v2825 = vpop.permute.xlu0 %2824
    %2826 = vrot.lane.b32.xlu0 %v2342, 15
    %v2827 = vpop.permute.xlu0 %2826
    %v2828 = vsel %vm760, %v2825, %v2827
    %v2829 = vsel %vm760, %v2823, %v2825
    %v2830 = vsel %vm760, %v2821, %v2823
    %v2831 = vsel %vm760, %v2827, %v2821
    %v2832 = vmul.f32 %v2831, %v771
    %v2833 = vmul.f32 %v2830, %v775
    %v2834 = vmul.f32 %v2829, %v779
    %v2835 = vmul.f32 %v2828, %v783
    %s2836 = scalar_lea.vmem %s1, 112
    %v2837 = vld [vmem:[%s2836] sm:$0xff]
    %v2839 = vsel %vm34, %v2837, 0
    %2841 = vmatprep.subr.mxu0 %v2833
    %2842 = vmatpush1.msra.mxu0 %v2832
    %2843 = vmatprep.subr.mxu0 0.0
    %2844 = vmatpush1.msra.mxu0 0.0
    %2845 = vmatprep.subr.mxu0 0.0
    %2846 = vmatpush1.msra.mxu0 0.0
    %2847 = vmatprep.subr.mxu0 0.0
    %2848 = vmatpush1.msra.mxu0 0.0
    %2849 = vmatprep.subr.mxu0 0.0
    %2850 = vmatpush1.msra.mxu0 0.0
    %2851 = vmatprep.subr.mxu0 0.0
    %2852 = vmatpush1.msra.mxu0 0.0
    %2853 = vmatprep.subr.mxu0 0.0
    %2854 = vmatpush1.msra.mxu0 0.0
    %2855 = vmatprep.subr.mxu0 0.0
    %2856 = vmatpush1.msra.mxu0 0.0
    %2857 = vmatprep.subr.mxu0 0.0
    %2858 = vmatpush1.msra.mxu0 0.0
    %2859 = vmatprep.subr.mxu0 0.0
    %2860 = vmatpush1.msra.mxu0 0.0
    %2861 = vmatprep.subr.mxu0 0.0
    %2862 = vmatpush1.msra.mxu0 0.0
    %2863 = vmatprep.subr.mxu0 0.0
    %2864 = vmatpush1.msra.mxu0 0.0
    %2865 = vmatprep.subr.mxu0 0.0
    %2866 = vmatpush1.msra.mxu0 0.0
    %2867 = vmatprep.subr.mxu0 0.0
    %2868 = vmatpush1.msra.mxu0 0.0
    %2869 = vmatprep.subr.mxu0 0.0
    %2870 = vmatpush1.msra.mxu0 0.0
    %2871 = vmatprep.subr.mxu0 0.0
    %2872 = vmatpush1.msra.mxu0 0.0
    %2873 = vmatprep.subr.mxu0 0.0
    %2874 = vmatpush1.msra.mxu0 0.0
    %2875 = vmatprep.subr.mxu0 0.0
    %2876 = vmatpush1.msra.mxu0 0.0
    %2877 = vmatprep.subr.mxu0 0.0
    %2878 = vmatpush1.msra.mxu0 0.0
    %2879 = vmatprep.subr.mxu0 0.0
    %2880 = vmatpush1.msra.mxu0 0.0
    %2881 = vmatprep.subr.mxu0 0.0
    %2882 = vmatpush1.msra.mxu0 0.0
    %2883 = vmatprep.subr.mxu0 0.0
    %2884 = vmatpush1.msra.mxu0 0.0
    %2885 = vmatprep.subr.mxu0 0.0
    %2886 = vmatpush1.msra.mxu0 0.0
    %2887 = vmatprep.subr.mxu0 0.0
    %2888 = vmatpush1.msra.mxu0 0.0
    %2889 = vmatprep.subr.mxu0 0.0
    %2890 = vmatpush1.msra.mxu0 0.0
    %2891 = vmatprep.subr.mxu0 0.0
    %2892 = vmatpush1.msra.mxu0 0.0
    %2893 = vmatprep.subr.mxu0 0.0
    %2894 = vmatpush1.msra.mxu0 0.0
    %2895 = vmatprep.subr.mxu0 0.0
    %2896 = vmatpush1.msra.mxu0 0.0
    %2897 = vmatprep.subr.mxu0 0.0
    %2898 = vmatpush1.msra.mxu0 0.0
    %2899 = vmatprep.subr.mxu0 0.0
    %2900 = vmatpush1.msra.mxu0 0.0
    %2901 = vmatprep.subr.mxu0 0.0
    %2902 = vmatpush1.msra.mxu0 0.0
    %2903 = vmatprep.subr.mxu0 0.0
    %2904 = vmatpush1.msra.mxu0 0.0
    %2905 = vmatprep.mubr.f32.mxu0 0.0
    %2906 = vmatmul.mubr.f32.gmra.mrb[0].mxu0 %v2839
    %v2907 = vpop.f32.mrb[0].mxu0
    %v2908 = vadd.f32 0.0, %v2907
    %v2909 = vpop.f32.mrb[0].mxu0
    %v2910 = vadd.f32 0.0, %v2909
    %2911 = vdwg.mxu0
    %2912 = vmatprep.subr.mxu0 %v2835
    %2913 = vmatpush1.msra.mxu0 %v2834
    %2914 = vmatprep.subr.mxu0 0.0
    %2915 = vmatpush1.msra.mxu0 0.0
    %2916 = vmatprep.subr.mxu0 0.0
    %2917 = vmatpush1.msra.mxu0 0.0
    %2918 = vmatprep.subr.mxu0 0.0
    %2919 = vmatpush1.msra.mxu0 0.0
    %2920 = vmatprep.subr.mxu0 0.0
    %2921 = vmatpush1.msra.mxu0 0.0
    %2922 = vmatprep.subr.mxu0 0.0
    %2923 = vmatpush1.msra.mxu0 0.0
    %2924 = vmatprep.subr.mxu0 0.0
    %2925 = vmatpush1.msra.mxu0 0.0
    %2926 = vmatprep.subr.mxu0 0.0
    %2927 = vmatpush1.msra.mxu0 0.0
    %2928 = vmatprep.subr.mxu0 0.0
    %2929 = vmatpush1.msra.mxu0 0.0
    %2930 = vmatprep.subr.mxu0 0.0
    %2931 = vmatpush1.msra.mxu0 0.0
    %2932 = vmatprep.subr.mxu0 0.0
    %2933 = vmatpush1.msra.mxu0 0.0
    %2934 = vmatprep.subr.mxu0 0.0
    %2935 = vmatpush1.msra.mxu0 0.0
    %2936 = vmatprep.subr.mxu0 0.0
    %2937 = vmatpush1.msra.mxu0 0.0
    %2938 = vmatprep.subr.mxu0 0.0
    %2939 = vmatpush1.msra.mxu0 0.0
    %2940 = vmatprep.subr.mxu0 0.0
    %2941 = vmatpush1.msra.mxu0 0.0
    %2942 = vmatprep.subr.mxu0 0.0
    %2943 = vmatpush1.msra.mxu0 0.0
    %2944 = vmatprep.subr.mxu0 0.0
    %2945 = vmatpush1.msra.mxu0 0.0
    %2946 = vmatprep.subr.mxu0 0.0
    %2947 = vmatpush1.msra.mxu0 0.0
    %2948 = vmatprep.subr.mxu0 0.0
    %2949 = vmatpush1.msra.mxu0 0.0
    %2950 = vmatprep.subr.mxu0 0.0
    %2951 = vmatpush1.msra.mxu0 0.0
    %2952 = vmatprep.subr.mxu0 0.0
    %2953 = vmatpush1.msra.mxu0 0.0
    %2954 = vmatprep.subr.mxu0 0.0
    %2955 = vmatpush1.msra.mxu0 0.0
    %2956 = vmatprep.subr.mxu0 0.0
    %2957 = vmatpush1.msra.mxu0 0.0
    %2958 = vmatprep.subr.mxu0 0.0
    %2959 = vmatpush1.msra.mxu0 0.0
    %2960 = vmatprep.subr.mxu0 0.0
    %2961 = vmatpush1.msra.mxu0 0.0
    %2962 = vmatprep.subr.mxu0 0.0
    %2963 = vmatpush1.msra.mxu0 0.0
    %2964 = vmatprep.subr.mxu0 0.0
    %2965 = vmatpush1.msra.mxu0 0.0
    %2966 = vmatprep.subr.mxu0 0.0
    %2967 = vmatpush1.msra.mxu0 0.0
    %2968 = vmatprep.subr.mxu0 0.0
    %2969 = vmatpush1.msra.mxu0 0.0
    %2970 = vmatprep.subr.mxu0 0.0
    %2971 = vmatpush1.msra.mxu0 0.0
    %2972 = vmatprep.subr.mxu0 0.0
    %2973 = vmatpush1.msra.mxu0 0.0
    %2974 = vmatprep.subr.mxu0 0.0
    %2975 = vmatpush1.msra.mxu0 0.0
    %2976 = vmatprep.mubr.f32.mxu0 0.0
    %2977 = vmatmul.mubr.f32.gmra.mrb[0].mxu0 %v2839
    %v2978 = vpop.f32.mrb[0].mxu0
    %v2979 = vadd.f32 0.0, %v2978
    %v2980 = vpop.f32.mrb[0].mxu0
    %v2981 = vadd.f32 0.0, %v2980
    %2982 = vdwg.mxu0
    %v2983 = vadd.f32 %v2816, %v2908
    %v2984 = vadd.f32 %v2817, %v2910
    %v2985 = vadd.f32 %v2818, %v2979
    %v2986 = vadd.f32 %v2819, %v2981
    %2987 = vrot.lane.b32.xlu0 %v2339, 1
    %v2988 = vpop.permute.xlu0 %2987
    %2989 = vrot.lane.b32.xlu0 %v2340, 1
    %v2990 = vpop.permute.xlu0 %2989
    %2991 = vrot.lane.b32.xlu0 %v2341, 1
    %v2992 = vpop.permute.xlu0 %2991
    %2993 = vrot.lane.b32.xlu0 %v2342, 1
    %v2994 = vpop.permute.xlu0 %2993
    %v2995 = vsel %vm951, %v2992, %v2994
    %v2996 = vsel %vm951, %v2990, %v2992
    %v2997 = vsel %vm951, %v2988, %v2990
    %v2998 = vsel %vm951, %v2994, %v2988
    %v2999 = vmul.f32 %v2998, %v962
    %v3000 = vmul.f32 %v2997, %v966
    %v3001 = vmul.f32 %v2996, %v970
    %v3002 = vmul.f32 %v2995, %v974
    %s3003 = scalar_lea.vmem %s1, 120
    %v3004 = vld [vmem:[%s3003] sm:$0xff]
    %v3006 = vsel %vm34, %v3004, 0
    %3008 = vmatprep.subr.mxu0 %v3000
    %3009 = vmatpush1.msra.mxu0 %v2999
    %3010 = vmatprep.subr.mxu0 0.0
    %3011 = vmatpush1.msra.mxu0 0.0
    %3012 = vmatprep.subr.mxu0 0.0
    %3013 = vmatpush1.msra.mxu0 0.0
    %3014 = vmatprep.subr.mxu0 0.0
    %3015 = vmatpush1.msra.mxu0 0.0
    %3016 = vmatprep.subr.mxu0 0.0
    %3017 = vmatpush1.msra.mxu0 0.0
    %3018 = vmatprep.subr.mxu0 0.0
    %3019 = vmatpush1.msra.mxu0 0.0
    %3020 = vmatprep.subr.mxu0 0.0
    %3021 = vmatpush1.msra.mxu0 0.0
    %3022 = vmatprep.subr.mxu0 0.0
    %3023 = vmatpush1.msra.mxu0 0.0
    %3024 = vmatprep.subr.mxu0 0.0
    %3025 = vmatpush1.msra.mxu0 0.0
    %3026 = vmatprep.subr.mxu0 0.0
    %3027 = vmatpush1.msra.mxu0 0.0
    %3028 = vmatprep.subr.mxu0 0.0
    %3029 = vmatpush1.msra.mxu0 0.0
    %3030 = vmatprep.subr.mxu0 0.0
    %3031 = vmatpush1.msra.mxu0 0.0
    %3032 = vmatprep.subr.mxu0 0.0
    %3033 = vmatpush1.msra.mxu0 0.0
    %3034 = vmatprep.subr.mxu0 0.0
    %3035 = vmatpush1.msra.mxu0 0.0
    %3036 = vmatprep.subr.mxu0 0.0
    %3037 = vmatpush1.msra.mxu0 0.0
    %3038 = vmatprep.subr.mxu0 0.0
    %3039 = vmatpush1.msra.mxu0 0.0
    %3040 = vmatprep.subr.mxu0 0.0
    %3041 = vmatpush1.msra.mxu0 0.0
    %3042 = vmatprep.subr.mxu0 0.0
    %3043 = vmatpush1.msra.mxu0 0.0
    %3044 = vmatprep.subr.mxu0 0.0
    %3045 = vmatpush1.msra.mxu0 0.0
    %3046 = vmatprep.subr.mxu0 0.0
    %3047 = vmatpush1.msra.mxu0 0.0
    %3048 = vmatprep.subr.mxu0 0.0
    %3049 = vmatpush1.msra.mxu0 0.0
    %3050 = vmatprep.subr.mxu0 0.0
    %3051 = vmatpush1.msra.mxu0 0.0
    %3052 = vmatprep.subr.mxu0 0.0
    %3053 = vmatpush1.msra.mxu0 0.0
    %3054 = vmatprep.subr.mxu0 0.0
    %3055 = vmatpush1.msra.mxu0 0.0
    %3056 = vmatprep.subr.mxu0 0.0
    %3057 = vmatpush1.msra.mxu0 0.0
    %3058 = vmatprep.subr.mxu0 0.0
    %3059 = vmatpush1.msra.mxu0 0.0
    %3060 = vmatprep.subr.mxu0 0.0
    %3061 = vmatpush1.msra.mxu0 0.0
    %3062 = vmatprep.subr.mxu0 0.0
    %3063 = vmatpush1.msra.mxu0 0.0
    %3064 = vmatprep.subr.mxu0 0.0
    %3065 = vmatpush1.msra.mxu0 0.0
    %3066 = vmatprep.subr.mxu0 0.0
    %3067 = vmatpush1.msra.mxu0 0.0
    %3068 = vmatprep.subr.mxu0 0.0
    %3069 = vmatpush1.msra.mxu0 0.0
    %3070 = vmatprep.subr.mxu0 0.0
    %3071 = vmatpush1.msra.mxu0 0.0
    %3072 = vmatprep.mubr.f32.mxu0 0.0
    %3073 = vmatmul.mubr.f32.gmra.mrb[0].mxu0 %v3006
    %v3074 = vpop.f32.mrb[0].mxu0
    %v3075 = vadd.f32 0.0, %v3074
    %v3076 = vpop.f32.mrb[0].mxu0
    %v3077 = vadd.f32 0.0, %v3076
    %3078 = vdwg.mxu0
    %3079 = vmatprep.subr.mxu0 %v3002
    %3080 = vmatpush1.msra.mxu0 %v3001
    %3081 = vmatprep.subr.mxu0 0.0
    %3082 = vmatpush1.msra.mxu0 0.0
    %3083 = vmatprep.subr.mxu0 0.0
    %3084 = vmatpush1.msra.mxu0 0.0
    %3085 = vmatprep.subr.mxu0 0.0
    %3086 = vmatpush1.msra.mxu0 0.0
    %3087 = vmatprep.subr.mxu0 0.0
    %3088 = vmatpush1.msra.mxu0 0.0
    %3089 = vmatprep.subr.mxu0 0.0
    %3090 = vmatpush1.msra.mxu0 0.0
    %3091 = vmatprep.subr.mxu0 0.0
    %3092 = vmatpush1.msra.mxu0 0.0
    %3093 = vmatprep.subr.mxu0 0.0
    %3094 = vmatpush1.msra.mxu0 0.0
    %3095 = vmatprep.subr.mxu0 0.0
    %3096 = vmatpush1.msra.mxu0 0.0
    %3097 = vmatprep.subr.mxu0 0.0
    %3098 = vmatpush1.msra.mxu0 0.0
    %3099 = vmatprep.subr.mxu0 0.0
    %3100 = vmatpush1.msra.mxu0 0.0
    %3101 = vmatprep.subr.mxu0 0.0
    %3102 = vmatpush1.msra.mxu0 0.0
    %3103 = vmatprep.subr.mxu0 0.0
    %3104 = vmatpush1.msra.mxu0 0.0
    %3105 = vmatprep.subr.mxu0 0.0
    %3106 = vmatpush1.msra.mxu0 0.0
    %3107 = vmatprep.subr.mxu0 0.0
    %3108 = vmatpush1.msra.mxu0 0.0
    %3109 = vmatprep.subr.mxu0 0.0
    %3110 = vmatpush1.msra.mxu0 0.0
    %3111 = vmatprep.subr.mxu0 0.0
    %3112 = vmatpush1.msra.mxu0 0.0
    %3113 = vmatprep.subr.mxu0 0.0
    %3114 = vmatpush1.msra.mxu0 0.0
    %3115 = vmatprep.subr.mxu0 0.0
    %3116 = vmatpush1.msra.mxu0 0.0
    %3117 = vmatprep.subr.mxu0 0.0
    %3118 = vmatpush1.msra.mxu0 0.0
    %3119 = vmatprep.subr.mxu0 0.0
    %3120 = vmatpush1.msra.mxu0 0.0
    %3121 = vmatprep.subr.mxu0 0.0
    %3122 = vmatpush1.msra.mxu0 0.0
    %3123 = vmatprep.subr.mxu0 0.0
    %3124 = vmatpush1.msra.mxu0 0.0
    %3125 = vmatprep.subr.mxu0 0.0
    %3126 = vmatpush1.msra.mxu0 0.0
    %3127 = vmatprep.subr.mxu0 0.0
    %3128 = vmatpush1.msra.mxu0 0.0
    %3129 = vmatprep.subr.mxu0 0.0
    %3130 = vmatpush1.msra.mxu0 0.0
    %3131 = vmatprep.subr.mxu0 0.0
    %3132 = vmatpush1.msra.mxu0 0.0
    %3133 = vmatprep.subr.mxu0 0.0
    %3134 = vmatpush1.msra.mxu0 0.0
    %3135 = vmatprep.subr.mxu0 0.0
    %3136 = vmatpush1.msra.mxu0 0.0
    %3137 = vmatprep.subr.mxu0 0.0
    %3138 = vmatpush1.msra.mxu0 0.0
    %3139 = vmatprep.subr.mxu0 0.0
    %3140 = vmatpush1.msra.mxu0 0.0
    %3141 = vmatprep.subr.mxu0 0.0
    %3142 = vmatpush1.msra.mxu0 0.0
    %3143 = vmatprep.mubr.f32.mxu0 0.0
    %3144 = vmatmul.mubr.f32.gmra.mrb[0].mxu0 %v3006
    %v3145 = vpop.f32.mrb[0].mxu0
    %v3146 = vadd.f32 0.0, %v3145
    %v3147 = vpop.f32.mrb[0].mxu0
    %v3148 = vadd.f32 0.0, %v3147
    %3149 = vdwg.mxu0
    %v3150 = vadd.f32 %v2983, %v3075
    %v3151 = vadd.f32 %v2984, %v3077
    %v3152 = vadd.f32 %v2985, %v3146
    %v3153 = vadd.f32 %v2986, %v3148
    %3154 = vrot.lane.b32.xlu0 %v2339, 127
    %v3155 = vpop.permute.xlu0 %3154
    %3156 = vrot.lane.b32.xlu0 %v2340, 127
    %v3157 = vpop.permute.xlu0 %3156
    %3158 = vrot.lane.b32.xlu0 %v2341, 127
    %v3159 = vpop.permute.xlu0 %3158
    %3160 = vrot.lane.b32.xlu0 %v2342, 127
    %v3161 = vpop.permute.xlu0 %3160
    %v3162 = vsel %vm1142, %v3159, %v3161
    %v3163 = vsel %vm1142, %v3157, %v3159
    %v3164 = vsel %vm1142, %v3155, %v3157
    %v3165 = vsel %vm1142, %v3161, %v3155
    %v3166 = vmul.f32 %v3164, %v1153
    %v3167 = vmul.f32 %v3163, %v1157
    %v3168 = vmul.f32 %v3162, %v1161
    %v3169 = vmul.f32 %v3165, %v1165
    %s3170 = scalar_lea.vmem %s1, 136
    %v3171 = vld [vmem:[%s3170] sm:$0xff]
    %v3173 = vsel %vm34, %v3171, 0
    %3175 = vmatprep.subr.mxu0 %v3167
    %3176 = vmatpush1.msra.mxu0 %v3166
    %3177 = vmatprep.subr.mxu0 0.0
    %3178 = vmatpush1.msra.mxu0 0.0
    %3179 = vmatprep.subr.mxu0 0.0
    %3180 = vmatpush1.msra.mxu0 0.0
    %3181 = vmatprep.subr.mxu0 0.0
    %3182 = vmatpush1.msra.mxu0 0.0
    %3183 = vmatprep.subr.mxu0 0.0
    %3184 = vmatpush1.msra.mxu0 0.0
    %3185 = vmatprep.subr.mxu0 0.0
    %3186 = vmatpush1.msra.mxu0 0.0
    %3187 = vmatprep.subr.mxu0 0.0
    %3188 = vmatpush1.msra.mxu0 0.0
    %3189 = vmatprep.subr.mxu0 0.0
    %3190 = vmatpush1.msra.mxu0 0.0
    %3191 = vmatprep.subr.mxu0 0.0
    %3192 = vmatpush1.msra.mxu0 0.0
    %3193 = vmatprep.subr.mxu0 0.0
    %3194 = vmatpush1.msra.mxu0 0.0
    %3195 = vmatprep.subr.mxu0 0.0
    %3196 = vmatpush1.msra.mxu0 0.0
    %3197 = vmatprep.subr.mxu0 0.0
    %3198 = vmatpush1.msra.mxu0 0.0
    %3199 = vmatprep.subr.mxu0 0.0
    %3200 = vmatpush1.msra.mxu0 0.0
    %3201 = vmatprep.subr.mxu0 0.0
    %3202 = vmatpush1.msra.mxu0 0.0
    %3203 = vmatprep.subr.mxu0 0.0
    %3204 = vmatpush1.msra.mxu0 0.0
    %3205 = vmatprep.subr.mxu0 0.0
    %3206 = vmatpush1.msra.mxu0 0.0
    %3207 = vmatprep.subr.mxu0 0.0
    %3208 = vmatpush1.msra.mxu0 0.0
    %3209 = vmatprep.subr.mxu0 0.0
    %3210 = vmatpush1.msra.mxu0 0.0
    %3211 = vmatprep.subr.mxu0 0.0
    %3212 = vmatpush1.msra.mxu0 0.0
    %3213 = vmatprep.subr.mxu0 0.0
    %3214 = vmatpush1.msra.mxu0 0.0
    %3215 = vmatprep.subr.mxu0 0.0
    %3216 = vmatpush1.msra.mxu0 0.0
    %3217 = vmatprep.subr.mxu0 0.0
    %3218 = vmatpush1.msra.mxu0 0.0
    %3219 = vmatprep.subr.mxu0 0.0
    %3220 = vmatpush1.msra.mxu0 0.0
    %3221 = vmatprep.subr.mxu0 0.0
    %3222 = vmatpush1.msra.mxu0 0.0
    %3223 = vmatprep.subr.mxu0 0.0
    %3224 = vmatpush1.msra.mxu0 0.0
    %3225 = vmatprep.subr.mxu0 0.0
    %3226 = vmatpush1.msra.mxu0 0.0
    %3227 = vmatprep.subr.mxu0 0.0
    %3228 = vmatpush1.msra.mxu0 0.0
    %3229 = vmatprep.subr.mxu0 0.0
    %3230 = vmatpush1.msra.mxu0 0.0
    %3231 = vmatprep.subr.mxu0 0.0
    %3232 = vmatpush1.msra.mxu0 0.0
    %3233 = vmatprep.subr.mxu0 0.0
    %3234 = vmatpush1.msra.mxu0 0.0
    %3235 = vmatprep.subr.mxu0 0.0
    %3236 = vmatpush1.msra.mxu0 0.0
    %3237 = vmatprep.subr.mxu0 0.0
    %3238 = vmatpush1.msra.mxu0 0.0
    %3239 = vmatprep.mubr.f32.mxu0 0.0
    %3240 = vmatmul.mubr.f32.gmra.mrb[0].mxu0 %v3173
    %v3241 = vpop.f32.mrb[0].mxu0
    %v3242 = vadd.f32 0.0, %v3241
    %v3243 = vpop.f32.mrb[0].mxu0
    %v3244 = vadd.f32 0.0, %v3243
    %3245 = vdwg.mxu0
    %3246 = vmatprep.subr.mxu0 %v3169
    %3247 = vmatpush1.msra.mxu0 %v3168
    %3248 = vmatprep.subr.mxu0 0.0
    %3249 = vmatpush1.msra.mxu0 0.0
    %3250 = vmatprep.subr.mxu0 0.0
    %3251 = vmatpush1.msra.mxu0 0.0
    %3252 = vmatprep.subr.mxu0 0.0
    %3253 = vmatpush1.msra.mxu0 0.0
    %3254 = vmatprep.subr.mxu0 0.0
    %3255 = vmatpush1.msra.mxu0 0.0
    %3256 = vmatprep.subr.mxu0 0.0
    %3257 = vmatpush1.msra.mxu0 0.0
    %3258 = vmatprep.subr.mxu0 0.0
    %3259 = vmatpush1.msra.mxu0 0.0
    %3260 = vmatprep.subr.mxu0 0.0
    %3261 = vmatpush1.msra.mxu0 0.0
    %3262 = vmatprep.subr.mxu0 0.0
    %3263 = vmatpush1.msra.mxu0 0.0
    %3264 = vmatprep.subr.mxu0 0.0
    %3265 = vmatpush1.msra.mxu0 0.0
    %3266 = vmatprep.subr.mxu0 0.0
    %3267 = vmatpush1.msra.mxu0 0.0
    %3268 = vmatprep.subr.mxu0 0.0
    %3269 = vmatpush1.msra.mxu0 0.0
    %3270 = vmatprep.subr.mxu0 0.0
    %3271 = vmatpush1.msra.mxu0 0.0
    %3272 = vmatprep.subr.mxu0 0.0
    %3273 = vmatpush1.msra.mxu0 0.0
    %3274 = vmatprep.subr.mxu0 0.0
    %3275 = vmatpush1.msra.mxu0 0.0
    %3276 = vmatprep.subr.mxu0 0.0
    %3277 = vmatpush1.msra.mxu0 0.0
    %3278 = vmatprep.subr.mxu0 0.0
    %3279 = vmatpush1.msra.mxu0 0.0
    %3280 = vmatprep.subr.mxu0 0.0
    %3281 = vmatpush1.msra.mxu0 0.0
    %3282 = vmatprep.subr.mxu0 0.0
    %3283 = vmatpush1.msra.mxu0 0.0
    %3284 = vmatprep.subr.mxu0 0.0
    %3285 = vmatpush1.msra.mxu0 0.0
    %3286 = vmatprep.subr.mxu0 0.0
    %3287 = vmatpush1.msra.mxu0 0.0
    %3288 = vmatprep.subr.mxu0 0.0
    %3289 = vmatpush1.msra.mxu0 0.0
    %3290 = vmatprep.subr.mxu0 0.0
    %3291 = vmatpush1.msra.mxu0 0.0
    %3292 = vmatprep.subr.mxu0 0.0
    %3293 = vmatpush1.msra.mxu0 0.0
    %3294 = vmatprep.subr.mxu0 0.0
    %3295 = vmatpush1.msra.mxu0 0.0
    %3296 = vmatprep.subr.mxu0 0.0
    %3297 = vmatpush1.msra.mxu0 0.0
    %3298 = vmatprep.subr.mxu0 0.0
    %3299 = vmatpush1.msra.mxu0 0.0
    %3300 = vmatprep.subr.mxu0 0.0
    %3301 = vmatpush1.msra.mxu0 0.0
    %3302 = vmatprep.subr.mxu0 0.0
    %3303 = vmatpush1.msra.mxu0 0.0
    %3304 = vmatprep.subr.mxu0 0.0
    %3305 = vmatpush1.msra.mxu0 0.0
    %3306 = vmatprep.subr.mxu0 0.0
    %3307 = vmatpush1.msra.mxu0 0.0
    %3308 = vmatprep.subr.mxu0 0.0
    %3309 = vmatpush1.msra.mxu0 0.0
    %3310 = vmatprep.mubr.f32.mxu0 0.0
    %3311 = vmatmul.mubr.f32.gmra.mrb[0].mxu0 %v3173
    %v3312 = vpop.f32.mrb[0].mxu0
    %v3313 = vadd.f32 0.0, %v3312
    %v3314 = vpop.f32.mrb[0].mxu0
    %v3315 = vadd.f32 0.0, %v3314
    %3316 = vdwg.mxu0
    %v3317 = vadd.f32 %v3150, %v3242
    %v3318 = vadd.f32 %v3151, %v3244
    %v3319 = vadd.f32 %v3152, %v3313
    %v3320 = vadd.f32 %v3153, %v3315
    %3321 = vrot.lane.b32.xlu0 %v2339, 113
    %v3322 = vpop.permute.xlu0 %3321
    %3323 = vrot.lane.b32.xlu0 %v2340, 113
    %v3324 = vpop.permute.xlu0 %3323
    %3325 = vrot.lane.b32.xlu0 %v2341, 113
    %v3326 = vpop.permute.xlu0 %3325
    %3327 = vrot.lane.b32.xlu0 %v2342, 113
    %v3328 = vpop.permute.xlu0 %3327
    %v3329 = vsel %vm1333, %v3326, %v3328
    %v3330 = vsel %vm1333, %v3324, %v3326
    %v3331 = vsel %vm1333, %v3322, %v3324
    %v3332 = vsel %vm1333, %v3328, %v3322
    %v3333 = vmul.f32 %v3331, %v1344
    %v3334 = vmul.f32 %v3330, %v1348
    %v3335 = vmul.f32 %v3329, %v1352
    %v3336 = vmul.f32 %v3332, %v1356
    %s3337 = scalar_lea.vmem %s1, 144
    %v3338 = vld [vmem:[%s3337] sm:$0xff]
    %v3340 = vsel %vm34, %v3338, 0
    %3342 = vmatprep.subr.mxu0 %v3334
    %3343 = vmatpush1.msra.mxu0 %v3333
    %3344 = vmatprep.subr.mxu0 0.0
    %3345 = vmatpush1.msra.mxu0 0.0
    %3346 = vmatprep.subr.mxu0 0.0
    %3347 = vmatpush1.msra.mxu0 0.0
    %3348 = vmatprep.subr.mxu0 0.0
    %3349 = vmatpush1.msra.mxu0 0.0
    %3350 = vmatprep.subr.mxu0 0.0
    %3351 = vmatpush1.msra.mxu0 0.0
    %3352 = vmatprep.subr.mxu0 0.0
    %3353 = vmatpush1.msra.mxu0 0.0
    %3354 = vmatprep.subr.mxu0 0.0
    %3355 = vmatpush1.msra.mxu0 0.0
    %3356 = vmatprep.subr.mxu0 0.0
    %3357 = vmatpush1.msra.mxu0 0.0
    %3358 = vmatprep.subr.mxu0 0.0
    %3359 = vmatpush1.msra.mxu0 0.0
    %3360 = vmatprep.subr.mxu0 0.0
    %3361 = vmatpush1.msra.mxu0 0.0
    %3362 = vmatprep.subr.mxu0 0.0
    %3363 = vmatpush1.msra.mxu0 0.0
    %3364 = vmatprep.subr.mxu0 0.0
    %3365 = vmatpush1.msra.mxu0 0.0
    %3366 = vmatprep.subr.mxu0 0.0
    %3367 = vmatpush1.msra.mxu0 0.0
    %3368 = vmatprep.subr.mxu0 0.0
    %3369 = vmatpush1.msra.mxu0 0.0
    %3370 = vmatprep.subr.mxu0 0.0
    %3371 = vmatpush1.msra.mxu0 0.0
    %3372 = vmatprep.subr.mxu0 0.0
    %3373 = vmatpush1.msra.mxu0 0.0
    %3374 = vmatprep.subr.mxu0 0.0
    %3375 = vmatpush1.msra.mxu0 0.0
    %3376 = vmatprep.subr.mxu0 0.0
    %3377 = vmatpush1.msra.mxu0 0.0
    %3378 = vmatprep.subr.mxu0 0.0
    %3379 = vmatpush1.msra.mxu0 0.0
    %3380 = vmatprep.subr.mxu0 0.0
    %3381 = vmatpush1.msra.mxu0 0.0
    %3382 = vmatprep.subr.mxu0 0.0
    %3383 = vmatpush1.msra.mxu0 0.0
    %3384 = vmatprep.subr.mxu0 0.0
    %3385 = vmatpush1.msra.mxu0 0.0
    %3386 = vmatprep.subr.mxu0 0.0
    %3387 = vmatpush1.msra.mxu0 0.0
    %3388 = vmatprep.subr.mxu0 0.0
    %3389 = vmatpush1.msra.mxu0 0.0
    %3390 = vmatprep.subr.mxu0 0.0
    %3391 = vmatpush1.msra.mxu0 0.0
    %3392 = vmatprep.subr.mxu0 0.0
    %3393 = vmatpush1.msra.mxu0 0.0
    %3394 = vmatprep.subr.mxu0 0.0
    %3395 = vmatpush1.msra.mxu0 0.0
    %3396 = vmatprep.subr.mxu0 0.0
    %3397 = vmatpush1.msra.mxu0 0.0
    %3398 = vmatprep.subr.mxu0 0.0
    %3399 = vmatpush1.msra.mxu0 0.0
    %3400 = vmatprep.subr.mxu0 0.0
    %3401 = vmatpush1.msra.mxu0 0.0
    %3402 = vmatprep.subr.mxu0 0.0
    %3403 = vmatpush1.msra.mxu0 0.0
    %3404 = vmatprep.subr.mxu0 0.0
    %3405 = vmatpush1.msra.mxu0 0.0
    %3406 = vmatprep.mubr.f32.mxu0 0.0
    %3407 = vmatmul.mubr.f32.gmra.mrb[0].mxu0 %v3340
    %v3408 = vpop.f32.mrb[0].mxu0
    %v3409 = vadd.f32 0.0, %v3408
    %v3410 = vpop.f32.mrb[0].mxu0
    %v3411 = vadd.f32 0.0, %v3410
    %3412 = vdwg.mxu0
    %3413 = vmatprep.subr.mxu0 %v3336
    %3414 = vmatpush1.msra.mxu0 %v3335
    %3415 = vmatprep.subr.mxu0 0.0
    %3416 = vmatpush1.msra.mxu0 0.0
    %3417 = vmatprep.subr.mxu0 0.0
    %3418 = vmatpush1.msra.mxu0 0.0
    %3419 = vmatprep.subr.mxu0 0.0
    %3420 = vmatpush1.msra.mxu0 0.0
    %3421 = vmatprep.subr.mxu0 0.0
    %3422 = vmatpush1.msra.mxu0 0.0
    %3423 = vmatprep.subr.mxu0 0.0
    %3424 = vmatpush1.msra.mxu0 0.0
    %3425 = vmatprep.subr.mxu0 0.0
    %3426 = vmatpush1.msra.mxu0 0.0
    %3427 = vmatprep.subr.mxu0 0.0
    %3428 = vmatpush1.msra.mxu0 0.0
    %3429 = vmatprep.subr.mxu0 0.0
    %3430 = vmatpush1.msra.mxu0 0.0
    %3431 = vmatprep.subr.mxu0 0.0
    %3432 = vmatpush1.msra.mxu0 0.0
    %3433 = vmatprep.subr.mxu0 0.0
    %3434 = vmatpush1.msra.mxu0 0.0
    %3435 = vmatprep.subr.mxu0 0.0
    %3436 = vmatpush1.msra.mxu0 0.0
    %3437 = vmatprep.subr.mxu0 0.0
    %3438 = vmatpush1.msra.mxu0 0.0
    %3439 = vmatprep.subr.mxu0 0.0
    %3440 = vmatpush1.msra.mxu0 0.0
    %3441 = vmatprep.subr.mxu0 0.0
    %3442 = vmatpush1.msra.mxu0 0.0
    %3443 = vmatprep.subr.mxu0 0.0
    %3444 = vmatpush1.msra.mxu0 0.0
    %3445 = vmatprep.subr.mxu0 0.0
    %3446 = vmatpush1.msra.mxu0 0.0
    %3447 = vmatprep.subr.mxu0 0.0
    %3448 = vmatpush1.msra.mxu0 0.0
    %3449 = vmatprep.subr.mxu0 0.0
    %3450 = vmatpush1.msra.mxu0 0.0
    %3451 = vmatprep.subr.mxu0 0.0
    %3452 = vmatpush1.msra.mxu0 0.0
    %3453 = vmatprep.subr.mxu0 0.0
    %3454 = vmatpush1.msra.mxu0 0.0
    %3455 = vmatprep.subr.mxu0 0.0
    %3456 = vmatpush1.msra.mxu0 0.0
    %3457 = vmatprep.subr.mxu0 0.0
    %3458 = vmatpush1.msra.mxu0 0.0
    %3459 = vmatprep.subr.mxu0 0.0
    %3460 = vmatpush1.msra.mxu0 0.0
    %3461 = vmatprep.subr.mxu0 0.0
    %3462 = vmatpush1.msra.mxu0 0.0
    %3463 = vmatprep.subr.mxu0 0.0
    %3464 = vmatpush1.msra.mxu0 0.0
    %3465 = vmatprep.subr.mxu0 0.0
    %3466 = vmatpush1.msra.mxu0 0.0
    %3467 = vmatprep.subr.mxu0 0.0
    %3468 = vmatpush1.msra.mxu0 0.0
    %3469 = vmatprep.subr.mxu0 0.0
    %3470 = vmatpush1.msra.mxu0 0.0
    %3471 = vmatprep.subr.mxu0 0.0
    %3472 = vmatpush1.msra.mxu0 0.0
    %3473 = vmatprep.subr.mxu0 0.0
    %3474 = vmatpush1.msra.mxu0 0.0
    %3475 = vmatprep.subr.mxu0 0.0
    %3476 = vmatpush1.msra.mxu0 0.0
    %3477 = vmatprep.mubr.f32.mxu0 0.0
    %3478 = vmatmul.mubr.f32.gmra.mrb[0].mxu0 %v3340
    %v3479 = vpop.f32.mrb[0].mxu0
    %v3480 = vadd.f32 0.0, %v3479
    %v3481 = vpop.f32.mrb[0].mxu0
    %v3482 = vadd.f32 0.0, %v3481
    %3483 = vdwg.mxu0
    %v3484 = vadd.f32 %v3317, %v3409
    %v3485 = vadd.f32 %v3318, %v3411
    %v3486 = vadd.f32 %v3319, %v3480
    %v3487 = vadd.f32 %v3320, %v3482
    %3488 = vrot.lane.b32.xlu0 %v2339, 112
    %v3489 = vpop.permute.xlu0 %3488
    %3490 = vrot.lane.b32.xlu0 %v2340, 112
    %v3491 = vpop.permute.xlu0 %3490
    %3492 = vrot.lane.b32.xlu0 %v2341, 112
    %v3493 = vpop.permute.xlu0 %3492
    %3494 = vrot.lane.b32.xlu0 %v2342, 112
    %v3495 = vpop.permute.xlu0 %3494
    %v3496 = vsel %vm1524, %v3493, %v3495
    %v3497 = vsel %vm1524, %v3491, %v3493
    %v3498 = vsel %vm1524, %v3489, %v3491
    %v3499 = vsel %vm1524, %v3495, %v3489
    %v3500 = vmul.f32 %v3498, %v1535
    %v3501 = vmul.f32 %v3497, %v1539
    %v3502 = vmul.f32 %v3496, %v1543
    %v3503 = vmul.f32 %v3499, %v1547
    %s3504 = scalar_lea.vmem %s1, 152
    %v3505 = vld [vmem:[%s3504] sm:$0xff]
    %v3507 = vsel %vm34, %v3505, 0
    %3509 = vmatprep.subr.mxu0 %v3501
    %3510 = vmatpush1.msra.mxu0 %v3500
    %3511 = vmatprep.subr.mxu0 0.0
    %3512 = vmatpush1.msra.mxu0 0.0
    %3513 = vmatprep.subr.mxu0 0.0
    %3514 = vmatpush1.msra.mxu0 0.0
    %3515 = vmatprep.subr.mxu0 0.0
    %3516 = vmatpush1.msra.mxu0 0.0
    %3517 = vmatprep.subr.mxu0 0.0
    %3518 = vmatpush1.msra.mxu0 0.0
    %3519 = vmatprep.subr.mxu0 0.0
    %3520 = vmatpush1.msra.mxu0 0.0
    %3521 = vmatprep.subr.mxu0 0.0
    %3522 = vmatpush1.msra.mxu0 0.0
    %3523 = vmatprep.subr.mxu0 0.0
    %3524 = vmatpush1.msra.mxu0 0.0
    %3525 = vmatprep.subr.mxu0 0.0
    %3526 = vmatpush1.msra.mxu0 0.0
    %3527 = vmatprep.subr.mxu0 0.0
    %3528 = vmatpush1.msra.mxu0 0.0
    %3529 = vmatprep.subr.mxu0 0.0
    %3530 = vmatpush1.msra.mxu0 0.0
    %3531 = vmatprep.subr.mxu0 0.0
    %3532 = vmatpush1.msra.mxu0 0.0
    %3533 = vmatprep.subr.mxu0 0.0
    %3534 = vmatpush1.msra.mxu0 0.0
    %3535 = vmatprep.subr.mxu0 0.0
    %3536 = vmatpush1.msra.mxu0 0.0
    %3537 = vmatprep.subr.mxu0 0.0
    %3538 = vmatpush1.msra.mxu0 0.0
    %3539 = vmatprep.subr.mxu0 0.0
    %3540 = vmatpush1.msra.mxu0 0.0
    %3541 = vmatprep.subr.mxu0 0.0
    %3542 = vmatpush1.msra.mxu0 0.0
    %3543 = vmatprep.subr.mxu0 0.0
    %3544 = vmatpush1.msra.mxu0 0.0
    %3545 = vmatprep.subr.mxu0 0.0
    %3546 = vmatpush1.msra.mxu0 0.0
    %3547 = vmatprep.subr.mxu0 0.0
    %3548 = vmatpush1.msra.mxu0 0.0
    %3549 = vmatprep.subr.mxu0 0.0
    %3550 = vmatpush1.msra.mxu0 0.0
    %3551 = vmatprep.subr.mxu0 0.0
    %3552 = vmatpush1.msra.mxu0 0.0
    %3553 = vmatprep.subr.mxu0 0.0
    %3554 = vmatpush1.msra.mxu0 0.0
    %3555 = vmatprep.subr.mxu0 0.0
    %3556 = vmatpush1.msra.mxu0 0.0
    %3557 = vmatprep.subr.mxu0 0.0
    %3558 = vmatpush1.msra.mxu0 0.0
    %3559 = vmatprep.subr.mxu0 0.0
    %3560 = vmatpush1.msra.mxu0 0.0
    %3561 = vmatprep.subr.mxu0 0.0
    %3562 = vmatpush1.msra.mxu0 0.0
    %3563 = vmatprep.subr.mxu0 0.0
    %3564 = vmatpush1.msra.mxu0 0.0
    %3565 = vmatprep.subr.mxu0 0.0
    %3566 = vmatpush1.msra.mxu0 0.0
    %3567 = vmatprep.subr.mxu0 0.0
    %3568 = vmatpush1.msra.mxu0 0.0
    %3569 = vmatprep.subr.mxu0 0.0
    %3570 = vmatpush1.msra.mxu0 0.0
    %3571 = vmatprep.subr.mxu0 0.0
    %3572 = vmatpush1.msra.mxu0 0.0
    %3573 = vmatprep.mubr.f32.mxu0 0.0
    %3574 = vmatmul.mubr.f32.gmra.mrb[0].mxu0 %v3507
    %v3575 = vpop.f32.mrb[0].mxu0
    %v3576 = vadd.f32 0.0, %v3575
    %v3577 = vpop.f32.mrb[0].mxu0
    %v3578 = vadd.f32 0.0, %v3577
    %3579 = vdwg.mxu0
    %3580 = vmatprep.subr.mxu0 %v3503
    %3581 = vmatpush1.msra.mxu0 %v3502
    %3582 = vmatprep.subr.mxu0 0.0
    %3583 = vmatpush1.msra.mxu0 0.0
    %3584 = vmatprep.subr.mxu0 0.0
    %3585 = vmatpush1.msra.mxu0 0.0
    %3586 = vmatprep.subr.mxu0 0.0
    %3587 = vmatpush1.msra.mxu0 0.0
    %3588 = vmatprep.subr.mxu0 0.0
    %3589 = vmatpush1.msra.mxu0 0.0
    %3590 = vmatprep.subr.mxu0 0.0
    %3591 = vmatpush1.msra.mxu0 0.0
    %3592 = vmatprep.subr.mxu0 0.0
    %3593 = vmatpush1.msra.mxu0 0.0
    %3594 = vmatprep.subr.mxu0 0.0
    %3595 = vmatpush1.msra.mxu0 0.0
    %3596 = vmatprep.subr.mxu0 0.0
    %3597 = vmatpush1.msra.mxu0 0.0
    %3598 = vmatprep.subr.mxu0 0.0
    %3599 = vmatpush1.msra.mxu0 0.0
    %3600 = vmatprep.subr.mxu0 0.0
    %3601 = vmatpush1.msra.mxu0 0.0
    %3602 = vmatprep.subr.mxu0 0.0
    %3603 = vmatpush1.msra.mxu0 0.0
    %3604 = vmatprep.subr.mxu0 0.0
    %3605 = vmatpush1.msra.mxu0 0.0
    %3606 = vmatprep.subr.mxu0 0.0
    %3607 = vmatpush1.msra.mxu0 0.0
    %3608 = vmatprep.subr.mxu0 0.0
    %3609 = vmatpush1.msra.mxu0 0.0
    %3610 = vmatprep.subr.mxu0 0.0
    %3611 = vmatpush1.msra.mxu0 0.0
    %3612 = vmatprep.subr.mxu0 0.0
    %3613 = vmatpush1.msra.mxu0 0.0
    %3614 = vmatprep.subr.mxu0 0.0
    %3615 = vmatpush1.msra.mxu0 0.0
    %3616 = vmatprep.subr.mxu0 0.0
    %3617 = vmatpush1.msra.mxu0 0.0
    %3618 = vmatprep.subr.mxu0 0.0
    %3619 = vmatpush1.msra.mxu0 0.0
    %3620 = vmatprep.subr.mxu0 0.0
    %3621 = vmatpush1.msra.mxu0 0.0
    %3622 = vmatprep.subr.mxu0 0.0
    %3623 = vmatpush1.msra.mxu0 0.0
    %3624 = vmatprep.subr.mxu0 0.0
    %3625 = vmatpush1.msra.mxu0 0.0
    %3626 = vmatprep.subr.mxu0 0.0
    %3627 = vmatpush1.msra.mxu0 0.0
    %3628 = vmatprep.subr.mxu0 0.0
    %3629 = vmatpush1.msra.mxu0 0.0
    %3630 = vmatprep.subr.mxu0 0.0
    %3631 = vmatpush1.msra.mxu0 0.0
    %3632 = vmatprep.subr.mxu0 0.0
    %3633 = vmatpush1.msra.mxu0 0.0
    %3634 = vmatprep.subr.mxu0 0.0
    %3635 = vmatpush1.msra.mxu0 0.0
    %3636 = vmatprep.subr.mxu0 0.0
    %3637 = vmatpush1.msra.mxu0 0.0
    %3638 = vmatprep.subr.mxu0 0.0
    %3639 = vmatpush1.msra.mxu0 0.0
    %3640 = vmatprep.subr.mxu0 0.0
    %3641 = vmatpush1.msra.mxu0 0.0
    %3642 = vmatprep.subr.mxu0 0.0
    %3643 = vmatpush1.msra.mxu0 0.0
    %3644 = vmatprep.mubr.f32.mxu0 0.0
    %3645 = vmatmul.mubr.f32.gmra.mrb[0].mxu0 %v3507
    %v3646 = vpop.f32.mrb[0].mxu0
    %v3647 = vadd.f32 0.0, %v3646
    %v3648 = vpop.f32.mrb[0].mxu0
    %v3649 = vadd.f32 0.0, %v3648
    %3650 = vdwg.mxu0
    %v3651 = vadd.f32 %v3484, %v3576
    %v3652 = vadd.f32 %v3485, %v3578
    %v3653 = vadd.f32 %v3486, %v3647
    %v3654 = vadd.f32 %v3487, %v3649
    %3655 = vrot.lane.b32.xlu0 %v2339, 111
    %v3656 = vpop.permute.xlu0 %3655
    %3657 = vrot.lane.b32.xlu0 %v2340, 111
    %v3658 = vpop.permute.xlu0 %3657
    %3659 = vrot.lane.b32.xlu0 %v2341, 111
    %v3660 = vpop.permute.xlu0 %3659
    %3661 = vrot.lane.b32.xlu0 %v2342, 111
    %v3662 = vpop.permute.xlu0 %3661
    %v3663 = vsel %vm1715, %v3660, %v3662
    %v3664 = vsel %vm1715, %v3658, %v3660
    %v3665 = vsel %vm1715, %v3656, %v3658
    %v3666 = vsel %vm1715, %v3662, %v3656
    %v3667 = vmul.f32 %v3665, %v1726
    %v3668 = vmul.f32 %v3664, %v1730
    %v3669 = vmul.f32 %v3663, %v1734
    %v3670 = vmul.f32 %v3666, %v1738
    %s3671 = scalar_lea.vmem %s1, 160
    %v3672 = vld [vmem:[%s3671] sm:$0xff]
    %v3674 = vsel %vm34, %v3672, 0
    %3676 = vmatprep.subr.mxu0 %v3668
    %3677 = vmatpush1.msra.mxu0 %v3667
    %3678 = vmatprep.subr.mxu0 0.0
    %3679 = vmatpush1.msra.mxu0 0.0
    %3680 = vmatprep.subr.mxu0 0.0
    %3681 = vmatpush1.msra.mxu0 0.0
    %3682 = vmatprep.subr.mxu0 0.0
    %3683 = vmatpush1.msra.mxu0 0.0
    %3684 = vmatprep.subr.mxu0 0.0
    %3685 = vmatpush1.msra.mxu0 0.0
    %3686 = vmatprep.subr.mxu0 0.0
    %3687 = vmatpush1.msra.mxu0 0.0
    %3688 = vmatprep.subr.mxu0 0.0
    %3689 = vmatpush1.msra.mxu0 0.0
    %3690 = vmatprep.subr.mxu0 0.0
    %3691 = vmatpush1.msra.mxu0 0.0
    %3692 = vmatprep.subr.mxu0 0.0
    %3693 = vmatpush1.msra.mxu0 0.0
    %3694 = vmatprep.subr.mxu0 0.0
    %3695 = vmatpush1.msra.mxu0 0.0
    %3696 = vmatprep.subr.mxu0 0.0
    %3697 = vmatpush1.msra.mxu0 0.0
    %3698 = vmatprep.subr.mxu0 0.0
    %3699 = vmatpush1.msra.mxu0 0.0
    %3700 = vmatprep.subr.mxu0 0.0
    %3701 = vmatpush1.msra.mxu0 0.0
    %3702 = vmatprep.subr.mxu0 0.0
    %3703 = vmatpush1.msra.mxu0 0.0
    %3704 = vmatprep.subr.mxu0 0.0
    %3705 = vmatpush1.msra.mxu0 0.0
    %3706 = vmatprep.subr.mxu0 0.0
    %3707 = vmatpush1.msra.mxu0 0.0
    %3708 = vmatprep.subr.mxu0 0.0
    %3709 = vmatpush1.msra.mxu0 0.0
    %3710 = vmatprep.subr.mxu0 0.0
    %3711 = vmatpush1.msra.mxu0 0.0
    %3712 = vmatprep.subr.mxu0 0.0
    %3713 = vmatpush1.msra.mxu0 0.0
    %3714 = vmatprep.subr.mxu0 0.0
    %3715 = vmatpush1.msra.mxu0 0.0
    %3716 = vmatprep.subr.mxu0 0.0
    %3717 = vmatpush1.msra.mxu0 0.0
    %3718 = vmatprep.subr.mxu0 0.0
    %3719 = vmatpush1.msra.mxu0 0.0
    %3720 = vmatprep.subr.mxu0 0.0
    %3721 = vmatpush1.msra.mxu0 0.0
    %3722 = vmatprep.subr.mxu0 0.0
    %3723 = vmatpush1.msra.mxu0 0.0
    %3724 = vmatprep.subr.mxu0 0.0
    %3725 = vmatpush1.msra.mxu0 0.0
    %3726 = vmatprep.subr.mxu0 0.0
    %3727 = vmatpush1.msra.mxu0 0.0
    %3728 = vmatprep.subr.mxu0 0.0
    %3729 = vmatpush1.msra.mxu0 0.0
    %3730 = vmatprep.subr.mxu0 0.0
    %3731 = vmatpush1.msra.mxu0 0.0
    %3732 = vmatprep.subr.mxu0 0.0
    %3733 = vmatpush1.msra.mxu0 0.0
    %3734 = vmatprep.subr.mxu0 0.0
    %3735 = vmatpush1.msra.mxu0 0.0
    %3736 = vmatprep.subr.mxu0 0.0
    %3737 = vmatpush1.msra.mxu0 0.0
    %3738 = vmatprep.subr.mxu0 0.0
    %3739 = vmatpush1.msra.mxu0 0.0
    %3740 = vmatprep.mubr.f32.mxu0 0.0
    %3741 = vmatmul.mubr.f32.gmra.mrb[0].mxu0 %v3674
    %v3742 = vpop.f32.mrb[0].mxu0
    %v3743 = vadd.f32 0.0, %v3742
    %v3744 = vpop.f32.mrb[0].mxu0
    %v3745 = vadd.f32 0.0, %v3744
    %3746 = vdwg.mxu0
    %3747 = vmatprep.subr.mxu0 %v3670
    %3748 = vmatpush1.msra.mxu0 %v3669
    %3749 = vmatprep.subr.mxu0 0.0
    %3750 = vmatpush1.msra.mxu0 0.0
    %3751 = vmatprep.subr.mxu0 0.0
    %3752 = vmatpush1.msra.mxu0 0.0
    %3753 = vmatprep.subr.mxu0 0.0
    %3754 = vmatpush1.msra.mxu0 0.0
    %3755 = vmatprep.subr.mxu0 0.0
    %3756 = vmatpush1.msra.mxu0 0.0
    %3757 = vmatprep.subr.mxu0 0.0
    %3758 = vmatpush1.msra.mxu0 0.0
    %3759 = vmatprep.subr.mxu0 0.0
    %3760 = vmatpush1.msra.mxu0 0.0
    %3761 = vmatprep.subr.mxu0 0.0
    %3762 = vmatpush1.msra.mxu0 0.0
    %3763 = vmatprep.subr.mxu0 0.0
    %3764 = vmatpush1.msra.mxu0 0.0
    %3765 = vmatprep.subr.mxu0 0.0
    %3766 = vmatpush1.msra.mxu0 0.0
    %3767 = vmatprep.subr.mxu0 0.0
    %3768 = vmatpush1.msra.mxu0 0.0
    %3769 = vmatprep.subr.mxu0 0.0
    %3770 = vmatpush1.msra.mxu0 0.0
    %3771 = vmatprep.subr.mxu0 0.0
    %3772 = vmatpush1.msra.mxu0 0.0
    %3773 = vmatprep.subr.mxu0 0.0
    %3774 = vmatpush1.msra.mxu0 0.0
    %3775 = vmatprep.subr.mxu0 0.0
    %3776 = vmatpush1.msra.mxu0 0.0
    %3777 = vmatprep.subr.mxu0 0.0
    %3778 = vmatpush1.msra.mxu0 0.0
    %3779 = vmatprep.subr.mxu0 0.0
    %3780 = vmatpush1.msra.mxu0 0.0
    %3781 = vmatprep.subr.mxu0 0.0
    %3782 = vmatpush1.msra.mxu0 0.0
    %3783 = vmatprep.subr.mxu0 0.0
    %3784 = vmatpush1.msra.mxu0 0.0
    %3785 = vmatprep.subr.mxu0 0.0
    %3786 = vmatpush1.msra.mxu0 0.0
    %3787 = vmatprep.subr.mxu0 0.0
    %3788 = vmatpush1.msra.mxu0 0.0
    %3789 = vmatprep.subr.mxu0 0.0
    %3790 = vmatpush1.msra.mxu0 0.0
    %3791 = vmatprep.subr.mxu0 0.0
    %3792 = vmatpush1.msra.mxu0 0.0
    %3793 = vmatprep.subr.mxu0 0.0
    %3794 = vmatpush1.msra.mxu0 0.0
    %3795 = vmatprep.subr.mxu0 0.0
    %3796 = vmatpush1.msra.mxu0 0.0
    %3797 = vmatprep.subr.mxu0 0.0
    %3798 = vmatpush1.msra.mxu0 0.0
    %3799 = vmatprep.subr.mxu0 0.0
    %3800 = vmatpush1.msra.mxu0 0.0
    %3801 = vmatprep.subr.mxu0 0.0
    %3802 = vmatpush1.msra.mxu0 0.0
    %3803 = vmatprep.subr.mxu0 0.0
    %3804 = vmatpush1.msra.mxu0 0.0
    %3805 = vmatprep.subr.mxu0 0.0
    %3806 = vmatpush1.msra.mxu0 0.0
    %3807 = vmatprep.subr.mxu0 0.0
    %3808 = vmatpush1.msra.mxu0 0.0
    %3809 = vmatprep.subr.mxu0 0.0
    %3810 = vmatpush1.msra.mxu0 0.0
    %3811 = vmatprep.mubr.f32.mxu0 0.0
    %3812 = vmatmul.mubr.f32.gmra.mrb[0].mxu0 %v3674
    %v3813 = vpop.f32.mrb[0].mxu0
    %v3814 = vadd.f32 0.0, %v3813
    %v3815 = vpop.f32.mrb[0].mxu0
    %v3816 = vadd.f32 0.0, %v3815
    %3817 = vdwg.mxu0
    %v3818 = vadd.f32 %v3651, %v3743
    %v3819 = vadd.f32 %v3652, %v3745
    %v3820 = vadd.f32 %v3653, %v3814
    %v3821 = vadd.f32 %v3654, %v3816
    %v3822 = vadd.f32 %v3818, %v3819
    %v3823 = vadd.f32 %v3822, %v3820
    %v3824 = vadd.f32 %v3823, %v3821
    %3825 = vadd.xlane.f32.xlu0 %v3824
    %v3826 = vpop.xlane.xlu0 %3825
    %v3827 = vmul.f32 %v3826, %v185
    %v3828 = vsub.f32 %v3818, %v3827
    %v3829 = vsub.f32 %v3819, %v3827
    %v3830 = vsub.f32 %v3820, %v3827
    %v3831 = vsub.f32 %v3821, %v3827
    %v3832 = vmul.f32 %v3828, %v3828
    %v3833 = vmul.f32 %v3829, %v3829
    %v3834 = vmul.f32 %v3830, %v3830
    %v3835 = vmul.f32 %v3831, %v3831
    %v3836 = vadd.f32 %v3832, %v3833
    %v3837 = vadd.f32 %v3836, %v3834
    %v3838 = vadd.f32 %v3837, %v3835
    %3839 = vadd.xlane.f32.xlu0 %v3838
    %v3840 = vpop.xlane.xlu0 %3839
    %v3841 = vmul.f32 %v3840, %v185
    %v3842 = vadd.f32 %v3841, 1e-05
    %v3843 = vrsqrt.pop %v3842
    %v3844 = vmul.f32 %v3843, %v2144
    %3846 = vset.pattern.permute.xlu0 0
    %3847 = vperm.xlu0 %3846, %v3844
    %v3848 = vpop.permute.xlu0 %3847
    %v3850 = vmul.f32 %v3828, %v3848
    %v3851 = vmul.f32 %v3829, %v3848
    %v3852 = vmul.f32 %v3830, %v3848
    %v3853 = vmul.f32 %v3831, %v3848
    %3855 = vset.pattern.permute.xlu0 0
    %3856 = vperm.xlu0 %3855, %v2146
    %v3857 = vpop.permute.xlu0 %3856
    %v3859 = vadd.f32 %v3850, %v3857
    %v3860 = vadd.f32 %v3851, %v3857
    %v3861 = vadd.f32 %v3852, %v3857
    %v3862 = vadd.f32 %v3853, %v3857
    %v3863 = vmax.f32 %v3859, 0.0
    %v3864 = vmax.f32 %v3860, 0.0
    %v3865 = vmax.f32 %v3861, 0.0
    %v3866 = vmax.f32 %v3862, 0.0
    %s3867 = scalar_lea.vmem %s1, 168
    %v3868 = vld [vmem:[%s3867] sm:$0xff]
    %v3870 = vsel %vm34, %v3868, 0
    %3872 = vmatprep.subr.mxu0 %v3864
    %3873 = vmatpush1.msra.mxu0 %v3863
    %3874 = vmatprep.subr.mxu0 0.0
    %3875 = vmatpush1.msra.mxu0 0.0
    %3876 = vmatprep.subr.mxu0 0.0
    %3877 = vmatpush1.msra.mxu0 0.0
    %3878 = vmatprep.subr.mxu0 0.0
    %3879 = vmatpush1.msra.mxu0 0.0
    %3880 = vmatprep.subr.mxu0 0.0
    %3881 = vmatpush1.msra.mxu0 0.0
    %3882 = vmatprep.subr.mxu0 0.0
    %3883 = vmatpush1.msra.mxu0 0.0
    %3884 = vmatprep.subr.mxu0 0.0
    %3885 = vmatpush1.msra.mxu0 0.0
    %3886 = vmatprep.subr.mxu0 0.0
    %3887 = vmatpush1.msra.mxu0 0.0
    %3888 = vmatprep.subr.mxu0 0.0
    %3889 = vmatpush1.msra.mxu0 0.0
    %3890 = vmatprep.subr.mxu0 0.0
    %3891 = vmatpush1.msra.mxu0 0.0
    %3892 = vmatprep.subr.mxu0 0.0
    %3893 = vmatpush1.msra.mxu0 0.0
    %3894 = vmatprep.subr.mxu0 0.0
    %3895 = vmatpush1.msra.mxu0 0.0
    %3896 = vmatprep.subr.mxu0 0.0
    %3897 = vmatpush1.msra.mxu0 0.0
    %3898 = vmatprep.subr.mxu0 0.0
    %3899 = vmatpush1.msra.mxu0 0.0
    %3900 = vmatprep.subr.mxu0 0.0
    %3901 = vmatpush1.msra.mxu0 0.0
    %3902 = vmatprep.subr.mxu0 0.0
    %3903 = vmatpush1.msra.mxu0 0.0
    %3904 = vmatprep.subr.mxu0 0.0
    %3905 = vmatpush1.msra.mxu0 0.0
    %3906 = vmatprep.subr.mxu0 0.0
    %3907 = vmatpush1.msra.mxu0 0.0
    %3908 = vmatprep.subr.mxu0 0.0
    %3909 = vmatpush1.msra.mxu0 0.0
    %3910 = vmatprep.subr.mxu0 0.0
    %3911 = vmatpush1.msra.mxu0 0.0
    %3912 = vmatprep.subr.mxu0 0.0
    %3913 = vmatpush1.msra.mxu0 0.0
    %3914 = vmatprep.subr.mxu0 0.0
    %3915 = vmatpush1.msra.mxu0 0.0
    %3916 = vmatprep.subr.mxu0 0.0
    %3917 = vmatpush1.msra.mxu0 0.0
    %3918 = vmatprep.subr.mxu0 0.0
    %3919 = vmatpush1.msra.mxu0 0.0
    %3920 = vmatprep.subr.mxu0 0.0
    %3921 = vmatpush1.msra.mxu0 0.0
    %3922 = vmatprep.subr.mxu0 0.0
    %3923 = vmatpush1.msra.mxu0 0.0
    %3924 = vmatprep.subr.mxu0 0.0
    %3925 = vmatpush1.msra.mxu0 0.0
    %3926 = vmatprep.subr.mxu0 0.0
    %3927 = vmatpush1.msra.mxu0 0.0
    %3928 = vmatprep.subr.mxu0 0.0
    %3929 = vmatpush1.msra.mxu0 0.0
    %3930 = vmatprep.subr.mxu0 0.0
    %3931 = vmatpush1.msra.mxu0 0.0
    %3932 = vmatprep.subr.mxu0 0.0
    %3933 = vmatpush1.msra.mxu0 0.0
    %3934 = vmatprep.subr.mxu0 0.0
    %3935 = vmatpush1.msra.mxu0 0.0
    %3936 = vmatprep.mubr.f32.mxu0 0.0
    %3937 = vmatmul.mubr.f32.gmra.mrb[0].mxu0 %v3870
    %v3938 = vpop.f32.mrb[0].mxu0
    %v3939 = vadd.f32 0.0, %v3938
    %v3940 = vpop.f32.mrb[0].mxu0
    %v3941 = vadd.f32 0.0, %v3940
    %3942 = vdwg.mxu0
    %3943 = vmatprep.subr.mxu0 %v3866
    %3944 = vmatpush1.msra.mxu0 %v3865
    %3945 = vmatprep.subr.mxu0 0.0
    %3946 = vmatpush1.msra.mxu0 0.0
    %3947 = vmatprep.subr.mxu0 0.0
    %3948 = vmatpush1.msra.mxu0 0.0
    %3949 = vmatprep.subr.mxu0 0.0
    %3950 = vmatpush1.msra.mxu0 0.0
    %3951 = vmatprep.subr.mxu0 0.0
    %3952 = vmatpush1.msra.mxu0 0.0
    %3953 = vmatprep.subr.mxu0 0.0
    %3954 = vmatpush1.msra.mxu0 0.0
    %3955 = vmatprep.subr.mxu0 0.0
    %3956 = vmatpush1.msra.mxu0 0.0
    %3957 = vmatprep.subr.mxu0 0.0
    %3958 = vmatpush1.msra.mxu0 0.0
    %3959 = vmatprep.subr.mxu0 0.0
    %3960 = vmatpush1.msra.mxu0 0.0
    %3961 = vmatprep.subr.mxu0 0.0
    %3962 = vmatpush1.msra.mxu0 0.0
    %3963 = vmatprep.subr.mxu0 0.0
    %3964 = vmatpush1.msra.mxu0 0.0
    %3965 = vmatprep.subr.mxu0 0.0
    %3966 = vmatpush1.msra.mxu0 0.0
    %3967 = vmatprep.subr.mxu0 0.0
    %3968 = vmatpush1.msra.mxu0 0.0
    %3969 = vmatprep.subr.mxu0 0.0
    %3970 = vmatpush1.msra.mxu0 0.0
    %3971 = vmatprep.subr.mxu0 0.0
    %3972 = vmatpush1.msra.mxu0 0.0
    %3973 = vmatprep.subr.mxu0 0.0
    %3974 = vmatpush1.msra.mxu0 0.0
    %3975 = vmatprep.subr.mxu0 0.0
    %3976 = vmatpush1.msra.mxu0 0.0
    %3977 = vmatprep.subr.mxu0 0.0
    %3978 = vmatpush1.msra.mxu0 0.0
    %3979 = vmatprep.subr.mxu0 0.0
    %3980 = vmatpush1.msra.mxu0 0.0
    %3981 = vmatprep.subr.mxu0 0.0
    %3982 = vmatpush1.msra.mxu0 0.0
    %3983 = vmatprep.subr.mxu0 0.0
    %3984 = vmatpush1.msra.mxu0 0.0
    %3985 = vmatprep.subr.mxu0 0.0
    %3986 = vmatpush1.msra.mxu0 0.0
    %3987 = vmatprep.subr.mxu0 0.0
    %3988 = vmatpush1.msra.mxu0 0.0
    %3989 = vmatprep.subr.mxu0 0.0
    %3990 = vmatpush1.msra.mxu0 0.0
    %3991 = vmatprep.subr.mxu0 0.0
    %3992 = vmatpush1.msra.mxu0 0.0
    %3993 = vmatprep.subr.mxu0 0.0
    %3994 = vmatpush1.msra.mxu0 0.0
    %3995 = vmatprep.subr.mxu0 0.0
    %3996 = vmatpush1.msra.mxu0 0.0
    %3997 = vmatprep.subr.mxu0 0.0
    %3998 = vmatpush1.msra.mxu0 0.0
    %3999 = vmatprep.subr.mxu0 0.0
    %4000 = vmatpush1.msra.mxu0 0.0
    %4001 = vmatprep.subr.mxu0 0.0
    %4002 = vmatpush1.msra.mxu0 0.0
    %4003 = vmatprep.subr.mxu0 0.0
    %4004 = vmatpush1.msra.mxu0 0.0
    %4005 = vmatprep.subr.mxu0 0.0
    %4006 = vmatpush1.msra.mxu0 0.0
    %4007 = vmatprep.mubr.f32.mxu0 0.0
    %4008 = vmatmul.mubr.f32.gmra.mrb[0].mxu0 %v3870
    %v4009 = vpop.f32.mrb[0].mxu0
    %v4010 = vadd.f32 0.0, %v4009
    %v4011 = vpop.f32.mrb[0].mxu0
    %v4012 = vadd.f32 0.0, %v4011
    %4013 = vdwg.mxu0
    %v4014 = vadd.f32 %v3863, %v3939
    %v4015 = vadd.f32 %v3864, %v3941
    %v4016 = vadd.f32 %v3865, %v4010
    %v4017 = vadd.f32 %v3866, %v4012
    %v4018 = vadd.f32 %v4014, %v4015
    %v4019 = vadd.f32 %v4018, %v4016
    %v4020 = vadd.f32 %v4019, %v4017
    %4021 = vadd.xlane.f32.xlu0 %v4020
    %v4022 = vpop.xlane.xlu0 %4021
    %v4023 = vmul.f32 %v4022, %v185
    %v4024 = vsub.f32 %v4014, %v4023
    %v4025 = vsub.f32 %v4015, %v4023
    %v4026 = vsub.f32 %v4016, %v4023
    %v4027 = vsub.f32 %v4017, %v4023
    %v4028 = vmul.f32 %v4024, %v4024
    %v4029 = vmul.f32 %v4025, %v4025
    %v4030 = vmul.f32 %v4026, %v4026
    %v4031 = vmul.f32 %v4027, %v4027
    %v4032 = vadd.f32 %v4028, %v4029
    %v4033 = vadd.f32 %v4032, %v4030
    %v4034 = vadd.f32 %v4033, %v4031
    %4035 = vadd.xlane.f32.xlu0 %v4034
    %v4036 = vpop.xlane.xlu0 %4035
    %v4037 = vmul.f32 %v4036, %v185
    %v4038 = vadd.f32 %v4037, 1e-05
    %v4039 = vrsqrt.pop %v4038
    %v4040 = vmul.f32 %v4039, %v2148
    %4042 = vset.pattern.permute.xlu0 0
    %4043 = vperm.xlu0 %4042, %v4040
    %v4044 = vpop.permute.xlu0 %4043
    %v4046 = vmul.f32 %v4024, %v4044
    %v4047 = vmul.f32 %v4025, %v4044
    %v4048 = vmul.f32 %v4026, %v4044
    %v4049 = vmul.f32 %v4027, %v4044
    %4051 = vset.pattern.permute.xlu0 0
    %4052 = vperm.xlu0 %4051, %v2150
    %v4053 = vpop.permute.xlu0 %4052
    %v4055 = vadd.f32 %v4046, %v4053
    %v4056 = vadd.f32 %v4047, %v4053
    %v4057 = vadd.f32 %v4048, %v4053
    %v4058 = vadd.f32 %v4049, %v4053
    %v4059 = vmax.f32 %v4055, 0.0
    %v4060 = vmax.f32 %v4056, 0.0
    %v4061 = vmax.f32 %v4057, 0.0
    %v4062 = vmax.f32 %v4058, 0.0
    %s4063 = scalar_lea.vmem %s2, 96
    %v4064 = vld [vmem:[%s4063] sm:$0xff]
    %s4065 = scalar_lea.vmem %s2, 104
    %v4066 = vld [vmem:[%s4065] sm:$0xff]
    %s4067 = scalar_lea.vmem %s2, 112
    %v4068 = vld [vmem:[%s4067] sm:$0xff]
    %s4069 = scalar_lea.vmem %s2, 120
    %v4070 = vld [vmem:[%s4069] sm:$0xff]
    %s4071 = scalar_lea.vmem %s2, 128
    %v4072 = vld [vmem:[%s4071] sm:$0xff]
    %s4073 = scalar_lea.vmem %s2, 136
    %v4074 = vld [vmem:[%s4073] sm:$0xff]
    %s4075 = scalar_lea.vmem %s1, 176
    %v4076 = vld [vmem:[%s4075] sm:$0xff]
    %v4078 = vsel %vm34, %v4076, 0
    %4080 = vmatprep.subr.mxu0 %v4060
    %4081 = vmatpush1.msra.mxu0 %v4059
    %4082 = vmatprep.subr.mxu0 0.0
    %4083 = vmatpush1.msra.mxu0 0.0
    %4084 = vmatprep.subr.mxu0 0.0
    %4085 = vmatpush1.msra.mxu0 0.0
    %4086 = vmatprep.subr.mxu0 0.0
    %4087 = vmatpush1.msra.mxu0 0.0
    %4088 = vmatprep.subr.mxu0 0.0
    %4089 = vmatpush1.msra.mxu0 0.0
    %4090 = vmatprep.subr.mxu0 0.0
    %4091 = vmatpush1.msra.mxu0 0.0
    %4092 = vmatprep.subr.mxu0 0.0
    %4093 = vmatpush1.msra.mxu0 0.0
    %4094 = vmatprep.subr.mxu0 0.0
    %4095 = vmatpush1.msra.mxu0 0.0
    %4096 = vmatprep.subr.mxu0 0.0
    %4097 = vmatpush1.msra.mxu0 0.0
    %4098 = vmatprep.subr.mxu0 0.0
    %4099 = vmatpush1.msra.mxu0 0.0
    %4100 = vmatprep.subr.mxu0 0.0
    %4101 = vmatpush1.msra.mxu0 0.0
    %4102 = vmatprep.subr.mxu0 0.0
    %4103 = vmatpush1.msra.mxu0 0.0
    %4104 = vmatprep.subr.mxu0 0.0
    %4105 = vmatpush1.msra.mxu0 0.0
    %4106 = vmatprep.subr.mxu0 0.0
    %4107 = vmatpush1.msra.mxu0 0.0
    %4108 = vmatprep.subr.mxu0 0.0
    %4109 = vmatpush1.msra.mxu0 0.0
    %4110 = vmatprep.subr.mxu0 0.0
    %4111 = vmatpush1.msra.mxu0 0.0
    %4112 = vmatprep.subr.mxu0 0.0
    %4113 = vmatpush1.msra.mxu0 0.0
    %4114 = vmatprep.subr.mxu0 0.0
    %4115 = vmatpush1.msra.mxu0 0.0
    %4116 = vmatprep.subr.mxu0 0.0
    %4117 = vmatpush1.msra.mxu0 0.0
    %4118 = vmatprep.subr.mxu0 0.0
    %4119 = vmatpush1.msra.mxu0 0.0
    %4120 = vmatprep.subr.mxu0 0.0
    %4121 = vmatpush1.msra.mxu0 0.0
    %4122 = vmatprep.subr.mxu0 0.0
    %4123 = vmatpush1.msra.mxu0 0.0
    %4124 = vmatprep.subr.mxu0 0.0
    %4125 = vmatpush1.msra.mxu0 0.0
    %4126 = vmatprep.subr.mxu0 0.0
    %4127 = vmatpush1.msra.mxu0 0.0
    %4128 = vmatprep.subr.mxu0 0.0
    %4129 = vmatpush1.msra.mxu0 0.0
    %4130 = vmatprep.subr.mxu0 0.0
    %4131 = vmatpush1.msra.mxu0 0.0
    %4132 = vmatprep.subr.mxu0 0.0
    %4133 = vmatpush1.msra.mxu0 0.0
    %4134 = vmatprep.subr.mxu0 0.0
    %4135 = vmatpush1.msra.mxu0 0.0
    %4136 = vmatprep.subr.mxu0 0.0
    %4137 = vmatpush1.msra.mxu0 0.0
    %4138 = vmatprep.subr.mxu0 0.0
    %4139 = vmatpush1.msra.mxu0 0.0
    %4140 = vmatprep.subr.mxu0 0.0
    %4141 = vmatpush1.msra.mxu0 0.0
    %4142 = vmatprep.subr.mxu0 0.0
    %4143 = vmatpush1.msra.mxu0 0.0
    %4144 = vmatprep.mubr.f32.mxu0 0.0
    %4145 = vmatmul.mubr.f32.gmra.mrb[0].mxu0 %v4078
    %v4146 = vpop.f32.mrb[0].mxu0
    %v4147 = vadd.f32 0.0, %v4146
    %v4148 = vpop.f32.mrb[0].mxu0
    %v4149 = vadd.f32 0.0, %v4148
    %4150 = vdwg.mxu0
    %4151 = vmatprep.subr.mxu0 %v4062
    %4152 = vmatpush1.msra.mxu0 %v4061
    %4153 = vmatprep.subr.mxu0 0.0
    %4154 = vmatpush1.msra.mxu0 0.0
    %4155 = vmatprep.subr.mxu0 0.0
    %4156 = vmatpush1.msra.mxu0 0.0
    %4157 = vmatprep.subr.mxu0 0.0
    %4158 = vmatpush1.msra.mxu0 0.0
    %4159 = vmatprep.subr.mxu0 0.0
    %4160 = vmatpush1.msra.mxu0 0.0
    %4161 = vmatprep.subr.mxu0 0.0
    %4162 = vmatpush1.msra.mxu0 0.0
    %4163 = vmatprep.subr.mxu0 0.0
    %4164 = vmatpush1.msra.mxu0 0.0
    %4165 = vmatprep.subr.mxu0 0.0
    %4166 = vmatpush1.msra.mxu0 0.0
    %4167 = vmatprep.subr.mxu0 0.0
    %4168 = vmatpush1.msra.mxu0 0.0
    %4169 = vmatprep.subr.mxu0 0.0
    %4170 = vmatpush1.msra.mxu0 0.0
    %4171 = vmatprep.subr.mxu0 0.0
    %4172 = vmatpush1.msra.mxu0 0.0
    %4173 = vmatprep.subr.mxu0 0.0
    %4174 = vmatpush1.msra.mxu0 0.0
    %4175 = vmatprep.subr.mxu0 0.0
    %4176 = vmatpush1.msra.mxu0 0.0
    %4177 = vmatprep.subr.mxu0 0.0
    %4178 = vmatpush1.msra.mxu0 0.0
    %4179 = vmatprep.subr.mxu0 0.0
    %4180 = vmatpush1.msra.mxu0 0.0
    %4181 = vmatprep.subr.mxu0 0.0
    %4182 = vmatpush1.msra.mxu0 0.0
    %4183 = vmatprep.subr.mxu0 0.0
    %4184 = vmatpush1.msra.mxu0 0.0
    %4185 = vmatprep.subr.mxu0 0.0
    %4186 = vmatpush1.msra.mxu0 0.0
    %4187 = vmatprep.subr.mxu0 0.0
    %4188 = vmatpush1.msra.mxu0 0.0
    %4189 = vmatprep.subr.mxu0 0.0
    %4190 = vmatpush1.msra.mxu0 0.0
    %4191 = vmatprep.subr.mxu0 0.0
    %4192 = vmatpush1.msra.mxu0 0.0
    %4193 = vmatprep.subr.mxu0 0.0
    %4194 = vmatpush1.msra.mxu0 0.0
    %4195 = vmatprep.subr.mxu0 0.0
    %4196 = vmatpush1.msra.mxu0 0.0
    %4197 = vmatprep.subr.mxu0 0.0
    %4198 = vmatpush1.msra.mxu0 0.0
    %4199 = vmatprep.subr.mxu0 0.0
    %4200 = vmatpush1.msra.mxu0 0.0
    %4201 = vmatprep.subr.mxu0 0.0
    %4202 = vmatpush1.msra.mxu0 0.0
    %4203 = vmatprep.subr.mxu0 0.0
    %4204 = vmatpush1.msra.mxu0 0.0
    %4205 = vmatprep.subr.mxu0 0.0
    %4206 = vmatpush1.msra.mxu0 0.0
    %4207 = vmatprep.subr.mxu0 0.0
    %4208 = vmatpush1.msra.mxu0 0.0
    %4209 = vmatprep.subr.mxu0 0.0
    %4210 = vmatpush1.msra.mxu0 0.0
    %4211 = vmatprep.subr.mxu0 0.0
    %4212 = vmatpush1.msra.mxu0 0.0
    %4213 = vmatprep.subr.mxu0 0.0
    %4214 = vmatpush1.msra.mxu0 0.0
    %4215 = vmatprep.mubr.f32.mxu0 0.0
    %4216 = vmatmul.mubr.f32.gmra.mrb[0].mxu0 %v4078
    %v4217 = vpop.f32.mrb[0].mxu0
    %v4218 = vadd.f32 0.0, %v4217
    %v4219 = vpop.f32.mrb[0].mxu0
    %v4220 = vadd.f32 0.0, %v4219
    %4221 = vdwg.mxu0
    %v4222 = vadd.f32 %v4147, %v4149
    %v4223 = vadd.f32 %v4222, %v4218
    %v4224 = vadd.f32 %v4223, %v4220
    %4225 = vadd.xlane.f32.xlu0 %v4224
    %v4226 = vpop.xlane.xlu0 %4225
    %v4227 = vmul.f32 %v4226, %v185
    %v4228 = vsub.f32 %v4147, %v4227
    %v4229 = vsub.f32 %v4149, %v4227
    %v4230 = vsub.f32 %v4218, %v4227
    %v4231 = vsub.f32 %v4220, %v4227
    %v4232 = vmul.f32 %v4228, %v4228
    %v4233 = vmul.f32 %v4229, %v4229
    %v4234 = vmul.f32 %v4230, %v4230
    %v4235 = vmul.f32 %v4231, %v4231
    %v4236 = vadd.f32 %v4232, %v4233
    %v4237 = vadd.f32 %v4236, %v4234
    %v4238 = vadd.f32 %v4237, %v4235
    %4239 = vadd.xlane.f32.xlu0 %v4238
    %v4240 = vpop.xlane.xlu0 %4239
    %v4241 = vmul.f32 %v4240, %v185
    %v4242 = vadd.f32 %v4241, 1e-05
    %v4243 = vrsqrt.pop %v4242
    %v4244 = vmul.f32 %v4243, %v4064
    %4246 = vset.pattern.permute.xlu0 0
    %4247 = vperm.xlu0 %4246, %v4244
    %v4248 = vpop.permute.xlu0 %4247
    %v4250 = vmul.f32 %v4228, %v4248
    %v4251 = vmul.f32 %v4229, %v4248
    %v4252 = vmul.f32 %v4230, %v4248
    %v4253 = vmul.f32 %v4231, %v4248
    %4255 = vset.pattern.permute.xlu0 0
    %4256 = vperm.xlu0 %4255, %v4066
    %v4257 = vpop.permute.xlu0 %4256
    %v4259 = vadd.f32 %v4250, %v4257
    %v4260 = vadd.f32 %v4251, %v4257
    %v4261 = vadd.f32 %v4252, %v4257
    %v4262 = vadd.f32 %v4253, %v4257
    %v4263 = vmax.f32 %v4259, 0.0
    %v4264 = vmax.f32 %v4260, 0.0
    %v4265 = vmax.f32 %v4261, 0.0
    %v4266 = vmax.f32 %v4262, 0.0
    %s4267 = scalar_lea.vmem %s1, 216
    %v4268 = vld [vmem:[%s4267] sm:$0xff]
    %4269 = vrot.lane.b32.xlu0 %v4263, 17
    %v4270 = vpop.permute.xlu0 %4269
    %4271 = vrot.lane.b32.xlu0 %v4264, 17
    %v4272 = vpop.permute.xlu0 %4271
    %4273 = vrot.lane.b32.xlu0 %v4265, 17
    %v4274 = vpop.permute.xlu0 %4273
    %4275 = vrot.lane.b32.xlu0 %v4266, 17
    %v4276 = vpop.permute.xlu0 %4275
    %v4277 = vsel %vm238, %v4274, %v4276
    %v4278 = vsel %vm238, %v4272, %v4274
    %v4279 = vsel %vm238, %v4270, %v4272
    %v4280 = vsel %vm238, %v4276, %v4270
    %v4281 = vmul.f32 %v4280, %v248
    %v4282 = vmul.f32 %v4279, %v252
    %v4283 = vmul.f32 %v4278, %v256
    %v4284 = vmul.f32 %v4277, %v260
    %s4285 = scalar_lea.vmem %s1, 184
    %v4286 = vld [vmem:[%s4285] sm:$0xff]
    %v4288 = vsel %vm34, %v4286, 0
    %4290 = vmatprep.subr.mxu0 %v4282
    %4291 = vmatpush1.msra.mxu0 %v4281
    %4292 = vmatprep.subr.mxu0 0.0
    %4293 = vmatpush1.msra.mxu0 0.0
    %4294 = vmatprep.subr.mxu0 0.0
    %4295 = vmatpush1.msra.mxu0 0.0
    %4296 = vmatprep.subr.mxu0 0.0
    %4297 = vmatpush1.msra.mxu0 0.0
    %4298 = vmatprep.subr.mxu0 0.0
    %4299 = vmatpush1.msra.mxu0 0.0
    %4300 = vmatprep.subr.mxu0 0.0
    %4301 = vmatpush1.msra.mxu0 0.0
    %4302 = vmatprep.subr.mxu0 0.0
    %4303 = vmatpush1.msra.mxu0 0.0
    %4304 = vmatprep.subr.mxu0 0.0
    %4305 = vmatpush1.msra.mxu0 0.0
    %4306 = vmatprep.subr.mxu0 0.0
    %4307 = vmatpush1.msra.mxu0 0.0
    %4308 = vmatprep.subr.mxu0 0.0
    %4309 = vmatpush1.msra.mxu0 0.0
    %4310 = vmatprep.subr.mxu0 0.0
    %4311 = vmatpush1.msra.mxu0 0.0
    %4312 = vmatprep.subr.mxu0 0.0
    %4313 = vmatpush1.msra.mxu0 0.0
    %4314 = vmatprep.subr.mxu0 0.0
    %4315 = vmatpush1.msra.mxu0 0.0
    %4316 = vmatprep.subr.mxu0 0.0
    %4317 = vmatpush1.msra.mxu0 0.0
    %4318 = vmatprep.subr.mxu0 0.0
    %4319 = vmatpush1.msra.mxu0 0.0
    %4320 = vmatprep.subr.mxu0 0.0
    %4321 = vmatpush1.msra.mxu0 0.0
    %4322 = vmatprep.subr.mxu0 0.0
    %4323 = vmatpush1.msra.mxu0 0.0
    %4324 = vmatprep.subr.mxu0 0.0
    %4325 = vmatpush1.msra.mxu0 0.0
    %4326 = vmatprep.subr.mxu0 0.0
    %4327 = vmatpush1.msra.mxu0 0.0
    %4328 = vmatprep.subr.mxu0 0.0
    %4329 = vmatpush1.msra.mxu0 0.0
    %4330 = vmatprep.subr.mxu0 0.0
    %4331 = vmatpush1.msra.mxu0 0.0
    %4332 = vmatprep.subr.mxu0 0.0
    %4333 = vmatpush1.msra.mxu0 0.0
    %4334 = vmatprep.subr.mxu0 0.0
    %4335 = vmatpush1.msra.mxu0 0.0
    %4336 = vmatprep.subr.mxu0 0.0
    %4337 = vmatpush1.msra.mxu0 0.0
    %4338 = vmatprep.subr.mxu0 0.0
    %4339 = vmatpush1.msra.mxu0 0.0
    %4340 = vmatprep.subr.mxu0 0.0
    %4341 = vmatpush1.msra.mxu0 0.0
    %4342 = vmatprep.subr.mxu0 0.0
    %4343 = vmatpush1.msra.mxu0 0.0
    %4344 = vmatprep.subr.mxu0 0.0
    %4345 = vmatpush1.msra.mxu0 0.0
    %4346 = vmatprep.subr.mxu0 0.0
    %4347 = vmatpush1.msra.mxu0 0.0
    %4348 = vmatprep.subr.mxu0 0.0
    %4349 = vmatpush1.msra.mxu0 0.0
    %4350 = vmatprep.subr.mxu0 0.0
    %4351 = vmatpush1.msra.mxu0 0.0
    %4352 = vmatprep.subr.mxu0 0.0
    %4353 = vmatpush1.msra.mxu0 0.0
    %4354 = vmatprep.mubr.f32.mxu0 0.0
    %4355 = vmatmul.mubr.f32.gmra.mrb[0].mxu0 %v4288
    %v4356 = vpop.f32.mrb[0].mxu0
    %v4357 = vadd.f32 0.0, %v4356
    %v4358 = vpop.f32.mrb[0].mxu0
    %v4359 = vadd.f32 0.0, %v4358
    %4360 = vdwg.mxu0
    %4361 = vmatprep.subr.mxu0 %v4284
    %4362 = vmatpush1.msra.mxu0 %v4283
    %4363 = vmatprep.subr.mxu0 0.0
    %4364 = vmatpush1.msra.mxu0 0.0
    %4365 = vmatprep.subr.mxu0 0.0
    %4366 = vmatpush1.msra.mxu0 0.0
    %4367 = vmatprep.subr.mxu0 0.0
    %4368 = vmatpush1.msra.mxu0 0.0
    %4369 = vmatprep.subr.mxu0 0.0
    %4370 = vmatpush1.msra.mxu0 0.0
    %4371 = vmatprep.subr.mxu0 0.0
    %4372 = vmatpush1.msra.mxu0 0.0
    %4373 = vmatprep.subr.mxu0 0.0
    %4374 = vmatpush1.msra.mxu0 0.0
    %4375 = vmatprep.subr.mxu0 0.0
    %4376 = vmatpush1.msra.mxu0 0.0
    %4377 = vmatprep.subr.mxu0 0.0
    %4378 = vmatpush1.msra.mxu0 0.0
    %4379 = vmatprep.subr.mxu0 0.0
    %4380 = vmatpush1.msra.mxu0 0.0
    %4381 = vmatprep.subr.mxu0 0.0
    %4382 = vmatpush1.msra.mxu0 0.0
    %4383 = vmatprep.subr.mxu0 0.0
    %4384 = vmatpush1.msra.mxu0 0.0
    %4385 = vmatprep.subr.mxu0 0.0
    %4386 = vmatpush1.msra.mxu0 0.0
    %4387 = vmatprep.subr.mxu0 0.0
    %4388 = vmatpush1.msra.mxu0 0.0
    %4389 = vmatprep.subr.mxu0 0.0
    %4390 = vmatpush1.msra.mxu0 0.0
    %4391 = vmatprep.subr.mxu0 0.0
    %4392 = vmatpush1.msra.mxu0 0.0
    %4393 = vmatprep.subr.mxu0 0.0
    %4394 = vmatpush1.msra.mxu0 0.0
    %4395 = vmatprep.subr.mxu0 0.0
    %4396 = vmatpush1.msra.mxu0 0.0
    %4397 = vmatprep.subr.mxu0 0.0
    %4398 = vmatpush1.msra.mxu0 0.0
    %4399 = vmatprep.subr.mxu0 0.0
    %4400 = vmatpush1.msra.mxu0 0.0
    %4401 = vmatprep.subr.mxu0 0.0
    %4402 = vmatpush1.msra.mxu0 0.0
    %4403 = vmatprep.subr.mxu0 0.0
    %4404 = vmatpush1.msra.mxu0 0.0
    %4405 = vmatprep.subr.mxu0 0.0
    %4406 = vmatpush1.msra.mxu0 0.0
    %4407 = vmatprep.subr.mxu0 0.0
    %4408 = vmatpush1.msra.mxu0 0.0
    %4409 = vmatprep.subr.mxu0 0.0
    %4410 = vmatpush1.msra.mxu0 0.0
    %4411 = vmatprep.subr.mxu0 0.0
    %4412 = vmatpush1.msra.mxu0 0.0
    %4413 = vmatprep.subr.mxu0 0.0
    %4414 = vmatpush1.msra.mxu0 0.0
    %4415 = vmatprep.subr.mxu0 0.0
    %4416 = vmatpush1.msra.mxu0 0.0
    %4417 = vmatprep.subr.mxu0 0.0
    %4418 = vmatpush1.msra.mxu0 0.0
    %4419 = vmatprep.subr.mxu0 0.0
    %4420 = vmatpush1.msra.mxu0 0.0
    %4421 = vmatprep.subr.mxu0 0.0
    %4422 = vmatpush1.msra.mxu0 0.0
    %4423 = vmatprep.subr.mxu0 0.0
    %4424 = vmatpush1.msra.mxu0 0.0
    %4425 = vmatprep.mubr.f32.mxu0 0.0
    %4426 = vmatmul.mubr.f32.gmra.mrb[0].mxu0 %v4288
    %v4427 = vpop.f32.mrb[0].mxu0
    %v4428 = vadd.f32 0.0, %v4427
    %v4429 = vpop.f32.mrb[0].mxu0
    %v4430 = vadd.f32 0.0, %v4429
    %4431 = vdwg.mxu0
    %v4433 = vsel %vm34, %v4268, 0
    %4435 = vmatprep.subr.mxu0 %v4264
    %4436 = vmatpush1.msra.mxu0 %v4263
    %4437 = vmatprep.subr.mxu0 0.0
    %4438 = vmatpush1.msra.mxu0 0.0
    %4439 = vmatprep.subr.mxu0 0.0
    %4440 = vmatpush1.msra.mxu0 0.0
    %4441 = vmatprep.subr.mxu0 0.0
    %4442 = vmatpush1.msra.mxu0 0.0
    %4443 = vmatprep.subr.mxu0 0.0
    %4444 = vmatpush1.msra.mxu0 0.0
    %4445 = vmatprep.subr.mxu0 0.0
    %4446 = vmatpush1.msra.mxu0 0.0
    %4447 = vmatprep.subr.mxu0 0.0
    %4448 = vmatpush1.msra.mxu0 0.0
    %4449 = vmatprep.subr.mxu0 0.0
    %4450 = vmatpush1.msra.mxu0 0.0
    %4451 = vmatprep.subr.mxu0 0.0
    %4452 = vmatpush1.msra.mxu0 0.0
    %4453 = vmatprep.subr.mxu0 0.0
    %4454 = vmatpush1.msra.mxu0 0.0
    %4455 = vmatprep.subr.mxu0 0.0
    %4456 = vmatpush1.msra.mxu0 0.0
    %4457 = vmatprep.subr.mxu0 0.0
    %4458 = vmatpush1.msra.mxu0 0.0
    %4459 = vmatprep.subr.mxu0 0.0
    %4460 = vmatpush1.msra.mxu0 0.0
    %4461 = vmatprep.subr.mxu0 0.0
    %4462 = vmatpush1.msra.mxu0 0.0
    %4463 = vmatprep.subr.mxu0 0.0
    %4464 = vmatpush1.msra.mxu0 0.0
    %4465 = vmatprep.subr.mxu0 0.0
    %4466 = vmatpush1.msra.mxu0 0.0
    %4467 = vmatprep.subr.mxu0 0.0
    %4468 = vmatpush1.msra.mxu0 0.0
    %4469 = vmatprep.subr.mxu0 0.0
    %4470 = vmatpush1.msra.mxu0 0.0
    %4471 = vmatprep.subr.mxu0 0.0
    %4472 = vmatpush1.msra.mxu0 0.0
    %4473 = vmatprep.subr.mxu0 0.0
    %4474 = vmatpush1.msra.mxu0 0.0
    %4475 = vmatprep.subr.mxu0 0.0
    %4476 = vmatpush1.msra.mxu0 0.0
    %4477 = vmatprep.subr.mxu0 0.0
    %4478 = vmatpush1.msra.mxu0 0.0
    %4479 = vmatprep.subr.mxu0 0.0
    %4480 = vmatpush1.msra.mxu0 0.0
    %4481 = vmatprep.subr.mxu0 0.0
    %4482 = vmatpush1.msra.mxu0 0.0
    %4483 = vmatprep.subr.mxu0 0.0
    %4484 = vmatpush1.msra.mxu0 0.0
    %4485 = vmatprep.subr.mxu0 0.0
    %4486 = vmatpush1.msra.mxu0 0.0
    %4487 = vmatprep.subr.mxu0 0.0
    %4488 = vmatpush1.msra.mxu0 0.0
    %4489 = vmatprep.subr.mxu0 0.0
    %4490 = vmatpush1.msra.mxu0 0.0
    %4491 = vmatprep.subr.mxu0 0.0
    %4492 = vmatpush1.msra.mxu0 0.0
    %4493 = vmatprep.subr.mxu0 0.0
    %4494 = vmatpush1.msra.mxu0 0.0
    %4495 = vmatprep.subr.mxu0 0.0
    %4496 = vmatpush1.msra.mxu0 0.0
    %4497 = vmatprep.subr.mxu0 0.0
    %4498 = vmatpush1.msra.mxu0 0.0
    %4499 = vmatprep.mubr.f32.mxu0 0.0
    %4500 = vmatmul.mubr.f32.gmra.mrb[0].mxu0 %v4433
    %v4501 = vpop.f32.mrb[0].mxu0
    %v4502 = vadd.f32 %v4357, %v4501
    %v4503 = vpop.f32.mrb[0].mxu0
    %v4504 = vadd.f32 %v4359, %v4503
    %4505 = vdwg.mxu0
    %4506 = vmatprep.subr.mxu0 %v4266
    %4507 = vmatpush1.msra.mxu0 %v4265
    %4508 = vmatprep.subr.mxu0 0.0
    %4509 = vmatpush1.msra.mxu0 0.0
    %4510 = vmatprep.subr.mxu0 0.0
    %4511 = vmatpush1.msra.mxu0 0.0
    %4512 = vmatprep.subr.mxu0 0.0
    %4513 = vmatpush1.msra.mxu0 0.0
    %4514 = vmatprep.subr.mxu0 0.0
    %4515 = vmatpush1.msra.mxu0 0.0
    %4516 = vmatprep.subr.mxu0 0.0
    %4517 = vmatpush1.msra.mxu0 0.0
    %4518 = vmatprep.subr.mxu0 0.0
    %4519 = vmatpush1.msra.mxu0 0.0
    %4520 = vmatprep.subr.mxu0 0.0
    %4521 = vmatpush1.msra.mxu0 0.0
    %4522 = vmatprep.subr.mxu0 0.0
    %4523 = vmatpush1.msra.mxu0 0.0
    %4524 = vmatprep.subr.mxu0 0.0
    %4525 = vmatpush1.msra.mxu0 0.0
    %4526 = vmatprep.subr.mxu0 0.0
    %4527 = vmatpush1.msra.mxu0 0.0
    %4528 = vmatprep.subr.mxu0 0.0
    %4529 = vmatpush1.msra.mxu0 0.0
    %4530 = vmatprep.subr.mxu0 0.0
    %4531 = vmatpush1.msra.mxu0 0.0
    %4532 = vmatprep.subr.mxu0 0.0
    %4533 = vmatpush1.msra.mxu0 0.0
    %4534 = vmatprep.subr.mxu0 0.0
    %4535 = vmatpush1.msra.mxu0 0.0
    %4536 = vmatprep.subr.mxu0 0.0
    %4537 = vmatpush1.msra.mxu0 0.0
    %4538 = vmatprep.subr.mxu0 0.0
    %4539 = vmatpush1.msra.mxu0 0.0
    %4540 = vmatprep.subr.mxu0 0.0
    %4541 = vmatpush1.msra.mxu0 0.0
    %4542 = vmatprep.subr.mxu0 0.0
    %4543 = vmatpush1.msra.mxu0 0.0
    %4544 = vmatprep.subr.mxu0 0.0
    %4545 = vmatpush1.msra.mxu0 0.0
    %4546 = vmatprep.subr.mxu0 0.0
    %4547 = vmatpush1.msra.mxu0 0.0
    %4548 = vmatprep.subr.mxu0 0.0
    %4549 = vmatpush1.msra.mxu0 0.0
    %4550 = vmatprep.subr.mxu0 0.0
    %4551 = vmatpush1.msra.mxu0 0.0
    %4552 = vmatprep.subr.mxu0 0.0
    %4553 = vmatpush1.msra.mxu0 0.0
    %4554 = vmatprep.subr.mxu0 0.0
    %4555 = vmatpush1.msra.mxu0 0.0
    %4556 = vmatprep.subr.mxu0 0.0
    %4557 = vmatpush1.msra.mxu0 0.0
    %4558 = vmatprep.subr.mxu0 0.0
    %4559 = vmatpush1.msra.mxu0 0.0
    %4560 = vmatprep.subr.mxu0 0.0
    %4561 = vmatpush1.msra.mxu0 0.0
    %4562 = vmatprep.subr.mxu0 0.0
    %4563 = vmatpush1.msra.mxu0 0.0
    %4564 = vmatprep.subr.mxu0 0.0
    %4565 = vmatpush1.msra.mxu0 0.0
    %4566 = vmatprep.subr.mxu0 0.0
    %4567 = vmatpush1.msra.mxu0 0.0
    %4568 = vmatprep.subr.mxu0 0.0
    %4569 = vmatpush1.msra.mxu0 0.0
    %4570 = vmatprep.mubr.f32.mxu0 0.0
    %4571 = vmatmul.mubr.f32.gmra.mrb[0].mxu0 %v4433
    %v4572 = vpop.f32.mrb[0].mxu0
    %v4573 = vadd.f32 %v4428, %v4572
    %v4574 = vpop.f32.mrb[0].mxu0
    %v4575 = vadd.f32 %v4430, %v4574
    %4576 = vdwg.mxu0
    %4577 = vrot.lane.b32.xlu0 %v4263, 16
    %v4578 = vpop.permute.xlu0 %4577
    %4579 = vrot.lane.b32.xlu0 %v4264, 16
    %v4580 = vpop.permute.xlu0 %4579
    %4581 = vrot.lane.b32.xlu0 %v4265, 16
    %v4582 = vpop.permute.xlu0 %4581
    %4583 = vrot.lane.b32.xlu0 %v4266, 16
    %v4584 = vpop.permute.xlu0 %4583
    %v4585 = vsel %vm569, %v4582, %v4584
    %v4586 = vsel %vm569, %v4580, %v4582
    %v4587 = vsel %vm569, %v4578, %v4580
    %v4588 = vsel %vm569, %v4584, %v4578
    %v4589 = vmul.f32 %v4588, %v580
    %v4590 = vmul.f32 %v4587, %v584
    %v4591 = vmul.f32 %v4586, %v588
    %v4592 = vmul.f32 %v4585, %v592
    %s4593 = scalar_lea.vmem %s1, 192
    %v4594 = vld [vmem:[%s4593] sm:$0xff]
    %v4596 = vsel %vm34, %v4594, 0
    %4598 = vmatprep.subr.mxu0 %v4590
    %4599 = vmatpush1.msra.mxu0 %v4589
    %4600 = vmatprep.subr.mxu0 0.0
    %4601 = vmatpush1.msra.mxu0 0.0
    %4602 = vmatprep.subr.mxu0 0.0
    %4603 = vmatpush1.msra.mxu0 0.0
    %4604 = vmatprep.subr.mxu0 0.0
    %4605 = vmatpush1.msra.mxu0 0.0
    %4606 = vmatprep.subr.mxu0 0.0
    %4607 = vmatpush1.msra.mxu0 0.0
    %4608 = vmatprep.subr.mxu0 0.0
    %4609 = vmatpush1.msra.mxu0 0.0
    %4610 = vmatprep.subr.mxu0 0.0
    %4611 = vmatpush1.msra.mxu0 0.0
    %4612 = vmatprep.subr.mxu0 0.0
    %4613 = vmatpush1.msra.mxu0 0.0
    %4614 = vmatprep.subr.mxu0 0.0
    %4615 = vmatpush1.msra.mxu0 0.0
    %4616 = vmatprep.subr.mxu0 0.0
    %4617 = vmatpush1.msra.mxu0 0.0
    %4618 = vmatprep.subr.mxu0 0.0
    %4619 = vmatpush1.msra.mxu0 0.0
    %4620 = vmatprep.subr.mxu0 0.0
    %4621 = vmatpush1.msra.mxu0 0.0
    %4622 = vmatprep.subr.mxu0 0.0
    %4623 = vmatpush1.msra.mxu0 0.0
    %4624 = vmatprep.subr.mxu0 0.0
    %4625 = vmatpush1.msra.mxu0 0.0
    %4626 = vmatprep.subr.mxu0 0.0
    %4627 = vmatpush1.msra.mxu0 0.0
    %4628 = vmatprep.subr.mxu0 0.0
    %4629 = vmatpush1.msra.mxu0 0.0
    %4630 = vmatprep.subr.mxu0 0.0
    %4631 = vmatpush1.msra.mxu0 0.0
    %4632 = vmatprep.subr.mxu0 0.0
    %4633 = vmatpush1.msra.mxu0 0.0
    %4634 = vmatprep.subr.mxu0 0.0
    %4635 = vmatpush1.msra.mxu0 0.0
    %4636 = vmatprep.subr.mxu0 0.0
    %4637 = vmatpush1.msra.mxu0 0.0
    %4638 = vmatprep.subr.mxu0 0.0
    %4639 = vmatpush1.msra.mxu0 0.0
    %4640 = vmatprep.subr.mxu0 0.0
    %4641 = vmatpush1.msra.mxu0 0.0
    %4642 = vmatprep.subr.mxu0 0.0
    %4643 = vmatpush1.msra.mxu0 0.0
    %4644 = vmatprep.subr.mxu0 0.0
    %4645 = vmatpush1.msra.mxu0 0.0
    %4646 = vmatprep.subr.mxu0 0.0
    %4647 = vmatpush1.msra.mxu0 0.0
    %4648 = vmatprep.subr.mxu0 0.0
    %4649 = vmatpush1.msra.mxu0 0.0
    %4650 = vmatprep.subr.mxu0 0.0
    %4651 = vmatpush1.msra.mxu0 0.0
    %4652 = vmatprep.subr.mxu0 0.0
    %4653 = vmatpush1.msra.mxu0 0.0
    %4654 = vmatprep.subr.mxu0 0.0
    %4655 = vmatpush1.msra.mxu0 0.0
    %4656 = vmatprep.subr.mxu0 0.0
    %4657 = vmatpush1.msra.mxu0 0.0
    %4658 = vmatprep.subr.mxu0 0.0
    %4659 = vmatpush1.msra.mxu0 0.0
    %4660 = vmatprep.subr.mxu0 0.0
    %4661 = vmatpush1.msra.mxu0 0.0
    %4662 = vmatprep.mubr.f32.mxu0 0.0
    %4663 = vmatmul.mubr.f32.gmra.mrb[0].mxu0 %v4596
    %v4664 = vpop.f32.mrb[0].mxu0
    %v4665 = vadd.f32 0.0, %v4664
    %v4666 = vpop.f32.mrb[0].mxu0
    %v4667 = vadd.f32 0.0, %v4666
    %4668 = vdwg.mxu0
    %4669 = vmatprep.subr.mxu0 %v4592
    %4670 = vmatpush1.msra.mxu0 %v4591
    %4671 = vmatprep.subr.mxu0 0.0
    %4672 = vmatpush1.msra.mxu0 0.0
    %4673 = vmatprep.subr.mxu0 0.0
    %4674 = vmatpush1.msra.mxu0 0.0
    %4675 = vmatprep.subr.mxu0 0.0
    %4676 = vmatpush1.msra.mxu0 0.0
    %4677 = vmatprep.subr.mxu0 0.0
    %4678 = vmatpush1.msra.mxu0 0.0
    %4679 = vmatprep.subr.mxu0 0.0
    %4680 = vmatpush1.msra.mxu0 0.0
    %4681 = vmatprep.subr.mxu0 0.0
    %4682 = vmatpush1.msra.mxu0 0.0
    %4683 = vmatprep.subr.mxu0 0.0
    %4684 = vmatpush1.msra.mxu0 0.0
    %4685 = vmatprep.subr.mxu0 0.0
    %4686 = vmatpush1.msra.mxu0 0.0
    %4687 = vmatprep.subr.mxu0 0.0
    %4688 = vmatpush1.msra.mxu0 0.0
    %4689 = vmatprep.subr.mxu0 0.0
    %4690 = vmatpush1.msra.mxu0 0.0
    %4691 = vmatprep.subr.mxu0 0.0
    %4692 = vmatpush1.msra.mxu0 0.0
    %4693 = vmatprep.subr.mxu0 0.0
    %4694 = vmatpush1.msra.mxu0 0.0
    %4695 = vmatprep.subr.mxu0 0.0
    %4696 = vmatpush1.msra.mxu0 0.0
    %4697 = vmatprep.subr.mxu0 0.0
    %4698 = vmatpush1.msra.mxu0 0.0
    %4699 = vmatprep.subr.mxu0 0.0
    %4700 = vmatpush1.msra.mxu0 0.0
    %4701 = vmatprep.subr.mxu0 0.0
    %4702 = vmatpush1.msra.mxu0 0.0
    %4703 = vmatprep.subr.mxu0 0.0
    %4704 = vmatpush1.msra.mxu0 0.0
    %4705 = vmatprep.subr.mxu0 0.0
    %4706 = vmatpush1.msra.mxu0 0.0
    %4707 = vmatprep.subr.mxu0 0.0
    %4708 = vmatpush1.msra.mxu0 0.0
    %4709 = vmatprep.subr.mxu0 0.0
    %4710 = vmatpush1.msra.mxu0 0.0
    %4711 = vmatprep.subr.mxu0 0.0
    %4712 = vmatpush1.msra.mxu0 0.0
    %4713 = vmatprep.subr.mxu0 0.0
    %4714 = vmatpush1.msra.mxu0 0.0
    %4715 = vmatprep.subr.mxu0 0.0
    %4716 = vmatpush1.msra.mxu0 0.0
    %4717 = vmatprep.subr.mxu0 0.0
    %4718 = vmatpush1.msra.mxu0 0.0
    %4719 = vmatprep.subr.mxu0 0.0
    %4720 = vmatpush1.msra.mxu0 0.0
    %4721 = vmatprep.subr.mxu0 0.0
    %4722 = vmatpush1.msra.mxu0 0.0
    %4723 = vmatprep.subr.mxu0 0.0
    %4724 = vmatpush1.msra.mxu0 0.0
    %4725 = vmatprep.subr.mxu0 0.0
    %4726 = vmatpush1.msra.mxu0 0.0
    %4727 = vmatprep.subr.mxu0 0.0
    %4728 = vmatpush1.msra.mxu0 0.0
    %4729 = vmatprep.subr.mxu0 0.0
    %4730 = vmatpush1.msra.mxu0 0.0
    %4731 = vmatprep.subr.mxu0 0.0
    %4732 = vmatpush1.msra.mxu0 0.0
    %4733 = vmatprep.mubr.f32.mxu0 0.0
    %4734 = vmatmul.mubr.f32.gmra.mrb[0].mxu0 %v4596
    %v4735 = vpop.f32.mrb[0].mxu0
    %v4736 = vadd.f32 0.0, %v4735
    %v4737 = vpop.f32.mrb[0].mxu0
    %v4738 = vadd.f32 0.0, %v4737
    %4739 = vdwg.mxu0
    %v4740 = vadd.f32 %v4502, %v4665
    %v4741 = vadd.f32 %v4504, %v4667
    %v4742 = vadd.f32 %v4573, %v4736
    %v4743 = vadd.f32 %v4575, %v4738
    %4744 = vrot.lane.b32.xlu0 %v4263, 15
    %v4745 = vpop.permute.xlu0 %4744
    %4746 = vrot.lane.b32.xlu0 %v4264, 15
    %v4747 = vpop.permute.xlu0 %4746
    %4748 = vrot.lane.b32.xlu0 %v4265, 15
    %v4749 = vpop.permute.xlu0 %4748
    %4750 = vrot.lane.b32.xlu0 %v4266, 15
    %v4751 = vpop.permute.xlu0 %4750
    %v4752 = vsel %vm760, %v4749, %v4751
    %v4753 = vsel %vm760, %v4747, %v4749
    %v4754 = vsel %vm760, %v4745, %v4747
    %v4755 = vsel %vm760, %v4751, %v4745
    %v4756 = vmul.f32 %v4755, %v771
    %v4757 = vmul.f32 %v4754, %v775
    %v4758 = vmul.f32 %v4753, %v779
    %v4759 = vmul.f32 %v4752, %v783
    %s4760 = scalar_lea.vmem %s1, 200
    %v4761 = vld [vmem:[%s4760] sm:$0xff]
    %v4763 = vsel %vm34, %v4761, 0
    %4765 = vmatprep.subr.mxu0 %v4757
    %4766 = vmatpush1.msra.mxu0 %v4756
    %4767 = vmatprep.subr.mxu0 0.0
    %4768 = vmatpush1.msra.mxu0 0.0
    %4769 = vmatprep.subr.mxu0 0.0
    %4770 = vmatpush1.msra.mxu0 0.0
    %4771 = vmatprep.subr.mxu0 0.0
    %4772 = vmatpush1.msra.mxu0 0.0
    %4773 = vmatprep.subr.mxu0 0.0
    %4774 = vmatpush1.msra.mxu0 0.0
    %4775 = vmatprep.subr.mxu0 0.0
    %4776 = vmatpush1.msra.mxu0 0.0
    %4777 = vmatprep.subr.mxu0 0.0
    %4778 = vmatpush1.msra.mxu0 0.0
    %4779 = vmatprep.subr.mxu0 0.0
    %4780 = vmatpush1.msra.mxu0 0.0
    %4781 = vmatprep.subr.mxu0 0.0
    %4782 = vmatpush1.msra.mxu0 0.0
    %4783 = vmatprep.subr.mxu0 0.0
    %4784 = vmatpush1.msra.mxu0 0.0
    %4785 = vmatprep.subr.mxu0 0.0
    %4786 = vmatpush1.msra.mxu0 0.0
    %4787 = vmatprep.subr.mxu0 0.0
    %4788 = vmatpush1.msra.mxu0 0.0
    %4789 = vmatprep.subr.mxu0 0.0
    %4790 = vmatpush1.msra.mxu0 0.0
    %4791 = vmatprep.subr.mxu0 0.0
    %4792 = vmatpush1.msra.mxu0 0.0
    %4793 = vmatprep.subr.mxu0 0.0
    %4794 = vmatpush1.msra.mxu0 0.0
    %4795 = vmatprep.subr.mxu0 0.0
    %4796 = vmatpush1.msra.mxu0 0.0
    %4797 = vmatprep.subr.mxu0 0.0
    %4798 = vmatpush1.msra.mxu0 0.0
    %4799 = vmatprep.subr.mxu0 0.0
    %4800 = vmatpush1.msra.mxu0 0.0
    %4801 = vmatprep.subr.mxu0 0.0
    %4802 = vmatpush1.msra.mxu0 0.0
    %4803 = vmatprep.subr.mxu0 0.0
    %4804 = vmatpush1.msra.mxu0 0.0
    %4805 = vmatprep.subr.mxu0 0.0
    %4806 = vmatpush1.msra.mxu0 0.0
    %4807 = vmatprep.subr.mxu0 0.0
    %4808 = vmatpush1.msra.mxu0 0.0
    %4809 = vmatprep.subr.mxu0 0.0
    %4810 = vmatpush1.msra.mxu0 0.0
    %4811 = vmatprep.subr.mxu0 0.0
    %4812 = vmatpush1.msra.mxu0 0.0
    %4813 = vmatprep.subr.mxu0 0.0
    %4814 = vmatpush1.msra.mxu0 0.0
    %4815 = vmatprep.subr.mxu0 0.0
    %4816 = vmatpush1.msra.mxu0 0.0
    %4817 = vmatprep.subr.mxu0 0.0
    %4818 = vmatpush1.msra.mxu0 0.0
    %4819 = vmatprep.subr.mxu0 0.0
    %4820 = vmatpush1.msra.mxu0 0.0
    %4821 = vmatprep.subr.mxu0 0.0
    %4822 = vmatpush1.msra.mxu0 0.0
    %4823 = vmatprep.subr.mxu0 0.0
    %4824 = vmatpush1.msra.mxu0 0.0
    %4825 = vmatprep.subr.mxu0 0.0
    %4826 = vmatpush1.msra.mxu0 0.0
    %4827 = vmatprep.subr.mxu0 0.0
    %4828 = vmatpush1.msra.mxu0 0.0
    %4829 = vmatprep.mubr.f32.mxu0 0.0
    %4830 = vmatmul.mubr.f32.gmra.mrb[0].mxu0 %v4763
    %v4831 = vpop.f32.mrb[0].mxu0
    %v4832 = vadd.f32 0.0, %v4831
    %v4833 = vpop.f32.mrb[0].mxu0
    %v4834 = vadd.f32 0.0, %v4833
    %4835 = vdwg.mxu0
    %4836 = vmatprep.subr.mxu0 %v4759
    %4837 = vmatpush1.msra.mxu0 %v4758
    %4838 = vmatprep.subr.mxu0 0.0
    %4839 = vmatpush1.msra.mxu0 0.0
    %4840 = vmatprep.subr.mxu0 0.0
    %4841 = vmatpush1.msra.mxu0 0.0
    %4842 = vmatprep.subr.mxu0 0.0
    %4843 = vmatpush1.msra.mxu0 0.0
    %4844 = vmatprep.subr.mxu0 0.0
    %4845 = vmatpush1.msra.mxu0 0.0
    %4846 = vmatprep.subr.mxu0 0.0
    %4847 = vmatpush1.msra.mxu0 0.0
    %4848 = vmatprep.subr.mxu0 0.0
    %4849 = vmatpush1.msra.mxu0 0.0
    %4850 = vmatprep.subr.mxu0 0.0
    %4851 = vmatpush1.msra.mxu0 0.0
    %4852 = vmatprep.subr.mxu0 0.0
    %4853 = vmatpush1.msra.mxu0 0.0
    %4854 = vmatprep.subr.mxu0 0.0
    %4855 = vmatpush1.msra.mxu0 0.0
    %4856 = vmatprep.subr.mxu0 0.0
    %4857 = vmatpush1.msra.mxu0 0.0
    %4858 = vmatprep.subr.mxu0 0.0
    %4859 = vmatpush1.msra.mxu0 0.0
    %4860 = vmatprep.subr.mxu0 0.0
    %4861 = vmatpush1.msra.mxu0 0.0
    %4862 = vmatprep.subr.mxu0 0.0
    %4863 = vmatpush1.msra.mxu0 0.0
    %4864 = vmatprep.subr.mxu0 0.0
    %4865 = vmatpush1.msra.mxu0 0.0
    %4866 = vmatprep.subr.mxu0 0.0
    %4867 = vmatpush1.msra.mxu0 0.0
    %4868 = vmatprep.subr.mxu0 0.0
    %4869 = vmatpush1.msra.mxu0 0.0
    %4870 = vmatprep.subr.mxu0 0.0
    %4871 = vmatpush1.msra.mxu0 0.0
    %4872 = vmatprep.subr.mxu0 0.0
    %4873 = vmatpush1.msra.mxu0 0.0
    %4874 = vmatprep.subr.mxu0 0.0
    %4875 = vmatpush1.msra.mxu0 0.0
    %4876 = vmatprep.subr.mxu0 0.0
    %4877 = vmatpush1.msra.mxu0 0.0
    %4878 = vmatprep.subr.mxu0 0.0
    %4879 = vmatpush1.msra.mxu0 0.0
    %4880 = vmatprep.subr.mxu0 0.0
    %4881 = vmatpush1.msra.mxu0 0.0
    %4882 = vmatprep.subr.mxu0 0.0
    %4883 = vmatpush1.msra.mxu0 0.0
    %4884 = vmatprep.subr.mxu0 0.0
    %4885 = vmatpush1.msra.mxu0 0.0
    %4886 = vmatprep.subr.mxu0 0.0
    %4887 = vmatpush1.msra.mxu0 0.0
    %4888 = vmatprep.subr.mxu0 0.0
    %4889 = vmatpush1.msra.mxu0 0.0
    %4890 = vmatprep.subr.mxu0 0.0
    %4891 = vmatpush1.msra.mxu0 0.0
    %4892 = vmatprep.subr.mxu0 0.0
    %4893 = vmatpush1.msra.mxu0 0.0
    %4894 = vmatprep.subr.mxu0 0.0
    %4895 = vmatpush1.msra.mxu0 0.0
    %4896 = vmatprep.subr.mxu0 0.0
    %4897 = vmatpush1.msra.mxu0 0.0
    %4898 = vmatprep.subr.mxu0 0.0
    %4899 = vmatpush1.msra.mxu0 0.0
    %4900 = vmatprep.mubr.f32.mxu0 0.0
    %4901 = vmatmul.mubr.f32.gmra.mrb[0].mxu0 %v4763
    %v4902 = vpop.f32.mrb[0].mxu0
    %v4903 = vadd.f32 0.0, %v4902
    %v4904 = vpop.f32.mrb[0].mxu0
    %v4905 = vadd.f32 0.0, %v4904
    %4906 = vdwg.mxu0
    %v4907 = vadd.f32 %v4740, %v4832
    %v4908 = vadd.f32 %v4741, %v4834
    %v4909 = vadd.f32 %v4742, %v4903
    %v4910 = vadd.f32 %v4743, %v4905
    %4911 = vrot.lane.b32.xlu0 %v4263, 1
    %v4912 = vpop.permute.xlu0 %4911
    %4913 = vrot.lane.b32.xlu0 %v4264, 1
    %v4914 = vpop.permute.xlu0 %4913
    %4915 = vrot.lane.b32.xlu0 %v4265, 1
    %v4916 = vpop.permute.xlu0 %4915
    %4917 = vrot.lane.b32.xlu0 %v4266, 1
    %v4918 = vpop.permute.xlu0 %4917
    %v4919 = vsel %vm951, %v4916, %v4918
    %v4920 = vsel %vm951, %v4914, %v4916
    %v4921 = vsel %vm951, %v4912, %v4914
    %v4922 = vsel %vm951, %v4918, %v4912
    %v4923 = vmul.f32 %v4922, %v962
    %v4924 = vmul.f32 %v4921, %v966
    %v4925 = vmul.f32 %v4920, %v970
    %v4926 = vmul.f32 %v4919, %v974
    %s4927 = scalar_lea.vmem %s1, 208
    %v4928 = vld [vmem:[%s4927] sm:$0xff]
    %v4930 = vsel %vm34, %v4928, 0
    %4932 = vmatprep.subr.mxu0 %v4924
    %4933 = vmatpush1.msra.mxu0 %v4923
    %4934 = vmatprep.subr.mxu0 0.0
    %4935 = vmatpush1.msra.mxu0 0.0
    %4936 = vmatprep.subr.mxu0 0.0
    %4937 = vmatpush1.msra.mxu0 0.0
    %4938 = vmatprep.subr.mxu0 0.0
    %4939 = vmatpush1.msra.mxu0 0.0
    %4940 = vmatprep.subr.mxu0 0.0
    %4941 = vmatpush1.msra.mxu0 0.0
    %4942 = vmatprep.subr.mxu0 0.0
    %4943 = vmatpush1.msra.mxu0 0.0
    %4944 = vmatprep.subr.mxu0 0.0
    %4945 = vmatpush1.msra.mxu0 0.0
    %4946 = vmatprep.subr.mxu0 0.0
    %4947 = vmatpush1.msra.mxu0 0.0
    %4948 = vmatprep.subr.mxu0 0.0
    %4949 = vmatpush1.msra.mxu0 0.0
    %4950 = vmatprep.subr.mxu0 0.0
    %4951 = vmatpush1.msra.mxu0 0.0
    %4952 = vmatprep.subr.mxu0 0.0
    %4953 = vmatpush1.msra.mxu0 0.0
    %4954 = vmatprep.subr.mxu0 0.0
    %4955 = vmatpush1.msra.mxu0 0.0
    %4956 = vmatprep.subr.mxu0 0.0
    %4957 = vmatpush1.msra.mxu0 0.0
    %4958 = vmatprep.subr.mxu0 0.0
    %4959 = vmatpush1.msra.mxu0 0.0
    %4960 = vmatprep.subr.mxu0 0.0
    %4961 = vmatpush1.msra.mxu0 0.0
    %4962 = vmatprep.subr.mxu0 0.0
    %4963 = vmatpush1.msra.mxu0 0.0
    %4964 = vmatprep.subr.mxu0 0.0
    %4965 = vmatpush1.msra.mxu0 0.0
    %4966 = vmatprep.subr.mxu0 0.0
    %4967 = vmatpush1.msra.mxu0 0.0
    %4968 = vmatprep.subr.mxu0 0.0
    %4969 = vmatpush1.msra.mxu0 0.0
    %4970 = vmatprep.subr.mxu0 0.0
    %4971 = vmatpush1.msra.mxu0 0.0
    %4972 = vmatprep.subr.mxu0 0.0
    %4973 = vmatpush1.msra.mxu0 0.0
    %4974 = vmatprep.subr.mxu0 0.0
    %4975 = vmatpush1.msra.mxu0 0.0
    %4976 = vmatprep.subr.mxu0 0.0
    %4977 = vmatpush1.msra.mxu0 0.0
    %4978 = vmatprep.subr.mxu0 0.0
    %4979 = vmatpush1.msra.mxu0 0.0
    %4980 = vmatprep.subr.mxu0 0.0
    %4981 = vmatpush1.msra.mxu0 0.0
    %4982 = vmatprep.subr.mxu0 0.0
    %4983 = vmatpush1.msra.mxu0 0.0
    %4984 = vmatprep.subr.mxu0 0.0
    %4985 = vmatpush1.msra.mxu0 0.0
    %4986 = vmatprep.subr.mxu0 0.0
    %4987 = vmatpush1.msra.mxu0 0.0
    %4988 = vmatprep.subr.mxu0 0.0
    %4989 = vmatpush1.msra.mxu0 0.0
    %4990 = vmatprep.subr.mxu0 0.0
    %4991 = vmatpush1.msra.mxu0 0.0
    %4992 = vmatprep.subr.mxu0 0.0
    %4993 = vmatpush1.msra.mxu0 0.0
    %4994 = vmatprep.subr.mxu0 0.0
    %4995 = vmatpush1.msra.mxu0 0.0
    %4996 = vmatprep.mubr.f32.mxu0 0.0
    %4997 = vmatmul.mubr.f32.gmra.mrb[0].mxu0 %v4930
    %v4998 = vpop.f32.mrb[0].mxu0
    %v4999 = vadd.f32 0.0, %v4998
    %v5000 = vpop.f32.mrb[0].mxu0
    %v5001 = vadd.f32 0.0, %v5000
    %5002 = vdwg.mxu0
    %5003 = vmatprep.subr.mxu0 %v4926
    %5004 = vmatpush1.msra.mxu0 %v4925
    %5005 = vmatprep.subr.mxu0 0.0
    %5006 = vmatpush1.msra.mxu0 0.0
    %5007 = vmatprep.subr.mxu0 0.0
    %5008 = vmatpush1.msra.mxu0 0.0
    %5009 = vmatprep.subr.mxu0 0.0
    %5010 = vmatpush1.msra.mxu0 0.0
    %5011 = vmatprep.subr.mxu0 0.0
    %5012 = vmatpush1.msra.mxu0 0.0
    %5013 = vmatprep.subr.mxu0 0.0
    %5014 = vmatpush1.msra.mxu0 0.0
    %5015 = vmatprep.subr.mxu0 0.0
    %5016 = vmatpush1.msra.mxu0 0.0
    %5017 = vmatprep.subr.mxu0 0.0
    %5018 = vmatpush1.msra.mxu0 0.0
    %5019 = vmatprep.subr.mxu0 0.0
    %5020 = vmatpush1.msra.mxu0 0.0
    %5021 = vmatprep.subr.mxu0 0.0
    %5022 = vmatpush1.msra.mxu0 0.0
    %5023 = vmatprep.subr.mxu0 0.0
    %5024 = vmatpush1.msra.mxu0 0.0
    %5025 = vmatprep.subr.mxu0 0.0
    %5026 = vmatpush1.msra.mxu0 0.0
    %5027 = vmatprep.subr.mxu0 0.0
    %5028 = vmatpush1.msra.mxu0 0.0
    %5029 = vmatprep.subr.mxu0 0.0
    %5030 = vmatpush1.msra.mxu0 0.0
    %5031 = vmatprep.subr.mxu0 0.0
    %5032 = vmatpush1.msra.mxu0 0.0
    %5033 = vmatprep.subr.mxu0 0.0
    %5034 = vmatpush1.msra.mxu0 0.0
    %5035 = vmatprep.subr.mxu0 0.0
    %5036 = vmatpush1.msra.mxu0 0.0
    %5037 = vmatprep.subr.mxu0 0.0
    %5038 = vmatpush1.msra.mxu0 0.0
    %5039 = vmatprep.subr.mxu0 0.0
    %5040 = vmatpush1.msra.mxu0 0.0
    %5041 = vmatprep.subr.mxu0 0.0
    %5042 = vmatpush1.msra.mxu0 0.0
    %5043 = vmatprep.subr.mxu0 0.0
    %5044 = vmatpush1.msra.mxu0 0.0
    %5045 = vmatprep.subr.mxu0 0.0
    %5046 = vmatpush1.msra.mxu0 0.0
    %5047 = vmatprep.subr.mxu0 0.0
    %5048 = vmatpush1.msra.mxu0 0.0
    %5049 = vmatprep.subr.mxu0 0.0
    %5050 = vmatpush1.msra.mxu0 0.0
    %5051 = vmatprep.subr.mxu0 0.0
    %5052 = vmatpush1.msra.mxu0 0.0
    %5053 = vmatprep.subr.mxu0 0.0
    %5054 = vmatpush1.msra.mxu0 0.0
    %5055 = vmatprep.subr.mxu0 0.0
    %5056 = vmatpush1.msra.mxu0 0.0
    %5057 = vmatprep.subr.mxu0 0.0
    %5058 = vmatpush1.msra.mxu0 0.0
    %5059 = vmatprep.subr.mxu0 0.0
    %5060 = vmatpush1.msra.mxu0 0.0
    %5061 = vmatprep.subr.mxu0 0.0
    %5062 = vmatpush1.msra.mxu0 0.0
    %5063 = vmatprep.subr.mxu0 0.0
    %5064 = vmatpush1.msra.mxu0 0.0
    %5065 = vmatprep.subr.mxu0 0.0
    %5066 = vmatpush1.msra.mxu0 0.0
    %5067 = vmatprep.mubr.f32.mxu0 0.0
    %5068 = vmatmul.mubr.f32.gmra.mrb[0].mxu0 %v4930
    %v5069 = vpop.f32.mrb[0].mxu0
    %v5070 = vadd.f32 0.0, %v5069
    %v5071 = vpop.f32.mrb[0].mxu0
    %v5072 = vadd.f32 0.0, %v5071
    %5073 = vdwg.mxu0
    %v5074 = vadd.f32 %v4907, %v4999
    %v5075 = vadd.f32 %v4908, %v5001
    %v5076 = vadd.f32 %v4909, %v5070
    %v5077 = vadd.f32 %v4910, %v5072
    %5078 = vrot.lane.b32.xlu0 %v4263, 127
    %v5079 = vpop.permute.xlu0 %5078
    %5080 = vrot.lane.b32.xlu0 %v4264, 127
    %v5081 = vpop.permute.xlu0 %5080
    %5082 = vrot.lane.b32.xlu0 %v4265, 127
    %v5083 = vpop.permute.xlu0 %5082
    %5084 = vrot.lane.b32.xlu0 %v4266, 127
    %v5085 = vpop.permute.xlu0 %5084
    %v5086 = vsel %vm1142, %v5083, %v5085
    %v5087 = vsel %vm1142, %v5081, %v5083
    %v5088 = vsel %vm1142, %v5079, %v5081
    %v5089 = vsel %vm1142, %v5085, %v5079
    %v5090 = vmul.f32 %v5088, %v1153
    %v5091 = vmul.f32 %v5087, %v1157
    %v5092 = vmul.f32 %v5086, %v1161
    %v5093 = vmul.f32 %v5089, %v1165
    %s5094 = scalar_lea.vmem %s1, 224
    %v5095 = vld [vmem:[%s5094] sm:$0xff]
    %v5097 = vsel %vm34, %v5095, 0
    %5099 = vmatprep.subr.mxu0 %v5091
    %5100 = vmatpush1.msra.mxu0 %v5090
    %5101 = vmatprep.subr.mxu0 0.0
    %5102 = vmatpush1.msra.mxu0 0.0
    %5103 = vmatprep.subr.mxu0 0.0
    %5104 = vmatpush1.msra.mxu0 0.0
    %5105 = vmatprep.subr.mxu0 0.0
    %5106 = vmatpush1.msra.mxu0 0.0
    %5107 = vmatprep.subr.mxu0 0.0
    %5108 = vmatpush1.msra.mxu0 0.0
    %5109 = vmatprep.subr.mxu0 0.0
    %5110 = vmatpush1.msra.mxu0 0.0
    %5111 = vmatprep.subr.mxu0 0.0
    %5112 = vmatpush1.msra.mxu0 0.0
    %5113 = vmatprep.subr.mxu0 0.0
    %5114 = vmatpush1.msra.mxu0 0.0
    %5115 = vmatprep.subr.mxu0 0.0
    %5116 = vmatpush1.msra.mxu0 0.0
    %5117 = vmatprep.subr.mxu0 0.0
    %5118 = vmatpush1.msra.mxu0 0.0
    %5119 = vmatprep.subr.mxu0 0.0
    %5120 = vmatpush1.msra.mxu0 0.0
    %5121 = vmatprep.subr.mxu0 0.0
    %5122 = vmatpush1.msra.mxu0 0.0
    %5123 = vmatprep.subr.mxu0 0.0
    %5124 = vmatpush1.msra.mxu0 0.0
    %5125 = vmatprep.subr.mxu0 0.0
    %5126 = vmatpush1.msra.mxu0 0.0
    %5127 = vmatprep.subr.mxu0 0.0
    %5128 = vmatpush1.msra.mxu0 0.0
    %5129 = vmatprep.subr.mxu0 0.0
    %5130 = vmatpush1.msra.mxu0 0.0
    %5131 = vmatprep.subr.mxu0 0.0
    %5132 = vmatpush1.msra.mxu0 0.0
    %5133 = vmatprep.subr.mxu0 0.0
    %5134 = vmatpush1.msra.mxu0 0.0
    %5135 = vmatprep.subr.mxu0 0.0
    %5136 = vmatpush1.msra.mxu0 0.0
    %5137 = vmatprep.subr.mxu0 0.0
    %5138 = vmatpush1.msra.mxu0 0.0
    %5139 = vmatprep.subr.mxu0 0.0
    %5140 = vmatpush1.msra.mxu0 0.0
    %5141 = vmatprep.subr.mxu0 0.0
    %5142 = vmatpush1.msra.mxu0 0.0
    %5143 = vmatprep.subr.mxu0 0.0
    %5144 = vmatpush1.msra.mxu0 0.0
    %5145 = vmatprep.subr.mxu0 0.0
    %5146 = vmatpush1.msra.mxu0 0.0
    %5147 = vmatprep.subr.mxu0 0.0
    %5148 = vmatpush1.msra.mxu0 0.0
    %5149 = vmatprep.subr.mxu0 0.0
    %5150 = vmatpush1.msra.mxu0 0.0
    %5151 = vmatprep.subr.mxu0 0.0
    %5152 = vmatpush1.msra.mxu0 0.0
    %5153 = vmatprep.subr.mxu0 0.0
    %5154 = vmatpush1.msra.mxu0 0.0
    %5155 = vmatprep.subr.mxu0 0.0
    %5156 = vmatpush1.msra.mxu0 0.0
    %5157 = vmatprep.subr.mxu0 0.0
    %5158 = vmatpush1.msra.mxu0 0.0
    %5159 = vmatprep.subr.mxu0 0.0
    %5160 = vmatpush1.msra.mxu0 0.0
    %5161 = vmatprep.subr.mxu0 0.0
    %5162 = vmatpush1.msra.mxu0 0.0
    %5163 = vmatprep.mubr.f32.mxu0 0.0
    %5164 = vmatmul.mubr.f32.gmra.mrb[0].mxu0 %v5097
    %v5165 = vpop.f32.mrb[0].mxu0
    %v5166 = vadd.f32 0.0, %v5165
    %v5167 = vpop.f32.mrb[0].mxu0
    %v5168 = vadd.f32 0.0, %v5167
    %5169 = vdwg.mxu0
    %5170 = vmatprep.subr.mxu0 %v5093
    %5171 = vmatpush1.msra.mxu0 %v5092
    %5172 = vmatprep.subr.mxu0 0.0
    %5173 = vmatpush1.msra.mxu0 0.0
    %5174 = vmatprep.subr.mxu0 0.0
    %5175 = vmatpush1.msra.mxu0 0.0
    %5176 = vmatprep.subr.mxu0 0.0
    %5177 = vmatpush1.msra.mxu0 0.0
    %5178 = vmatprep.subr.mxu0 0.0
    %5179 = vmatpush1.msra.mxu0 0.0
    %5180 = vmatprep.subr.mxu0 0.0
    %5181 = vmatpush1.msra.mxu0 0.0
    %5182 = vmatprep.subr.mxu0 0.0
    %5183 = vmatpush1.msra.mxu0 0.0
    %5184 = vmatprep.subr.mxu0 0.0
    %5185 = vmatpush1.msra.mxu0 0.0
    %5186 = vmatprep.subr.mxu0 0.0
    %5187 = vmatpush1.msra.mxu0 0.0
    %5188 = vmatprep.subr.mxu0 0.0
    %5189 = vmatpush1.msra.mxu0 0.0
    %5190 = vmatprep.subr.mxu0 0.0
    %5191 = vmatpush1.msra.mxu0 0.0
    %5192 = vmatprep.subr.mxu0 0.0
    %5193 = vmatpush1.msra.mxu0 0.0
    %5194 = vmatprep.subr.mxu0 0.0
    %5195 = vmatpush1.msra.mxu0 0.0
    %5196 = vmatprep.subr.mxu0 0.0
    %5197 = vmatpush1.msra.mxu0 0.0
    %5198 = vmatprep.subr.mxu0 0.0
    %5199 = vmatpush1.msra.mxu0 0.0
    %5200 = vmatprep.subr.mxu0 0.0
    %5201 = vmatpush1.msra.mxu0 0.0
    %5202 = vmatprep.subr.mxu0 0.0
    %5203 = vmatpush1.msra.mxu0 0.0
    %5204 = vmatprep.subr.mxu0 0.0
    %5205 = vmatpush1.msra.mxu0 0.0
    %5206 = vmatprep.subr.mxu0 0.0
    %5207 = vmatpush1.msra.mxu0 0.0
    %5208 = vmatprep.subr.mxu0 0.0
    %5209 = vmatpush1.msra.mxu0 0.0
    %5210 = vmatprep.subr.mxu0 0.0
    %5211 = vmatpush1.msra.mxu0 0.0
    %5212 = vmatprep.subr.mxu0 0.0
    %5213 = vmatpush1.msra.mxu0 0.0
    %5214 = vmatprep.subr.mxu0 0.0
    %5215 = vmatpush1.msra.mxu0 0.0
    %5216 = vmatprep.subr.mxu0 0.0
    %5217 = vmatpush1.msra.mxu0 0.0
    %5218 = vmatprep.subr.mxu0 0.0
    %5219 = vmatpush1.msra.mxu0 0.0
    %5220 = vmatprep.subr.mxu0 0.0
    %5221 = vmatpush1.msra.mxu0 0.0
    %5222 = vmatprep.subr.mxu0 0.0
    %5223 = vmatpush1.msra.mxu0 0.0
    %5224 = vmatprep.subr.mxu0 0.0
    %5225 = vmatpush1.msra.mxu0 0.0
    %5226 = vmatprep.subr.mxu0 0.0
    %5227 = vmatpush1.msra.mxu0 0.0
    %5228 = vmatprep.subr.mxu0 0.0
    %5229 = vmatpush1.msra.mxu0 0.0
    %5230 = vmatprep.subr.mxu0 0.0
    %5231 = vmatpush1.msra.mxu0 0.0
    %5232 = vmatprep.subr.mxu0 0.0
    %5233 = vmatpush1.msra.mxu0 0.0
    %5234 = vmatprep.mubr.f32.mxu0 0.0
    %5235 = vmatmul.mubr.f32.gmra.mrb[0].mxu0 %v5097
    %v5236 = vpop.f32.mrb[0].mxu0
    %v5237 = vadd.f32 0.0, %v5236
    %v5238 = vpop.f32.mrb[0].mxu0
    %v5239 = vadd.f32 0.0, %v5238
    %5240 = vdwg.mxu0
    %v5241 = vadd.f32 %v5074, %v5166
    %v5242 = vadd.f32 %v5075, %v5168
    %v5243 = vadd.f32 %v5076, %v5237
    %v5244 = vadd.f32 %v5077, %v5239
    %5245 = vrot.lane.b32.xlu0 %v4263, 113
    %v5246 = vpop.permute.xlu0 %5245
    %5247 = vrot.lane.b32.xlu0 %v4264, 113
    %v5248 = vpop.permute.xlu0 %5247
    %5249 = vrot.lane.b32.xlu0 %v4265, 113
    %v5250 = vpop.permute.xlu0 %5249
    %5251 = vrot.lane.b32.xlu0 %v4266, 113
    %v5252 = vpop.permute.xlu0 %5251
    %v5253 = vsel %vm1333, %v5250, %v5252
    %v5254 = vsel %vm1333, %v5248, %v5250
    %v5255 = vsel %vm1333, %v5246, %v5248
    %v5256 = vsel %vm1333, %v5252, %v5246
    %v5257 = vmul.f32 %v5255, %v1344
    %v5258 = vmul.f32 %v5254, %v1348
    %v5259 = vmul.f32 %v5253, %v1352
    %v5260 = vmul.f32 %v5256, %v1356
    %s5261 = scalar_lea.vmem %s1, 232
    %v5262 = vld [vmem:[%s5261] sm:$0xff]
    %v5264 = vsel %vm34, %v5262, 0
    %5266 = vmatprep.subr.mxu0 %v5258
    %5267 = vmatpush1.msra.mxu0 %v5257
    %5268 = vmatprep.subr.mxu0 0.0
    %5269 = vmatpush1.msra.mxu0 0.0
    %5270 = vmatprep.subr.mxu0 0.0
    %5271 = vmatpush1.msra.mxu0 0.0
    %5272 = vmatprep.subr.mxu0 0.0
    %5273 = vmatpush1.msra.mxu0 0.0
    %5274 = vmatprep.subr.mxu0 0.0
    %5275 = vmatpush1.msra.mxu0 0.0
    %5276 = vmatprep.subr.mxu0 0.0
    %5277 = vmatpush1.msra.mxu0 0.0
    %5278 = vmatprep.subr.mxu0 0.0
    %5279 = vmatpush1.msra.mxu0 0.0
    %5280 = vmatprep.subr.mxu0 0.0
    %5281 = vmatpush1.msra.mxu0 0.0
    %5282 = vmatprep.subr.mxu0 0.0
    %5283 = vmatpush1.msra.mxu0 0.0
    %5284 = vmatprep.subr.mxu0 0.0
    %5285 = vmatpush1.msra.mxu0 0.0
    %5286 = vmatprep.subr.mxu0 0.0
    %5287 = vmatpush1.msra.mxu0 0.0
    %5288 = vmatprep.subr.mxu0 0.0
    %5289 = vmatpush1.msra.mxu0 0.0
    %5290 = vmatprep.subr.mxu0 0.0
    %5291 = vmatpush1.msra.mxu0 0.0
    %5292 = vmatprep.subr.mxu0 0.0
    %5293 = vmatpush1.msra.mxu0 0.0
    %5294 = vmatprep.subr.mxu0 0.0
    %5295 = vmatpush1.msra.mxu0 0.0
    %5296 = vmatprep.subr.mxu0 0.0
    %5297 = vmatpush1.msra.mxu0 0.0
    %5298 = vmatprep.subr.mxu0 0.0
    %5299 = vmatpush1.msra.mxu0 0.0
    %5300 = vmatprep.subr.mxu0 0.0
    %5301 = vmatpush1.msra.mxu0 0.0
    %5302 = vmatprep.subr.mxu0 0.0
    %5303 = vmatpush1.msra.mxu0 0.0
    %5304 = vmatprep.subr.mxu0 0.0
    %5305 = vmatpush1.msra.mxu0 0.0
    %5306 = vmatprep.subr.mxu0 0.0
    %5307 = vmatpush1.msra.mxu0 0.0
    %5308 = vmatprep.subr.mxu0 0.0
    %5309 = vmatpush1.msra.mxu0 0.0
    %5310 = vmatprep.subr.mxu0 0.0
    %5311 = vmatpush1.msra.mxu0 0.0
    %5312 = vmatprep.subr.mxu0 0.0
    %5313 = vmatpush1.msra.mxu0 0.0
    %5314 = vmatprep.subr.mxu0 0.0
    %5315 = vmatpush1.msra.mxu0 0.0
    %5316 = vmatprep.subr.mxu0 0.0
    %5317 = vmatpush1.msra.mxu0 0.0
    %5318 = vmatprep.subr.mxu0 0.0
    %5319 = vmatpush1.msra.mxu0 0.0
    %5320 = vmatprep.subr.mxu0 0.0
    %5321 = vmatpush1.msra.mxu0 0.0
    %5322 = vmatprep.subr.mxu0 0.0
    %5323 = vmatpush1.msra.mxu0 0.0
    %5324 = vmatprep.subr.mxu0 0.0
    %5325 = vmatpush1.msra.mxu0 0.0
    %5326 = vmatprep.subr.mxu0 0.0
    %5327 = vmatpush1.msra.mxu0 0.0
    %5328 = vmatprep.subr.mxu0 0.0
    %5329 = vmatpush1.msra.mxu0 0.0
    %5330 = vmatprep.mubr.f32.mxu0 0.0
    %5331 = vmatmul.mubr.f32.gmra.mrb[0].mxu0 %v5264
    %v5332 = vpop.f32.mrb[0].mxu0
    %v5333 = vadd.f32 0.0, %v5332
    %v5334 = vpop.f32.mrb[0].mxu0
    %v5335 = vadd.f32 0.0, %v5334
    %5336 = vdwg.mxu0
    %5337 = vmatprep.subr.mxu0 %v5260
    %5338 = vmatpush1.msra.mxu0 %v5259
    %5339 = vmatprep.subr.mxu0 0.0
    %5340 = vmatpush1.msra.mxu0 0.0
    %5341 = vmatprep.subr.mxu0 0.0
    %5342 = vmatpush1.msra.mxu0 0.0
    %5343 = vmatprep.subr.mxu0 0.0
    %5344 = vmatpush1.msra.mxu0 0.0
    %5345 = vmatprep.subr.mxu0 0.0
    %5346 = vmatpush1.msra.mxu0 0.0
    %5347 = vmatprep.subr.mxu0 0.0
    %5348 = vmatpush1.msra.mxu0 0.0
    %5349 = vmatprep.subr.mxu0 0.0
    %5350 = vmatpush1.msra.mxu0 0.0
    %5351 = vmatprep.subr.mxu0 0.0
    %5352 = vmatpush1.msra.mxu0 0.0
    %5353 = vmatprep.subr.mxu0 0.0
    %5354 = vmatpush1.msra.mxu0 0.0
    %5355 = vmatprep.subr.mxu0 0.0
    %5356 = vmatpush1.msra.mxu0 0.0
    %5357 = vmatprep.subr.mxu0 0.0
    %5358 = vmatpush1.msra.mxu0 0.0
    %5359 = vmatprep.subr.mxu0 0.0
    %5360 = vmatpush1.msra.mxu0 0.0
    %5361 = vmatprep.subr.mxu0 0.0
    %5362 = vmatpush1.msra.mxu0 0.0
    %5363 = vmatprep.subr.mxu0 0.0
    %5364 = vmatpush1.msra.mxu0 0.0
    %5365 = vmatprep.subr.mxu0 0.0
    %5366 = vmatpush1.msra.mxu0 0.0
    %5367 = vmatprep.subr.mxu0 0.0
    %5368 = vmatpush1.msra.mxu0 0.0
    %5369 = vmatprep.subr.mxu0 0.0
    %5370 = vmatpush1.msra.mxu0 0.0
    %5371 = vmatprep.subr.mxu0 0.0
    %5372 = vmatpush1.msra.mxu0 0.0
    %5373 = vmatprep.subr.mxu0 0.0
    %5374 = vmatpush1.msra.mxu0 0.0
    %5375 = vmatprep.subr.mxu0 0.0
    %5376 = vmatpush1.msra.mxu0 0.0
    %5377 = vmatprep.subr.mxu0 0.0
    %5378 = vmatpush1.msra.mxu0 0.0
    %5379 = vmatprep.subr.mxu0 0.0
    %5380 = vmatpush1.msra.mxu0 0.0
    %5381 = vmatprep.subr.mxu0 0.0
    %5382 = vmatpush1.msra.mxu0 0.0
    %5383 = vmatprep.subr.mxu0 0.0
    %5384 = vmatpush1.msra.mxu0 0.0
    %5385 = vmatprep.subr.mxu0 0.0
    %5386 = vmatpush1.msra.mxu0 0.0
    %5387 = vmatprep.subr.mxu0 0.0
    %5388 = vmatpush1.msra.mxu0 0.0
    %5389 = vmatprep.subr.mxu0 0.0
    %5390 = vmatpush1.msra.mxu0 0.0
    %5391 = vmatprep.subr.mxu0 0.0
    %5392 = vmatpush1.msra.mxu0 0.0
    %5393 = vmatprep.subr.mxu0 0.0
    %5394 = vmatpush1.msra.mxu0 0.0
    %5395 = vmatprep.subr.mxu0 0.0
    %5396 = vmatpush1.msra.mxu0 0.0
    %5397 = vmatprep.subr.mxu0 0.0
    %5398 = vmatpush1.msra.mxu0 0.0
    %5399 = vmatprep.subr.mxu0 0.0
    %5400 = vmatpush1.msra.mxu0 0.0
    %5401 = vmatprep.mubr.f32.mxu0 0.0
    %5402 = vmatmul.mubr.f32.gmra.mrb[0].mxu0 %v5264
    %v5403 = vpop.f32.mrb[0].mxu0
    %v5404 = vadd.f32 0.0, %v5403
    %v5405 = vpop.f32.mrb[0].mxu0
    %v5406 = vadd.f32 0.0, %v5405
    %5407 = vdwg.mxu0
    %v5408 = vadd.f32 %v5241, %v5333
    %v5409 = vadd.f32 %v5242, %v5335
    %v5410 = vadd.f32 %v5243, %v5404
    %v5411 = vadd.f32 %v5244, %v5406
    %5412 = vrot.lane.b32.xlu0 %v4263, 112
    %v5413 = vpop.permute.xlu0 %5412
    %5414 = vrot.lane.b32.xlu0 %v4264, 112
    %v5415 = vpop.permute.xlu0 %5414
    %5416 = vrot.lane.b32.xlu0 %v4265, 112
    %v5417 = vpop.permute.xlu0 %5416
    %5418 = vrot.lane.b32.xlu0 %v4266, 112
    %v5419 = vpop.permute.xlu0 %5418
    %v5420 = vsel %vm1524, %v5417, %v5419
    %v5421 = vsel %vm1524, %v5415, %v5417
    %v5422 = vsel %vm1524, %v5413, %v5415
    %v5423 = vsel %vm1524, %v5419, %v5413
    %v5424 = vmul.f32 %v5422, %v1535
    %v5425 = vmul.f32 %v5421, %v1539
    %v5426 = vmul.f32 %v5420, %v1543
    %v5427 = vmul.f32 %v5423, %v1547
    %s5428 = scalar_lea.vmem %s1, 240
    %v5429 = vld [vmem:[%s5428] sm:$0xff]
    %v5431 = vsel %vm34, %v5429, 0
    %5433 = vmatprep.subr.mxu0 %v5425
    %5434 = vmatpush1.msra.mxu0 %v5424
    %5435 = vmatprep.subr.mxu0 0.0
    %5436 = vmatpush1.msra.mxu0 0.0
    %5437 = vmatprep.subr.mxu0 0.0
    %5438 = vmatpush1.msra.mxu0 0.0
    %5439 = vmatprep.subr.mxu0 0.0
    %5440 = vmatpush1.msra.mxu0 0.0
    %5441 = vmatprep.subr.mxu0 0.0
    %5442 = vmatpush1.msra.mxu0 0.0
    %5443 = vmatprep.subr.mxu0 0.0
    %5444 = vmatpush1.msra.mxu0 0.0
    %5445 = vmatprep.subr.mxu0 0.0
    %5446 = vmatpush1.msra.mxu0 0.0
    %5447 = vmatprep.subr.mxu0 0.0
    %5448 = vmatpush1.msra.mxu0 0.0
    %5449 = vmatprep.subr.mxu0 0.0
    %5450 = vmatpush1.msra.mxu0 0.0
    %5451 = vmatprep.subr.mxu0 0.0
    %5452 = vmatpush1.msra.mxu0 0.0
    %5453 = vmatprep.subr.mxu0 0.0
    %5454 = vmatpush1.msra.mxu0 0.0
    %5455 = vmatprep.subr.mxu0 0.0
    %5456 = vmatpush1.msra.mxu0 0.0
    %5457 = vmatprep.subr.mxu0 0.0
    %5458 = vmatpush1.msra.mxu0 0.0
    %5459 = vmatprep.subr.mxu0 0.0
    %5460 = vmatpush1.msra.mxu0 0.0
    %5461 = vmatprep.subr.mxu0 0.0
    %5462 = vmatpush1.msra.mxu0 0.0
    %5463 = vmatprep.subr.mxu0 0.0
    %5464 = vmatpush1.msra.mxu0 0.0
    %5465 = vmatprep.subr.mxu0 0.0
    %5466 = vmatpush1.msra.mxu0 0.0
    %5467 = vmatprep.subr.mxu0 0.0
    %5468 = vmatpush1.msra.mxu0 0.0
    %5469 = vmatprep.subr.mxu0 0.0
    %5470 = vmatpush1.msra.mxu0 0.0
    %5471 = vmatprep.subr.mxu0 0.0
    %5472 = vmatpush1.msra.mxu0 0.0
    %5473 = vmatprep.subr.mxu0 0.0
    %5474 = vmatpush1.msra.mxu0 0.0
    %5475 = vmatprep.subr.mxu0 0.0
    %5476 = vmatpush1.msra.mxu0 0.0
    %5477 = vmatprep.subr.mxu0 0.0
    %5478 = vmatpush1.msra.mxu0 0.0
    %5479 = vmatprep.subr.mxu0 0.0
    %5480 = vmatpush1.msra.mxu0 0.0
    %5481 = vmatprep.subr.mxu0 0.0
    %5482 = vmatpush1.msra.mxu0 0.0
    %5483 = vmatprep.subr.mxu0 0.0
    %5484 = vmatpush1.msra.mxu0 0.0
    %5485 = vmatprep.subr.mxu0 0.0
    %5486 = vmatpush1.msra.mxu0 0.0
    %5487 = vmatprep.subr.mxu0 0.0
    %5488 = vmatpush1.msra.mxu0 0.0
    %5489 = vmatprep.subr.mxu0 0.0
    %5490 = vmatpush1.msra.mxu0 0.0
    %5491 = vmatprep.subr.mxu0 0.0
    %5492 = vmatpush1.msra.mxu0 0.0
    %5493 = vmatprep.subr.mxu0 0.0
    %5494 = vmatpush1.msra.mxu0 0.0
    %5495 = vmatprep.subr.mxu0 0.0
    %5496 = vmatpush1.msra.mxu0 0.0
    %5497 = vmatprep.mubr.f32.mxu0 0.0
    %5498 = vmatmul.mubr.f32.gmra.mrb[0].mxu0 %v5431
    %v5499 = vpop.f32.mrb[0].mxu0
    %v5500 = vadd.f32 0.0, %v5499
    %v5501 = vpop.f32.mrb[0].mxu0
    %v5502 = vadd.f32 0.0, %v5501
    %5503 = vdwg.mxu0
    %5504 = vmatprep.subr.mxu0 %v5427
    %5505 = vmatpush1.msra.mxu0 %v5426
    %5506 = vmatprep.subr.mxu0 0.0
    %5507 = vmatpush1.msra.mxu0 0.0
    %5508 = vmatprep.subr.mxu0 0.0
    %5509 = vmatpush1.msra.mxu0 0.0
    %5510 = vmatprep.subr.mxu0 0.0
    %5511 = vmatpush1.msra.mxu0 0.0
    %5512 = vmatprep.subr.mxu0 0.0
    %5513 = vmatpush1.msra.mxu0 0.0
    %5514 = vmatprep.subr.mxu0 0.0
    %5515 = vmatpush1.msra.mxu0 0.0
    %5516 = vmatprep.subr.mxu0 0.0
    %5517 = vmatpush1.msra.mxu0 0.0
    %5518 = vmatprep.subr.mxu0 0.0
    %5519 = vmatpush1.msra.mxu0 0.0
    %5520 = vmatprep.subr.mxu0 0.0
    %5521 = vmatpush1.msra.mxu0 0.0
    %5522 = vmatprep.subr.mxu0 0.0
    %5523 = vmatpush1.msra.mxu0 0.0
    %5524 = vmatprep.subr.mxu0 0.0
    %5525 = vmatpush1.msra.mxu0 0.0
    %5526 = vmatprep.subr.mxu0 0.0
    %5527 = vmatpush1.msra.mxu0 0.0
    %5528 = vmatprep.subr.mxu0 0.0
    %5529 = vmatpush1.msra.mxu0 0.0
    %5530 = vmatprep.subr.mxu0 0.0
    %5531 = vmatpush1.msra.mxu0 0.0
    %5532 = vmatprep.subr.mxu0 0.0
    %5533 = vmatpush1.msra.mxu0 0.0
    %5534 = vmatprep.subr.mxu0 0.0
    %5535 = vmatpush1.msra.mxu0 0.0
    %5536 = vmatprep.subr.mxu0 0.0
    %5537 = vmatpush1.msra.mxu0 0.0
    %5538 = vmatprep.subr.mxu0 0.0
    %5539 = vmatpush1.msra.mxu0 0.0
    %5540 = vmatprep.subr.mxu0 0.0
    %5541 = vmatpush1.msra.mxu0 0.0
    %5542 = vmatprep.subr.mxu0 0.0
    %5543 = vmatpush1.msra.mxu0 0.0
    %5544 = vmatprep.subr.mxu0 0.0
    %5545 = vmatpush1.msra.mxu0 0.0
    %5546 = vmatprep.subr.mxu0 0.0
    %5547 = vmatpush1.msra.mxu0 0.0
    %5548 = vmatprep.subr.mxu0 0.0
    %5549 = vmatpush1.msra.mxu0 0.0
    %5550 = vmatprep.subr.mxu0 0.0
    %5551 = vmatpush1.msra.mxu0 0.0
    %5552 = vmatprep.subr.mxu0 0.0
    %5553 = vmatpush1.msra.mxu0 0.0
    %5554 = vmatprep.subr.mxu0 0.0
    %5555 = vmatpush1.msra.mxu0 0.0
    %5556 = vmatprep.subr.mxu0 0.0
    %5557 = vmatpush1.msra.mxu0 0.0
    %5558 = vmatprep.subr.mxu0 0.0
    %5559 = vmatpush1.msra.mxu0 0.0
    %5560 = vmatprep.subr.mxu0 0.0
    %5561 = vmatpush1.msra.mxu0 0.0
    %5562 = vmatprep.subr.mxu0 0.0
    %5563 = vmatpush1.msra.mxu0 0.0
    %5564 = vmatprep.subr.mxu0 0.0
    %5565 = vmatpush1.msra.mxu0 0.0
    %5566 = vmatprep.subr.mxu0 0.0
    %5567 = vmatpush1.msra.mxu0 0.0
    %5568 = vmatprep.mubr.f32.mxu0 0.0
    %5569 = vmatmul.mubr.f32.gmra.mrb[0].mxu0 %v5431
    %v5570 = vpop.f32.mrb[0].mxu0
    %v5571 = vadd.f32 0.0, %v5570
    %v5572 = vpop.f32.mrb[0].mxu0
    %v5573 = vadd.f32 0.0, %v5572
    %5574 = vdwg.mxu0
    %v5575 = vadd.f32 %v5408, %v5500
    %v5576 = vadd.f32 %v5409, %v5502
    %v5577 = vadd.f32 %v5410, %v5571
    %v5578 = vadd.f32 %v5411, %v5573
    %5579 = vrot.lane.b32.xlu0 %v4263, 111
    %v5580 = vpop.permute.xlu0 %5579
    %5581 = vrot.lane.b32.xlu0 %v4264, 111
    %v5582 = vpop.permute.xlu0 %5581
    %5583 = vrot.lane.b32.xlu0 %v4265, 111
    %v5584 = vpop.permute.xlu0 %5583
    %5585 = vrot.lane.b32.xlu0 %v4266, 111
    %v5586 = vpop.permute.xlu0 %5585
    %v5587 = vsel %vm1715, %v5584, %v5586
    %v5588 = vsel %vm1715, %v5582, %v5584
    %v5589 = vsel %vm1715, %v5580, %v5582
    %v5590 = vsel %vm1715, %v5586, %v5580
    %v5591 = vmul.f32 %v5589, %v1726
    %v5592 = vmul.f32 %v5588, %v1730
    %v5593 = vmul.f32 %v5587, %v1734
    %v5594 = vmul.f32 %v5590, %v1738
    %s5595 = scalar_lea.vmem %s1, 248
    %v5596 = vld [vmem:[%s5595] sm:$0xff]
    %v5598 = vsel %vm34, %v5596, 0
    %5600 = vmatprep.subr.mxu0 %v5592
    %5601 = vmatpush1.msra.mxu0 %v5591
    %5602 = vmatprep.subr.mxu0 0.0
    %5603 = vmatpush1.msra.mxu0 0.0
    %5604 = vmatprep.subr.mxu0 0.0
    %5605 = vmatpush1.msra.mxu0 0.0
    %5606 = vmatprep.subr.mxu0 0.0
    %5607 = vmatpush1.msra.mxu0 0.0
    %5608 = vmatprep.subr.mxu0 0.0
    %5609 = vmatpush1.msra.mxu0 0.0
    %5610 = vmatprep.subr.mxu0 0.0
    %5611 = vmatpush1.msra.mxu0 0.0
    %5612 = vmatprep.subr.mxu0 0.0
    %5613 = vmatpush1.msra.mxu0 0.0
    %5614 = vmatprep.subr.mxu0 0.0
    %5615 = vmatpush1.msra.mxu0 0.0
    %5616 = vmatprep.subr.mxu0 0.0
    %5617 = vmatpush1.msra.mxu0 0.0
    %5618 = vmatprep.subr.mxu0 0.0
    %5619 = vmatpush1.msra.mxu0 0.0
    %5620 = vmatprep.subr.mxu0 0.0
    %5621 = vmatpush1.msra.mxu0 0.0
    %5622 = vmatprep.subr.mxu0 0.0
    %5623 = vmatpush1.msra.mxu0 0.0
    %5624 = vmatprep.subr.mxu0 0.0
    %5625 = vmatpush1.msra.mxu0 0.0
    %5626 = vmatprep.subr.mxu0 0.0
    %5627 = vmatpush1.msra.mxu0 0.0
    %5628 = vmatprep.subr.mxu0 0.0
    %5629 = vmatpush1.msra.mxu0 0.0
    %5630 = vmatprep.subr.mxu0 0.0
    %5631 = vmatpush1.msra.mxu0 0.0
    %5632 = vmatprep.subr.mxu0 0.0
    %5633 = vmatpush1.msra.mxu0 0.0
    %5634 = vmatprep.subr.mxu0 0.0
    %5635 = vmatpush1.msra.mxu0 0.0
    %5636 = vmatprep.subr.mxu0 0.0
    %5637 = vmatpush1.msra.mxu0 0.0
    %5638 = vmatprep.subr.mxu0 0.0
    %5639 = vmatpush1.msra.mxu0 0.0
    %5640 = vmatprep.subr.mxu0 0.0
    %5641 = vmatpush1.msra.mxu0 0.0
    %5642 = vmatprep.subr.mxu0 0.0
    %5643 = vmatpush1.msra.mxu0 0.0
    %5644 = vmatprep.subr.mxu0 0.0
    %5645 = vmatpush1.msra.mxu0 0.0
    %5646 = vmatprep.subr.mxu0 0.0
    %5647 = vmatpush1.msra.mxu0 0.0
    %5648 = vmatprep.subr.mxu0 0.0
    %5649 = vmatpush1.msra.mxu0 0.0
    %5650 = vmatprep.subr.mxu0 0.0
    %5651 = vmatpush1.msra.mxu0 0.0
    %5652 = vmatprep.subr.mxu0 0.0
    %5653 = vmatpush1.msra.mxu0 0.0
    %5654 = vmatprep.subr.mxu0 0.0
    %5655 = vmatpush1.msra.mxu0 0.0
    %5656 = vmatprep.subr.mxu0 0.0
    %5657 = vmatpush1.msra.mxu0 0.0
    %5658 = vmatprep.subr.mxu0 0.0
    %5659 = vmatpush1.msra.mxu0 0.0
    %5660 = vmatprep.subr.mxu0 0.0
    %5661 = vmatpush1.msra.mxu0 0.0
    %5662 = vmatprep.subr.mxu0 0.0
    %5663 = vmatpush1.msra.mxu0 0.0
    %5664 = vmatprep.mubr.f32.mxu0 0.0
    %5665 = vmatmul.mubr.f32.gmra.mrb[0].mxu0 %v5598
    %v5666 = vpop.f32.mrb[0].mxu0
    %v5667 = vadd.f32 0.0, %v5666
    %v5668 = vpop.f32.mrb[0].mxu0
    %v5669 = vadd.f32 0.0, %v5668
    %5670 = vdwg.mxu0
    %5671 = vmatprep.subr.mxu0 %v5594
    %5672 = vmatpush1.msra.mxu0 %v5593
    %5673 = vmatprep.subr.mxu0 0.0
    %5674 = vmatpush1.msra.mxu0 0.0
    %5675 = vmatprep.subr.mxu0 0.0
    %5676 = vmatpush1.msra.mxu0 0.0
    %5677 = vmatprep.subr.mxu0 0.0
    %5678 = vmatpush1.msra.mxu0 0.0
    %5679 = vmatprep.subr.mxu0 0.0
    %5680 = vmatpush1.msra.mxu0 0.0
    %5681 = vmatprep.subr.mxu0 0.0
    %5682 = vmatpush1.msra.mxu0 0.0
    %5683 = vmatprep.subr.mxu0 0.0
    %5684 = vmatpush1.msra.mxu0 0.0
    %5685 = vmatprep.subr.mxu0 0.0
    %5686 = vmatpush1.msra.mxu0 0.0
    %5687 = vmatprep.subr.mxu0 0.0
    %5688 = vmatpush1.msra.mxu0 0.0
    %5689 = vmatprep.subr.mxu0 0.0
    %5690 = vmatpush1.msra.mxu0 0.0
    %5691 = vmatprep.subr.mxu0 0.0
    %5692 = vmatpush1.msra.mxu0 0.0
    %5693 = vmatprep.subr.mxu0 0.0
    %5694 = vmatpush1.msra.mxu0 0.0
    %5695 = vmatprep.subr.mxu0 0.0
    %5696 = vmatpush1.msra.mxu0 0.0
    %5697 = vmatprep.subr.mxu0 0.0
    %5698 = vmatpush1.msra.mxu0 0.0
    %5699 = vmatprep.subr.mxu0 0.0
    %5700 = vmatpush1.msra.mxu0 0.0
    %5701 = vmatprep.subr.mxu0 0.0
    %5702 = vmatpush1.msra.mxu0 0.0
    %5703 = vmatprep.subr.mxu0 0.0
    %5704 = vmatpush1.msra.mxu0 0.0
    %5705 = vmatprep.subr.mxu0 0.0
    %5706 = vmatpush1.msra.mxu0 0.0
    %5707 = vmatprep.subr.mxu0 0.0
    %5708 = vmatpush1.msra.mxu0 0.0
    %5709 = vmatprep.subr.mxu0 0.0
    %5710 = vmatpush1.msra.mxu0 0.0
    %5711 = vmatprep.subr.mxu0 0.0
    %5712 = vmatpush1.msra.mxu0 0.0
    %5713 = vmatprep.subr.mxu0 0.0
    %5714 = vmatpush1.msra.mxu0 0.0
    %5715 = vmatprep.subr.mxu0 0.0
    %5716 = vmatpush1.msra.mxu0 0.0
    %5717 = vmatprep.subr.mxu0 0.0
    %5718 = vmatpush1.msra.mxu0 0.0
    %5719 = vmatprep.subr.mxu0 0.0
    %5720 = vmatpush1.msra.mxu0 0.0
    %5721 = vmatprep.subr.mxu0 0.0
    %5722 = vmatpush1.msra.mxu0 0.0
    %5723 = vmatprep.subr.mxu0 0.0
    %5724 = vmatpush1.msra.mxu0 0.0
    %5725 = vmatprep.subr.mxu0 0.0
    %5726 = vmatpush1.msra.mxu0 0.0
    %5727 = vmatprep.subr.mxu0 0.0
    %5728 = vmatpush1.msra.mxu0 0.0
    %5729 = vmatprep.subr.mxu0 0.0
    %5730 = vmatpush1.msra.mxu0 0.0
    %5731 = vmatprep.subr.mxu0 0.0
    %5732 = vmatpush1.msra.mxu0 0.0
    %5733 = vmatprep.subr.mxu0 0.0
    %5734 = vmatpush1.msra.mxu0 0.0
    %5735 = vmatprep.mubr.f32.mxu0 0.0
    %5736 = vmatmul.mubr.f32.gmra.mrb[0].mxu0 %v5598
    %v5737 = vpop.f32.mrb[0].mxu0
    %v5738 = vadd.f32 0.0, %v5737
    %v5739 = vpop.f32.mrb[0].mxu0
    %v5740 = vadd.f32 0.0, %v5739
    %5741 = vdwg.mxu0
    %v5742 = vadd.f32 %v5575, %v5667
    %v5743 = vadd.f32 %v5576, %v5669
    %v5744 = vadd.f32 %v5577, %v5738
    %v5745 = vadd.f32 %v5578, %v5740
    %v5746 = vadd.f32 %v5742, %v5743
    %v5747 = vadd.f32 %v5746, %v5744
    %v5748 = vadd.f32 %v5747, %v5745
    %5749 = vadd.xlane.f32.xlu0 %v5748
    %v5750 = vpop.xlane.xlu0 %5749
    %v5751 = vmul.f32 %v5750, %v185
    %v5752 = vsub.f32 %v5742, %v5751
    %v5753 = vsub.f32 %v5743, %v5751
    %v5754 = vsub.f32 %v5744, %v5751
    %v5755 = vsub.f32 %v5745, %v5751
    %v5756 = vmul.f32 %v5752, %v5752
    %v5757 = vmul.f32 %v5753, %v5753
    %v5758 = vmul.f32 %v5754, %v5754
    %v5759 = vmul.f32 %v5755, %v5755
    %v5760 = vadd.f32 %v5756, %v5757
    %v5761 = vadd.f32 %v5760, %v5758
    %v5762 = vadd.f32 %v5761, %v5759
    %5763 = vadd.xlane.f32.xlu0 %v5762
    %v5764 = vpop.xlane.xlu0 %5763
    %v5765 = vmul.f32 %v5764, %v185
    %v5766 = vadd.f32 %v5765, 1e-05
    %v5767 = vrsqrt.pop %v5766
    %v5768 = vmul.f32 %v5767, %v4068
    %5770 = vset.pattern.permute.xlu0 0
    %5771 = vperm.xlu0 %5770, %v5768
    %v5772 = vpop.permute.xlu0 %5771
    %v5774 = vmul.f32 %v5752, %v5772
    %v5775 = vmul.f32 %v5753, %v5772
    %v5776 = vmul.f32 %v5754, %v5772
    %v5777 = vmul.f32 %v5755, %v5772
    %5779 = vset.pattern.permute.xlu0 0
    %5780 = vperm.xlu0 %5779, %v4070
    %v5781 = vpop.permute.xlu0 %5780
    %v5783 = vadd.f32 %v5774, %v5781
    %v5784 = vadd.f32 %v5775, %v5781
    %v5785 = vadd.f32 %v5776, %v5781
    %v5786 = vadd.f32 %v5777, %v5781
    %v5787 = vmax.f32 %v5783, 0.0
    %v5788 = vmax.f32 %v5784, 0.0
    %v5789 = vmax.f32 %v5785, 0.0
    %v5790 = vmax.f32 %v5786, 0.0
    %s5791 = scalar_lea.vmem %s1, 256
    %v5792 = vld [vmem:[%s5791] sm:$0xff]
    %v5794 = vsel %vm34, %v5792, 0
    %5796 = vmatprep.subr.mxu0 %v5788
    %5797 = vmatpush1.msra.mxu0 %v5787
    %5798 = vmatprep.subr.mxu0 0.0
    %5799 = vmatpush1.msra.mxu0 0.0
    %5800 = vmatprep.subr.mxu0 0.0
    %5801 = vmatpush1.msra.mxu0 0.0
    %5802 = vmatprep.subr.mxu0 0.0
    %5803 = vmatpush1.msra.mxu0 0.0
    %5804 = vmatprep.subr.mxu0 0.0
    %5805 = vmatpush1.msra.mxu0 0.0
    %5806 = vmatprep.subr.mxu0 0.0
    %5807 = vmatpush1.msra.mxu0 0.0
    %5808 = vmatprep.subr.mxu0 0.0
    %5809 = vmatpush1.msra.mxu0 0.0
    %5810 = vmatprep.subr.mxu0 0.0
    %5811 = vmatpush1.msra.mxu0 0.0
    %5812 = vmatprep.subr.mxu0 0.0
    %5813 = vmatpush1.msra.mxu0 0.0
    %5814 = vmatprep.subr.mxu0 0.0
    %5815 = vmatpush1.msra.mxu0 0.0
    %5816 = vmatprep.subr.mxu0 0.0
    %5817 = vmatpush1.msra.mxu0 0.0
    %5818 = vmatprep.subr.mxu0 0.0
    %5819 = vmatpush1.msra.mxu0 0.0
    %5820 = vmatprep.subr.mxu0 0.0
    %5821 = vmatpush1.msra.mxu0 0.0
    %5822 = vmatprep.subr.mxu0 0.0
    %5823 = vmatpush1.msra.mxu0 0.0
    %5824 = vmatprep.subr.mxu0 0.0
    %5825 = vmatpush1.msra.mxu0 0.0
    %5826 = vmatprep.subr.mxu0 0.0
    %5827 = vmatpush1.msra.mxu0 0.0
    %5828 = vmatprep.subr.mxu0 0.0
    %5829 = vmatpush1.msra.mxu0 0.0
    %5830 = vmatprep.subr.mxu0 0.0
    %5831 = vmatpush1.msra.mxu0 0.0
    %5832 = vmatprep.subr.mxu0 0.0
    %5833 = vmatpush1.msra.mxu0 0.0
    %5834 = vmatprep.subr.mxu0 0.0
    %5835 = vmatpush1.msra.mxu0 0.0
    %5836 = vmatprep.subr.mxu0 0.0
    %5837 = vmatpush1.msra.mxu0 0.0
    %5838 = vmatprep.subr.mxu0 0.0
    %5839 = vmatpush1.msra.mxu0 0.0
    %5840 = vmatprep.subr.mxu0 0.0
    %5841 = vmatpush1.msra.mxu0 0.0
    %5842 = vmatprep.subr.mxu0 0.0
    %5843 = vmatpush1.msra.mxu0 0.0
    %5844 = vmatprep.subr.mxu0 0.0
    %5845 = vmatpush1.msra.mxu0 0.0
    %5846 = vmatprep.subr.mxu0 0.0
    %5847 = vmatpush1.msra.mxu0 0.0
    %5848 = vmatprep.subr.mxu0 0.0
    %5849 = vmatpush1.msra.mxu0 0.0
    %5850 = vmatprep.subr.mxu0 0.0
    %5851 = vmatpush1.msra.mxu0 0.0
    %5852 = vmatprep.subr.mxu0 0.0
    %5853 = vmatpush1.msra.mxu0 0.0
    %5854 = vmatprep.subr.mxu0 0.0
    %5855 = vmatpush1.msra.mxu0 0.0
    %5856 = vmatprep.subr.mxu0 0.0
    %5857 = vmatpush1.msra.mxu0 0.0
    %5858 = vmatprep.subr.mxu0 0.0
    %5859 = vmatpush1.msra.mxu0 0.0
    %5860 = vmatprep.mubr.f32.mxu0 0.0
    %5861 = vmatmul.mubr.f32.gmra.mrb[0].mxu0 %v5794
    %v5862 = vpop.f32.mrb[0].mxu0
    %v5863 = vadd.f32 0.0, %v5862
    %v5864 = vpop.f32.mrb[0].mxu0
    %v5865 = vadd.f32 0.0, %v5864
    %5866 = vdwg.mxu0
    %5867 = vmatprep.subr.mxu0 %v5790
    %5868 = vmatpush1.msra.mxu0 %v5789
    %5869 = vmatprep.subr.mxu0 0.0
    %5870 = vmatpush1.msra.mxu0 0.0
    %5871 = vmatprep.subr.mxu0 0.0
    %5872 = vmatpush1.msra.mxu0 0.0
    %5873 = vmatprep.subr.mxu0 0.0
    %5874 = vmatpush1.msra.mxu0 0.0
    %5875 = vmatprep.subr.mxu0 0.0
    %5876 = vmatpush1.msra.mxu0 0.0
    %5877 = vmatprep.subr.mxu0 0.0
    %5878 = vmatpush1.msra.mxu0 0.0
    %5879 = vmatprep.subr.mxu0 0.0
    %5880 = vmatpush1.msra.mxu0 0.0
    %5881 = vmatprep.subr.mxu0 0.0
    %5882 = vmatpush1.msra.mxu0 0.0
    %5883 = vmatprep.subr.mxu0 0.0
    %5884 = vmatpush1.msra.mxu0 0.0
    %5885 = vmatprep.subr.mxu0 0.0
    %5886 = vmatpush1.msra.mxu0 0.0
    %5887 = vmatprep.subr.mxu0 0.0
    %5888 = vmatpush1.msra.mxu0 0.0
    %5889 = vmatprep.subr.mxu0 0.0
    %5890 = vmatpush1.msra.mxu0 0.0
    %5891 = vmatprep.subr.mxu0 0.0
    %5892 = vmatpush1.msra.mxu0 0.0
    %5893 = vmatprep.subr.mxu0 0.0
    %5894 = vmatpush1.msra.mxu0 0.0
    %5895 = vmatprep.subr.mxu0 0.0
    %5896 = vmatpush1.msra.mxu0 0.0
    %5897 = vmatprep.subr.mxu0 0.0
    %5898 = vmatpush1.msra.mxu0 0.0
    %5899 = vmatprep.subr.mxu0 0.0
    %5900 = vmatpush1.msra.mxu0 0.0
    %5901 = vmatprep.subr.mxu0 0.0
    %5902 = vmatpush1.msra.mxu0 0.0
    %5903 = vmatprep.subr.mxu0 0.0
    %5904 = vmatpush1.msra.mxu0 0.0
    %5905 = vmatprep.subr.mxu0 0.0
    %5906 = vmatpush1.msra.mxu0 0.0
    %5907 = vmatprep.subr.mxu0 0.0
    %5908 = vmatpush1.msra.mxu0 0.0
    %5909 = vmatprep.subr.mxu0 0.0
    %5910 = vmatpush1.msra.mxu0 0.0
    %5911 = vmatprep.subr.mxu0 0.0
    %5912 = vmatpush1.msra.mxu0 0.0
    %5913 = vmatprep.subr.mxu0 0.0
    %5914 = vmatpush1.msra.mxu0 0.0
    %5915 = vmatprep.subr.mxu0 0.0
    %5916 = vmatpush1.msra.mxu0 0.0
    %5917 = vmatprep.subr.mxu0 0.0
    %5918 = vmatpush1.msra.mxu0 0.0
    %5919 = vmatprep.subr.mxu0 0.0
    %5920 = vmatpush1.msra.mxu0 0.0
    %5921 = vmatprep.subr.mxu0 0.0
    %5922 = vmatpush1.msra.mxu0 0.0
    %5923 = vmatprep.subr.mxu0 0.0
    %5924 = vmatpush1.msra.mxu0 0.0
    %5925 = vmatprep.subr.mxu0 0.0
    %5926 = vmatpush1.msra.mxu0 0.0
    %5927 = vmatprep.subr.mxu0 0.0
    %5928 = vmatpush1.msra.mxu0 0.0
    %5929 = vmatprep.subr.mxu0 0.0
    %5930 = vmatpush1.msra.mxu0 0.0
    %5931 = vmatprep.mubr.f32.mxu0 0.0
    %5932 = vmatmul.mubr.f32.gmra.mrb[0].mxu0 %v5794
    %v5933 = vpop.f32.mrb[0].mxu0
    %v5934 = vadd.f32 0.0, %v5933
    %v5935 = vpop.f32.mrb[0].mxu0
    %v5936 = vadd.f32 0.0, %v5935
    %5937 = vdwg.mxu0
    %v5938 = vadd.f32 %v5787, %v5863
    %v5939 = vadd.f32 %v5788, %v5865
    %v5940 = vadd.f32 %v5789, %v5934
    %v5941 = vadd.f32 %v5790, %v5936
    %v5942 = vadd.f32 %v5938, %v5939
    %v5943 = vadd.f32 %v5942, %v5940
    %v5944 = vadd.f32 %v5943, %v5941
    %5945 = vadd.xlane.f32.xlu0 %v5944
    %v5946 = vpop.xlane.xlu0 %5945
    %v5947 = vmul.f32 %v5946, %v185
    %v5948 = vsub.f32 %v5938, %v5947
    %v5949 = vsub.f32 %v5939, %v5947
    %v5950 = vsub.f32 %v5940, %v5947
    %v5951 = vsub.f32 %v5941, %v5947
    %v5952 = vmul.f32 %v5948, %v5948
    %v5953 = vmul.f32 %v5949, %v5949
    %v5954 = vmul.f32 %v5950, %v5950
    %v5955 = vmul.f32 %v5951, %v5951
    %v5956 = vadd.f32 %v5952, %v5953
    %v5957 = vadd.f32 %v5956, %v5954
    %v5958 = vadd.f32 %v5957, %v5955
    %5959 = vadd.xlane.f32.xlu0 %v5958
    %v5960 = vpop.xlane.xlu0 %5959
    %v5961 = vmul.f32 %v5960, %v185
    %v5962 = vadd.f32 %v5961, 1e-05
    %v5963 = vrsqrt.pop %v5962
    %v5964 = vmul.f32 %v5963, %v4072
    %5966 = vset.pattern.permute.xlu0 0
    %5967 = vperm.xlu0 %5966, %v5964
    %v5968 = vpop.permute.xlu0 %5967
    %v5970 = vmul.f32 %v5948, %v5968
    %v5971 = vmul.f32 %v5949, %v5968
    %v5972 = vmul.f32 %v5950, %v5968
    %v5973 = vmul.f32 %v5951, %v5968
    %5975 = vset.pattern.permute.xlu0 0
    %5976 = vperm.xlu0 %5975, %v4074
    %v5977 = vpop.permute.xlu0 %5976
    %v5979 = vadd.f32 %v5970, %v5977
    %v5980 = vadd.f32 %v5971, %v5977
    %v5981 = vadd.f32 %v5972, %v5977
    %v5982 = vadd.f32 %v5973, %v5977
    %v5983 = vmax.f32 %v5979, 0.0
    %v5984 = vmax.f32 %v5980, 0.0
    %v5985 = vmax.f32 %v5981, 0.0
    %v5986 = vmax.f32 %v5982, 0.0
    %v5987 = vlaneseq
    %v5988 = vshrl.u32 %v5987, 7
    %vm5989 = vcmp.lt.s32.totalorder %v5988, 4
    %v5990 = vmax.f32 %v5983, %v5984
    %5991 = vmax.xlane.f32.xlu0 %v5990
    %v5992 = vpop.xlane.xlu0 %5991
    %v5993 = vsub.f32 %v5983, %v5992
    %v5994 = vsub.f32 %v5984, %v5992
    %v5995 = vmul.f32 %v5993, 1.442695
    %v5996 = vpow.pop %v5995
    %v5997 = vmul.f32 %v5994, 1.442695
    %v5998 = vpow.pop %v5997
    %v5999 = vadd.f32 %v5996, %v5998
    %6000 = vadd.xlane.f32.xlu0 %v5999
    %v6001 = vpop.xlane.xlu0 %6000
    %v6002 = vrcp.pop %v6001
    %v6003 = vmul.f32 %v5996, %v6002
    %v6004 = vmul.f32 %v5998, %v6002
    %v6005 = vsel %vm5989, 1, 0
    %vm6006 = vcmp.eq.s32.totalorder %v6005, 1
    %v6007 = vsel %vm6006, %v6003, %v5983
    %v6008 = vsel %vm6006, %v6004, %v5984
    %6009 = vst [vmem:[#allocation2] sm:$0xff] %v6007
    %6010 = vst [vmem:[#allocation2 + $0x8] sm:$0xff] %v6008
    %v6011 = vmax.f32 %v5985, %v5986
    %6012 = vmax.xlane.f32.xlu0 %v6011
    %v6013 = vpop.xlane.xlu0 %6012
    %v6014 = vsub.f32 %v5985, %v6013
    %v6015 = vsub.f32 %v5986, %v6013
    %v6016 = vmul.f32 %v6014, 1.442695
    %v6017 = vpow.pop %v6016
    %v6018 = vmul.f32 %v6015, 1.442695
    %v6019 = vpow.pop %v6018
    %v6020 = vadd.f32 %v6017, %v6019
    %6021 = vadd.xlane.f32.xlu0 %v6020
    %v6022 = vpop.xlane.xlu0 %6021
    %v6023 = vrcp.pop %v6022
    %v6024 = vmul.f32 %v6017, %v6023
    %v6025 = vmul.f32 %v6019, %v6023
    %v6026 = vsel %vm6006, %v6024, %v5985
    %v6027 = vsel %vm6006, %v6025, %v5986
    %6028 = vst [vmem:[#allocation2 + $0x10] sm:$0xff] %v6026
    %6029 = vst [vmem:[#allocation2 + $0x18] sm:$0xff] %v6027
    // Predicated region
    $region18: #{tpu_custom_call.1} parent=1 // pred_check
      _
    $region19: #{tpu_custom_call.1} parent=1 // pred_check_branch
      %6031 = sbr.rel (0) target = $region21
    $region20: #{tpu_custom_call.1} parent=1 // pred_region
      %s6033 = ssub.s32 512, 512
      %6034 = vsyncadd [#allocation3], %s6033
      %s6036 = sshll.u32 [#allocation2], 4
      %s6037 = int_to_ptr.vmem [resolvable:$true] %s6036
      %6039 = dma.vmem_to_hbm [thread:$0]  %s6037, 512, %s4, [#allocation3]
    $region21: #{tpu_custom_call.1} parent=1 // pred_fallthru
      _
    // Predicated region
    $region22: #{tpu_custom_call.1} parent=1 // pred_check
      _
    $region23: #{tpu_custom_call.1} parent=1 // pred_check_branch
      %6041 = sbr.rel (0) target = $region25
    $region24: #{tpu_custom_call.1} parent=1 // pred_region
      %6042 = dma.done [#allocation3], 512
    $region25: #{tpu_custom_call.1} parent=1 // pred_fallthru
      _
    %6043 = vsyncpa [#allocation3], 1

</llo_original>
